<compile_context>
chip_gen: v7x
topology: tpu7x:2x2x1
jax: 0.10.0
libtpu: 0.0.40
codegen_flags: <defaults>
</compile_context>

<pallas_src>
import functools

import jax
import jax.numpy as jnp
import numpy as np
from jax.experimental import pallas as pl
from jax.experimental.pallas import tpu as pltpu

DIM = 64              # channel dim (PyTorch default 512; small for the demo)
HEADS = 8
HEAD_DIM = DIM // HEADS
HIDDEN = DIM * 4
EXP = HEADS * DIM     # 512: flattened (query-head h, key-head g, head_dim d)
WS = 8                # window size (must divide H and W)
EPS = 1e-5

PACK = 2              # tokens packed per 128-lane row
ROW = PACK * DIM      # 128 lanes per packed row
PEXP = PACK * EXP     # 1024 expanded lanes per packed row
PHID = PACK * HIDDEN  # 512 packed FFN hidden lanes
PSCORE = PACK * HEADS * HEADS   # 128 packed score lanes

_MIB = 1024 * 1024
_BYTES_PER_ROW_EST = 40 * 1024  # conservative live-intermediate bytes per packed row


# -------------------------------- kernel ------------------------------------

def maxvit_block_kernel(x_ref,
                        ln1_g_ref, ln1_b_ref, seg_ref,
                        wqk_ref, bqk_ref, wv_ref, bv_ref,
                        rsum_ref, hsum_ref, pexp_ref,
                        wproj_ref, bproj_ref,
                        ln2_g_ref, ln2_b_ref,
                        w1_ref, b1_ref, w2_ref, b2_ref,
                        o_ref):
    f32, bf16 = jnp.float32, jnp.bfloat16
    x = x_ref[...].astype(f32)                    # (tm, 128): 2 tokens per row
    seg = seg_ref[...]                            # (128, 128) block-diag ones

    def seg_layernorm(t, gamma, beta):
        # Per-64-lane-segment LayerNorm; segment sums run on the MXU.
        mean = jnp.dot(t, seg, preferred_element_type=f32) * (1.0 / DIM)
        c = t - mean
        var = jnp.dot(c * c, seg, preferred_element_type=f32) * (1.0 / DIM)
        return c * jax.lax.rsqrt(var + EPS) * gamma + beta

    # --- attention branch: LN1 -> fused q/k expansion -> head-mix attn -> proj
    xn = seg_layernorm(x, ln1_g_ref[...], ln1_b_ref[...]).astype(bf16)

    # Lane layout of the PEXP axis is (token-slot p, h, g, d); the expansion
    # weights are pre-folded 0/1 gathers, block-diagonalized over token slots.
    qk = (jnp.dot(xn, wqk_ref[...], preferred_element_type=f32)
          + bqk_ref[...]).astype(bf16)            # (tm, 2*PEXP)
    q_exp = qk[:, :PEXP]                          # lane-aligned static slices
    k_exp = qk[:, PEXP:]

    # scores[t, (p, h, g)] = sum_d q*k  (segment-sum over d on the MXU)
    prod = q_exp * k_exp                          # bf16 VPU
    s = jnp.dot(prod, rsum_ref[...], preferred_element_type=f32)   # (tm, 128)

    # Softmax over g (contiguous 8-lane groups): a single per-row max is valid
    # (per-segment shift invariance); denominator is epsilon-guarded so an
    # underflowed segment can never produce inf/NaN from the approx reciprocal.
    m = jnp.max(s, axis=-1, keepdims=True)
    p = jnp.exp(s - m)
    denom = jnp.dot(p.astype(bf16), hsum_ref[...], preferred_element_type=f32)
    p = p * pl.reciprocal(jnp.maximum(denom, 1e-20), approx=True)

    # v expansion deferred here so its (tm, PEXP) slab is not live through the
    # softmax; sum over g + output projection are fused into one (PEXP,128) dot.
    v_exp = (jnp.dot(xn, wv_ref[...], preferred_element_type=f32)
             + bv_ref[...]).astype(bf16)          # (tm, PEXP)
    p_exp = jnp.dot(p.astype(bf16), pexp_ref[...],
                    preferred_element_type=f32).astype(bf16)        # (tm, PEXP)
    w = p_exp * v_exp                             # bf16 VPU
    a = jnp.dot(w, wproj_ref[...], preferred_element_type=f32) + bproj_ref[...]
    x = x + a

    # --- FFN branch: LN2 -> Linear -> ReLU -> Linear (block-diag weights) ---
    xn2 = seg_layernorm(x, ln2_g_ref[...], ln2_b_ref[...]).astype(bf16)
    h = jnp.dot(xn2, w1_ref[...], preferred_element_type=f32) + b1_ref[...]
    h = jnp.maximum(h, 0.0).astype(bf16)
    f = jnp.dot(h, w2_ref[...], preferred_element_type=f32) + b2_ref[...]

    o_ref[...] = (x + f).astype(o_ref.dtype)      # lane-dense (tm, 128) store


# --------------------- constant expansion / fold matrices --------------------

@functools.lru_cache(maxsize=1)
def _expansion_matrices():
    j = np.arange(EXP)
    h = j // (HEADS * HEAD_DIM)
    g = (j // HEAD_DIM) % HEADS
    d = j % HEAD_DIM

    e_q = np.zeros((DIM, EXP), np.float32)      # gathers q[h, d] onto lane j
    e_q[h * HEAD_DIM + d, j] = 1.0
    e_k = np.zeros((DIM, EXP), np.float32)      # gathers k[g, d] / v[g, d]
    e_k[g * HEAD_DIM + d, j] = 1.0
    r_sum = np.zeros((EXP, HEADS * HEADS), np.float32)  # sum over d per (h, g)
    r_sum[j, h * HEADS + g] = 1.0
    e_p = np.ascontiguousarray(r_sum.T)         # broadcasts p[h, g] onto lane j
    r_v = np.ascontiguousarray(e_q.T)           # sums over g onto column h*HD+d
    c = np.arange(HEADS * HEADS)
    h_sum = (c[:, None] // HEADS == c[None, :] // HEADS).astype(np.float32)
    seg = np.kron(np.eye(PACK, dtype=np.float32),
                  np.ones((DIM, DIM), np.float32))       # LN segment-sum (128,128)
    return e_q, e_k, r_sum, e_p, r_v, h_sum, seg


def _blockdiag(m):
    """Duplicate m on the diagonal PACK times (one block per packed token)."""
    m = jnp.asarray(m, jnp.float32)
    r, c = m.shape
    out = jnp.zeros((PACK * r, PACK * c), jnp.float32)
    for i in range(PACK):
        out = out.at[i * r:(i + 1) * r, i * c:(i + 1) * c].set(m)
    return out


def _tile_lanes(b):
    """Tile a (1, n) per-token row vector across the PACK token slots."""
    return jnp.tile(jnp.asarray(b, jnp.float32), (1, PACK))


def _prepare_kernel_inputs(params):
    e_q, e_k, r_sum, e_p, r_v, h_sum, seg = _expansion_matrices()
    bf16, f32 = jnp.bfloat16, jnp.float32
    scale = 1.0 / (HEAD_DIM ** 0.5)

    wqkv, bqkv = params["wqkv"], params["bqkv"]
    wq, wk, wv = wqkv[:, :DIM], wqkv[:, DIM:2 * DIM], wqkv[:, 2 * DIM:]
    bq, bk, bv = bqkv[:, :DIM], bqkv[:, DIM:2 * DIM], bqkv[:, 2 * DIM:]

    # Exact 0/1-gather folds per token, then block-diagonalized over token slots.
    wq_f = (wq * scale) @ e_q
    wk_f = wk @ e_k
    wv_f = wv @ e_k
    bq_f = (bq * scale) @ e_q
    bk_f = bk @ e_k
    bv_f = bv @ e_k
    wproj_f = r_v @ params["wproj"]

    wqk2 = jnp.concatenate([_blockdiag(wq_f), _blockdiag(wk_f)], axis=1)
    bqk2 = jnp.concatenate([_tile_lanes(bq_f), _tile_lanes(bk_f)], axis=1)

    # TODO(synk): at production DIM=512 re-validate the 2e-2 tolerance (bf16
    # rounding grows with the wider EXP contractions).
    return [
        _tile_lanes(params["ln1_g"]), _tile_lanes(params["ln1_b"]),
        jnp.asarray(seg, f32),
        wqk2.astype(bf16), bqk2.astype(f32),
        _blockdiag(wv_f).astype(bf16), _tile_lanes(bv_f).astype(f32),
        _blockdiag(r_sum).astype(bf16), _blockdiag(h_sum).astype(bf16),
        _blockdiag(e_p).astype(bf16),
        _blockdiag(wproj_f).astype(bf16), _tile_lanes(params["bproj"]).astype(f32),
        _tile_lanes(params["ln2_g"]), _tile_lanes(params["ln2_b"]),
        _blockdiag(params["w1"]).astype(bf16), _tile_lanes(params["b1"]).astype(f32),
        _blockdiag(params["w2"]).astype(bf16), _tile_lanes(params["b2"]).astype(f32),
    ]


# -------------------------------- wrapper ------------------------------------

def _vmem_capacity_bytes():
    try:
        return int(pltpu.get_tpu_info().vmem_capacity_bytes)
    except Exception:
        return 64 * _MIB          # v7x-safe fallback


def _pick_tile(n_rows, budget_bytes):
    cands = [t for t in (2048, 1024, 512, 256, 128, 64, 32, 16, 8)
             if n_rows % t == 0]
    if not cands:
        return n_rows             # full-array block: (8,128) rule does not apply
    fitting = [t for t in cands if t * _BYTES_PER_ROW_EST <= budget_bytes]
    if not fitting:
        fitting = [cands[-1]]
    tm = fitting[0]               # largest tile that fits -> fewest grid steps
    grid = n_rows // tm
    if grid > 1 and grid % 2:     # only when tiling anyway, prefer even grid (v7x)
        for t in fitting:
            if (n_rows // t) % 2 == 0:
                tm = t
                break
    return tm


def maxvit_block(x, params):
    B, H, W, C = x.shape
    assert C == DIM and H % WS == 0 and W % WS == 0
    T = B * H * W
    assert T % PACK == 0 and PACK * C == ROW
    rows = x.reshape(T // PACK, ROW)              # pack 2 tokens per 128-lane row
    R = rows.shape[0]

    kparams = _prepare_kernel_inputs(params)
    param_bytes = sum(int(np.prod(p.shape)) * p.dtype.itemsize for p in kparams)

    capacity = _vmem_capacity_bytes()
    budget = max(int(0.5 * capacity) - 2 * param_bytes, 8 * _BYTES_PER_ROW_EST)
    tm = _pick_tile(R, budget)

    io_bytes = 2 * 2 * tm * ROW * x.dtype.itemsize    # double-buffered in + out
    vmem_limit = int(1.25 * (2 * param_bytes + io_bytes + tm * _BYTES_PER_ROW_EST))
    vmem_limit = max(32 * _MIB, min(vmem_limit, int(0.75 * capacity)))

    in_specs = [pl.BlockSpec((tm, ROW), lambda i: (i, 0))]
    # TODO(synk): at production DIM=512, single-buffer these constant-index
    # params (pipeline_mode=pl.Buffered(1)) so double-buffered weights don't
    # blow v7x's smaller VMEM; negligible at DIM=64 so left default here.
    in_specs += [pl.BlockSpec(p.shape, lambda i: (0, 0)) for p in kparams]

    # MXU flops per packed row: 2 * K * N per dot.
    dot_kn = (2 * ROW * ROW            # LN1 segment sums
              + ROW * (2 * PEXP)       # fused q/k expansion
              + PEXP * PSCORE          # score segment-sum
              + PSCORE * PSCORE        # softmax denominator
              + PSCORE * PEXP          # p broadcast onto expanded lanes
              + ROW * PEXP             # v expansion
              + PEXP * ROW             # fused head-merge + proj
              + 2 * ROW * ROW          # LN2 segment sums
              + ROW * PHID + PHID * ROW)   # FFN
    cost = pl.CostEstimate(
        flops=int(R * 2 * dot_kn),
        transcendentals=int(R * 4 * PSCORE),
        bytes_accessed=int(2 * R * ROW * x.dtype.itemsize + param_bytes),
    )

    out = pl.pallas_call(
        maxvit_block_kernel,
        out_shape=jax.ShapeDtypeStruct((R, ROW), x.dtype),
        grid=(R // tm,),
        in_specs=in_specs,
        out_specs=pl.BlockSpec((tm, ROW), lambda i: (i, 0)),
        compiler_params=pltpu.CompilerParams(
            dimension_semantics=("parallel",),
            vmem_limit_bytes=vmem_limit),
        cost_estimate=cost,
    )(rows, *kparams)
    return out.reshape(B, H, W, C)


# ---------------------- deterministic parameter init -------------------------

def init_params(key):
    ks = jax.random.split(key, 8)
    s = 0.02
    return {
        "ln1_g": jnp.ones((1, DIM), jnp.float32),
        "ln1_b": jnp.zeros((1, DIM), jnp.float32),
        "wqkv": s * jax.random.normal(ks[0], (DIM, 3 * DIM), jnp.float32),
        "bqkv": s * jax.random.normal(ks[1], (1, 3 * DIM), jnp.float32),
        "wproj": s * jax.random.normal(ks[2], (DIM, DIM), jnp.float32),
        "bproj": s * jax.random.normal(ks[3], (1, DIM), jnp.float32),
        "ln2_g": jnp.ones((1, DIM), jnp.float32),
        "ln2_b": jnp.zeros((1, DIM), jnp.float32),
        "w1": s * jax.random.normal(ks[4], (DIM, HIDDEN), jnp.float32),
        "b1": s * jax.random.normal(ks[5], (1, HIDDEN), jnp.float32),
        "w2": s * jax.random.normal(ks[6], (HIDDEN, DIM), jnp.float32),
        "b2": s * jax.random.normal(ks[7], (1, DIM), jnp.float32),
    }


# --------------------------- pure-JAX reference -------------------------------

def ref_forward(x, p):
    B, H, W, C = x.shape

    def ln(t, g, b):
        m = t.mean(-1, keepdims=True)
        v = ((t - m) ** 2).mean(-1, keepdims=True)
        return (t - m) / jnp.sqrt(v + EPS) * g + b

    def attn(blocks):                                   # (nB, N, C)
        nB, N, _ = blocks.shape
        qkv = blocks @ p["wqkv"] + p["bqkv"][0]
        qkv = qkv.reshape(nB, N, 3, HEADS, HEAD_DIM)
        q, k, v = qkv[:, :, 0], qkv[:, :, 1], qkv[:, :, 2]
        scores = jnp.einsum("bnhd,bngd->bnhg", q, k) / (HEAD_DIM ** 0.5)
        a = jax.nn.softmax(scores, axis=-1)
        out = jnp.einsum("bnhg,bngd->bnhd", a, v).reshape(nB, N, C)
        return out @ p["wproj"] + p["bproj"][0]

    x_ = ln(x.reshape(B, H * W, C), p["ln1_g"][0], p["ln1_b"][0])
    x_ = x_.reshape(B, H, W, C)
    blocks = x_.reshape(B, H // WS, WS, W // WS, WS, C)
    blocks = blocks.transpose(0, 1, 3, 2, 4, 5).reshape(-1, WS * WS, C)
    out = attn(blocks).reshape(-1, WS, WS, C)
    out = out.reshape(B, H // WS, W // WS, WS, WS, C)
    out = out.transpose(0, 1, 3, 2, 4, 5).reshape(B, H, W, C)
    x = x + out
    x_ = ln(x.reshape(B, H * W, C), p["ln2_g"][0], p["ln2_b"][0])
    h = jnp.maximum(x_ @ p["w1"] + p["b1"][0], 0.0)
    f = h @ p["w2"] + p["b2"][0]
    return x + f.reshape(B, H, W, C)


# ---------------------------------- main -------------------------------------

if __name__ == "__main__":
    B, H, W = 2, 16, 16
    key = jax.random.PRNGKey(0)
    kx, kp = jax.random.split(key)
    x = jax.random.normal(kx, (B, H, W, DIM), dtype=jnp.float32)
    params = init_params(kp)

    out = maxvit_block(x, params)
    jax.block_until_ready(out)

    ref = ref_forward(x, params)
    assert out.shape == (B, H, W, DIM)
    max_err = float(jnp.max(jnp.abs(out - ref)))
    assert max_err < 2e-2, f"max abs err {max_err}"
    print("KERNEL_OK")
</pallas_src>

<mosaic_0001>
module attributes {stable_mosaic.version = 11 : i64} {
  func.func @maxvit_block_kernel(%arg0: i32, %arg1: memref<256x128xf32, #tpu.memory_space<vmem>>, %arg2: memref<1x128xf32, #tpu.memory_space<vmem>>, %arg3: memref<1x128xf32, #tpu.memory_space<vmem>>, %arg4: memref<128x128xf32, #tpu.memory_space<vmem>>, %arg5: memref<128x2048xbf16, #tpu.memory_space<vmem>>, %arg6: memref<1x2048xf32, #tpu.memory_space<vmem>>, %arg7: memref<128x1024xbf16, #tpu.memory_space<vmem>>, %arg8: memref<1x1024xf32, #tpu.memory_space<vmem>>, %arg9: memref<1024x128xbf16, #tpu.memory_space<vmem>>, %arg10: memref<128x128xbf16, #tpu.memory_space<vmem>>, %arg11: memref<128x1024xbf16, #tpu.memory_space<vmem>>, %arg12: memref<1024x128xbf16, #tpu.memory_space<vmem>>, %arg13: memref<1x128xf32, #tpu.memory_space<vmem>>, %arg14: memref<1x128xf32, #tpu.memory_space<vmem>>, %arg15: memref<1x128xf32, #tpu.memory_space<vmem>>, %arg16: memref<128x512xbf16, #tpu.memory_space<vmem>>, %arg17: memref<1x512xf32, #tpu.memory_space<vmem>>, %arg18: memref<512x128xbf16, #tpu.memory_space<vmem>>, %arg19: memref<1x128xf32, #tpu.memory_space<vmem>>, %arg20: memref<256x128xf32, #tpu.memory_space<vmem>>) attributes {dimension_semantics = [#tpu.dimension_semantics<parallel>], iteration_bounds = array<i64: 1>, scalar_prefetch = 0 : i64, scratch_operands = 0 : i64, tpu.core_type = #tpu.core_type<tc>, window_params = [{transform_indices = @transform_0, window_bounds = array<i64: 256, 128>}, {pipeline_mode = #tpu.pipeline_mode<synchronous>, transform_indices = @transform_1, window_bounds = array<i64: 1, 128>}, {pipeline_mode = #tpu.pipeline_mode<synchronous>, transform_indices = @transform_2, window_bounds = array<i64: 1, 128>}, {pipeline_mode = #tpu.pipeline_mode<synchronous>, transform_indices = @transform_3, window_bounds = array<i64: 128, 128>}, {pipeline_mode = #tpu.pipeline_mode<synchronous>, transform_indices = @transform_4, window_bounds = array<i64: 128, 2048>}, {pipeline_mode = #tpu.pipeline_mode<synchronous>, transform_indices = @transform_5, window_bounds = array<i64: 1, 2048>}, {pipeline_mode = #tpu.pipeline_mode<synchronous>, transform_indices = @transform_6, window_bounds = array<i64: 128, 1024>}, {pipeline_mode = #tpu.pipeline_mode<synchronous>, transform_indices = @transform_7, window_bounds = array<i64: 1, 1024>}, {pipeline_mode = #tpu.pipeline_mode<synchronous>, transform_indices = @transform_8, window_bounds = array<i64: 1024, 128>}, {pipeline_mode = #tpu.pipeline_mode<synchronous>, transform_indices = @transform_9, window_bounds = array<i64: 128, 128>}, {pipeline_mode = #tpu.pipeline_mode<synchronous>, transform_indices = @transform_10, window_bounds = array<i64: 128, 1024>}, {pipeline_mode = #tpu.pipeline_mode<synchronous>, transform_indices = @transform_11, window_bounds = array<i64: 1024, 128>}, {pipeline_mode = #tpu.pipeline_mode<synchronous>, transform_indices = @transform_12, window_bounds = array<i64: 1, 128>}, {pipeline_mode = #tpu.pipeline_mode<synchronous>, transform_indices = @transform_13, window_bounds = array<i64: 1, 128>}, {pipeline_mode = #tpu.pipeline_mode<synchronous>, transform_indices = @transform_14, window_bounds = array<i64: 1, 128>}, {pipeline_mode = #tpu.pipeline_mode<synchronous>, transform_indices = @transform_15, window_bounds = array<i64: 128, 512>}, {pipeline_mode = #tpu.pipeline_mode<synchronous>, transform_indices = @transform_16, window_bounds = array<i64: 1, 512>}, {pipeline_mode = #tpu.pipeline_mode<synchronous>, transform_indices = @transform_17, window_bounds = array<i64: 512, 128>}, {pipeline_mode = #tpu.pipeline_mode<synchronous>, transform_indices = @transform_18, window_bounds = array<i64: 1, 128>}, {transform_indices = @transform_19, window_bounds = array<i64: 256, 128>}]} {
    %c0 = arith.constant 0 : index
    %c0_0 = arith.constant 0 : index
    %0 = vector.load %arg1[%c0, %c0_0] : memref<256x128xf32, #tpu.memory_space<vmem>>, vector<256x128xf32>
    %c0_1 = arith.constant 0 : index
    %c0_2 = arith.constant 0 : index
    %1 = vector.load %arg4[%c0_1, %c0_2] : memref<128x128xf32, #tpu.memory_space<vmem>>, vector<128x128xf32>
    %c0_3 = arith.constant 0 : index
    %c0_4 = arith.constant 0 : index
    %2 = vector.load %arg2[%c0_3, %c0_4] : memref<1x128xf32, #tpu.memory_space<vmem>>, vector<1x128xf32>
    %c0_5 = arith.constant 0 : index
    %c0_6 = arith.constant 0 : index
    %3 = vector.load %arg3[%c0_5, %c0_6] : memref<1x128xf32, #tpu.memory_space<vmem>>, vector<1x128xf32>
    %cst = arith.constant dense<0.000000e+00> : vector<256x128xf32>
    %4 = tpu.matmul %0, %1, %cst {dimension_numbers = #tpu.dot_dimension_numbers<[1], [0], [0], [1], [0, 0, 1, 1], [], []>} : vector<256x128xf32>, vector<128x128xf32>, vector<256x128xf32> -> vector<256x128xf32>
    %cst_7 = arith.constant 1.562500e-02 : f32
    %5 = vector.broadcast %cst_7 : f32 to vector<256x128xf32>
    %6 = arith.mulf %4, %5 : vector<256x128xf32>
    %7 = arith.subf %0, %6 : vector<256x128xf32>
    %8 = arith.mulf %7, %7 : vector<256x128xf32>
    %cst_8 = arith.constant dense<0.000000e+00> : vector<256x128xf32>
    %9 = tpu.matmul %8, %1, %cst_8 {dimension_numbers = #tpu.dot_dimension_numbers<[1], [0], [0], [1], [0, 0, 1, 1], [], []>} : vector<256x128xf32>, vector<128x128xf32>, vector<256x128xf32> -> vector<256x128xf32>
    %cst_9 = arith.constant 1.562500e-02 : f32
    %10 = vector.broadcast %cst_9 : f32 to vector<256x128xf32>
    %11 = arith.mulf %9, %10 : vector<256x128xf32>
    %cst_10 = arith.constant 9.99999974E-6 : f32
    %12 = vector.broadcast %cst_10 : f32 to vector<256x128xf32>
    %13 = arith.addf %11, %12 : vector<256x128xf32>
    %14 = math.rsqrt %13 : vector<256x128xf32>
    %15 = arith.mulf %7, %14 : vector<256x128xf32>
    %16 = vector.broadcast %2 : vector<1x128xf32> to vector<256x128xf32>
    %17 = arith.mulf %15, %16 : vector<256x128xf32>
    %18 = vector.broadcast %3 : vector<1x128xf32> to vector<256x128xf32>
    %19 = arith.addf %17, %18 : vector<256x128xf32>
    %20 = arith.truncf %19 : vector<256x128xf32> to vector<256x128xbf16>
    %c0_11 = arith.constant 0 : index
    %c0_12 = arith.constant 0 : index
    %21 = vector.load %arg5[%c0_11, %c0_12] : memref<128x2048xbf16, #tpu.memory_space<vmem>>, vector<128x2048xbf16>
    %cst_13 = arith.constant dense<0.000000e+00> : vector<256x2048xf32>
    %22 = tpu.matmul %20, %21, %cst_13 {dimension_numbers = #tpu.dot_dimension_numbers<[1], [0], [0], [1], [0, 0, 1, 1], [], []>} : vector<256x128xbf16>, vector<128x2048xbf16>, vector<256x2048xf32> -> vector<256x2048xf32>
    %c0_14 = arith.constant 0 : index
    %c0_15 = arith.constant 0 : index
    %23 = vector.load %arg6[%c0_14, %c0_15] : memref<1x2048xf32, #tpu.memory_space<vmem>>, vector<1x2048xf32>
    %24 = vector.broadcast %23 : vector<1x2048xf32> to vector<256x2048xf32>
    %25 = arith.addf %22, %24 : vector<256x2048xf32>
    %26 = arith.truncf %25 : vector<256x2048xf32> to vector<256x2048xbf16>
    %27 = vector.extract_strided_slice %26 {offsets = [0, 0], sizes = [256, 1024], strides = [1, 1]} : vector<256x2048xbf16> to vector<256x1024xbf16>
    %28 = vector.extract_strided_slice %26 {offsets = [0, 1024], sizes = [256, 1024], strides = [1, 1]} : vector<256x2048xbf16> to vector<256x1024xbf16>
    %29 = arith.mulf %27, %28 : vector<256x1024xbf16>
    %c0_16 = arith.constant 0 : index
    %c0_17 = arith.constant 0 : index
    %30 = vector.load %arg9[%c0_16, %c0_17] : memref<1024x128xbf16, #tpu.memory_space<vmem>>, vector<1024x128xbf16>
    %cst_18 = arith.constant dense<0.000000e+00> : vector<256x128xf32>
    %31 = tpu.matmul %29, %30, %cst_18 {dimension_numbers = #tpu.dot_dimension_numbers<[1], [0], [0], [1], [0, 0, 1, 1], [], []>} : vector<256x1024xbf16>, vector<1024x128xbf16>, vector<256x128xf32> -> vector<256x128xf32>
    %cst_19 = arith.constant dense<0xFF800000> : vector<256xf32>
    %32 = vector.multi_reduction <maximumf>, %31, %cst_19 [1] : vector<256x128xf32> to vector<256xf32>
    %33 = vector.shape_cast %32 : vector<256xf32> to vector<256x1xf32>
    %34 = vector.broadcast %33 : vector<256x1xf32> to vector<256x128xf32>
    %35 = arith.subf %31, %34 : vector<256x128xf32>
    %36 = math.exp %35 : vector<256x128xf32>
    %37 = arith.truncf %36 : vector<256x128xf32> to vector<256x128xbf16>
    %c0_20 = arith.constant 0 : index
    %c0_21 = arith.constant 0 : index
    %38 = vector.load %arg10[%c0_20, %c0_21] : memref<128x128xbf16, #tpu.memory_space<vmem>>, vector<128x128xbf16>
    %cst_22 = arith.constant dense<0.000000e+00> : vector<256x128xf32>
    %39 = tpu.matmul %37, %38, %cst_22 {dimension_numbers = #tpu.dot_dimension_numbers<[1], [0], [0], [1], [0, 0, 1, 1], [], []>} : vector<256x128xbf16>, vector<128x128xbf16>, vector<256x128xf32> -> vector<256x128xf32>
    %cst_23 = arith.constant 9.99999968E-21 : f32
    %40 = vector.broadcast %cst_23 : f32 to vector<256x128xf32>
    %41 = arith.maximumf %39, %40 : vector<256x128xf32>
    %42 = tpu.reciprocal %41 {approx = true} : vector<256x128xf32> -> vector<256x128xf32>
    %43 = arith.mulf %36, %42 : vector<256x128xf32>
    %c0_24 = arith.constant 0 : index
    %c0_25 = arith.constant 0 : index
    %44 = vector.load %arg7[%c0_24, %c0_25] : memref<128x1024xbf16, #tpu.memory_space<vmem>>, vector<128x1024xbf16>
    %cst_26 = arith.constant dense<0.000000e+00> : vector<256x1024xf32>
    %45 = tpu.matmul %20, %44, %cst_26 {dimension_numbers = #tpu.dot_dimension_numbers<[1], [0], [0], [1], [0, 0, 1, 1], [], []>} : vector<256x128xbf16>, vector<128x1024xbf16>, vector<256x1024xf32> -> vector<256x1024xf32>
    %c0_27 = arith.constant 0 : index
    %c0_28 = arith.constant 0 : index
    %46 = vector.load %arg8[%c0_27, %c0_28] : memref<1x1024xf32, #tpu.memory_space<vmem>>, vector<1x1024xf32>
    %47 = vector.broadcast %46 : vector<1x1024xf32> to vector<256x1024xf32>
    %48 = arith.addf %45, %47 : vector<256x1024xf32>
    %49 = arith.truncf %48 : vector<256x1024xf32> to vector<256x1024xbf16>
    %50 = arith.truncf %43 : vector<256x128xf32> to vector<256x128xbf16>
    %c0_29 = arith.constant 0 : index
    %c0_30 = arith.constant 0 : index
    %51 = vector.load %arg11[%c0_29, %c0_30] : memref<128x1024xbf16, #tpu.memory_space<vmem>>, vector<128x1024xbf16>
    %cst_31 = arith.constant dense<0.000000e+00> : vector<256x1024xf32>
    %52 = tpu.matmul %50, %51, %cst_31 {dimension_numbers = #tpu.dot_dimension_numbers<[1], [0], [0], [1], [0, 0, 1, 1], [], []>} : vector<256x128xbf16>, vector<128x1024xbf16>, vector<256x1024xf32> -> vector<256x1024xf32>
    %53 = arith.truncf %52 : vector<256x1024xf32> to vector<256x1024xbf16>
    %54 = arith.mulf %53, %49 : vector<256x1024xbf16>
    %c0_32 = arith.constant 0 : index
    %c0_33 = arith.constant 0 : index
    %55 = vector.load %arg12[%c0_32, %c0_33] : memref<1024x128xbf16, #tpu.memory_space<vmem>>, vector<1024x128xbf16>
    %cst_34 = arith.constant dense<0.000000e+00> : vector<256x128xf32>
    %56 = tpu.matmul %54, %55, %cst_34 {dimension_numbers = #tpu.dot_dimension_numbers<[1], [0], [0], [1], [0, 0, 1, 1], [], []>} : vector<256x1024xbf16>, vector<1024x128xbf16>, vector<256x128xf32> -> vector<256x128xf32>
    %c0_35 = arith.constant 0 : index
    %c0_36 = arith.constant 0 : index
    %57 = vector.load %arg13[%c0_35, %c0_36] : memref<1x128xf32, #tpu.memory_space<vmem>>, vector<1x128xf32>
    %58 = vector.broadcast %57 : vector<1x128xf32> to vector<256x128xf32>
    %59 = arith.addf %56, %58 : vector<256x128xf32>
    %60 = arith.addf %0, %59 : vector<256x128xf32>
    %c0_37 = arith.constant 0 : index
    %c0_38 = arith.constant 0 : index
    %61 = vector.load %arg14[%c0_37, %c0_38] : memref<1x128xf32, #tpu.memory_space<vmem>>, vector<1x128xf32>
    %c0_39 = arith.constant 0 : index
    %c0_40 = arith.constant 0 : index
    %62 = vector.load %arg15[%c0_39, %c0_40] : memref<1x128xf32, #tpu.memory_space<vmem>>, vector<1x128xf32>
    %cst_41 = arith.constant dense<0.000000e+00> : vector<256x128xf32>
    %63 = tpu.matmul %60, %1, %cst_41 {dimension_numbers = #tpu.dot_dimension_numbers<[1], [0], [0], [1], [0, 0, 1, 1], [], []>} : vector<256x128xf32>, vector<128x128xf32>, vector<256x128xf32> -> vector<256x128xf32>
    %cst_42 = arith.constant 1.562500e-02 : f32
    %64 = vector.broadcast %cst_42 : f32 to vector<256x128xf32>
    %65 = arith.mulf %63, %64 : vector<256x128xf32>
    %66 = arith.subf %60, %65 : vector<256x128xf32>
    %67 = arith.mulf %66, %66 : vector<256x128xf32>
    %cst_43 = arith.constant dense<0.000000e+00> : vector<256x128xf32>
    %68 = tpu.matmul %67, %1, %cst_43 {dimension_numbers = #tpu.dot_dimension_numbers<[1], [0], [0], [1], [0, 0, 1, 1], [], []>} : vector<256x128xf32>, vector<128x128xf32>, vector<256x128xf32> -> vector<256x128xf32>
    %cst_44 = arith.constant 1.562500e-02 : f32
    %69 = vector.broadcast %cst_44 : f32 to vector<256x128xf32>
    %70 = arith.mulf %68, %69 : vector<256x128xf32>
    %cst_45 = arith.constant 9.99999974E-6 : f32
    %71 = vector.broadcast %cst_45 : f32 to vector<256x128xf32>
    %72 = arith.addf %70, %71 : vector<256x128xf32>
    %73 = math.rsqrt %72 : vector<256x128xf32>
    %74 = arith.mulf %66, %73 : vector<256x128xf32>
    %75 = vector.broadcast %61 : vector<1x128xf32> to vector<256x128xf32>
    %76 = arith.mulf %74, %75 : vector<256x128xf32>
    %77 = vector.broadcast %62 : vector<1x128xf32> to vector<256x128xf32>
    %78 = arith.addf %76, %77 : vector<256x128xf32>
    %79 = arith.truncf %78 : vector<256x128xf32> to vector<256x128xbf16>
    %c0_46 = arith.constant 0 : index
    %c0_47 = arith.constant 0 : index
    %80 = vector.load %arg16[%c0_46, %c0_47] : memref<128x512xbf16, #tpu.memory_space<vmem>>, vector<128x512xbf16>
    %cst_48 = arith.constant dense<0.000000e+00> : vector<256x512xf32>
    %81 = tpu.matmul %79, %80, %cst_48 {dimension_numbers = #tpu.dot_dimension_numbers<[1], [0], [0], [1], [0, 0, 1, 1], [], []>} : vector<256x128xbf16>, vector<128x512xbf16>, vector<256x512xf32> -> vector<256x512xf32>
    %c0_49 = arith.constant 0 : index
    %c0_50 = arith.constant 0 : index
    %82 = vector.load %arg17[%c0_49, %c0_50] : memref<1x512xf32, #tpu.memory_space<vmem>>, vector<1x512xf32>
    %83 = vector.broadcast %82 : vector<1x512xf32> to vector<256x512xf32>
    %84 = arith.addf %81, %83 : vector<256x512xf32>
    %cst_51 = arith.constant 0.000000e+00 : f32
    %85 = vector.broadcast %cst_51 : f32 to vector<256x512xf32>
    %86 = arith.maximumf %84, %85 : vector<256x512xf32>
    %87 = arith.truncf %86 : vector<256x512xf32> to vector<256x512xbf16>
    %c0_52 = arith.constant 0 : index
    %c0_53 = arith.constant 0 : index
    %88 = vector.load %arg18[%c0_52, %c0_53] : memref<512x128xbf16, #tpu.memory_space<vmem>>, vector<512x128xbf16>
    %cst_54 = arith.constant dense<0.000000e+00> : vector<256x128xf32>
    %89 = tpu.matmul %87, %88, %cst_54 {dimension_numbers = #tpu.dot_dimension_numbers<[1], [0], [0], [1], [0, 0, 1, 1], [], []>} : vector<256x512xbf16>, vector<512x128xbf16>, vector<256x128xf32> -> vector<256x128xf32>
    %c0_55 = arith.constant 0 : index
    %c0_56 = arith.constant 0 : index
    %90 = vector.load %arg19[%c0_55, %c0_56] : memref<1x128xf32, #tpu.memory_space<vmem>>, vector<1x128xf32>
    %91 = vector.broadcast %90 : vector<1x128xf32> to vector<256x128xf32>
    %92 = arith.addf %89, %91 : vector<256x128xf32>
    %93 = arith.addf %60, %92 : vector<256x128xf32>
    %c0_57 = arith.constant 0 : index
    %c0_58 = arith.constant 0 : index
    %94 = vector.load %arg20[%c0_57, %c0_58] : memref<256x128xf32, #tpu.memory_space<vmem>>, vector<256x128xf32>
    tpu.vector_store %arg20[%c0_57, %c0_58], %93 {strides = array<i32>} : memref<256x128xf32, #tpu.memory_space<vmem>>, vector<256x128xf32>,
    return
  }
  func.func @transform_0(%arg0: i32) -> (i32, i32) {
    %c0_i32 = arith.constant 0 : i32
    %c0_i32_0 = arith.constant 0 : i32
    return %arg0, %c0_i32 : i32, i32
  }
  func.func @transform_1(%arg0: i32) -> (i32, i32) {
    %c0_i32 = arith.constant 0 : i32
    %c0_i32_0 = arith.constant 0 : i32
    %c0_i32_1 = arith.constant 0 : i32
    return %c0_i32, %c0_i32_0 : i32, i32
  }
  func.func @transform_2(%arg0: i32) -> (i32, i32) {
    %c0_i32 = arith.constant 0 : i32
    %c0_i32_0 = arith.constant 0 : i32
    %c0_i32_1 = arith.constant 0 : i32
    return %c0_i32, %c0_i32_0 : i32, i32
  }
  func.func @transform_3(%arg0: i32) -> (i32, i32) {
    %c0_i32 = arith.constant 0 : i32
    %c0_i32_0 = arith.constant 0 : i32
    %c0_i32_1 = arith.constant 0 : i32
    return %c0_i32, %c0_i32_0 : i32, i32
  }
  func.func @transform_4(%arg0: i32) -> (i32, i32) {
    %c0_i32 = arith.constant 0 : i32
    %c0_i32_0 = arith.constant 0 : i32
    %c0_i32_1 = arith.constant 0 : i32
    return %c0_i32, %c0_i32_0 : i32, i32
  }
  func.func @transform_5(%arg0: i32) -> (i32, i32) {
    %c0_i32 = arith.constant 0 : i32
    %c0_i32_0 = arith.constant 0 : i32
    %c0_i32_1 = arith.constant 0 : i32
    return %c0_i32, %c0_i32_0 : i32, i32
  }
  func.func @transform_6(%arg0: i32) -> (i32, i32) {
    %c0_i32 = arith.constant 0 : i32
    %c0_i32_0 = arith.constant 0 : i32
    %c0_i32_1 = arith.constant 0 : i32
    return %c0_i32, %c0_i32_0 : i32, i32
  }
  func.func @transform_7(%arg0: i32) -> (i32, i32) {
    %c0_i32 = arith.constant 0 : i32
    %c0_i32_0 = arith.constant 0 : i32
    %c0_i32_1 = arith.constant 0 : i32
    return %c0_i32, %c0_i32_0 : i32, i32
  }
  func.func @transform_8(%arg0: i32) -> (i32, i32) {
    %c0_i32 = arith.constant 0 : i32
    %c0_i32_0 = arith.constant 0 : i32
    %c0_i32_1 = arith.constant 0 : i32
    return %c0_i32, %c0_i32_0 : i32, i32
  }
  func.func @transform_9(%arg0: i32) -> (i32, i32) {
    %c0_i32 = arith.constant 0 : i32
    %c0_i32_0 = arith.constant 0 : i32
    %c0_i32_1 = arith.constant 0 : i32
    return %c0_i32, %c0_i32_0 : i32, i32
  }
  func.func @transform_10(%arg0: i32) -> (i32, i32) {
    %c0_i32 = arith.constant 0 : i32
    %c0_i32_0 = arith.constant 0 : i32
    %c0_i32_1 = arith.constant 0 : i32
    return %c0_i32, %c0_i32_0 : i32, i32
  }
  func.func @transform_11(%arg0: i32) -> (i32, i32) {
    %c0_i32 = arith.constant 0 : i32
    %c0_i32_0 = arith.constant 0 : i32
    %c0_i32_1 = arith.constant 0 : i32
    return %c0_i32, %c0_i32_0 : i32, i32
  }
  func.func @transform_12(%arg0: i32) -> (i32, i32) {
    %c0_i32 = arith.constant 0 : i32
    %c0_i32_0 = arith.constant 0 : i32
    %c0_i32_1 = arith.constant 0 : i32
    return %c0_i32, %c0_i32_0 : i32, i32
  }
  func.func @transform_13(%arg0: i32) -> (i32, i32) {
    %c0_i32 = arith.constant 0 : i32
    %c0_i32_0 = arith.constant 0 : i32
    %c0_i32_1 = arith.constant 0 : i32
    return %c0_i32, %c0_i32_0 : i32, i32
  }
  func.func @transform_14(%arg0: i32) -> (i32, i32) {
    %c0_i32 = arith.constant 0 : i32
    %c0_i32_0 = arith.constant 0 : i32
    %c0_i32_1 = arith.constant 0 : i32
    return %c0_i32, %c0_i32_0 : i32, i32
  }
  func.func @transform_15(%arg0: i32) -> (i32, i32) {
    %c0_i32 = arith.constant 0 : i32
    %c0_i32_0 = arith.constant 0 : i32
    %c0_i32_1 = arith.constant 0 : i32
    return %c0_i32, %c0_i32_0 : i32, i32
  }
  func.func @transform_16(%arg0: i32) -> (i32, i32) {
    %c0_i32 = arith.constant 0 : i32
    %c0_i32_0 = arith.constant 0 : i32
    %c0_i32_1 = arith.constant 0 : i32
    return %c0_i32, %c0_i32_0 : i32, i32
  }
  func.func @transform_17(%arg0: i32) -> (i32, i32) {
    %c0_i32 = arith.constant 0 : i32
    %c0_i32_0 = arith.constant 0 : i32
    %c0_i32_1 = arith.constant 0 : i32
    return %c0_i32, %c0_i32_0 : i32, i32
  }
  func.func @transform_18(%arg0: i32) -> (i32, i32) {
    %c0_i32 = arith.constant 0 : i32
    %c0_i32_0 = arith.constant 0 : i32
    %c0_i32_1 = arith.constant 0 : i32
    return %c0_i32, %c0_i32_0 : i32, i32
  }
  func.func @transform_19(%arg0: i32) -> (i32, i32) {
    %c0_i32 = arith.constant 0 : i32
    %c0_i32_0 = arith.constant 0 : i32
    return %arg0, %c0_i32 : i32, i32
  }
}

</mosaic_0001>

<llo_original>
// kernel: tpu_custom_call.1
$region0: #{tpu_custom_call.1}
  #allocation0 [shape = 'u32[]', space=smem, size = 0x4, offset = 0x4, fixed_abs, tag = 'smem constant byte address 0x4 - core index']
  #allocation1 [shape = 'u32[144,128]{1,0:T(1,128)}', space=vmem, size = 0x12000, scoped, tag = 'internal scratch']
  %s0 = inlined_call_operand.hbm [shape: f32[256,128], index: 0, kind: input, shape index: {}]
  %s1 = inlined_call_operand.vmem [shape: f32[1,128], index: 1, kind: input, shape index: {}]
  %s2 = inlined_call_operand.vmem [shape: f32[1,128], index: 2, kind: input, shape index: {}]
  %s3 = inlined_call_operand.hbm [shape: f32[128,128], index: 3, kind: input, shape index: {}]
  %s4 = inlined_call_operand.hbm [shape: bf16[128,2048], index: 4, kind: input, shape index: {}]
  %s5 = inlined_call_operand.vmem [shape: f32[1,2048], index: 5, kind: input, shape index: {}]
  %s6 = inlined_call_operand.hbm [shape: bf16[128,1024], index: 6, kind: input, shape index: {}]
  %s7 = inlined_call_operand.vmem [shape: f32[1,1024], index: 7, kind: input, shape index: {}]
  %s8 = inlined_call_operand.hbm [shape: bf16[1024,128], index: 8, kind: input, shape index: {}]
  %s9 = inlined_call_operand.hbm [shape: bf16[128,128], index: 9, kind: input, shape index: {}]
  %s10 = inlined_call_operand.hbm [shape: bf16[128,1024], index: 10, kind: input, shape index: {}]
  %s11 = inlined_call_operand.hbm [shape: bf16[1024,128], index: 11, kind: input, shape index: {}]
  %s12 = inlined_call_operand.vmem [shape: f32[1,128], index: 12, kind: input, shape index: {}]
  %s13 = inlined_call_operand.vmem [shape: f32[1,128], index: 13, kind: input, shape index: {}]
  %s14 = inlined_call_operand.vmem [shape: f32[1,128], index: 14, kind: input, shape index: {}]
  %s15 = inlined_call_operand.hbm [shape: bf16[128,512], index: 15, kind: input, shape index: {}]
  %s16 = inlined_call_operand.vmem [shape: f32[1,512], index: 16, kind: input, shape index: {}]
  %s17 = inlined_call_operand.hbm [shape: bf16[512,128], index: 17, kind: input, shape index: {}]
  %s18 = inlined_call_operand.vmem [shape: f32[1,128], index: 18, kind: input, shape index: {}]
  %s19 = inlined_call_operand.hbm [shape: f32[256,128], index: 19, kind: output, shape index: {}]
  %s20 = sld [smem:[#allocation0]]
  $region126: #{tpu_custom_call.1} parent=0
    _
  %s22 = ssub.s32 1, %s20
  %s23 = scalar_select 0, %s22, %s20
  $region1: #{tpu_custom_call.1} parent=0
    #allocation2 [shape = 'u8[131072]{0}', space=vmem, size = 0x20000, scoped, tag = 'input window, operand 0, single buffered']
    #allocation3 [shape = 's32[1]{0}', space=sflag, size = 0x4, scoped, tag = 'scoped memory for tpu_custom_call.1']
    #allocation4 [shape = 's32[1]{0}', space=sflag, size = 0x4, scoped, tag = 'scoped memory for tpu_custom_call.1']
    #allocation5 [shape = 'u8[65536]{0}', space=vmem, size = 0x10000, scoped, tag = 'input window, operand 3, single buffered']
    #allocation6 [shape = 's32[1]{0}', space=sflag, size = 0x4, scoped, tag = 'scoped memory for tpu_custom_call.1']
    #allocation7 [shape = 'u8[524288]{0}', space=vmem, size = 0x80000, scoped, tag = 'input window, operand 4, single buffered']
    #allocation8 [shape = 'u8[262144]{0}', space=vmem, size = 0x40000, scoped, tag = 'input window, operand 6, single buffered']
    #allocation9 [shape = 's32[1]{0}', space=sflag, size = 0x4, scoped, tag = 'scoped memory for tpu_custom_call.1']
    #allocation10 [shape = 'u8[262144]{0}', space=vmem, size = 0x40000, scoped, tag = 'input window, operand 8, single buffered']
    #allocation11 [shape = 'u8[32768]{0}', space=vmem, size = 0x8000, scoped, tag = 'input window, operand 9, single buffered']
    #allocation12 [shape = 's32[1]{0}', space=sflag, size = 0x4, scoped, tag = 'scoped memory for tpu_custom_call.1']
    #allocation13 [shape = 'u8[262144]{0}', space=vmem, size = 0x40000, scoped, tag = 'input window, operand 10, single buffered']
    #allocation14 [shape = 'u8[262144]{0}', space=vmem, size = 0x40000, scoped, tag = 'input window, operand 11, single buffered']
    #allocation15 [shape = 's32[1]{0}', space=sflag, size = 0x4, scoped, tag = 'scoped memory for tpu_custom_call.1']
    #allocation16 [shape = 'u8[131072]{0}', space=vmem, size = 0x20000, scoped, tag = 'input window, operand 15, single buffered']
    #allocation17 [shape = 'u8[131072]{0}', space=vmem, size = 0x20000, scoped, tag = 'input window, operand 17, single buffered']
    #allocation18 [shape = 's32[1]{0}', space=sflag, size = 0x4, scoped, tag = 'scoped memory for tpu_custom_call.1']
    #allocation19 [shape = 'u8[131072]{0}', space=vmem, size = 0x20000, scoped, tag = 'output window, operand 0, single buffered']
    %24 = vsyncpa [#allocation3], 0
    %25 = vsyncpa [#allocation6], 0
    %26 = vsyncpa [#allocation9], 0
    %27 = vsyncpa [#allocation12], 0
    %28 = vsyncpa [#allocation15], 0
    %29 = vsyncpa [#allocation18], 0
    %30 = vsyncpa [#allocation4], 0
    // Predicated region
    $region2: #{tpu_custom_call.1} parent=1 // pred_check
      _
    $region3: #{tpu_custom_call.1} parent=1 // pred_check_branch
      %32 = sbr.rel (0) target = $region5
    $region4: #{tpu_custom_call.1} parent=1 // pred_region
      %s34 = ssub.s32 4096, 4096
      %35 = vsyncadd [#allocation3], %s34
      %s36 = sshll.u32 [#allocation2], 4
      %s37 = int_to_ptr.vmem [resolvable:$true] %s36
      %42 = dma.hbm_to_vmem [thread:$0]  %s0, 4096, %s37, [#allocation3], 128, 128, 8
    $region5: #{tpu_custom_call.1} parent=1 // pred_fallthru
      _
    // Predicated region
    $region6: #{tpu_custom_call.1} parent=1 // pred_check
      _
    $region7: #{tpu_custom_call.1} parent=1 // pred_check_branch
      %44 = sbr.rel (0) target = $region9
    $region8: #{tpu_custom_call.1} parent=1 // pred_region
      _
    $region9: #{tpu_custom_call.1} parent=1 // pred_fallthru
      _
    // Predicated region
    $region10: #{tpu_custom_call.1} parent=1 // pred_check
      _
    $region11: #{tpu_custom_call.1} parent=1 // pred_check_branch
      %46 = sbr.rel (0) target = $region13
    $region12: #{tpu_custom_call.1} parent=1 // pred_region
      _
    $region13: #{tpu_custom_call.1} parent=1 // pred_fallthru
      _
    // Predicated region
    $region14: #{tpu_custom_call.1} parent=1 // pred_check
      _
    $region15: #{tpu_custom_call.1} parent=1 // pred_check_branch
      %48 = sbr.rel (0) target = $region17
    $region16: #{tpu_custom_call.1} parent=1 // pred_region
      %s50 = ssub.s32 2048, 2048
      %51 = vsyncadd [#allocation6], %s50
      %s52 = sshll.u32 [#allocation5], 4
      %s53 = int_to_ptr.vmem [resolvable:$true] %s52
      %58 = dma.hbm_to_vmem [thread:$0]  %s3, 2048, %s53, [#allocation6], 128, 128, 8
    $region17: #{tpu_custom_call.1} parent=1 // pred_fallthru
      _
    // Predicated region
    $region18: #{tpu_custom_call.1} parent=1 // pred_check
      _
    $region19: #{tpu_custom_call.1} parent=1 // pred_check_branch
      %60 = sbr.rel (0) target = $region21
    $region20: #{tpu_custom_call.1} parent=1 // pred_region
      %s62 = ssub.s32 16384, 16384
      %63 = vsyncadd [#allocation6], %s62
      %s64 = sshll.u32 [#allocation7], 4
      %s65 = int_to_ptr.vmem [resolvable:$true] %s64
      %70 = dma.hbm_to_vmem [thread:$0]  %s4, 16384, %s65, [#allocation6], 1024, 1024, 64
    $region21: #{tpu_custom_call.1} parent=1 // pred_fallthru
      _
    // Predicated region
    $region22: #{tpu_custom_call.1} parent=1 // pred_check
      _
    $region23: #{tpu_custom_call.1} parent=1 // pred_check_branch
      %72 = sbr.rel (0) target = $region25
    $region24: #{tpu_custom_call.1} parent=1 // pred_region
      _
    $region25: #{tpu_custom_call.1} parent=1 // pred_fallthru
      _
    // Predicated region
    $region26: #{tpu_custom_call.1} parent=1 // pred_check
      _
    $region27: #{tpu_custom_call.1} parent=1 // pred_check_branch
      %74 = sbr.rel (0) target = $region29
    $region28: #{tpu_custom_call.1} parent=1 // pred_region
      %s76 = ssub.s32 8192, 8192
      %77 = vsyncadd [#allocation9], %s76
      %s78 = sshll.u32 [#allocation8], 4
      %s79 = int_to_ptr.vmem [resolvable:$true] %s78
      %84 = dma.hbm_to_vmem [thread:$0]  %s6, 8192, %s79, [#allocation9], 512, 512, 32
    $region29: #{tpu_custom_call.1} parent=1 // pred_fallthru
      _
    // Predicated region
    $region30: #{tpu_custom_call.1} parent=1 // pred_check
      _
    $region31: #{tpu_custom_call.1} parent=1 // pred_check_branch
      %86 = sbr.rel (0) target = $region33
    $region32: #{tpu_custom_call.1} parent=1 // pred_region
      _
    $region33: #{tpu_custom_call.1} parent=1 // pred_fallthru
      _
    // Predicated region
    $region34: #{tpu_custom_call.1} parent=1 // pred_check
      _
    $region35: #{tpu_custom_call.1} parent=1 // pred_check_branch
      %88 = sbr.rel (0) target = $region37
    $region36: #{tpu_custom_call.1} parent=1 // pred_region
      %s90 = ssub.s32 8192, 8192
      %91 = vsyncadd [#allocation9], %s90
      %s92 = sshll.u32 [#allocation10], 4
      %s93 = int_to_ptr.vmem [resolvable:$true] %s92
      %98 = dma.hbm_to_vmem [thread:$0]  %s8, 8192, %s93, [#allocation9], 64, 64, 4
    $region37: #{tpu_custom_call.1} parent=1 // pred_fallthru
      _
    // Predicated region
    $region38: #{tpu_custom_call.1} parent=1 // pred_check
      _
    $region39: #{tpu_custom_call.1} parent=1 // pred_check_branch
      %100 = sbr.rel (0) target = $region41
    $region40: #{tpu_custom_call.1} parent=1 // pred_region
      %s102 = ssub.s32 1024, 1024
      %103 = vsyncadd [#allocation12], %s102
      %s104 = sshll.u32 [#allocation11], 4
      %s105 = int_to_ptr.vmem [resolvable:$true] %s104
      %110 = dma.hbm_to_vmem [thread:$0]  %s9, 1024, %s105, [#allocation12], 64, 64, 4
    $region41: #{tpu_custom_call.1} parent=1 // pred_fallthru
      _
    // Predicated region
    $region42: #{tpu_custom_call.1} parent=1 // pred_check
      _
    $region43: #{tpu_custom_call.1} parent=1 // pred_check_branch
      %112 = sbr.rel (0) target = $region45
    $region44: #{tpu_custom_call.1} parent=1 // pred_region
      %s114 = ssub.s32 8192, 8192
      %115 = vsyncadd [#allocation12], %s114
      %s116 = sshll.u32 [#allocation13], 4
      %s117 = int_to_ptr.vmem [resolvable:$true] %s116
      %122 = dma.hbm_to_vmem [thread:$0]  %s10, 8192, %s117, [#allocation12], 512, 512, 32
    $region45: #{tpu_custom_call.1} parent=1 // pred_fallthru
      _
    // Predicated region
    $region46: #{tpu_custom_call.1} parent=1 // pred_check
      _
    $region47: #{tpu_custom_call.1} parent=1 // pred_check_branch
      %124 = sbr.rel (0) target = $region49
    $region48: #{tpu_custom_call.1} parent=1 // pred_region
      %s126 = ssub.s32 8192, 8192
      %127 = vsyncadd [#allocation15], %s126
      %s128 = sshll.u32 [#allocation14], 4
      %s129 = int_to_ptr.vmem [resolvable:$true] %s128
      %134 = dma.hbm_to_vmem [thread:$0]  %s11, 8192, %s129, [#allocation15], 64, 64, 4
    $region49: #{tpu_custom_call.1} parent=1 // pred_fallthru
      _
    // Predicated region
    $region50: #{tpu_custom_call.1} parent=1 // pred_check
      _
    $region51: #{tpu_custom_call.1} parent=1 // pred_check_branch
      %136 = sbr.rel (0) target = $region53
    $region52: #{tpu_custom_call.1} parent=1 // pred_region
      _
    $region53: #{tpu_custom_call.1} parent=1 // pred_fallthru
      _
    // Predicated region
    $region54: #{tpu_custom_call.1} parent=1 // pred_check
      _
    $region55: #{tpu_custom_call.1} parent=1 // pred_check_branch
      %138 = sbr.rel (0) target = $region57
    $region56: #{tpu_custom_call.1} parent=1 // pred_region
      _
    $region57: #{tpu_custom_call.1} parent=1 // pred_fallthru
      _
    // Predicated region
    $region58: #{tpu_custom_call.1} parent=1 // pred_check
      _
    $region59: #{tpu_custom_call.1} parent=1 // pred_check_branch
      %140 = sbr.rel (0) target = $region61
    $region60: #{tpu_custom_call.1} parent=1 // pred_region
      _
    $region61: #{tpu_custom_call.1} parent=1 // pred_fallthru
      _
    // Predicated region
    $region62: #{tpu_custom_call.1} parent=1 // pred_check
      _
    $region63: #{tpu_custom_call.1} parent=1 // pred_check_branch
      %142 = sbr.rel (0) target = $region65
    $region64: #{tpu_custom_call.1} parent=1 // pred_region
      %s144 = ssub.s32 4096, 4096
      %145 = vsyncadd [#allocation15], %s144
      %s146 = sshll.u32 [#allocation16], 4
      %s147 = int_to_ptr.vmem [resolvable:$true] %s146
      %152 = dma.hbm_to_vmem [thread:$0]  %s15, 4096, %s147, [#allocation15], 256, 256, 16
    $region65: #{tpu_custom_call.1} parent=1 // pred_fallthru
      _
    // Predicated region
    $region66: #{tpu_custom_call.1} parent=1 // pred_check
      _
    $region67: #{tpu_custom_call.1} parent=1 // pred_check_branch
      %154 = sbr.rel (0) target = $region69
    $region68: #{tpu_custom_call.1} parent=1 // pred_region
      _
    $region69: #{tpu_custom_call.1} parent=1 // pred_fallthru
      _
    // Predicated region
    $region70: #{tpu_custom_call.1} parent=1 // pred_check
      _
    $region71: #{tpu_custom_call.1} parent=1 // pred_check_branch
      %156 = sbr.rel (0) target = $region73
    $region72: #{tpu_custom_call.1} parent=1 // pred_region
      %s158 = ssub.s32 4096, 4096
      %159 = vsyncadd [#allocation18], %s158
      %s160 = sshll.u32 [#allocation17], 4
      %s161 = int_to_ptr.vmem [resolvable:$true] %s160
      %166 = dma.hbm_to_vmem [thread:$0]  %s17, 4096, %s161, [#allocation18], 64, 64, 4
    $region73: #{tpu_custom_call.1} parent=1 // pred_fallthru
      _
    // Predicated region
    $region74: #{tpu_custom_call.1} parent=1 // pred_check
      _
    $region75: #{tpu_custom_call.1} parent=1 // pred_check_branch
      %168 = sbr.rel (0) target = $region77
    $region76: #{tpu_custom_call.1} parent=1 // pred_region
      _
    $region77: #{tpu_custom_call.1} parent=1 // pred_fallthru
      _
    // Predicated region
    $region78: #{tpu_custom_call.1} parent=1 // pred_check
      _
    $region79: #{tpu_custom_call.1} parent=1 // pred_check_branch
      %170 = sbr.rel (0) target = $region81
    $region80: #{tpu_custom_call.1} parent=1 // pred_region
      %171 = dma.done [#allocation3], 4096
    $region81: #{tpu_custom_call.1} parent=1 // pred_fallthru
      _
    // Predicated region
    $region82: #{tpu_custom_call.1} parent=1 // pred_check
      _
    $region83: #{tpu_custom_call.1} parent=1 // pred_check_branch
      %173 = sbr.rel (0) target = $region85
    $region84: #{tpu_custom_call.1} parent=1 // pred_region
      %174 = dma.done [#allocation6], 2048
    $region85: #{tpu_custom_call.1} parent=1 // pred_fallthru
      _
    // Predicated region
    $region86: #{tpu_custom_call.1} parent=1 // pred_check
      _
    $region87: #{tpu_custom_call.1} parent=1 // pred_check_branch
      %176 = sbr.rel (0) target = $region89
    $region88: #{tpu_custom_call.1} parent=1 // pred_region
      %177 = dma.done [#allocation6], 16384
    $region89: #{tpu_custom_call.1} parent=1 // pred_fallthru
      _
    // Predicated region
    $region90: #{tpu_custom_call.1} parent=1 // pred_check
      _
    $region91: #{tpu_custom_call.1} parent=1 // pred_check_branch
      %179 = sbr.rel (0) target = $region93
    $region92: #{tpu_custom_call.1} parent=1 // pred_region
      %180 = dma.done [#allocation9], 8192
    $region93: #{tpu_custom_call.1} parent=1 // pred_fallthru
      _
    // Predicated region
    $region94: #{tpu_custom_call.1} parent=1 // pred_check
      _
    $region95: #{tpu_custom_call.1} parent=1 // pred_check_branch
      %182 = sbr.rel (0) target = $region97
    $region96: #{tpu_custom_call.1} parent=1 // pred_region
      %183 = dma.done [#allocation9], 8192
    $region97: #{tpu_custom_call.1} parent=1 // pred_fallthru
      _
    // Predicated region
    $region98: #{tpu_custom_call.1} parent=1 // pred_check
      _
    $region99: #{tpu_custom_call.1} parent=1 // pred_check_branch
      %185 = sbr.rel (0) target = $region101
    $region100: #{tpu_custom_call.1} parent=1 // pred_region
      %186 = dma.done [#allocation12], 1024
    $region101: #{tpu_custom_call.1} parent=1 // pred_fallthru
      _
    // Predicated region
    $region102: #{tpu_custom_call.1} parent=1 // pred_check
      _
    $region103: #{tpu_custom_call.1} parent=1 // pred_check_branch
      %188 = sbr.rel (0) target = $region105
    $region104: #{tpu_custom_call.1} parent=1 // pred_region
      %189 = dma.done [#allocation12], 8192
    $region105: #{tpu_custom_call.1} parent=1 // pred_fallthru
      _
    // Predicated region
    $region106: #{tpu_custom_call.1} parent=1 // pred_check
      _
    $region107: #{tpu_custom_call.1} parent=1 // pred_check_branch
      %191 = sbr.rel (0) target = $region109
    $region108: #{tpu_custom_call.1} parent=1 // pred_region
      %192 = dma.done [#allocation15], 8192
    $region109: #{tpu_custom_call.1} parent=1 // pred_fallthru
      _
    // Predicated region
    $region110: #{tpu_custom_call.1} parent=1 // pred_check
      _
    $region111: #{tpu_custom_call.1} parent=1 // pred_check_branch
      %194 = sbr.rel (0) target = $region113
    $region112: #{tpu_custom_call.1} parent=1 // pred_region
      %195 = dma.done [#allocation15], 4096
    $region113: #{tpu_custom_call.1} parent=1 // pred_fallthru
      _
    // Predicated region
    $region114: #{tpu_custom_call.1} parent=1 // pred_check
      _
    $region115: #{tpu_custom_call.1} parent=1 // pred_check_branch
      %197 = sbr.rel (0) target = $region117
    $region116: #{tpu_custom_call.1} parent=1 // pred_region
      %198 = dma.done [#allocation18], 4096
    $region117: #{tpu_custom_call.1} parent=1 // pred_fallthru
      _
    %v200 = vld [vmem:[#allocation2] sm:$0xff]
    %v201 = vld [vmem:[#allocation2 + $0x8] sm:$0xff]
    %v202 = vld [vmem:[#allocation2 + $0x10] sm:$0xff]
    %v203 = vld [vmem:[#allocation2 + $0x18] sm:$0xff]
    %v204 = vld [vmem:[#allocation2 + $0x20] sm:$0xff]
    %v205 = vld [vmem:[#allocation2 + $0x28] sm:$0xff]
    %v206 = vld [vmem:[#allocation2 + $0x30] sm:$0xff]
    %v207 = vld [vmem:[#allocation2 + $0x38] sm:$0xff]
    %v208 = vld [vmem:[#allocation2 + $0x40] sm:$0xff]
    %v209 = vld [vmem:[#allocation2 + $0x48] sm:$0xff]
    %v210 = vld [vmem:[#allocation2 + $0x50] sm:$0xff]
    %v211 = vld [vmem:[#allocation2 + $0x58] sm:$0xff]
    %v212 = vld [vmem:[#allocation2 + $0x60] sm:$0xff]
    %v213 = vld [vmem:[#allocation2 + $0x68] sm:$0xff]
    %v214 = vld [vmem:[#allocation2 + $0x70] sm:$0xff]
    %v215 = vld [vmem:[#allocation2 + $0x78] sm:$0xff]
    %v216 = vld [vmem:[#allocation2 + $0x80] sm:$0xff]
    %v217 = vld [vmem:[#allocation2 + $0x88] sm:$0xff]
    %v218 = vld [vmem:[#allocation2 + $0x90] sm:$0xff]
    %v219 = vld [vmem:[#allocation2 + $0x98] sm:$0xff]
    %v220 = vld [vmem:[#allocation2 + $0xa0] sm:$0xff]
    %v221 = vld [vmem:[#allocation2 + $0xa8] sm:$0xff]
    %v222 = vld [vmem:[#allocation2 + $0xb0] sm:$0xff]
    %v223 = vld [vmem:[#allocation2 + $0xb8] sm:$0xff]
    %v224 = vld [vmem:[#allocation2 + $0xc0] sm:$0xff]
    %v225 = vld [vmem:[#allocation2 + $0xc8] sm:$0xff]
    %v226 = vld [vmem:[#allocation2 + $0xd0] sm:$0xff]
    %v227 = vld [vmem:[#allocation2 + $0xd8] sm:$0xff]
    %v228 = vld [vmem:[#allocation2 + $0xe0] sm:$0xff]
    %v229 = vld [vmem:[#allocation2 + $0xe8] sm:$0xff]
    %v230 = vld [vmem:[#allocation2 + $0xf0] sm:$0xff]
    %v231 = vld [vmem:[#allocation2 + $0xf8] sm:$0xff]
    %v232 = vld [vmem:[#allocation5] sm:$0xff]
    %v233 = vld [vmem:[#allocation5 + $0x8] sm:$0xff]
    %v234 = vld [vmem:[#allocation5 + $0x10] sm:$0xff]
    %v235 = vld [vmem:[#allocation5 + $0x18] sm:$0xff]
    %v236 = vld [vmem:[#allocation5 + $0x20] sm:$0xff]
    %v237 = vld [vmem:[#allocation5 + $0x28] sm:$0xff]
    %v238 = vld [vmem:[#allocation5 + $0x30] sm:$0xff]
    %v239 = vld [vmem:[#allocation5 + $0x38] sm:$0xff]
    %v240 = vld [vmem:[#allocation5 + $0x40] sm:$0xff]
    %v241 = vld [vmem:[#allocation5 + $0x48] sm:$0xff]
    %v242 = vld [vmem:[#allocation5 + $0x50] sm:$0xff]
    %v243 = vld [vmem:[#allocation5 + $0x58] sm:$0xff]
    %v244 = vld [vmem:[#allocation5 + $0x60] sm:$0xff]
    %v245 = vld [vmem:[#allocation5 + $0x68] sm:$0xff]
    %v246 = vld [vmem:[#allocation5 + $0x70] sm:$0xff]
    %v247 = vld [vmem:[#allocation5 + $0x78] sm:$0xff]
    %v248 = vld [vmem:[%s1] sm:$0x1]
    %v249 = vld [vmem:[%s2] sm:$0x1]
    %250 = vmatprep.subr.mxu0 0.0
    %251 = vmatpush1.msra.mxu0 %v232
    %252 = vmatprep.subr.mxu0 0.0
    %253 = vmatpush1.msra.mxu0 %v233
    %254 = vmatprep.subr.mxu0 0.0
    %255 = vmatpush1.msra.mxu0 %v234
    %256 = vmatprep.subr.mxu0 0.0
    %257 = vmatpush1.msra.mxu0 %v235
    %258 = vmatprep.subr.mxu0 0.0
    %259 = vmatpush1.msra.mxu0 %v236
    %260 = vmatprep.subr.mxu0 0.0
    %261 = vmatpush1.msra.mxu0 %v237
    %262 = vmatprep.subr.mxu0 0.0
    %263 = vmatpush1.msra.mxu0 %v238
    %264 = vmatprep.subr.mxu0 0.0
    %265 = vmatpush1.msra.mxu0 %v239
    %266 = vmatprep.subr.mxu0 0.0
    %267 = vmatpush1.msra.mxu0 %v240
    %268 = vmatprep.subr.mxu0 0.0
    %269 = vmatpush1.msra.mxu0 %v241
    %270 = vmatprep.subr.mxu0 0.0
    %271 = vmatpush1.msra.mxu0 %v242
    %272 = vmatprep.subr.mxu0 0.0
    %273 = vmatpush1.msra.mxu0 %v243
    %274 = vmatprep.subr.mxu0 0.0
    %275 = vmatpush1.msra.mxu0 %v244
    %276 = vmatprep.subr.mxu0 0.0
    %277 = vmatpush1.msra.mxu0 %v245
    %278 = vmatprep.subr.mxu0 0.0
    %279 = vmatpush1.msra.mxu0 %v246
    %280 = vmatprep.subr.mxu0 0.0
    %281 = vmatpush1.msra.mxu0 %v247
    %282 = vmatprep.subr.mxu0 0.0
    %283 = vmatpush1.msra.mxu0 0.0
    %284 = vmatprep.subr.mxu0 0.0
    %285 = vmatpush1.msra.mxu0 0.0
    %286 = vmatprep.subr.mxu0 0.0
    %287 = vmatpush1.msra.mxu0 0.0
    %288 = vmatprep.subr.mxu0 0.0
    %289 = vmatpush1.msra.mxu0 0.0
    %290 = vmatprep.subr.mxu0 0.0
    %291 = vmatpush1.msra.mxu0 0.0
    %292 = vmatprep.subr.mxu0 0.0
    %293 = vmatpush1.msra.mxu0 0.0
    %294 = vmatprep.subr.mxu0 0.0
    %295 = vmatpush1.msra.mxu0 0.0
    %296 = vmatprep.subr.mxu0 0.0
    %297 = vmatpush1.msra.mxu0 0.0
    %298 = vmatprep.subr.mxu0 0.0
    %299 = vmatpush1.msra.mxu0 0.0
    %300 = vmatprep.subr.mxu0 0.0
    %301 = vmatpush1.msra.mxu0 0.0
    %302 = vmatprep.subr.mxu0 0.0
    %303 = vmatpush1.msra.mxu0 0.0
    %304 = vmatprep.subr.mxu0 0.0
    %305 = vmatpush1.msra.mxu0 0.0
    %306 = vmatprep.subr.mxu0 0.0
    %307 = vmatpush1.msra.mxu0 0.0
    %308 = vmatprep.subr.mxu0 0.0
    %309 = vmatpush1.msra.mxu0 0.0
    %310 = vmatprep.subr.mxu0 0.0
    %311 = vmatpush1.msra.mxu0 0.0
    %312 = vmatprep.subr.mxu0 0.0
    %313 = vmatpush1.msra.mxu0 0.0
    %314 = vmatprep.mubr.f32.mxu0 0.0
    %315 = vmatmul.mubr.f32.gmra.mrb[0].mxu0 %v200
    %v316 = vpop.f32.mrb[0].mxu0
    %v317 = vadd.f32 0.0, %v316
    %v318 = vpop.f32.mrb[0].mxu0
    %319 = vmatprep.mubr.f32.mxu0 0.0
    %320 = vmatmul.mubr.f32.gmra.mrb[0].mxu0 %v201
    %v321 = vpop.f32.mrb[0].mxu0
    %v322 = vadd.f32 0.0, %v321
    %v323 = vpop.f32.mrb[0].mxu0
    %324 = vmatprep.mubr.f32.mxu0 0.0
    %325 = vmatmul.mubr.f32.gmra.mrb[0].mxu0 %v202
    %v326 = vpop.f32.mrb[0].mxu0
    %v327 = vadd.f32 0.0, %v326
    %v328 = vpop.f32.mrb[0].mxu0
    %329 = vmatprep.mubr.f32.mxu0 0.0
    %330 = vmatmul.mubr.f32.gmra.mrb[0].mxu0 %v203
    %v331 = vpop.f32.mrb[0].mxu0
    %v332 = vadd.f32 0.0, %v331
    %v333 = vpop.f32.mrb[0].mxu0
    %334 = vmatprep.mubr.f32.mxu0 0.0
    %335 = vmatmul.mubr.f32.gmra.mrb[0].mxu0 %v204
    %v336 = vpop.f32.mrb[0].mxu0
    %v337 = vadd.f32 0.0, %v336
    %v338 = vpop.f32.mrb[0].mxu0
    %339 = vmatprep.mubr.f32.mxu0 0.0
    %340 = vmatmul.mubr.f32.gmra.mrb[0].mxu0 %v205
    %v341 = vpop.f32.mrb[0].mxu0
    %v342 = vadd.f32 0.0, %v341
    %v343 = vpop.f32.mrb[0].mxu0
    %344 = vmatprep.mubr.f32.mxu0 0.0
    %345 = vmatmul.mubr.f32.gmra.mrb[0].mxu0 %v206
    %v346 = vpop.f32.mrb[0].mxu0
    %v347 = vadd.f32 0.0, %v346
    %v348 = vpop.f32.mrb[0].mxu0
    %349 = vmatprep.mubr.f32.mxu0 0.0
    %350 = vmatmul.mubr.f32.gmra.mrb[0].mxu0 %v207
    %v351 = vpop.f32.mrb[0].mxu0
    %v352 = vadd.f32 0.0, %v351
    %v353 = vpop.f32.mrb[0].mxu0
    %354 = vmatprep.mubr.f32.mxu0 0.0
    %355 = vmatmul.mubr.f32.gmra.mrb[0].mxu0 %v208
    %v356 = vpop.f32.mrb[0].mxu0
    %v357 = vadd.f32 0.0, %v356
    %v358 = vpop.f32.mrb[0].mxu0
    %359 = vmatprep.mubr.f32.mxu0 0.0
    %360 = vmatmul.mubr.f32.gmra.mrb[0].mxu0 %v209
    %v361 = vpop.f32.mrb[0].mxu0
    %v362 = vadd.f32 0.0, %v361
    %v363 = vpop.f32.mrb[0].mxu0
    %364 = vmatprep.mubr.f32.mxu0 0.0
    %365 = vmatmul.mubr.f32.gmra.mrb[0].mxu0 %v210
    %v366 = vpop.f32.mrb[0].mxu0
    %v367 = vadd.f32 0.0, %v366
    %v368 = vpop.f32.mrb[0].mxu0
    %369 = vmatprep.mubr.f32.mxu0 0.0
    %370 = vmatmul.mubr.f32.gmra.mrb[0].mxu0 %v211
    %v371 = vpop.f32.mrb[0].mxu0
    %v372 = vadd.f32 0.0, %v371
    %v373 = vpop.f32.mrb[0].mxu0
    %374 = vmatprep.mubr.f32.mxu0 0.0
    %375 = vmatmul.mubr.f32.gmra.mrb[0].mxu0 %v212
    %v376 = vpop.f32.mrb[0].mxu0
    %v377 = vadd.f32 0.0, %v376
    %v378 = vpop.f32.mrb[0].mxu0
    %379 = vmatprep.mubr.f32.mxu0 0.0
    %380 = vmatmul.mubr.f32.gmra.mrb[0].mxu0 %v213
    %v381 = vpop.f32.mrb[0].mxu0
    %v382 = vadd.f32 0.0, %v381
    %v383 = vpop.f32.mrb[0].mxu0
    %384 = vmatprep.mubr.f32.mxu0 0.0
    %385 = vmatmul.mubr.f32.gmra.mrb[0].mxu0 %v214
    %v386 = vpop.f32.mrb[0].mxu0
    %v387 = vadd.f32 0.0, %v386
    %v388 = vpop.f32.mrb[0].mxu0
    %389 = vmatprep.mubr.f32.mxu0 0.0
    %390 = vmatmul.mubr.f32.gmra.mrb[0].mxu0 %v215
    %v391 = vpop.f32.mrb[0].mxu0
    %v392 = vadd.f32 0.0, %v391
    %v393 = vpop.f32.mrb[0].mxu0
    %394 = vmatprep.mubr.f32.mxu0 0.0
    %395 = vmatmul.mubr.f32.gmra.mrb[0].mxu0 %v216
    %v396 = vpop.f32.mrb[0].mxu0
    %v397 = vadd.f32 0.0, %v396
    %v398 = vpop.f32.mrb[0].mxu0
    %399 = vmatprep.mubr.f32.mxu0 0.0
    %400 = vmatmul.mubr.f32.gmra.mrb[0].mxu0 %v217
    %v401 = vpop.f32.mrb[0].mxu0
    %v402 = vadd.f32 0.0, %v401
    %v403 = vpop.f32.mrb[0].mxu0
    %404 = vmatprep.mubr.f32.mxu0 0.0
    %405 = vmatmul.mubr.f32.gmra.mrb[0].mxu0 %v218
    %v406 = vpop.f32.mrb[0].mxu0
    %v407 = vadd.f32 0.0, %v406
    %v408 = vpop.f32.mrb[0].mxu0
    %409 = vmatprep.mubr.f32.mxu0 0.0
    %410 = vmatmul.mubr.f32.gmra.mrb[0].mxu0 %v219
    %v411 = vpop.f32.mrb[0].mxu0
    %v412 = vadd.f32 0.0, %v411
    %v413 = vpop.f32.mrb[0].mxu0
    %414 = vmatprep.mubr.f32.mxu0 0.0
    %415 = vmatmul.mubr.f32.gmra.mrb[0].mxu0 %v220
    %v416 = vpop.f32.mrb[0].mxu0
    %v417 = vadd.f32 0.0, %v416
    %v418 = vpop.f32.mrb[0].mxu0
    %419 = vmatprep.mubr.f32.mxu0 0.0
    %420 = vmatmul.mubr.f32.gmra.mrb[0].mxu0 %v221
    %v421 = vpop.f32.mrb[0].mxu0
    %v422 = vadd.f32 0.0, %v421
    %v423 = vpop.f32.mrb[0].mxu0
    %424 = vmatprep.mubr.f32.mxu0 0.0
    %425 = vmatmul.mubr.f32.gmra.mrb[0].mxu0 %v222
    %v426 = vpop.f32.mrb[0].mxu0
    %v427 = vadd.f32 0.0, %v426
    %v428 = vpop.f32.mrb[0].mxu0
    %429 = vmatprep.mubr.f32.mxu0 0.0
    %430 = vmatmul.mubr.f32.gmra.mrb[0].mxu0 %v223
    %v431 = vpop.f32.mrb[0].mxu0
    %v432 = vadd.f32 0.0, %v431
    %v433 = vpop.f32.mrb[0].mxu0
    %434 = vmatprep.mubr.f32.mxu0 0.0
    %435 = vmatmul.mubr.f32.gmra.mrb[0].mxu0 %v224
    %v436 = vpop.f32.mrb[0].mxu0
    %v437 = vadd.f32 0.0, %v436
    %v438 = vpop.f32.mrb[0].mxu0
    %439 = vmatprep.mubr.f32.mxu0 0.0
    %440 = vmatmul.mubr.f32.gmra.mrb[0].mxu0 %v225
    %v441 = vpop.f32.mrb[0].mxu0
    %v442 = vadd.f32 0.0, %v441
    %v443 = vpop.f32.mrb[0].mxu0
    %444 = vmatprep.mubr.f32.mxu0 0.0
    %445 = vmatmul.mubr.f32.gmra.mrb[0].mxu0 %v226
    %v446 = vpop.f32.mrb[0].mxu0
    %v447 = vadd.f32 0.0, %v446
    %v448 = vpop.f32.mrb[0].mxu0
    %449 = vmatprep.mubr.f32.mxu0 0.0
    %450 = vmatmul.mubr.f32.gmra.mrb[0].mxu0 %v227
    %v451 = vpop.f32.mrb[0].mxu0
    %v452 = vadd.f32 0.0, %v451
    %v453 = vpop.f32.mrb[0].mxu0
    %454 = vmatprep.mubr.f32.mxu0 0.0
    %455 = vmatmul.mubr.f32.gmra.mrb[0].mxu0 %v228
    %v456 = vpop.f32.mrb[0].mxu0
    %v457 = vadd.f32 0.0, %v456
    %v458 = vpop.f32.mrb[0].mxu0
    %459 = vmatprep.mubr.f32.mxu0 0.0
    %460 = vmatmul.mubr.f32.gmra.mrb[0].mxu0 %v229
    %v461 = vpop.f32.mrb[0].mxu0
    %v462 = vadd.f32 0.0, %v461
    %v463 = vpop.f32.mrb[0].mxu0
    %464 = vmatprep.mubr.f32.mxu0 0.0
    %465 = vmatmul.mubr.f32.gmra.mrb[0].mxu0 %v230
    %v466 = vpop.f32.mrb[0].mxu0
    %v467 = vadd.f32 0.0, %v466
    %v468 = vpop.f32.mrb[0].mxu0
    %469 = vmatprep.mubr.f32.mxu0 0.0
    %470 = vmatmul.mubr.f32.gmra.mrb[0].mxu0 %v231
    %v471 = vpop.f32.mrb[0].mxu0
    %v472 = vadd.f32 0.0, %v471
    %v473 = vpop.f32.mrb[0].mxu0
    %474 = vdwg.mxu0
    %v475 = vmul.f32 %v317, 0.015625
    %v476 = vmul.f32 %v322, 0.015625
    %v477 = vmul.f32 %v327, 0.015625
    %v478 = vmul.f32 %v332, 0.015625
    %v479 = vmul.f32 %v337, 0.015625
    %v480 = vmul.f32 %v342, 0.015625
    %v481 = vmul.f32 %v347, 0.015625
    %v482 = vmul.f32 %v352, 0.015625
    %v483 = vmul.f32 %v357, 0.015625
    %v484 = vmul.f32 %v362, 0.015625
    %v485 = vmul.f32 %v367, 0.015625
    %v486 = vmul.f32 %v372, 0.015625
    %v487 = vmul.f32 %v377, 0.015625
    %v488 = vmul.f32 %v382, 0.015625
    %v489 = vmul.f32 %v387, 0.015625
    %v490 = vmul.f32 %v392, 0.015625
    %v491 = vmul.f32 %v397, 0.015625
    %v492 = vmul.f32 %v402, 0.015625
    %v493 = vmul.f32 %v407, 0.015625
    %v494 = vmul.f32 %v412, 0.015625
    %v495 = vmul.f32 %v417, 0.015625
    %v496 = vmul.f32 %v422, 0.015625
    %v497 = vmul.f32 %v427, 0.015625
    %v498 = vmul.f32 %v432, 0.015625
    %v499 = vmul.f32 %v437, 0.015625
    %v500 = vmul.f32 %v442, 0.015625
    %v501 = vmul.f32 %v447, 0.015625
    %v502 = vmul.f32 %v452, 0.015625
    %v503 = vmul.f32 %v457, 0.015625
    %v504 = vmul.f32 %v462, 0.015625
    %v505 = vmul.f32 %v467, 0.015625
    %v506 = vmul.f32 %v472, 0.015625
    %v507 = vsub.f32 %v200, %v475
    %v508 = vsub.f32 %v201, %v476
    %v509 = vsub.f32 %v202, %v477
    %v510 = vsub.f32 %v203, %v478
    %v511 = vsub.f32 %v204, %v479
    %v512 = vsub.f32 %v205, %v480
    %v513 = vsub.f32 %v206, %v481
    %v514 = vsub.f32 %v207, %v482
    %v515 = vsub.f32 %v208, %v483
    %v516 = vsub.f32 %v209, %v484
    %v517 = vsub.f32 %v210, %v485
    %v518 = vsub.f32 %v211, %v486
    %v519 = vsub.f32 %v212, %v487
    %v520 = vsub.f32 %v213, %v488
    %v521 = vsub.f32 %v214, %v489
    %v522 = vsub.f32 %v215, %v490
    %v523 = vsub.f32 %v216, %v491
    %v524 = vsub.f32 %v217, %v492
    %v525 = vsub.f32 %v218, %v493
    %v526 = vsub.f32 %v219, %v494
    %v527 = vsub.f32 %v220, %v495
    %v528 = vsub.f32 %v221, %v496
    %v529 = vsub.f32 %v222, %v497
    %v530 = vsub.f32 %v223, %v498
    %v531 = vsub.f32 %v224, %v499
    %v532 = vsub.f32 %v225, %v500
    %v533 = vsub.f32 %v226, %v501
    %v534 = vsub.f32 %v227, %v502
    %v535 = vsub.f32 %v228, %v503
    %v536 = vsub.f32 %v229, %v504
    %v537 = vsub.f32 %v230, %v505
    %v538 = vsub.f32 %v231, %v506
    %v539 = vmul.f32 %v507, %v507
    %v540 = vmul.f32 %v508, %v508
    %v541 = vmul.f32 %v509, %v509
    %v542 = vmul.f32 %v510, %v510
    %v543 = vmul.f32 %v511, %v511
    %v544 = vmul.f32 %v512, %v512
    %v545 = vmul.f32 %v513, %v513
    %v546 = vmul.f32 %v514, %v514
    %v547 = vmul.f32 %v515, %v515
    %v548 = vmul.f32 %v516, %v516
    %v549 = vmul.f32 %v517, %v517
    %v550 = vmul.f32 %v518, %v518
    %v551 = vmul.f32 %v519, %v519
    %v552 = vmul.f32 %v520, %v520
    %v553 = vmul.f32 %v521, %v521
    %v554 = vmul.f32 %v522, %v522
    %v555 = vmul.f32 %v523, %v523
    %v556 = vmul.f32 %v524, %v524
    %v557 = vmul.f32 %v525, %v525
    %v558 = vmul.f32 %v526, %v526
    %v559 = vmul.f32 %v527, %v527
    %v560 = vmul.f32 %v528, %v528
    %v561 = vmul.f32 %v529, %v529
    %v562 = vmul.f32 %v530, %v530
    %v563 = vmul.f32 %v531, %v531
    %v564 = vmul.f32 %v532, %v532
    %v565 = vmul.f32 %v533, %v533
    %v566 = vmul.f32 %v534, %v534
    %v567 = vmul.f32 %v535, %v535
    %v568 = vmul.f32 %v536, %v536
    %v569 = vmul.f32 %v537, %v537
    %v570 = vmul.f32 %v538, %v538
    %571 = vmatprep.subr.mxu0 0.0
    %572 = vmatpush1.msra.mxu0 %v232
    %573 = vmatprep.subr.mxu0 0.0
    %574 = vmatpush1.msra.mxu0 %v233
    %575 = vmatprep.subr.mxu0 0.0
    %576 = vmatpush1.msra.mxu0 %v234
    %577 = vmatprep.subr.mxu0 0.0
    %578 = vmatpush1.msra.mxu0 %v235
    %579 = vmatprep.subr.mxu0 0.0
    %580 = vmatpush1.msra.mxu0 %v236
    %581 = vmatprep.subr.mxu0 0.0
    %582 = vmatpush1.msra.mxu0 %v237
    %583 = vmatprep.subr.mxu0 0.0
    %584 = vmatpush1.msra.mxu0 %v238
    %585 = vmatprep.subr.mxu0 0.0
    %586 = vmatpush1.msra.mxu0 %v239
    %587 = vmatprep.subr.mxu0 0.0
    %588 = vmatpush1.msra.mxu0 %v240
    %589 = vmatprep.subr.mxu0 0.0
    %590 = vmatpush1.msra.mxu0 %v241
    %591 = vmatprep.subr.mxu0 0.0
    %592 = vmatpush1.msra.mxu0 %v242
    %593 = vmatprep.subr.mxu0 0.0
    %594 = vmatpush1.msra.mxu0 %v243
    %595 = vmatprep.subr.mxu0 0.0
    %596 = vmatpush1.msra.mxu0 %v244
    %597 = vmatprep.subr.mxu0 0.0
    %598 = vmatpush1.msra.mxu0 %v245
    %599 = vmatprep.subr.mxu0 0.0
    %600 = vmatpush1.msra.mxu0 %v246
    %601 = vmatprep.subr.mxu0 0.0
    %602 = vmatpush1.msra.mxu0 %v247
    %603 = vmatprep.subr.mxu0 0.0
    %604 = vmatpush1.msra.mxu0 0.0
    %605 = vmatprep.subr.mxu0 0.0
    %606 = vmatpush1.msra.mxu0 0.0
    %607 = vmatprep.subr.mxu0 0.0
    %608 = vmatpush1.msra.mxu0 0.0
    %609 = vmatprep.subr.mxu0 0.0
    %610 = vmatpush1.msra.mxu0 0.0
    %611 = vmatprep.subr.mxu0 0.0
    %612 = vmatpush1.msra.mxu0 0.0
    %613 = vmatprep.subr.mxu0 0.0
    %614 = vmatpush1.msra.mxu0 0.0
    %615 = vmatprep.subr.mxu0 0.0
    %616 = vmatpush1.msra.mxu0 0.0
    %617 = vmatprep.subr.mxu0 0.0
    %618 = vmatpush1.msra.mxu0 0.0
    %619 = vmatprep.subr.mxu0 0.0
    %620 = vmatpush1.msra.mxu0 0.0
    %621 = vmatprep.subr.mxu0 0.0
    %622 = vmatpush1.msra.mxu0 0.0
    %623 = vmatprep.subr.mxu0 0.0
    %624 = vmatpush1.msra.mxu0 0.0
    %625 = vmatprep.subr.mxu0 0.0
    %626 = vmatpush1.msra.mxu0 0.0
    %627 = vmatprep.subr.mxu0 0.0
    %628 = vmatpush1.msra.mxu0 0.0
    %629 = vmatprep.subr.mxu0 0.0
    %630 = vmatpush1.msra.mxu0 0.0
    %631 = vmatprep.subr.mxu0 0.0
    %632 = vmatpush1.msra.mxu0 0.0
    %633 = vmatprep.subr.mxu0 0.0
    %634 = vmatpush1.msra.mxu0 0.0
    %635 = vmatprep.mubr.f32.mxu0 0.0
    %636 = vmatmul.mubr.f32.gmra.mrb[0].mxu0 %v539
    %v637 = vpop.f32.mrb[0].mxu0
    %v638 = vadd.f32 0.0, %v637
    %v639 = vpop.f32.mrb[0].mxu0
    %640 = vmatprep.mubr.f32.mxu0 0.0
    %641 = vmatmul.mubr.f32.gmra.mrb[0].mxu0 %v540
    %v642 = vpop.f32.mrb[0].mxu0
    %v643 = vadd.f32 0.0, %v642
    %v644 = vpop.f32.mrb[0].mxu0
    %645 = vmatprep.mubr.f32.mxu0 0.0
    %646 = vmatmul.mubr.f32.gmra.mrb[0].mxu0 %v541
    %v647 = vpop.f32.mrb[0].mxu0
    %v648 = vadd.f32 0.0, %v647
    %v649 = vpop.f32.mrb[0].mxu0
    %650 = vmatprep.mubr.f32.mxu0 0.0
    %651 = vmatmul.mubr.f32.gmra.mrb[0].mxu0 %v542
    %v652 = vpop.f32.mrb[0].mxu0
    %v653 = vadd.f32 0.0, %v652
    %v654 = vpop.f32.mrb[0].mxu0
    %655 = vmatprep.mubr.f32.mxu0 0.0
    %656 = vmatmul.mubr.f32.gmra.mrb[0].mxu0 %v543
    %v657 = vpop.f32.mrb[0].mxu0
    %v658 = vadd.f32 0.0, %v657
    %v659 = vpop.f32.mrb[0].mxu0
    %660 = vmatprep.mubr.f32.mxu0 0.0
    %661 = vmatmul.mubr.f32.gmra.mrb[0].mxu0 %v544
    %v662 = vpop.f32.mrb[0].mxu0
    %v663 = vadd.f32 0.0, %v662
    %v664 = vpop.f32.mrb[0].mxu0
    %665 = vmatprep.mubr.f32.mxu0 0.0
    %666 = vmatmul.mubr.f32.gmra.mrb[0].mxu0 %v545
    %v667 = vpop.f32.mrb[0].mxu0
    %v668 = vadd.f32 0.0, %v667
    %v669 = vpop.f32.mrb[0].mxu0
    %670 = vmatprep.mubr.f32.mxu0 0.0
    %671 = vmatmul.mubr.f32.gmra.mrb[0].mxu0 %v546
    %v672 = vpop.f32.mrb[0].mxu0
    %v673 = vadd.f32 0.0, %v672
    %v674 = vpop.f32.mrb[0].mxu0
    %675 = vmatprep.mubr.f32.mxu0 0.0
    %676 = vmatmul.mubr.f32.gmra.mrb[0].mxu0 %v547
    %v677 = vpop.f32.mrb[0].mxu0
    %v678 = vadd.f32 0.0, %v677
    %v679 = vpop.f32.mrb[0].mxu0
    %680 = vmatprep.mubr.f32.mxu0 0.0
    %681 = vmatmul.mubr.f32.gmra.mrb[0].mxu0 %v548
    %v682 = vpop.f32.mrb[0].mxu0
    %v683 = vadd.f32 0.0, %v682
    %v684 = vpop.f32.mrb[0].mxu0
    %685 = vmatprep.mubr.f32.mxu0 0.0
    %686 = vmatmul.mubr.f32.gmra.mrb[0].mxu0 %v549
    %v687 = vpop.f32.mrb[0].mxu0
    %v688 = vadd.f32 0.0, %v687
    %v689 = vpop.f32.mrb[0].mxu0
    %690 = vmatprep.mubr.f32.mxu0 0.0
    %691 = vmatmul.mubr.f32.gmra.mrb[0].mxu0 %v550
    %v692 = vpop.f32.mrb[0].mxu0
    %v693 = vadd.f32 0.0, %v692
    %v694 = vpop.f32.mrb[0].mxu0
    %695 = vmatprep.mubr.f32.mxu0 0.0
    %696 = vmatmul.mubr.f32.gmra.mrb[0].mxu0 %v551
    %v697 = vpop.f32.mrb[0].mxu0
    %v698 = vadd.f32 0.0, %v697
    %v699 = vpop.f32.mrb[0].mxu0
    %700 = vmatprep.mubr.f32.mxu0 0.0
    %701 = vmatmul.mubr.f32.gmra.mrb[0].mxu0 %v552
    %v702 = vpop.f32.mrb[0].mxu0
    %v703 = vadd.f32 0.0, %v702
    %v704 = vpop.f32.mrb[0].mxu0
    %705 = vmatprep.mubr.f32.mxu0 0.0
    %706 = vmatmul.mubr.f32.gmra.mrb[0].mxu0 %v553
    %v707 = vpop.f32.mrb[0].mxu0
    %v708 = vadd.f32 0.0, %v707
    %v709 = vpop.f32.mrb[0].mxu0
    %710 = vmatprep.mubr.f32.mxu0 0.0
    %711 = vmatmul.mubr.f32.gmra.mrb[0].mxu0 %v554
    %v712 = vpop.f32.mrb[0].mxu0
    %v713 = vadd.f32 0.0, %v712
    %v714 = vpop.f32.mrb[0].mxu0
    %715 = vmatprep.mubr.f32.mxu0 0.0
    %716 = vmatmul.mubr.f32.gmra.mrb[0].mxu0 %v555
    %v717 = vpop.f32.mrb[0].mxu0
    %v718 = vadd.f32 0.0, %v717
    %v719 = vpop.f32.mrb[0].mxu0
    %720 = vmatprep.mubr.f32.mxu0 0.0
    %721 = vmatmul.mubr.f32.gmra.mrb[0].mxu0 %v556
    %v722 = vpop.f32.mrb[0].mxu0
    %v723 = vadd.f32 0.0, %v722
    %v724 = vpop.f32.mrb[0].mxu0
    %725 = vmatprep.mubr.f32.mxu0 0.0
    %726 = vmatmul.mubr.f32.gmra.mrb[0].mxu0 %v557
    %v727 = vpop.f32.mrb[0].mxu0
    %v728 = vadd.f32 0.0, %v727
    %v729 = vpop.f32.mrb[0].mxu0
    %730 = vmatprep.mubr.f32.mxu0 0.0
    %731 = vmatmul.mubr.f32.gmra.mrb[0].mxu0 %v558
    %v732 = vpop.f32.mrb[0].mxu0
    %v733 = vadd.f32 0.0, %v732
    %v734 = vpop.f32.mrb[0].mxu0
    %735 = vmatprep.mubr.f32.mxu0 0.0
    %736 = vmatmul.mubr.f32.gmra.mrb[0].mxu0 %v559
    %v737 = vpop.f32.mrb[0].mxu0
    %v738 = vadd.f32 0.0, %v737
    %v739 = vpop.f32.mrb[0].mxu0
    %740 = vmatprep.mubr.f32.mxu0 0.0
    %741 = vmatmul.mubr.f32.gmra.mrb[0].mxu0 %v560
    %v742 = vpop.f32.mrb[0].mxu0
    %v743 = vadd.f32 0.0, %v742
    %v744 = vpop.f32.mrb[0].mxu0
    %745 = vmatprep.mubr.f32.mxu0 0.0
    %746 = vmatmul.mubr.f32.gmra.mrb[0].mxu0 %v561
    %v747 = vpop.f32.mrb[0].mxu0
    %v748 = vadd.f32 0.0, %v747
    %v749 = vpop.f32.mrb[0].mxu0
    %750 = vmatprep.mubr.f32.mxu0 0.0
    %751 = vmatmul.mubr.f32.gmra.mrb[0].mxu0 %v562
    %v752 = vpop.f32.mrb[0].mxu0
    %v753 = vadd.f32 0.0, %v752
    %v754 = vpop.f32.mrb[0].mxu0
    %755 = vmatprep.mubr.f32.mxu0 0.0
    %756 = vmatmul.mubr.f32.gmra.mrb[0].mxu0 %v563
    %v757 = vpop.f32.mrb[0].mxu0
    %v758 = vadd.f32 0.0, %v757
    %v759 = vpop.f32.mrb[0].mxu0
    %760 = vmatprep.mubr.f32.mxu0 0.0
    %761 = vmatmul.mubr.f32.gmra.mrb[0].mxu0 %v564
    %v762 = vpop.f32.mrb[0].mxu0
    %v763 = vadd.f32 0.0, %v762
    %v764 = vpop.f32.mrb[0].mxu0
    %765 = vmatprep.mubr.f32.mxu0 0.0
    %766 = vmatmul.mubr.f32.gmra.mrb[0].mxu0 %v565
    %v767 = vpop.f32.mrb[0].mxu0
    %v768 = vadd.f32 0.0, %v767
    %v769 = vpop.f32.mrb[0].mxu0
    %770 = vmatprep.mubr.f32.mxu0 0.0
    %771 = vmatmul.mubr.f32.gmra.mrb[0].mxu0 %v566
    %v772 = vpop.f32.mrb[0].mxu0
    %v773 = vadd.f32 0.0, %v772
    %v774 = vpop.f32.mrb[0].mxu0
    %775 = vmatprep.mubr.f32.mxu0 0.0
    %776 = vmatmul.mubr.f32.gmra.mrb[0].mxu0 %v567
    %v777 = vpop.f32.mrb[0].mxu0
    %v778 = vadd.f32 0.0, %v777
    %v779 = vpop.f32.mrb[0].mxu0
    %780 = vmatprep.mubr.f32.mxu0 0.0
    %781 = vmatmul.mubr.f32.gmra.mrb[0].mxu0 %v568
    %v782 = vpop.f32.mrb[0].mxu0
    %v783 = vadd.f32 0.0, %v782
    %v784 = vpop.f32.mrb[0].mxu0
    %785 = vmatprep.mubr.f32.mxu0 0.0
    %786 = vmatmul.mubr.f32.gmra.mrb[0].mxu0 %v569
    %v787 = vpop.f32.mrb[0].mxu0
    %v788 = vadd.f32 0.0, %v787
    %v789 = vpop.f32.mrb[0].mxu0
    %790 = vmatprep.mubr.f32.mxu0 0.0
    %791 = vmatmul.mubr.f32.gmra.mrb[0].mxu0 %v570
    %v792 = vpop.f32.mrb[0].mxu0
    %v793 = vadd.f32 0.0, %v792
    %v794 = vpop.f32.mrb[0].mxu0
    %795 = vdwg.mxu0
    %v796 = vmul.f32 %v638, 0.015625
    %v797 = vmul.f32 %v643, 0.015625
    %v798 = vmul.f32 %v648, 0.015625
    %v799 = vmul.f32 %v653, 0.015625
    %v800 = vmul.f32 %v658, 0.015625
    %v801 = vmul.f32 %v663, 0.015625
    %v802 = vmul.f32 %v668, 0.015625
    %v803 = vmul.f32 %v673, 0.015625
    %v804 = vmul.f32 %v678, 0.015625
    %v805 = vmul.f32 %v683, 0.015625
    %v806 = vmul.f32 %v688, 0.015625
    %v807 = vmul.f32 %v693, 0.015625
    %v808 = vmul.f32 %v698, 0.015625
    %v809 = vmul.f32 %v703, 0.015625
    %v810 = vmul.f32 %v708, 0.015625
    %v811 = vmul.f32 %v713, 0.015625
    %v812 = vmul.f32 %v718, 0.015625
    %v813 = vmul.f32 %v723, 0.015625
    %v814 = vmul.f32 %v728, 0.015625
    %v815 = vmul.f32 %v733, 0.015625
    %v816 = vmul.f32 %v738, 0.015625
    %v817 = vmul.f32 %v743, 0.015625
    %v818 = vmul.f32 %v748, 0.015625
    %v819 = vmul.f32 %v753, 0.015625
    %v820 = vmul.f32 %v758, 0.015625
    %v821 = vmul.f32 %v763, 0.015625
    %v822 = vmul.f32 %v768, 0.015625
    %v823 = vmul.f32 %v773, 0.015625
    %v824 = vmul.f32 %v778, 0.015625
    %v825 = vmul.f32 %v783, 0.015625
    %v826 = vmul.f32 %v788, 0.015625
    %v827 = vmul.f32 %v793, 0.015625
    %v828 = vadd.f32 %v796, 1e-05
    %v829 = vadd.f32 %v797, 1e-05
    %v830 = vadd.f32 %v798, 1e-05
    %v831 = vadd.f32 %v799, 1e-05
    %v832 = vadd.f32 %v800, 1e-05
    %v833 = vadd.f32 %v801, 1e-05
    %v834 = vadd.f32 %v802, 1e-05
    %v835 = vadd.f32 %v803, 1e-05
    %v836 = vadd.f32 %v804, 1e-05
    %v837 = vadd.f32 %v805, 1e-05
    %v838 = vadd.f32 %v806, 1e-05
    %v839 = vadd.f32 %v807, 1e-05
    %v840 = vadd.f32 %v808, 1e-05
    %v841 = vadd.f32 %v809, 1e-05
    %v842 = vadd.f32 %v810, 1e-05
    %v843 = vadd.f32 %v811, 1e-05
    %v844 = vadd.f32 %v812, 1e-05
    %v845 = vadd.f32 %v813, 1e-05
    %v846 = vadd.f32 %v814, 1e-05
    %v847 = vadd.f32 %v815, 1e-05
    %v848 = vadd.f32 %v816, 1e-05
    %v849 = vadd.f32 %v817, 1e-05
    %v850 = vadd.f32 %v818, 1e-05
    %v851 = vadd.f32 %v819, 1e-05
    %v852 = vadd.f32 %v820, 1e-05
    %v853 = vadd.f32 %v821, 1e-05
    %v854 = vadd.f32 %v822, 1e-05
    %v855 = vadd.f32 %v823, 1e-05
    %v856 = vadd.f32 %v824, 1e-05
    %v857 = vadd.f32 %v825, 1e-05
    %v858 = vadd.f32 %v826, 1e-05
    %v859 = vadd.f32 %v827, 1e-05
    %v860 = vrsqrt.pop %v828
    %v861 = vrsqrt.pop %v829
    %v862 = vrsqrt.pop %v830
    %v863 = vrsqrt.pop %v831
    %v864 = vrsqrt.pop %v832
    %v865 = vrsqrt.pop %v833
    %v866 = vrsqrt.pop %v834
    %v867 = vrsqrt.pop %v835
    %v868 = vrsqrt.pop %v836
    %v869 = vrsqrt.pop %v837
    %v870 = vrsqrt.pop %v838
    %v871 = vrsqrt.pop %v839
    %v872 = vrsqrt.pop %v840
    %v873 = vrsqrt.pop %v841
    %v874 = vrsqrt.pop %v842
    %v875 = vrsqrt.pop %v843
    %v876 = vrsqrt.pop %v844
    %v877 = vrsqrt.pop %v845
    %v878 = vrsqrt.pop %v846
    %v879 = vrsqrt.pop %v847
    %v880 = vrsqrt.pop %v848
    %v881 = vrsqrt.pop %v849
    %v882 = vrsqrt.pop %v850
    %v883 = vrsqrt.pop %v851
    %v884 = vrsqrt.pop %v852
    %v885 = vrsqrt.pop %v853
    %v886 = vrsqrt.pop %v854
    %v887 = vrsqrt.pop %v855
    %v888 = vrsqrt.pop %v856
    %v889 = vrsqrt.pop %v857
    %v890 = vrsqrt.pop %v858
    %v891 = vrsqrt.pop %v859
    %v892 = vmul.f32 %v507, %v860
    %v893 = vmul.f32 %v508, %v861
    %v894 = vmul.f32 %v509, %v862
    %v895 = vmul.f32 %v510, %v863
    %v896 = vmul.f32 %v511, %v864
    %v897 = vmul.f32 %v512, %v865
    %v898 = vmul.f32 %v513, %v866
    %v899 = vmul.f32 %v514, %v867
    %v900 = vmul.f32 %v515, %v868
    %v901 = vmul.f32 %v516, %v869
    %v902 = vmul.f32 %v517, %v870
    %v903 = vmul.f32 %v518, %v871
    %v904 = vmul.f32 %v519, %v872
    %v905 = vmul.f32 %v520, %v873
    %v906 = vmul.f32 %v521, %v874
    %v907 = vmul.f32 %v522, %v875
    %v908 = vmul.f32 %v523, %v876
    %v909 = vmul.f32 %v524, %v877
    %v910 = vmul.f32 %v525, %v878
    %v911 = vmul.f32 %v526, %v879
    %v912 = vmul.f32 %v527, %v880
    %v913 = vmul.f32 %v528, %v881
    %v914 = vmul.f32 %v529, %v882
    %v915 = vmul.f32 %v530, %v883
    %v916 = vmul.f32 %v531, %v884
    %v917 = vmul.f32 %v532, %v885
    %v918 = vmul.f32 %v533, %v886
    %v919 = vmul.f32 %v534, %v887
    %v920 = vmul.f32 %v535, %v888
    %v921 = vmul.f32 %v536, %v889
    %v922 = vmul.f32 %v537, %v890
    %v923 = vmul.f32 %v538, %v891
    %v925 = vlaneseq
    %v926 = vshrl.u32 %v925, 7
    %v927 = vsub.s32 0, %v926
    %v928 = vrot.slane %v248, %v927
    %v930 = vmul.f32 %v892, %v928
    %v931 = vmul.f32 %v893, %v928
    %v932 = vmul.f32 %v894, %v928
    %v933 = vmul.f32 %v895, %v928
    %v934 = vmul.f32 %v896, %v928
    %v935 = vmul.f32 %v897, %v928
    %v936 = vmul.f32 %v898, %v928
    %v937 = vmul.f32 %v899, %v928
    %v938 = vmul.f32 %v900, %v928
    %v939 = vmul.f32 %v901, %v928
    %v940 = vmul.f32 %v902, %v928
    %v941 = vmul.f32 %v903, %v928
    %v942 = vmul.f32 %v904, %v928
    %v943 = vmul.f32 %v905, %v928
    %v944 = vmul.f32 %v906, %v928
    %v945 = vmul.f32 %v907, %v928
    %v946 = vmul.f32 %v908, %v928
    %v947 = vmul.f32 %v909, %v928
    %v948 = vmul.f32 %v910, %v928
    %v949 = vmul.f32 %v911, %v928
    %v950 = vmul.f32 %v912, %v928
    %v951 = vmul.f32 %v913, %v928
    %v952 = vmul.f32 %v914, %v928
    %v953 = vmul.f32 %v915, %v928
    %v954 = vmul.f32 %v916, %v928
    %v955 = vmul.f32 %v917, %v928
    %v956 = vmul.f32 %v918, %v928
    %v957 = vmul.f32 %v919, %v928
    %v958 = vmul.f32 %v920, %v928
    %v959 = vmul.f32 %v921, %v928
    %v960 = vmul.f32 %v922, %v928
    %v961 = vmul.f32 %v923, %v928
    %v963 = vlaneseq
    %v964 = vshrl.u32 %v963, 7
    %v965 = vsub.s32 0, %v964
    %v966 = vrot.slane %v249, %v965
    %v968 = vadd.f32 %v930, %v966
    %v969 = vadd.f32 %v931, %v966
    %v970 = vadd.f32 %v932, %v966
    %v971 = vadd.f32 %v933, %v966
    %v972 = vadd.f32 %v934, %v966
    %v973 = vadd.f32 %v935, %v966
    %v974 = vadd.f32 %v936, %v966
    %v975 = vadd.f32 %v937, %v966
    %v976 = vadd.f32 %v938, %v966
    %v977 = vadd.f32 %v939, %v966
    %v978 = vadd.f32 %v940, %v966
    %v979 = vadd.f32 %v941, %v966
    %v980 = vadd.f32 %v942, %v966
    %v981 = vadd.f32 %v943, %v966
    %v982 = vadd.f32 %v944, %v966
    %v983 = vadd.f32 %v945, %v966
    %v984 = vadd.f32 %v946, %v966
    %v985 = vadd.f32 %v947, %v966
    %v986 = vadd.f32 %v948, %v966
    %v987 = vadd.f32 %v949, %v966
    %v988 = vadd.f32 %v950, %v966
    %v989 = vadd.f32 %v951, %v966
    %v990 = vadd.f32 %v952, %v966
    %v991 = vadd.f32 %v953, %v966
    %v992 = vadd.f32 %v954, %v966
    %v993 = vadd.f32 %v955, %v966
    %v994 = vadd.f32 %v956, %v966
    %v995 = vadd.f32 %v957, %v966
    %v996 = vadd.f32 %v958, %v966
    %v997 = vadd.f32 %v959, %v966
    %v998 = vadd.f32 %v960, %v966
    %v999 = vadd.f32 %v961, %v966
    %v1000 = vpack.c.bf16 %v969, %v968
    %v1001 = vpack.c.bf16 %v971, %v970
    %v1002 = vpack.c.bf16 %v973, %v972
    %v1003 = vpack.c.bf16 %v975, %v974
    %v1004 = vpack.c.bf16 %v977, %v976
    %v1005 = vpack.c.bf16 %v979, %v978
    %v1006 = vpack.c.bf16 %v981, %v980
    %v1007 = vpack.c.bf16 %v983, %v982
    %v1008 = vpack.c.bf16 %v985, %v984
    %v1009 = vpack.c.bf16 %v987, %v986
    %v1010 = vpack.c.bf16 %v989, %v988
    %v1011 = vpack.c.bf16 %v991, %v990
    %v1012 = vpack.c.bf16 %v993, %v992
    %v1013 = vpack.c.bf16 %v995, %v994
    %v1014 = vpack.c.bf16 %v997, %v996
    %v1015 = vpack.c.bf16 %v999, %v998
    %v1016 = vld [vmem:[#allocation7] sm:$0xff]
    %v1017 = vld [vmem:[#allocation7 + $0x8] sm:$0xff]
    %v1018 = vld [vmem:[#allocation7 + $0x10] sm:$0xff]
    %v1019 = vld [vmem:[#allocation7 + $0x18] sm:$0xff]
    %v1020 = vld [vmem:[#allocation7 + $0x20] sm:$0xff]
    %v1021 = vld [vmem:[#allocation7 + $0x28] sm:$0xff]
    %v1022 = vld [vmem:[#allocation7 + $0x30] sm:$0xff]
    %v1023 = vld [vmem:[#allocation7 + $0x38] sm:$0xff]
    %v1024 = vld [vmem:[#allocation7 + $0x40] sm:$0xff]
    %v1025 = vld [vmem:[#allocation7 + $0x48] sm:$0xff]
    %v1026 = vld [vmem:[#allocation7 + $0x50] sm:$0xff]
    %v1027 = vld [vmem:[#allocation7 + $0x58] sm:$0xff]
    %v1028 = vld [vmem:[#allocation7 + $0x60] sm:$0xff]
    %v1029 = vld [vmem:[#allocation7 + $0x68] sm:$0xff]
    %v1030 = vld [vmem:[#allocation7 + $0x70] sm:$0xff]
    %v1031 = vld [vmem:[#allocation7 + $0x78] sm:$0xff]
    %v1032 = vld [vmem:[#allocation7 + $0x80] sm:$0xff]
    %v1033 = vld [vmem:[#allocation7 + $0x88] sm:$0xff]
    %v1034 = vld [vmem:[#allocation7 + $0x90] sm:$0xff]
    %v1035 = vld [vmem:[#allocation7 + $0x98] sm:$0xff]
    %v1036 = vld [vmem:[#allocation7 + $0xa0] sm:$0xff]
    %v1037 = vld [vmem:[#allocation7 + $0xa8] sm:$0xff]
    %v1038 = vld [vmem:[#allocation7 + $0xb0] sm:$0xff]
    %v1039 = vld [vmem:[#allocation7 + $0xb8] sm:$0xff]
    %v1040 = vld [vmem:[#allocation7 + $0xc0] sm:$0xff]
    %v1041 = vld [vmem:[#allocation7 + $0xc8] sm:$0xff]
    %v1042 = vld [vmem:[#allocation7 + $0xd0] sm:$0xff]
    %v1043 = vld [vmem:[#allocation7 + $0xd8] sm:$0xff]
    %v1044 = vld [vmem:[#allocation7 + $0xe0] sm:$0xff]
    %v1045 = vld [vmem:[#allocation7 + $0xe8] sm:$0xff]
    %v1046 = vld [vmem:[#allocation7 + $0xf0] sm:$0xff]
    %v1047 = vld [vmem:[#allocation7 + $0xf8] sm:$0xff]
    %v1048 = vld [vmem:[#allocation7 + $0x100] sm:$0xff]
    %v1049 = vld [vmem:[#allocation7 + $0x108] sm:$0xff]
    %v1050 = vld [vmem:[#allocation7 + $0x110] sm:$0xff]
    %v1051 = vld [vmem:[#allocation7 + $0x118] sm:$0xff]
    %v1052 = vld [vmem:[#allocation7 + $0x120] sm:$0xff]
    %v1053 = vld [vmem:[#allocation7 + $0x128] sm:$0xff]
    %v1054 = vld [vmem:[#allocation7 + $0x130] sm:$0xff]
    %v1055 = vld [vmem:[#allocation7 + $0x138] sm:$0xff]
    %v1056 = vld [vmem:[#allocation7 + $0x140] sm:$0xff]
    %v1057 = vld [vmem:[#allocation7 + $0x148] sm:$0xff]
    %v1058 = vld [vmem:[#allocation7 + $0x150] sm:$0xff]
    %v1059 = vld [vmem:[#allocation7 + $0x158] sm:$0xff]
    %v1060 = vld [vmem:[#allocation7 + $0x160] sm:$0xff]
    %v1061 = vld [vmem:[#allocation7 + $0x168] sm:$0xff]
    %v1062 = vld [vmem:[#allocation7 + $0x170] sm:$0xff]
    %v1063 = vld [vmem:[#allocation7 + $0x178] sm:$0xff]
    %v1064 = vld [vmem:[#allocation7 + $0x180] sm:$0xff]
    %v1065 = vld [vmem:[#allocation7 + $0x188] sm:$0xff]
    %v1066 = vld [vmem:[#allocation7 + $0x190] sm:$0xff]
    %v1067 = vld [vmem:[#allocation7 + $0x198] sm:$0xff]
    %v1068 = vld [vmem:[#allocation7 + $0x1a0] sm:$0xff]
    %v1069 = vld [vmem:[#allocation7 + $0x1a8] sm:$0xff]
    %v1070 = vld [vmem:[#allocation7 + $0x1b0] sm:$0xff]
    %v1071 = vld [vmem:[#allocation7 + $0x1b8] sm:$0xff]
    %v1072 = vld [vmem:[#allocation7 + $0x1c0] sm:$0xff]
    %v1073 = vld [vmem:[#allocation7 + $0x1c8] sm:$0xff]
    %v1074 = vld [vmem:[#allocation7 + $0x1d0] sm:$0xff]
    %v1075 = vld [vmem:[#allocation7 + $0x1d8] sm:$0xff]
    %v1076 = vld [vmem:[#allocation7 + $0x1e0] sm:$0xff]
    %v1077 = vld [vmem:[#allocation7 + $0x1e8] sm:$0xff]
    %v1078 = vld [vmem:[#allocation7 + $0x1f0] sm:$0xff]
    %v1079 = vld [vmem:[#allocation7 + $0x1f8] sm:$0xff]
    %v1080 = vld [vmem:[#allocation7 + $0x200] sm:$0xff]
    %v1081 = vld [vmem:[#allocation7 + $0x208] sm:$0xff]
    %v1082 = vld [vmem:[#allocation7 + $0x210] sm:$0xff]
    %v1083 = vld [vmem:[#allocation7 + $0x218] sm:$0xff]
    %v1084 = vld [vmem:[#allocation7 + $0x220] sm:$0xff]
    %v1085 = vld [vmem:[#allocation7 + $0x228] sm:$0xff]
    %v1086 = vld [vmem:[#allocation7 + $0x230] sm:$0xff]
    %v1087 = vld [vmem:[#allocation7 + $0x238] sm:$0xff]
    %v1088 = vld [vmem:[#allocation7 + $0x240] sm:$0xff]
    %v1089 = vld [vmem:[#allocation7 + $0x248] sm:$0xff]
    %v1090 = vld [vmem:[#allocation7 + $0x250] sm:$0xff]
    %v1091 = vld [vmem:[#allocation7 + $0x258] sm:$0xff]
    %v1092 = vld [vmem:[#allocation7 + $0x260] sm:$0xff]
    %v1093 = vld [vmem:[#allocation7 + $0x268] sm:$0xff]
    %v1094 = vld [vmem:[#allocation7 + $0x270] sm:$0xff]
    %v1095 = vld [vmem:[#allocation7 + $0x278] sm:$0xff]
    %v1096 = vld [vmem:[#allocation7 + $0x280] sm:$0xff]
    %v1097 = vld [vmem:[#allocation7 + $0x288] sm:$0xff]
    %v1098 = vld [vmem:[#allocation7 + $0x290] sm:$0xff]
    %v1099 = vld [vmem:[#allocation7 + $0x298] sm:$0xff]
    %v1100 = vld [vmem:[#allocation7 + $0x2a0] sm:$0xff]
    %v1101 = vld [vmem:[#allocation7 + $0x2a8] sm:$0xff]
    %v1102 = vld [vmem:[#allocation7 + $0x2b0] sm:$0xff]
    %v1103 = vld [vmem:[#allocation7 + $0x2b8] sm:$0xff]
    %v1104 = vld [vmem:[#allocation7 + $0x2c0] sm:$0xff]
    %v1105 = vld [vmem:[#allocation7 + $0x2c8] sm:$0xff]
    %v1106 = vld [vmem:[#allocation7 + $0x2d0] sm:$0xff]
    %v1107 = vld [vmem:[#allocation7 + $0x2d8] sm:$0xff]
    %v1108 = vld [vmem:[#allocation7 + $0x2e0] sm:$0xff]
    %v1109 = vld [vmem:[#allocation7 + $0x2e8] sm:$0xff]
    %v1110 = vld [vmem:[#allocation7 + $0x2f0] sm:$0xff]
    %v1111 = vld [vmem:[#allocation7 + $0x2f8] sm:$0xff]
    %v1112 = vld [vmem:[#allocation7 + $0x300] sm:$0xff]
    %v1113 = vld [vmem:[#allocation7 + $0x308] sm:$0xff]
    %v1114 = vld [vmem:[#allocation7 + $0x310] sm:$0xff]
    %v1115 = vld [vmem:[#allocation7 + $0x318] sm:$0xff]
    %v1116 = vld [vmem:[#allocation7 + $0x320] sm:$0xff]
    %v1117 = vld [vmem:[#allocation7 + $0x328] sm:$0xff]
    %v1118 = vld [vmem:[#allocation7 + $0x330] sm:$0xff]
    %v1119 = vld [vmem:[#allocation7 + $0x338] sm:$0xff]
    %v1120 = vld [vmem:[#allocation7 + $0x340] sm:$0xff]
    %v1121 = vld [vmem:[#allocation7 + $0x348] sm:$0xff]
    %v1122 = vld [vmem:[#allocation7 + $0x350] sm:$0xff]
    %v1123 = vld [vmem:[#allocation7 + $0x358] sm:$0xff]
    %v1124 = vld [vmem:[#allocation7 + $0x360] sm:$0xff]
    %v1125 = vld [vmem:[#allocation7 + $0x368] sm:$0xff]
    %v1126 = vld [vmem:[#allocation7 + $0x370] sm:$0xff]
    %v1127 = vld [vmem:[#allocation7 + $0x378] sm:$0xff]
    %v1128 = vld [vmem:[#allocation7 + $0x380] sm:$0xff]
    %v1129 = vld [vmem:[#allocation7 + $0x388] sm:$0xff]
    %v1130 = vld [vmem:[#allocation7 + $0x390] sm:$0xff]
    %v1131 = vld [vmem:[#allocation7 + $0x398] sm:$0xff]
    %v1132 = vld [vmem:[#allocation7 + $0x3a0] sm:$0xff]
    %v1133 = vld [vmem:[#allocation7 + $0x3a8] sm:$0xff]
    %v1134 = vld [vmem:[#allocation7 + $0x3b0] sm:$0xff]
    %v1135 = vld [vmem:[#allocation7 + $0x3b8] sm:$0xff]
    %v1136 = vld [vmem:[#allocation7 + $0x3c0] sm:$0xff]
    %v1137 = vld [vmem:[#allocation7 + $0x3c8] sm:$0xff]
    %v1138 = vld [vmem:[#allocation7 + $0x3d0] sm:$0xff]
    %v1139 = vld [vmem:[#allocation7 + $0x3d8] sm:$0xff]
    %v1140 = vld [vmem:[#allocation7 + $0x3e0] sm:$0xff]
    %v1141 = vld [vmem:[#allocation7 + $0x3e8] sm:$0xff]
    %v1142 = vld [vmem:[#allocation7 + $0x3f0] sm:$0xff]
    %v1143 = vld [vmem:[#allocation7 + $0x3f8] sm:$0xff]
    %v1144 = vld [vmem:[%s5] sm:$0xff]
    %v1145 = vld [vmem:[%s5 + $0x8] sm:$0xff]
    %v1148 = vlaneseq
    %v1149 = vshrl.u32 %v1148, 7
    %v1150 = vsub.s32 0, %v1149
    %v1151 = vrot.slane %v1144, %v1150
    %v1152 = vlaneseq
    %v1153 = vshrl.u32 %v1152, 7
    %v1154 = vsub.s32 1, %v1153
    %v1155 = vrot.slane %v1144, %v1154
    %v1156 = vlaneseq
    %v1157 = vshrl.u32 %v1156, 7
    %v1158 = vsub.s32 2, %v1157
    %v1159 = vrot.slane %v1144, %v1158
    %v1160 = vlaneseq
    %v1161 = vshrl.u32 %v1160, 7
    %v1162 = vsub.s32 3, %v1161
    %v1163 = vrot.slane %v1144, %v1162
    %v1164 = vlaneseq
    %v1165 = vshrl.u32 %v1164, 7
    %v1166 = vsub.s32 4, %v1165
    %v1167 = vrot.slane %v1144, %v1166
    %v1168 = vlaneseq
    %v1169 = vshrl.u32 %v1168, 7
    %v1170 = vsub.s32 5, %v1169
    %v1171 = vrot.slane %v1144, %v1170
    %v1172 = vlaneseq
    %v1173 = vshrl.u32 %v1172, 7
    %v1174 = vsub.s32 6, %v1173
    %v1175 = vrot.slane %v1144, %v1174
    %v1176 = vlaneseq
    %v1177 = vshrl.u32 %v1176, 7
    %v1178 = vsub.s32 7, %v1177
    %v1179 = vrot.slane %v1144, %v1178
    %v1180 = vlaneseq
    %v1181 = vshrl.u32 %v1180, 7
    %v1182 = vsub.s32 0, %v1181
    %v1183 = vrot.slane %v1145, %v1182
    %v1184 = vlaneseq
    %v1185 = vshrl.u32 %v1184, 7
    %v1186 = vsub.s32 1, %v1185
    %v1187 = vrot.slane %v1145, %v1186
    %v1188 = vlaneseq
    %v1189 = vshrl.u32 %v1188, 7
    %v1190 = vsub.s32 2, %v1189
    %v1191 = vrot.slane %v1145, %v1190
    %v1192 = vlaneseq
    %v1193 = vshrl.u32 %v1192, 7
    %v1194 = vsub.s32 3, %v1193
    %v1195 = vrot.slane %v1145, %v1194
    %v1196 = vlaneseq
    %v1197 = vshrl.u32 %v1196, 7
    %v1198 = vsub.s32 4, %v1197
    %v1199 = vrot.slane %v1145, %v1198
    %v1200 = vlaneseq
    %v1201 = vshrl.u32 %v1200, 7
    %v1202 = vsub.s32 5, %v1201
    %v1203 = vrot.slane %v1145, %v1202
    %v1204 = vlaneseq
    %v1205 = vshrl.u32 %v1204, 7
    %v1206 = vsub.s32 6, %v1205
    %v1207 = vrot.slane %v1145, %v1206
    %v1208 = vlaneseq
    %v1209 = vshrl.u32 %v1208, 7
    %v1210 = vsub.s32 7, %v1209
    %v1211 = vrot.slane %v1145, %v1210
    %v1356 = vunpack.c.l.b16 %v1016
    %v1357 = vunpack.c.h.b16 %v1016
    %v1358 = vunpack.c.l.b16 %v1017
    %v1359 = vunpack.c.h.b16 %v1017
    %v1360 = vunpack.c.l.b16 %v1018
    %v1361 = vunpack.c.h.b16 %v1018
    %v1362 = vunpack.c.l.b16 %v1019
    %v1363 = vunpack.c.h.b16 %v1019
    %v1364 = vunpack.c.l.b16 %v1020
    %v1365 = vunpack.c.h.b16 %v1020
    %v1366 = vunpack.c.l.b16 %v1021
    %v1367 = vunpack.c.h.b16 %v1021
    %v1368 = vunpack.c.l.b16 %v1022
    %v1369 = vunpack.c.h.b16 %v1022
    %v1370 = vunpack.c.l.b16 %v1023
    %v1371 = vunpack.c.h.b16 %v1023
    %v1372 = vunpack.c.l.b16 %v1024
    %v1373 = vunpack.c.h.b16 %v1024
    %v1374 = vunpack.c.l.b16 %v1025
    %v1375 = vunpack.c.h.b16 %v1025
    %v1376 = vunpack.c.l.b16 %v1026
    %v1377 = vunpack.c.h.b16 %v1026
    %v1378 = vunpack.c.l.b16 %v1027
    %v1379 = vunpack.c.h.b16 %v1027
    %v1380 = vunpack.c.l.b16 %v1028
    %v1381 = vunpack.c.h.b16 %v1028
    %v1382 = vunpack.c.l.b16 %v1029
    %v1383 = vunpack.c.h.b16 %v1029
    %v1384 = vunpack.c.l.b16 %v1030
    %v1385 = vunpack.c.h.b16 %v1030
    %v1386 = vunpack.c.l.b16 %v1031
    %v1387 = vunpack.c.h.b16 %v1031
    %v1388 = vunpack.c.l.b16 %v1032
    %v1389 = vunpack.c.h.b16 %v1032
    %v1390 = vunpack.c.l.b16 %v1033
    %v1391 = vunpack.c.h.b16 %v1033
    %v1392 = vunpack.c.l.b16 %v1034
    %v1393 = vunpack.c.h.b16 %v1034
    %v1394 = vunpack.c.l.b16 %v1035
    %v1395 = vunpack.c.h.b16 %v1035
    %v1396 = vunpack.c.l.b16 %v1036
    %v1397 = vunpack.c.h.b16 %v1036
    %v1398 = vunpack.c.l.b16 %v1037
    %v1399 = vunpack.c.h.b16 %v1037
    %v1400 = vunpack.c.l.b16 %v1038
    %v1401 = vunpack.c.h.b16 %v1038
    %v1402 = vunpack.c.l.b16 %v1039
    %v1403 = vunpack.c.h.b16 %v1039
    %v1404 = vunpack.c.l.b16 %v1040
    %v1405 = vunpack.c.h.b16 %v1040
    %v1406 = vunpack.c.l.b16 %v1041
    %v1407 = vunpack.c.h.b16 %v1041
    %v1408 = vunpack.c.l.b16 %v1042
    %v1409 = vunpack.c.h.b16 %v1042
    %v1410 = vunpack.c.l.b16 %v1043
    %v1411 = vunpack.c.h.b16 %v1043
    %v1412 = vunpack.c.l.b16 %v1044
    %v1413 = vunpack.c.h.b16 %v1044
    %v1414 = vunpack.c.l.b16 %v1045
    %v1415 = vunpack.c.h.b16 %v1045
    %v1416 = vunpack.c.l.b16 %v1046
    %v1417 = vunpack.c.h.b16 %v1046
    %v1418 = vunpack.c.l.b16 %v1047
    %v1419 = vunpack.c.h.b16 %v1047
    %v1420 = vunpack.c.l.b16 %v1048
    %v1421 = vunpack.c.h.b16 %v1048
    %v1422 = vunpack.c.l.b16 %v1049
    %v1423 = vunpack.c.h.b16 %v1049
    %v1424 = vunpack.c.l.b16 %v1050
    %v1425 = vunpack.c.h.b16 %v1050
    %v1426 = vunpack.c.l.b16 %v1051
    %v1427 = vunpack.c.h.b16 %v1051
    %v1428 = vunpack.c.l.b16 %v1052
    %v1429 = vunpack.c.h.b16 %v1052
    %v1430 = vunpack.c.l.b16 %v1053
    %v1431 = vunpack.c.h.b16 %v1053
    %v1432 = vunpack.c.l.b16 %v1054
    %v1433 = vunpack.c.h.b16 %v1054
    %v1434 = vunpack.c.l.b16 %v1055
    %v1435 = vunpack.c.h.b16 %v1055
    %v1436 = vunpack.c.l.b16 %v1056
    %v1437 = vunpack.c.h.b16 %v1056
    %v1438 = vunpack.c.l.b16 %v1057
    %v1439 = vunpack.c.h.b16 %v1057
    %v1440 = vunpack.c.l.b16 %v1058
    %v1441 = vunpack.c.h.b16 %v1058
    %v1442 = vunpack.c.l.b16 %v1059
    %v1443 = vunpack.c.h.b16 %v1059
    %v1444 = vunpack.c.l.b16 %v1060
    %v1445 = vunpack.c.h.b16 %v1060
    %v1446 = vunpack.c.l.b16 %v1061
    %v1447 = vunpack.c.h.b16 %v1061
    %v1448 = vunpack.c.l.b16 %v1062
    %v1449 = vunpack.c.h.b16 %v1062
    %v1450 = vunpack.c.l.b16 %v1063
    %v1451 = vunpack.c.h.b16 %v1063
    %v1452 = vunpack.c.l.b16 %v1064
    %v1453 = vunpack.c.h.b16 %v1064
    %v1454 = vunpack.c.l.b16 %v1065
    %v1455 = vunpack.c.h.b16 %v1065
    %v1456 = vunpack.c.l.b16 %v1066
    %v1457 = vunpack.c.h.b16 %v1066
    %v1458 = vunpack.c.l.b16 %v1067
    %v1459 = vunpack.c.h.b16 %v1067
    %v1460 = vunpack.c.l.b16 %v1068
    %v1461 = vunpack.c.h.b16 %v1068
    %v1462 = vunpack.c.l.b16 %v1069
    %v1463 = vunpack.c.h.b16 %v1069
    %v1464 = vunpack.c.l.b16 %v1070
    %v1465 = vunpack.c.h.b16 %v1070
    %v1466 = vunpack.c.l.b16 %v1071
    %v1467 = vunpack.c.h.b16 %v1071
    %v1468 = vunpack.c.l.b16 %v1072
    %v1469 = vunpack.c.h.b16 %v1072
    %v1470 = vunpack.c.l.b16 %v1073
    %v1471 = vunpack.c.h.b16 %v1073
    %v1472 = vunpack.c.l.b16 %v1074
    %v1473 = vunpack.c.h.b16 %v1074
    %v1474 = vunpack.c.l.b16 %v1075
    %v1475 = vunpack.c.h.b16 %v1075
    %v1476 = vunpack.c.l.b16 %v1076
    %v1477 = vunpack.c.h.b16 %v1076
    %v1478 = vunpack.c.l.b16 %v1077
    %v1479 = vunpack.c.h.b16 %v1077
    %v1480 = vunpack.c.l.b16 %v1078
    %v1481 = vunpack.c.h.b16 %v1078
    %v1482 = vunpack.c.l.b16 %v1079
    %v1483 = vunpack.c.h.b16 %v1079
    %v1484 = vunpack.c.l.b16 %v1080
    %v1485 = vunpack.c.h.b16 %v1080
    %v1486 = vunpack.c.l.b16 %v1081
    %v1487 = vunpack.c.h.b16 %v1081
    %v1488 = vunpack.c.l.b16 %v1082
    %v1489 = vunpack.c.h.b16 %v1082
    %v1490 = vunpack.c.l.b16 %v1083
    %v1491 = vunpack.c.h.b16 %v1083
    %v1492 = vunpack.c.l.b16 %v1084
    %v1493 = vunpack.c.h.b16 %v1084
    %v1494 = vunpack.c.l.b16 %v1085
    %v1495 = vunpack.c.h.b16 %v1085
    %v1496 = vunpack.c.l.b16 %v1086
    %v1497 = vunpack.c.h.b16 %v1086
    %v1498 = vunpack.c.l.b16 %v1087
    %v1499 = vunpack.c.h.b16 %v1087
    %v1500 = vunpack.c.l.b16 %v1088
    %v1501 = vunpack.c.h.b16 %v1088
    %v1502 = vunpack.c.l.b16 %v1089
    %v1503 = vunpack.c.h.b16 %v1089
    %v1504 = vunpack.c.l.b16 %v1090
    %v1505 = vunpack.c.h.b16 %v1090
    %v1506 = vunpack.c.l.b16 %v1091
    %v1507 = vunpack.c.h.b16 %v1091
    %v1508 = vunpack.c.l.b16 %v1092
    %v1509 = vunpack.c.h.b16 %v1092
    %v1510 = vunpack.c.l.b16 %v1093
    %v1511 = vunpack.c.h.b16 %v1093
    %v1512 = vunpack.c.l.b16 %v1094
    %v1513 = vunpack.c.h.b16 %v1094
    %v1514 = vunpack.c.l.b16 %v1095
    %v1515 = vunpack.c.h.b16 %v1095
    %v1516 = vunpack.c.l.b16 %v1096
    %v1517 = vunpack.c.h.b16 %v1096
    %v1518 = vunpack.c.l.b16 %v1097
    %v1519 = vunpack.c.h.b16 %v1097
    %v1520 = vunpack.c.l.b16 %v1098
    %v1521 = vunpack.c.h.b16 %v1098
    %v1522 = vunpack.c.l.b16 %v1099
    %v1523 = vunpack.c.h.b16 %v1099
    %v1524 = vunpack.c.l.b16 %v1100
    %v1525 = vunpack.c.h.b16 %v1100
    %v1526 = vunpack.c.l.b16 %v1101
    %v1527 = vunpack.c.h.b16 %v1101
    %v1528 = vunpack.c.l.b16 %v1102
    %v1529 = vunpack.c.h.b16 %v1102
    %v1530 = vunpack.c.l.b16 %v1103
    %v1531 = vunpack.c.h.b16 %v1103
    %v1532 = vunpack.c.l.b16 %v1104
    %v1533 = vunpack.c.h.b16 %v1104
    %v1534 = vunpack.c.l.b16 %v1105
    %v1535 = vunpack.c.h.b16 %v1105
    %v1536 = vunpack.c.l.b16 %v1106
    %v1537 = vunpack.c.h.b16 %v1106
    %v1538 = vunpack.c.l.b16 %v1107
    %v1539 = vunpack.c.h.b16 %v1107
    %v1540 = vunpack.c.l.b16 %v1108
    %v1541 = vunpack.c.h.b16 %v1108
    %v1542 = vunpack.c.l.b16 %v1109
    %v1543 = vunpack.c.h.b16 %v1109
    %v1544 = vunpack.c.l.b16 %v1110
    %v1545 = vunpack.c.h.b16 %v1110
    %v1546 = vunpack.c.l.b16 %v1111
    %v1547 = vunpack.c.h.b16 %v1111
    %v1548 = vunpack.c.l.b16 %v1112
    %v1549 = vunpack.c.h.b16 %v1112
    %v1550 = vunpack.c.l.b16 %v1113
    %v1551 = vunpack.c.h.b16 %v1113
    %v1552 = vunpack.c.l.b16 %v1114
    %v1553 = vunpack.c.h.b16 %v1114
    %v1554 = vunpack.c.l.b16 %v1115
    %v1555 = vunpack.c.h.b16 %v1115
    %v1556 = vunpack.c.l.b16 %v1116
    %v1557 = vunpack.c.h.b16 %v1116
    %v1558 = vunpack.c.l.b16 %v1117
    %v1559 = vunpack.c.h.b16 %v1117
    %v1560 = vunpack.c.l.b16 %v1118
    %v1561 = vunpack.c.h.b16 %v1118
    %v1562 = vunpack.c.l.b16 %v1119
    %v1563 = vunpack.c.h.b16 %v1119
    %v1564 = vunpack.c.l.b16 %v1120
    %v1565 = vunpack.c.h.b16 %v1120
    %v1566 = vunpack.c.l.b16 %v1121
    %v1567 = vunpack.c.h.b16 %v1121
    %v1568 = vunpack.c.l.b16 %v1122
    %v1569 = vunpack.c.h.b16 %v1122
    %v1570 = vunpack.c.l.b16 %v1123
    %v1571 = vunpack.c.h.b16 %v1123
    %v1572 = vunpack.c.l.b16 %v1124
    %v1573 = vunpack.c.h.b16 %v1124
    %v1574 = vunpack.c.l.b16 %v1125
    %v1575 = vunpack.c.h.b16 %v1125
    %v1576 = vunpack.c.l.b16 %v1126
    %v1577 = vunpack.c.h.b16 %v1126
    %v1578 = vunpack.c.l.b16 %v1127
    %v1579 = vunpack.c.h.b16 %v1127
    %v1580 = vunpack.c.l.b16 %v1128
    %v1581 = vunpack.c.h.b16 %v1128
    %v1582 = vunpack.c.l.b16 %v1129
    %v1583 = vunpack.c.h.b16 %v1129
    %v1584 = vunpack.c.l.b16 %v1130
    %v1585 = vunpack.c.h.b16 %v1130
    %v1586 = vunpack.c.l.b16 %v1131
    %v1587 = vunpack.c.h.b16 %v1131
    %v1588 = vunpack.c.l.b16 %v1132
    %v1589 = vunpack.c.h.b16 %v1132
    %v1590 = vunpack.c.l.b16 %v1133
    %v1591 = vunpack.c.h.b16 %v1133
    %v1592 = vunpack.c.l.b16 %v1134
    %v1593 = vunpack.c.h.b16 %v1134
    %v1594 = vunpack.c.l.b16 %v1135
    %v1595 = vunpack.c.h.b16 %v1135
    %v1596 = vunpack.c.l.b16 %v1136
    %v1597 = vunpack.c.h.b16 %v1136
    %v1598 = vunpack.c.l.b16 %v1137
    %v1599 = vunpack.c.h.b16 %v1137
    %v1600 = vunpack.c.l.b16 %v1138
    %v1601 = vunpack.c.h.b16 %v1138
    %v1602 = vunpack.c.l.b16 %v1139
    %v1603 = vunpack.c.h.b16 %v1139
    %v1604 = vunpack.c.l.b16 %v1140
    %v1605 = vunpack.c.h.b16 %v1140
    %v1606 = vunpack.c.l.b16 %v1141
    %v1607 = vunpack.c.h.b16 %v1141
    %v1608 = vunpack.c.l.b16 %v1142
    %v1609 = vunpack.c.h.b16 %v1142
    %v1610 = vunpack.c.l.b16 %v1143
    %v1611 = vunpack.c.h.b16 %v1143
    %v1612 = vpack.c.b16 %v1372, %v1356
    %v1613 = vpack.c.b16 %v1373, %v1357
    %v1614 = vpack.c.b16 %v1374, %v1358
    %v1615 = vpack.c.b16 %v1375, %v1359
    %v1616 = vpack.c.b16 %v1376, %v1360
    %v1617 = vpack.c.b16 %v1377, %v1361
    %v1618 = vpack.c.b16 %v1378, %v1362
    %v1619 = vpack.c.b16 %v1379, %v1363
    %v1620 = vpack.c.b16 %v1380, %v1364
    %v1621 = vpack.c.b16 %v1381, %v1365
    %v1622 = vpack.c.b16 %v1382, %v1366
    %v1623 = vpack.c.b16 %v1383, %v1367
    %v1624 = vpack.c.b16 %v1384, %v1368
    %v1625 = vpack.c.b16 %v1385, %v1369
    %v1626 = vpack.c.b16 %v1386, %v1370
    %v1627 = vpack.c.b16 %v1387, %v1371
    %v1628 = vpack.c.b16 %v1404, %v1388
    %v1629 = vpack.c.b16 %v1405, %v1389
    %v1630 = vpack.c.b16 %v1406, %v1390
    %v1631 = vpack.c.b16 %v1407, %v1391
    %v1632 = vpack.c.b16 %v1408, %v1392
    %v1633 = vpack.c.b16 %v1409, %v1393
    %v1634 = vpack.c.b16 %v1410, %v1394
    %v1635 = vpack.c.b16 %v1411, %v1395
    %v1636 = vpack.c.b16 %v1412, %v1396
    %v1637 = vpack.c.b16 %v1413, %v1397
    %v1638 = vpack.c.b16 %v1414, %v1398
    %v1639 = vpack.c.b16 %v1415, %v1399
    %v1640 = vpack.c.b16 %v1416, %v1400
    %v1641 = vpack.c.b16 %v1417, %v1401
    %v1642 = vpack.c.b16 %v1418, %v1402
    %v1643 = vpack.c.b16 %v1419, %v1403
    %v1644 = vpack.c.b16 %v1436, %v1420
    %v1645 = vpack.c.b16 %v1437, %v1421
    %v1646 = vpack.c.b16 %v1438, %v1422
    %v1647 = vpack.c.b16 %v1439, %v1423
    %v1648 = vpack.c.b16 %v1440, %v1424
    %v1649 = vpack.c.b16 %v1441, %v1425
    %v1650 = vpack.c.b16 %v1442, %v1426
    %v1651 = vpack.c.b16 %v1443, %v1427
    %v1652 = vpack.c.b16 %v1444, %v1428
    %v1653 = vpack.c.b16 %v1445, %v1429
    %v1654 = vpack.c.b16 %v1446, %v1430
    %v1655 = vpack.c.b16 %v1447, %v1431
    %v1656 = vpack.c.b16 %v1448, %v1432
    %v1657 = vpack.c.b16 %v1449, %v1433
    %v1658 = vpack.c.b16 %v1450, %v1434
    %v1659 = vpack.c.b16 %v1451, %v1435
    %v1660 = vpack.c.b16 %v1468, %v1452
    %v1661 = vpack.c.b16 %v1469, %v1453
    %v1662 = vpack.c.b16 %v1470, %v1454
    %v1663 = vpack.c.b16 %v1471, %v1455
    %v1664 = vpack.c.b16 %v1472, %v1456
    %v1665 = vpack.c.b16 %v1473, %v1457
    %v1666 = vpack.c.b16 %v1474, %v1458
    %v1667 = vpack.c.b16 %v1475, %v1459
    %v1668 = vpack.c.b16 %v1476, %v1460
    %v1669 = vpack.c.b16 %v1477, %v1461
    %v1670 = vpack.c.b16 %v1478, %v1462
    %v1671 = vpack.c.b16 %v1479, %v1463
    %v1672 = vpack.c.b16 %v1480, %v1464
    %v1673 = vpack.c.b16 %v1481, %v1465
    %v1674 = vpack.c.b16 %v1482, %v1466
    %v1675 = vpack.c.b16 %v1483, %v1467
    %v1676 = vpack.c.b16 %v1500, %v1484
    %v1677 = vpack.c.b16 %v1501, %v1485
    %v1678 = vpack.c.b16 %v1502, %v1486
    %v1679 = vpack.c.b16 %v1503, %v1487
    %v1680 = vpack.c.b16 %v1504, %v1488
    %v1681 = vpack.c.b16 %v1505, %v1489
    %v1682 = vpack.c.b16 %v1506, %v1490
    %v1683 = vpack.c.b16 %v1507, %v1491
    %v1684 = vpack.c.b16 %v1508, %v1492
    %v1685 = vpack.c.b16 %v1509, %v1493
    %v1686 = vpack.c.b16 %v1510, %v1494
    %v1687 = vpack.c.b16 %v1511, %v1495
    %v1688 = vpack.c.b16 %v1512, %v1496
    %v1689 = vpack.c.b16 %v1513, %v1497
    %v1690 = vpack.c.b16 %v1514, %v1498
    %v1691 = vpack.c.b16 %v1515, %v1499
    %v1692 = vpack.c.b16 %v1532, %v1516
    %v1693 = vpack.c.b16 %v1533, %v1517
    %v1694 = vpack.c.b16 %v1534, %v1518
    %v1695 = vpack.c.b16 %v1535, %v1519
    %v1696 = vpack.c.b16 %v1536, %v1520
    %v1697 = vpack.c.b16 %v1537, %v1521
    %v1698 = vpack.c.b16 %v1538, %v1522
    %v1699 = vpack.c.b16 %v1539, %v1523
    %v1700 = vpack.c.b16 %v1540, %v1524
    %v1701 = vpack.c.b16 %v1541, %v1525
    %v1702 = vpack.c.b16 %v1542, %v1526
    %v1703 = vpack.c.b16 %v1543, %v1527
    %v1704 = vpack.c.b16 %v1544, %v1528
    %v1705 = vpack.c.b16 %v1545, %v1529
    %v1706 = vpack.c.b16 %v1546, %v1530
    %v1707 = vpack.c.b16 %v1547, %v1531
    %v1708 = vpack.c.b16 %v1564, %v1548
    %v1709 = vpack.c.b16 %v1565, %v1549
    %v1710 = vpack.c.b16 %v1566, %v1550
    %v1711 = vpack.c.b16 %v1567, %v1551
    %v1712 = vpack.c.b16 %v1568, %v1552
    %v1713 = vpack.c.b16 %v1569, %v1553
    %v1714 = vpack.c.b16 %v1570, %v1554
    %v1715 = vpack.c.b16 %v1571, %v1555
    %v1716 = vpack.c.b16 %v1572, %v1556
    %v1717 = vpack.c.b16 %v1573, %v1557
    %v1718 = vpack.c.b16 %v1574, %v1558
    %v1719 = vpack.c.b16 %v1575, %v1559
    %v1720 = vpack.c.b16 %v1576, %v1560
    %v1721 = vpack.c.b16 %v1577, %v1561
    %v1722 = vpack.c.b16 %v1578, %v1562
    %v1723 = vpack.c.b16 %v1579, %v1563
    %v1724 = vpack.c.b16 %v1596, %v1580
    %v1725 = vpack.c.b16 %v1597, %v1581
    %v1726 = vpack.c.b16 %v1598, %v1582
    %v1727 = vpack.c.b16 %v1599, %v1583
    %v1728 = vpack.c.b16 %v1600, %v1584
    %v1729 = vpack.c.b16 %v1601, %v1585
    %v1730 = vpack.c.b16 %v1602, %v1586
    %v1731 = vpack.c.b16 %v1603, %v1587
    %v1732 = vpack.c.b16 %v1604, %v1588
    %v1733 = vpack.c.b16 %v1605, %v1589
    %v1734 = vpack.c.b16 %v1606, %v1590
    %v1735 = vpack.c.b16 %v1607, %v1591
    %v1736 = vpack.c.b16 %v1608, %v1592
    %v1737 = vpack.c.b16 %v1609, %v1593
    %v1738 = vpack.c.b16 %v1610, %v1594
    %v1739 = vpack.c.b16 %v1611, %v1595
    %1868 = vmatprep.subr.bf16.mxu0 %v1613
    %1869 = vmatpush1.bf16.msra.mxu0 %v1612
    %1870 = vmatprep.subr.bf16.mxu0 %v1629
    %1871 = vmatpush1.bf16.msra.mxu0 %v1628
    %1872 = vmatprep.subr.bf16.mxu0 %v1645
    %1873 = vmatpush1.bf16.msra.mxu0 %v1644
    %1874 = vmatprep.subr.bf16.mxu0 %v1661
    %1875 = vmatpush1.bf16.msra.mxu0 %v1660
    %1876 = vmatprep.subr.bf16.mxu0 %v1677
    %1877 = vmatpush1.bf16.msra.mxu0 %v1676
    %1878 = vmatprep.subr.bf16.mxu0 %v1693
    %1879 = vmatpush1.bf16.msra.mxu0 %v1692
    %1880 = vmatprep.subr.bf16.mxu0 %v1709
    %1881 = vmatpush1.bf16.msra.mxu0 %v1708
    %1882 = vmatprep.subr.bf16.mxu0 %v1725
    %1883 = vmatpush1.bf16.msra.mxu0 %v1724
    %1884 = vmatprep.subr.bf16.mxu0 0
    %1885 = vmatpush1.bf16.msra.mxu0 0
    %1886 = vmatprep.subr.bf16.mxu0 0
    %1887 = vmatpush1.bf16.msra.mxu0 0
    %1888 = vmatprep.subr.bf16.mxu0 0
    %1889 = vmatpush1.bf16.msra.mxu0 0
    %1890 = vmatprep.subr.bf16.mxu0 0
    %1891 = vmatpush1.bf16.msra.mxu0 0
    %1892 = vmatprep.subr.bf16.mxu0 0
    %1893 = vmatpush1.bf16.msra.mxu0 0
    %1894 = vmatprep.subr.bf16.mxu0 0
    %1895 = vmatpush1.bf16.msra.mxu0 0
    %1896 = vmatprep.subr.bf16.mxu0 0
    %1897 = vmatpush1.bf16.msra.mxu0 0
    %1898 = vmatprep.subr.bf16.mxu0 0
    %1899 = vmatpush1.bf16.msra.mxu0 0
    %1900 = vmatprep.mubr.bf16.mxu0 0
    %1901 = vmatmul.mubr.bf16.gmra.mrb[0].mxu0 %v1000
    %v1902 = vpop.f32.mrb[0].mxu0
    %v1903 = vadd.f32 %v1151, %v1902
    %v1904 = vpop.f32.mrb[0].mxu0
    %v1905 = vadd.f32 %v1155, %v1904
    %v1906 = vpop.f32.mrb[0].mxu0
    %v1907 = vadd.f32 %v1151, %v1906
    %v1908 = vpop.f32.mrb[0].mxu0
    %v1909 = vadd.f32 %v1155, %v1908
    %1910 = vmatprep.mubr.bf16.mxu0 0
    %1911 = vmatmul.mubr.bf16.gmra.mrb[0].mxu0 %v1001
    %v1912 = vpop.f32.mrb[0].mxu0
    %v1913 = vadd.f32 %v1151, %v1912
    %v1914 = vpop.f32.mrb[0].mxu0
    %v1915 = vadd.f32 %v1155, %v1914
    %v1916 = vpop.f32.mrb[0].mxu0
    %v1917 = vadd.f32 %v1151, %v1916
    %v1918 = vpop.f32.mrb[0].mxu0
    %v1919 = vadd.f32 %v1155, %v1918
    %1920 = vmatprep.mubr.bf16.mxu0 0
    %1921 = vmatmul.mubr.bf16.gmra.mrb[0].mxu0 %v1002
    %v1922 = vpop.f32.mrb[0].mxu0
    %v1923 = vadd.f32 %v1151, %v1922
    %v1924 = vpop.f32.mrb[0].mxu0
    %v1925 = vadd.f32 %v1155, %v1924
    %v1926 = vpop.f32.mrb[0].mxu0
    %v1927 = vadd.f32 %v1151, %v1926
    %v1928 = vpop.f32.mrb[0].mxu0
    %v1929 = vadd.f32 %v1155, %v1928
    %1930 = vmatprep.mubr.bf16.mxu0 0
    %1931 = vmatmul.mubr.bf16.gmra.mrb[0].mxu0 %v1003
    %v1932 = vpop.f32.mrb[0].mxu0
    %v1933 = vadd.f32 %v1151, %v1932
    %v1934 = vpop.f32.mrb[0].mxu0
    %v1935 = vadd.f32 %v1155, %v1934
    %v1936 = vpop.f32.mrb[0].mxu0
    %v1937 = vadd.f32 %v1151, %v1936
    %v1938 = vpop.f32.mrb[0].mxu0
    %v1939 = vadd.f32 %v1155, %v1938
    %1940 = vmatprep.mubr.bf16.mxu0 0
    %1941 = vmatmul.mubr.bf16.gmra.mrb[0].mxu0 %v1004
    %v1942 = vpop.f32.mrb[0].mxu0
    %v1943 = vadd.f32 %v1151, %v1942
    %v1944 = vpop.f32.mrb[0].mxu0
    %v1945 = vadd.f32 %v1155, %v1944
    %v1946 = vpop.f32.mrb[0].mxu0
    %v1947 = vadd.f32 %v1151, %v1946
    %v1948 = vpop.f32.mrb[0].mxu0
    %v1949 = vadd.f32 %v1155, %v1948
    %1950 = vmatprep.mubr.bf16.mxu0 0
    %1951 = vmatmul.mubr.bf16.gmra.mrb[0].mxu0 %v1005
    %v1952 = vpop.f32.mrb[0].mxu0
    %v1953 = vadd.f32 %v1151, %v1952
    %v1954 = vpop.f32.mrb[0].mxu0
    %v1955 = vadd.f32 %v1155, %v1954
    %v1956 = vpop.f32.mrb[0].mxu0
    %v1957 = vadd.f32 %v1151, %v1956
    %v1958 = vpop.f32.mrb[0].mxu0
    %v1959 = vadd.f32 %v1155, %v1958
    %1960 = vmatprep.mubr.bf16.mxu0 0
    %1961 = vmatmul.mubr.bf16.gmra.mrb[0].mxu0 %v1006
    %v1962 = vpop.f32.mrb[0].mxu0
    %v1963 = vadd.f32 %v1151, %v1962
    %v1964 = vpop.f32.mrb[0].mxu0
    %v1965 = vadd.f32 %v1155, %v1964
    %v1966 = vpop.f32.mrb[0].mxu0
    %v1967 = vadd.f32 %v1151, %v1966
    %v1968 = vpop.f32.mrb[0].mxu0
    %v1969 = vadd.f32 %v1155, %v1968
    %1970 = vmatprep.mubr.bf16.mxu0 0
    %1971 = vmatmul.mubr.bf16.gmra.mrb[0].mxu0 %v1007
    %v1972 = vpop.f32.mrb[0].mxu0
    %v1973 = vadd.f32 %v1151, %v1972
    %v1974 = vpop.f32.mrb[0].mxu0
    %v1975 = vadd.f32 %v1155, %v1974
    %v1976 = vpop.f32.mrb[0].mxu0
    %v1977 = vadd.f32 %v1151, %v1976
    %v1978 = vpop.f32.mrb[0].mxu0
    %v1979 = vadd.f32 %v1155, %v1978
    %1980 = vmatprep.mubr.bf16.mxu0 0
    %1981 = vmatmul.mubr.bf16.gmra.mrb[0].mxu0 %v1008
    %v1982 = vpop.f32.mrb[0].mxu0
    %v1983 = vadd.f32 %v1151, %v1982
    %v1984 = vpop.f32.mrb[0].mxu0
    %v1985 = vadd.f32 %v1155, %v1984
    %v1986 = vpop.f32.mrb[0].mxu0
    %v1987 = vadd.f32 %v1151, %v1986
    %v1988 = vpop.f32.mrb[0].mxu0
    %v1989 = vadd.f32 %v1155, %v1988
    %1990 = vmatprep.mubr.bf16.mxu0 0
    %1991 = vmatmul.mubr.bf16.gmra.mrb[0].mxu0 %v1009
    %v1992 = vpop.f32.mrb[0].mxu0
    %v1993 = vadd.f32 %v1151, %v1992
    %v1994 = vpop.f32.mrb[0].mxu0
    %v1995 = vadd.f32 %v1155, %v1994
    %v1996 = vpop.f32.mrb[0].mxu0
    %v1997 = vadd.f32 %v1151, %v1996
    %v1998 = vpop.f32.mrb[0].mxu0
    %v1999 = vadd.f32 %v1155, %v1998
    %2000 = vmatprep.mubr.bf16.mxu0 0
    %2001 = vmatmul.mubr.bf16.gmra.mrb[0].mxu0 %v1010
    %v2002 = vpop.f32.mrb[0].mxu0
    %v2003 = vadd.f32 %v1151, %v2002
    %v2004 = vpop.f32.mrb[0].mxu0
    %v2005 = vadd.f32 %v1155, %v2004
    %v2006 = vpop.f32.mrb[0].mxu0
    %v2007 = vadd.f32 %v1151, %v2006
    %v2008 = vpop.f32.mrb[0].mxu0
    %v2009 = vadd.f32 %v1155, %v2008
    %2010 = vmatprep.mubr.bf16.mxu0 0
    %2011 = vmatmul.mubr.bf16.gmra.mrb[0].mxu0 %v1011
    %v2012 = vpop.f32.mrb[0].mxu0
    %v2013 = vadd.f32 %v1151, %v2012
    %v2014 = vpop.f32.mrb[0].mxu0
    %v2015 = vadd.f32 %v1155, %v2014
    %v2016 = vpop.f32.mrb[0].mxu0
    %v2017 = vadd.f32 %v1151, %v2016
    %v2018 = vpop.f32.mrb[0].mxu0
    %v2019 = vadd.f32 %v1155, %v2018
    %2020 = vmatprep.mubr.bf16.mxu0 0
    %2021 = vmatmul.mubr.bf16.gmra.mrb[0].mxu0 %v1012
    %v2022 = vpop.f32.mrb[0].mxu0
    %v2023 = vadd.f32 %v1151, %v2022
    %v2024 = vpop.f32.mrb[0].mxu0
    %v2025 = vadd.f32 %v1155, %v2024
    %v2026 = vpop.f32.mrb[0].mxu0
    %v2027 = vadd.f32 %v1151, %v2026
    %v2028 = vpop.f32.mrb[0].mxu0
    %v2029 = vadd.f32 %v1155, %v2028
    %2030 = vmatprep.mubr.bf16.mxu0 0
    %2031 = vmatmul.mubr.bf16.gmra.mrb[0].mxu0 %v1013
    %v2032 = vpop.f32.mrb[0].mxu0
    %v2033 = vadd.f32 %v1151, %v2032
    %v2034 = vpop.f32.mrb[0].mxu0
    %v2035 = vadd.f32 %v1155, %v2034
    %v2036 = vpop.f32.mrb[0].mxu0
    %v2037 = vadd.f32 %v1151, %v2036
    %v2038 = vpop.f32.mrb[0].mxu0
    %v2039 = vadd.f32 %v1155, %v2038
    %2040 = vmatprep.mubr.bf16.mxu0 0
    %2041 = vmatmul.mubr.bf16.gmra.mrb[0].mxu0 %v1014
    %v2042 = vpop.f32.mrb[0].mxu0
    %v2043 = vadd.f32 %v1151, %v2042
    %v2044 = vpop.f32.mrb[0].mxu0
    %v2045 = vadd.f32 %v1155, %v2044
    %v2046 = vpop.f32.mrb[0].mxu0
    %v2047 = vadd.f32 %v1151, %v2046
    %v2048 = vpop.f32.mrb[0].mxu0
    %v2049 = vadd.f32 %v1155, %v2048
    %2050 = vmatprep.mubr.bf16.mxu0 0
    %2051 = vmatmul.mubr.bf16.gmra.mrb[0].mxu0 %v1015
    %v2052 = vpop.f32.mrb[0].mxu0
    %v2053 = vadd.f32 %v1151, %v2052
    %v2054 = vpop.f32.mrb[0].mxu0
    %v2055 = vadd.f32 %v1155, %v2054
    %v2056 = vpop.f32.mrb[0].mxu0
    %v2057 = vadd.f32 %v1151, %v2056
    %v2058 = vpop.f32.mrb[0].mxu0
    %v2059 = vadd.f32 %v1155, %v2058
    %2060 = vdwg.mxu0
    %2061 = vmatprep.subr.bf16.mxu0 %v1615
    %2062 = vmatpush1.bf16.msra.mxu0 %v1614
    %2063 = vmatprep.subr.bf16.mxu0 %v1631
    %2064 = vmatpush1.bf16.msra.mxu0 %v1630
    %2065 = vmatprep.subr.bf16.mxu0 %v1647
    %2066 = vmatpush1.bf16.msra.mxu0 %v1646
    %2067 = vmatprep.subr.bf16.mxu0 %v1663
    %2068 = vmatpush1.bf16.msra.mxu0 %v1662
    %2069 = vmatprep.subr.bf16.mxu0 %v1679
    %2070 = vmatpush1.bf16.msra.mxu0 %v1678
    %2071 = vmatprep.subr.bf16.mxu0 %v1695
    %2072 = vmatpush1.bf16.msra.mxu0 %v1694
    %2073 = vmatprep.subr.bf16.mxu0 %v1711
    %2074 = vmatpush1.bf16.msra.mxu0 %v1710
    %2075 = vmatprep.subr.bf16.mxu0 %v1727
    %2076 = vmatpush1.bf16.msra.mxu0 %v1726
    %2077 = vmatprep.subr.bf16.mxu0 0
    %2078 = vmatpush1.bf16.msra.mxu0 0
    %2079 = vmatprep.subr.bf16.mxu0 0
    %2080 = vmatpush1.bf16.msra.mxu0 0
    %2081 = vmatprep.subr.bf16.mxu0 0
    %2082 = vmatpush1.bf16.msra.mxu0 0
    %2083 = vmatprep.subr.bf16.mxu0 0
    %2084 = vmatpush1.bf16.msra.mxu0 0
    %2085 = vmatprep.subr.bf16.mxu0 0
    %2086 = vmatpush1.bf16.msra.mxu0 0
    %2087 = vmatprep.subr.bf16.mxu0 0
    %2088 = vmatpush1.bf16.msra.mxu0 0
    %2089 = vmatprep.subr.bf16.mxu0 0
    %2090 = vmatpush1.bf16.msra.mxu0 0
    %2091 = vmatprep.subr.bf16.mxu0 0
    %2092 = vmatpush1.bf16.msra.mxu0 0
    %2093 = vmatprep.mubr.bf16.mxu0 0
    %2094 = vmatmul.mubr.bf16.gmra.mrb[0].mxu0 %v1000
    %v2095 = vpop.f32.mrb[0].mxu0
    %v2096 = vadd.f32 %v1159, %v2095
    %v2097 = vpop.f32.mrb[0].mxu0
    %v2098 = vadd.f32 %v1163, %v2097
    %v2099 = vpop.f32.mrb[0].mxu0
    %v2100 = vadd.f32 %v1159, %v2099
    %v2101 = vpop.f32.mrb[0].mxu0
    %v2102 = vadd.f32 %v1163, %v2101
    %2103 = vmatprep.mubr.bf16.mxu0 0
    %2104 = vmatmul.mubr.bf16.gmra.mrb[0].mxu0 %v1001
    %v2105 = vpop.f32.mrb[0].mxu0
    %v2106 = vadd.f32 %v1159, %v2105
    %v2107 = vpop.f32.mrb[0].mxu0
    %v2108 = vadd.f32 %v1163, %v2107
    %v2109 = vpop.f32.mrb[0].mxu0
    %v2110 = vadd.f32 %v1159, %v2109
    %v2111 = vpop.f32.mrb[0].mxu0
    %v2112 = vadd.f32 %v1163, %v2111
    %2113 = vmatprep.mubr.bf16.mxu0 0
    %2114 = vmatmul.mubr.bf16.gmra.mrb[0].mxu0 %v1002
    %v2115 = vpop.f32.mrb[0].mxu0
    %v2116 = vadd.f32 %v1159, %v2115
    %v2117 = vpop.f32.mrb[0].mxu0
    %v2118 = vadd.f32 %v1163, %v2117
    %v2119 = vpop.f32.mrb[0].mxu0
    %v2120 = vadd.f32 %v1159, %v2119
    %v2121 = vpop.f32.mrb[0].mxu0
    %v2122 = vadd.f32 %v1163, %v2121
    %2123 = vmatprep.mubr.bf16.mxu0 0
    %2124 = vmatmul.mubr.bf16.gmra.mrb[0].mxu0 %v1003
    %v2125 = vpop.f32.mrb[0].mxu0
    %v2126 = vadd.f32 %v1159, %v2125
    %v2127 = vpop.f32.mrb[0].mxu0
    %v2128 = vadd.f32 %v1163, %v2127
    %v2129 = vpop.f32.mrb[0].mxu0
    %v2130 = vadd.f32 %v1159, %v2129
    %v2131 = vpop.f32.mrb[0].mxu0
    %v2132 = vadd.f32 %v1163, %v2131
    %2133 = vmatprep.mubr.bf16.mxu0 0
    %2134 = vmatmul.mubr.bf16.gmra.mrb[0].mxu0 %v1004
    %v2135 = vpop.f32.mrb[0].mxu0
    %v2136 = vadd.f32 %v1159, %v2135
    %v2137 = vpop.f32.mrb[0].mxu0
    %v2138 = vadd.f32 %v1163, %v2137
    %v2139 = vpop.f32.mrb[0].mxu0
    %v2140 = vadd.f32 %v1159, %v2139
    %v2141 = vpop.f32.mrb[0].mxu0
    %v2142 = vadd.f32 %v1163, %v2141
    %2143 = vmatprep.mubr.bf16.mxu0 0
    %2144 = vmatmul.mubr.bf16.gmra.mrb[0].mxu0 %v1005
    %v2145 = vpop.f32.mrb[0].mxu0
    %v2146 = vadd.f32 %v1159, %v2145
    %v2147 = vpop.f32.mrb[0].mxu0
    %v2148 = vadd.f32 %v1163, %v2147
    %v2149 = vpop.f32.mrb[0].mxu0
    %v2150 = vadd.f32 %v1159, %v2149
    %v2151 = vpop.f32.mrb[0].mxu0
    %v2152 = vadd.f32 %v1163, %v2151
    %2153 = vmatprep.mubr.bf16.mxu0 0
    %2154 = vmatmul.mubr.bf16.gmra.mrb[0].mxu0 %v1006
    %v2155 = vpop.f32.mrb[0].mxu0
    %v2156 = vadd.f32 %v1159, %v2155
    %v2157 = vpop.f32.mrb[0].mxu0
    %v2158 = vadd.f32 %v1163, %v2157
    %v2159 = vpop.f32.mrb[0].mxu0
    %v2160 = vadd.f32 %v1159, %v2159
    %v2161 = vpop.f32.mrb[0].mxu0
    %v2162 = vadd.f32 %v1163, %v2161
    %2163 = vmatprep.mubr.bf16.mxu0 0
    %2164 = vmatmul.mubr.bf16.gmra.mrb[0].mxu0 %v1007
    %v2165 = vpop.f32.mrb[0].mxu0
    %v2166 = vadd.f32 %v1159, %v2165
    %v2167 = vpop.f32.mrb[0].mxu0
    %v2168 = vadd.f32 %v1163, %v2167
    %v2169 = vpop.f32.mrb[0].mxu0
    %v2170 = vadd.f32 %v1159, %v2169
    %v2171 = vpop.f32.mrb[0].mxu0
    %v2172 = vadd.f32 %v1163, %v2171
    %2173 = vmatprep.mubr.bf16.mxu0 0
    %2174 = vmatmul.mubr.bf16.gmra.mrb[0].mxu0 %v1008
    %v2175 = vpop.f32.mrb[0].mxu0
    %v2176 = vadd.f32 %v1159, %v2175
    %v2177 = vpop.f32.mrb[0].mxu0
    %v2178 = vadd.f32 %v1163, %v2177
    %v2179 = vpop.f32.mrb[0].mxu0
    %v2180 = vadd.f32 %v1159, %v2179
    %v2181 = vpop.f32.mrb[0].mxu0
    %v2182 = vadd.f32 %v1163, %v2181
    %2183 = vmatprep.mubr.bf16.mxu0 0
    %2184 = vmatmul.mubr.bf16.gmra.mrb[0].mxu0 %v1009
    %v2185 = vpop.f32.mrb[0].mxu0
    %v2186 = vadd.f32 %v1159, %v2185
    %v2187 = vpop.f32.mrb[0].mxu0
    %v2188 = vadd.f32 %v1163, %v2187
    %v2189 = vpop.f32.mrb[0].mxu0
    %v2190 = vadd.f32 %v1159, %v2189
    %v2191 = vpop.f32.mrb[0].mxu0
    %v2192 = vadd.f32 %v1163, %v2191
    %2193 = vmatprep.mubr.bf16.mxu0 0
    %2194 = vmatmul.mubr.bf16.gmra.mrb[0].mxu0 %v1010
    %v2195 = vpop.f32.mrb[0].mxu0
    %v2196 = vadd.f32 %v1159, %v2195
    %v2197 = vpop.f32.mrb[0].mxu0
    %v2198 = vadd.f32 %v1163, %v2197
    %v2199 = vpop.f32.mrb[0].mxu0
    %v2200 = vadd.f32 %v1159, %v2199
    %v2201 = vpop.f32.mrb[0].mxu0
    %v2202 = vadd.f32 %v1163, %v2201
    %2203 = vmatprep.mubr.bf16.mxu0 0
    %2204 = vmatmul.mubr.bf16.gmra.mrb[0].mxu0 %v1011
    %v2205 = vpop.f32.mrb[0].mxu0
    %v2206 = vadd.f32 %v1159, %v2205
    %v2207 = vpop.f32.mrb[0].mxu0
    %v2208 = vadd.f32 %v1163, %v2207
    %v2209 = vpop.f32.mrb[0].mxu0
    %v2210 = vadd.f32 %v1159, %v2209
    %v2211 = vpop.f32.mrb[0].mxu0
    %v2212 = vadd.f32 %v1163, %v2211
    %2213 = vmatprep.mubr.bf16.mxu0 0
    %2214 = vmatmul.mubr.bf16.gmra.mrb[0].mxu0 %v1012
    %v2215 = vpop.f32.mrb[0].mxu0
    %v2216 = vadd.f32 %v1159, %v2215
    %v2217 = vpop.f32.mrb[0].mxu0
    %v2218 = vadd.f32 %v1163, %v2217
    %v2219 = vpop.f32.mrb[0].mxu0
    %v2220 = vadd.f32 %v1159, %v2219
    %v2221 = vpop.f32.mrb[0].mxu0
    %v2222 = vadd.f32 %v1163, %v2221
    %2223 = vmatprep.mubr.bf16.mxu0 0
    %2224 = vmatmul.mubr.bf16.gmra.mrb[0].mxu0 %v1013
    %v2225 = vpop.f32.mrb[0].mxu0
    %v2226 = vadd.f32 %v1159, %v2225
    %v2227 = vpop.f32.mrb[0].mxu0
    %v2228 = vadd.f32 %v1163, %v2227
    %v2229 = vpop.f32.mrb[0].mxu0
    %v2230 = vadd.f32 %v1159, %v2229
    %v2231 = vpop.f32.mrb[0].mxu0
    %v2232 = vadd.f32 %v1163, %v2231
    %2233 = vmatprep.mubr.bf16.mxu0 0
    %2234 = vmatmul.mubr.bf16.gmra.mrb[0].mxu0 %v1014
    %v2235 = vpop.f32.mrb[0].mxu0
    %v2236 = vadd.f32 %v1159, %v2235
    %v2237 = vpop.f32.mrb[0].mxu0
    %v2238 = vadd.f32 %v1163, %v2237
    %v2239 = vpop.f32.mrb[0].mxu0
    %v2240 = vadd.f32 %v1159, %v2239
    %v2241 = vpop.f32.mrb[0].mxu0
    %v2242 = vadd.f32 %v1163, %v2241
    %2243 = vmatprep.mubr.bf16.mxu0 0
    %2244 = vmatmul.mubr.bf16.gmra.mrb[0].mxu0 %v1015
    %v2245 = vpop.f32.mrb[0].mxu0
    %v2246 = vadd.f32 %v1159, %v2245
    %v2247 = vpop.f32.mrb[0].mxu0
    %v2248 = vadd.f32 %v1163, %v2247
    %v2249 = vpop.f32.mrb[0].mxu0
    %v2250 = vadd.f32 %v1159, %v2249
    %v2251 = vpop.f32.mrb[0].mxu0
    %v2252 = vadd.f32 %v1163, %v2251
    %2253 = vdwg.mxu0
    %2254 = vmatprep.subr.bf16.mxu0 %v1617
    %2255 = vmatpush1.bf16.msra.mxu0 %v1616
    %2256 = vmatprep.subr.bf16.mxu0 %v1633
    %2257 = vmatpush1.bf16.msra.mxu0 %v1632
    %2258 = vmatprep.subr.bf16.mxu0 %v1649
    %2259 = vmatpush1.bf16.msra.mxu0 %v1648
    %2260 = vmatprep.subr.bf16.mxu0 %v1665
    %2261 = vmatpush1.bf16.msra.mxu0 %v1664
    %2262 = vmatprep.subr.bf16.mxu0 %v1681
    %2263 = vmatpush1.bf16.msra.mxu0 %v1680
    %2264 = vmatprep.subr.bf16.mxu0 %v1697
    %2265 = vmatpush1.bf16.msra.mxu0 %v1696
    %2266 = vmatprep.subr.bf16.mxu0 %v1713
    %2267 = vmatpush1.bf16.msra.mxu0 %v1712
    %2268 = vmatprep.subr.bf16.mxu0 %v1729
    %2269 = vmatpush1.bf16.msra.mxu0 %v1728
    %2270 = vmatprep.subr.bf16.mxu0 0
    %2271 = vmatpush1.bf16.msra.mxu0 0
    %2272 = vmatprep.subr.bf16.mxu0 0
    %2273 = vmatpush1.bf16.msra.mxu0 0
    %2274 = vmatprep.subr.bf16.mxu0 0
    %2275 = vmatpush1.bf16.msra.mxu0 0
    %2276 = vmatprep.subr.bf16.mxu0 0
    %2277 = vmatpush1.bf16.msra.mxu0 0
    %2278 = vmatprep.subr.bf16.mxu0 0
    %2279 = vmatpush1.bf16.msra.mxu0 0
    %2280 = vmatprep.subr.bf16.mxu0 0
    %2281 = vmatpush1.bf16.msra.mxu0 0
    %2282 = vmatprep.subr.bf16.mxu0 0
    %2283 = vmatpush1.bf16.msra.mxu0 0
    %2284 = vmatprep.subr.bf16.mxu0 0
    %2285 = vmatpush1.bf16.msra.mxu0 0
    %2286 = vmatprep.mubr.bf16.mxu0 0
    %2287 = vmatmul.mubr.bf16.gmra.mrb[0].mxu0 %v1000
    %v2288 = vpop.f32.mrb[0].mxu0
    %v2289 = vadd.f32 %v1167, %v2288
    %v2290 = vpop.f32.mrb[0].mxu0
    %v2291 = vadd.f32 %v1171, %v2290
    %v2292 = vpop.f32.mrb[0].mxu0
    %v2293 = vadd.f32 %v1167, %v2292
    %v2294 = vpop.f32.mrb[0].mxu0
    %v2295 = vadd.f32 %v1171, %v2294
    %2296 = vmatprep.mubr.bf16.mxu0 0
    %2297 = vmatmul.mubr.bf16.gmra.mrb[0].mxu0 %v1001
    %v2298 = vpop.f32.mrb[0].mxu0
    %v2299 = vadd.f32 %v1167, %v2298
    %v2300 = vpop.f32.mrb[0].mxu0
    %v2301 = vadd.f32 %v1171, %v2300
    %v2302 = vpop.f32.mrb[0].mxu0
    %v2303 = vadd.f32 %v1167, %v2302
    %v2304 = vpop.f32.mrb[0].mxu0
    %v2305 = vadd.f32 %v1171, %v2304
    %2306 = vmatprep.mubr.bf16.mxu0 0
    %2307 = vmatmul.mubr.bf16.gmra.mrb[0].mxu0 %v1002
    %v2308 = vpop.f32.mrb[0].mxu0
    %v2309 = vadd.f32 %v1167, %v2308
    %v2310 = vpop.f32.mrb[0].mxu0
    %v2311 = vadd.f32 %v1171, %v2310
    %v2312 = vpop.f32.mrb[0].mxu0
    %v2313 = vadd.f32 %v1167, %v2312
    %v2314 = vpop.f32.mrb[0].mxu0
    %v2315 = vadd.f32 %v1171, %v2314
    %2316 = vmatprep.mubr.bf16.mxu0 0
    %2317 = vmatmul.mubr.bf16.gmra.mrb[0].mxu0 %v1003
    %v2318 = vpop.f32.mrb[0].mxu0
    %v2319 = vadd.f32 %v1167, %v2318
    %v2320 = vpop.f32.mrb[0].mxu0
    %v2321 = vadd.f32 %v1171, %v2320
    %v2322 = vpop.f32.mrb[0].mxu0
    %v2323 = vadd.f32 %v1167, %v2322
    %v2324 = vpop.f32.mrb[0].mxu0
    %v2325 = vadd.f32 %v1171, %v2324
    %2326 = vmatprep.mubr.bf16.mxu0 0
    %2327 = vmatmul.mubr.bf16.gmra.mrb[0].mxu0 %v1004
    %v2328 = vpop.f32.mrb[0].mxu0
    %v2329 = vadd.f32 %v1167, %v2328
    %v2330 = vpop.f32.mrb[0].mxu0
    %v2331 = vadd.f32 %v1171, %v2330
    %v2332 = vpop.f32.mrb[0].mxu0
    %v2333 = vadd.f32 %v1167, %v2332
    %v2334 = vpop.f32.mrb[0].mxu0
    %v2335 = vadd.f32 %v1171, %v2334
    %2336 = vmatprep.mubr.bf16.mxu0 0
    %2337 = vmatmul.mubr.bf16.gmra.mrb[0].mxu0 %v1005
    %v2338 = vpop.f32.mrb[0].mxu0
    %v2339 = vadd.f32 %v1167, %v2338
    %v2340 = vpop.f32.mrb[0].mxu0
    %v2341 = vadd.f32 %v1171, %v2340
    %v2342 = vpop.f32.mrb[0].mxu0
    %v2343 = vadd.f32 %v1167, %v2342
    %v2344 = vpop.f32.mrb[0].mxu0
    %v2345 = vadd.f32 %v1171, %v2344
    %2346 = vmatprep.mubr.bf16.mxu0 0
    %2347 = vmatmul.mubr.bf16.gmra.mrb[0].mxu0 %v1006
    %v2348 = vpop.f32.mrb[0].mxu0
    %v2349 = vadd.f32 %v1167, %v2348
    %v2350 = vpop.f32.mrb[0].mxu0
    %v2351 = vadd.f32 %v1171, %v2350
    %v2352 = vpop.f32.mrb[0].mxu0
    %v2353 = vadd.f32 %v1167, %v2352
    %v2354 = vpop.f32.mrb[0].mxu0
    %v2355 = vadd.f32 %v1171, %v2354
    %2356 = vmatprep.mubr.bf16.mxu0 0
    %2357 = vmatmul.mubr.bf16.gmra.mrb[0].mxu0 %v1007
    %v2358 = vpop.f32.mrb[0].mxu0
    %v2359 = vadd.f32 %v1167, %v2358
    %v2360 = vpop.f32.mrb[0].mxu0
    %v2361 = vadd.f32 %v1171, %v2360
    %v2362 = vpop.f32.mrb[0].mxu0
    %v2363 = vadd.f32 %v1167, %v2362
    %v2364 = vpop.f32.mrb[0].mxu0
    %v2365 = vadd.f32 %v1171, %v2364
    %2366 = vmatprep.mubr.bf16.mxu0 0
    %2367 = vmatmul.mubr.bf16.gmra.mrb[0].mxu0 %v1008
    %v2368 = vpop.f32.mrb[0].mxu0
    %v2369 = vadd.f32 %v1167, %v2368
    %v2370 = vpop.f32.mrb[0].mxu0
    %v2371 = vadd.f32 %v1171, %v2370
    %v2372 = vpop.f32.mrb[0].mxu0
    %v2373 = vadd.f32 %v1167, %v2372
    %v2374 = vpop.f32.mrb[0].mxu0
    %v2375 = vadd.f32 %v1171, %v2374
    %2376 = vmatprep.mubr.bf16.mxu0 0
    %2377 = vmatmul.mubr.bf16.gmra.mrb[0].mxu0 %v1009
    %v2378 = vpop.f32.mrb[0].mxu0
    %v2379 = vadd.f32 %v1167, %v2378
    %v2380 = vpop.f32.mrb[0].mxu0
    %v2381 = vadd.f32 %v1171, %v2380
    %v2382 = vpop.f32.mrb[0].mxu0
    %v2383 = vadd.f32 %v1167, %v2382
    %v2384 = vpop.f32.mrb[0].mxu0
    %v2385 = vadd.f32 %v1171, %v2384
    %2386 = vmatprep.mubr.bf16.mxu0 0
    %2387 = vmatmul.mubr.bf16.gmra.mrb[0].mxu0 %v1010
    %v2388 = vpop.f32.mrb[0].mxu0
    %v2389 = vadd.f32 %v1167, %v2388
    %v2390 = vpop.f32.mrb[0].mxu0
    %v2391 = vadd.f32 %v1171, %v2390
    %v2392 = vpop.f32.mrb[0].mxu0
    %v2393 = vadd.f32 %v1167, %v2392
    %v2394 = vpop.f32.mrb[0].mxu0
    %v2395 = vadd.f32 %v1171, %v2394
    %2396 = vmatprep.mubr.bf16.mxu0 0
    %2397 = vmatmul.mubr.bf16.gmra.mrb[0].mxu0 %v1011
    %v2398 = vpop.f32.mrb[0].mxu0
    %v2399 = vadd.f32 %v1167, %v2398
    %v2400 = vpop.f32.mrb[0].mxu0
    %v2401 = vadd.f32 %v1171, %v2400
    %v2402 = vpop.f32.mrb[0].mxu0
    %v2403 = vadd.f32 %v1167, %v2402
    %v2404 = vpop.f32.mrb[0].mxu0
    %v2405 = vadd.f32 %v1171, %v2404
    %2406 = vmatprep.mubr.bf16.mxu0 0
    %2407 = vmatmul.mubr.bf16.gmra.mrb[0].mxu0 %v1012
    %v2408 = vpop.f32.mrb[0].mxu0
    %v2409 = vadd.f32 %v1167, %v2408
    %v2410 = vpop.f32.mrb[0].mxu0
    %v2411 = vadd.f32 %v1171, %v2410
    %v2412 = vpop.f32.mrb[0].mxu0
    %v2413 = vadd.f32 %v1167, %v2412
    %v2414 = vpop.f32.mrb[0].mxu0
    %v2415 = vadd.f32 %v1171, %v2414
    %2416 = vmatprep.mubr.bf16.mxu0 0
    %2417 = vmatmul.mubr.bf16.gmra.mrb[0].mxu0 %v1013
    %v2418 = vpop.f32.mrb[0].mxu0
    %v2419 = vadd.f32 %v1167, %v2418
    %v2420 = vpop.f32.mrb[0].mxu0
    %v2421 = vadd.f32 %v1171, %v2420
    %v2422 = vpop.f32.mrb[0].mxu0
    %v2423 = vadd.f32 %v1167, %v2422
    %v2424 = vpop.f32.mrb[0].mxu0
    %v2425 = vadd.f32 %v1171, %v2424
    %2426 = vmatprep.mubr.bf16.mxu0 0
    %2427 = vmatmul.mubr.bf16.gmra.mrb[0].mxu0 %v1014
    %v2428 = vpop.f32.mrb[0].mxu0
    %v2429 = vadd.f32 %v1167, %v2428
    %v2430 = vpop.f32.mrb[0].mxu0
    %v2431 = vadd.f32 %v1171, %v2430
    %v2432 = vpop.f32.mrb[0].mxu0
    %v2433 = vadd.f32 %v1167, %v2432
    %v2434 = vpop.f32.mrb[0].mxu0
    %v2435 = vadd.f32 %v1171, %v2434
    %2436 = vmatprep.mubr.bf16.mxu0 0
    %2437 = vmatmul.mubr.bf16.gmra.mrb[0].mxu0 %v1015
    %v2438 = vpop.f32.mrb[0].mxu0
    %v2439 = vadd.f32 %v1167, %v2438
    %v2440 = vpop.f32.mrb[0].mxu0
    %v2441 = vadd.f32 %v1171, %v2440
    %v2442 = vpop.f32.mrb[0].mxu0
    %v2443 = vadd.f32 %v1167, %v2442
    %v2444 = vpop.f32.mrb[0].mxu0
    %v2445 = vadd.f32 %v1171, %v2444
    %2446 = vdwg.mxu0
    %2447 = vmatprep.subr.bf16.mxu0 %v1619
    %2448 = vmatpush1.bf16.msra.mxu0 %v1618
    %2449 = vmatprep.subr.bf16.mxu0 %v1635
    %2450 = vmatpush1.bf16.msra.mxu0 %v1634
    %2451 = vmatprep.subr.bf16.mxu0 %v1651
    %2452 = vmatpush1.bf16.msra.mxu0 %v1650
    %2453 = vmatprep.subr.bf16.mxu0 %v1667
    %2454 = vmatpush1.bf16.msra.mxu0 %v1666
    %2455 = vmatprep.subr.bf16.mxu0 %v1683
    %2456 = vmatpush1.bf16.msra.mxu0 %v1682
    %2457 = vmatprep.subr.bf16.mxu0 %v1699
    %2458 = vmatpush1.bf16.msra.mxu0 %v1698
    %2459 = vmatprep.subr.bf16.mxu0 %v1715
    %2460 = vmatpush1.bf16.msra.mxu0 %v1714
    %2461 = vmatprep.subr.bf16.mxu0 %v1731
    %2462 = vmatpush1.bf16.msra.mxu0 %v1730
    %2463 = vmatprep.subr.bf16.mxu0 0
    %2464 = vmatpush1.bf16.msra.mxu0 0
    %2465 = vmatprep.subr.bf16.mxu0 0
    %2466 = vmatpush1.bf16.msra.mxu0 0
    %2467 = vmatprep.subr.bf16.mxu0 0
    %2468 = vmatpush1.bf16.msra.mxu0 0
    %2469 = vmatprep.subr.bf16.mxu0 0
    %2470 = vmatpush1.bf16.msra.mxu0 0
    %2471 = vmatprep.subr.bf16.mxu0 0
    %2472 = vmatpush1.bf16.msra.mxu0 0
    %2473 = vmatprep.subr.bf16.mxu0 0
    %2474 = vmatpush1.bf16.msra.mxu0 0
    %2475 = vmatprep.subr.bf16.mxu0 0
    %2476 = vmatpush1.bf16.msra.mxu0 0
    %2477 = vmatprep.subr.bf16.mxu0 0
    %2478 = vmatpush1.bf16.msra.mxu0 0
    %2479 = vmatprep.mubr.bf16.mxu0 0
    %2480 = vmatmul.mubr.bf16.gmra.mrb[0].mxu0 %v1000
    %v2481 = vpop.f32.mrb[0].mxu0
    %v2482 = vadd.f32 %v1175, %v2481
    %v2483 = vpop.f32.mrb[0].mxu0
    %v2484 = vadd.f32 %v1179, %v2483
    %v2485 = vpop.f32.mrb[0].mxu0
    %v2486 = vadd.f32 %v1175, %v2485
    %v2487 = vpop.f32.mrb[0].mxu0
    %v2488 = vadd.f32 %v1179, %v2487
    %2489 = vmatprep.mubr.bf16.mxu0 0
    %2490 = vmatmul.mubr.bf16.gmra.mrb[0].mxu0 %v1001
    %v2491 = vpop.f32.mrb[0].mxu0
    %v2492 = vadd.f32 %v1175, %v2491
    %v2493 = vpop.f32.mrb[0].mxu0
    %v2494 = vadd.f32 %v1179, %v2493
    %v2495 = vpop.f32.mrb[0].mxu0
    %v2496 = vadd.f32 %v1175, %v2495
    %v2497 = vpop.f32.mrb[0].mxu0
    %v2498 = vadd.f32 %v1179, %v2497
    %2499 = vmatprep.mubr.bf16.mxu0 0
    %2500 = vmatmul.mubr.bf16.gmra.mrb[0].mxu0 %v1002
    %v2501 = vpop.f32.mrb[0].mxu0
    %v2502 = vadd.f32 %v1175, %v2501
    %v2503 = vpop.f32.mrb[0].mxu0
    %v2504 = vadd.f32 %v1179, %v2503
    %v2505 = vpop.f32.mrb[0].mxu0
    %v2506 = vadd.f32 %v1175, %v2505
    %v2507 = vpop.f32.mrb[0].mxu0
    %v2508 = vadd.f32 %v1179, %v2507
    %2509 = vmatprep.mubr.bf16.mxu0 0
    %2510 = vmatmul.mubr.bf16.gmra.mrb[0].mxu0 %v1003
    %v2511 = vpop.f32.mrb[0].mxu0
    %v2512 = vadd.f32 %v1175, %v2511
    %v2513 = vpop.f32.mrb[0].mxu0
    %v2514 = vadd.f32 %v1179, %v2513
    %v2515 = vpop.f32.mrb[0].mxu0
    %v2516 = vadd.f32 %v1175, %v2515
    %v2517 = vpop.f32.mrb[0].mxu0
    %v2518 = vadd.f32 %v1179, %v2517
    %2519 = vmatprep.mubr.bf16.mxu0 0
    %2520 = vmatmul.mubr.bf16.gmra.mrb[0].mxu0 %v1004
    %v2521 = vpop.f32.mrb[0].mxu0
    %v2522 = vadd.f32 %v1175, %v2521
    %v2523 = vpop.f32.mrb[0].mxu0
    %v2524 = vadd.f32 %v1179, %v2523
    %v2525 = vpop.f32.mrb[0].mxu0
    %v2526 = vadd.f32 %v1175, %v2525
    %v2527 = vpop.f32.mrb[0].mxu0
    %v2528 = vadd.f32 %v1179, %v2527
    %2529 = vmatprep.mubr.bf16.mxu0 0
    %2530 = vmatmul.mubr.bf16.gmra.mrb[0].mxu0 %v1005
    %v2531 = vpop.f32.mrb[0].mxu0
    %v2532 = vadd.f32 %v1175, %v2531
    %v2533 = vpop.f32.mrb[0].mxu0
    %v2534 = vadd.f32 %v1179, %v2533
    %v2535 = vpop.f32.mrb[0].mxu0
    %v2536 = vadd.f32 %v1175, %v2535
    %v2537 = vpop.f32.mrb[0].mxu0
    %v2538 = vadd.f32 %v1179, %v2537
    %2539 = vmatprep.mubr.bf16.mxu0 0
    %2540 = vmatmul.mubr.bf16.gmra.mrb[0].mxu0 %v1006
    %v2541 = vpop.f32.mrb[0].mxu0
    %v2542 = vadd.f32 %v1175, %v2541
    %v2543 = vpop.f32.mrb[0].mxu0
    %v2544 = vadd.f32 %v1179, %v2543
    %v2545 = vpop.f32.mrb[0].mxu0
    %v2546 = vadd.f32 %v1175, %v2545
    %v2547 = vpop.f32.mrb[0].mxu0
    %v2548 = vadd.f32 %v1179, %v2547
    %2549 = vmatprep.mubr.bf16.mxu0 0
    %2550 = vmatmul.mubr.bf16.gmra.mrb[0].mxu0 %v1007
    %v2551 = vpop.f32.mrb[0].mxu0
    %v2552 = vadd.f32 %v1175, %v2551
    %v2553 = vpop.f32.mrb[0].mxu0
    %v2554 = vadd.f32 %v1179, %v2553
    %v2555 = vpop.f32.mrb[0].mxu0
    %v2556 = vadd.f32 %v1175, %v2555
    %v2557 = vpop.f32.mrb[0].mxu0
    %v2558 = vadd.f32 %v1179, %v2557
    %2559 = vmatprep.mubr.bf16.mxu0 0
    %2560 = vmatmul.mubr.bf16.gmra.mrb[0].mxu0 %v1008
    %v2561 = vpop.f32.mrb[0].mxu0
    %v2562 = vadd.f32 %v1175, %v2561
    %v2563 = vpop.f32.mrb[0].mxu0
    %v2564 = vadd.f32 %v1179, %v2563
    %v2565 = vpop.f32.mrb[0].mxu0
    %v2566 = vadd.f32 %v1175, %v2565
    %v2567 = vpop.f32.mrb[0].mxu0
    %v2568 = vadd.f32 %v1179, %v2567
    %2569 = vmatprep.mubr.bf16.mxu0 0
    %2570 = vmatmul.mubr.bf16.gmra.mrb[0].mxu0 %v1009
    %v2571 = vpop.f32.mrb[0].mxu0
    %v2572 = vadd.f32 %v1175, %v2571
    %v2573 = vpop.f32.mrb[0].mxu0
    %v2574 = vadd.f32 %v1179, %v2573
    %v2575 = vpop.f32.mrb[0].mxu0
    %v2576 = vadd.f32 %v1175, %v2575
    %v2577 = vpop.f32.mrb[0].mxu0
    %v2578 = vadd.f32 %v1179, %v2577
    %2579 = vmatprep.mubr.bf16.mxu0 0
    %2580 = vmatmul.mubr.bf16.gmra.mrb[0].mxu0 %v1010
    %v2581 = vpop.f32.mrb[0].mxu0
    %v2582 = vadd.f32 %v1175, %v2581
    %v2583 = vpop.f32.mrb[0].mxu0
    %v2584 = vadd.f32 %v1179, %v2583
    %v2585 = vpop.f32.mrb[0].mxu0
    %v2586 = vadd.f32 %v1175, %v2585
    %v2587 = vpop.f32.mrb[0].mxu0
    %v2588 = vadd.f32 %v1179, %v2587
    %2589 = vmatprep.mubr.bf16.mxu0 0
    %2590 = vmatmul.mubr.bf16.gmra.mrb[0].mxu0 %v1011
    %v2591 = vpop.f32.mrb[0].mxu0
    %v2592 = vadd.f32 %v1175, %v2591
    %v2593 = vpop.f32.mrb[0].mxu0
    %v2594 = vadd.f32 %v1179, %v2593
    %v2595 = vpop.f32.mrb[0].mxu0
    %v2596 = vadd.f32 %v1175, %v2595
    %v2597 = vpop.f32.mrb[0].mxu0
    %v2598 = vadd.f32 %v1179, %v2597
    %2599 = vmatprep.mubr.bf16.mxu0 0
    %2600 = vmatmul.mubr.bf16.gmra.mrb[0].mxu0 %v1012
    %v2601 = vpop.f32.mrb[0].mxu0
    %v2602 = vadd.f32 %v1175, %v2601
    %v2603 = vpop.f32.mrb[0].mxu0
    %v2604 = vadd.f32 %v1179, %v2603
    %v2605 = vpop.f32.mrb[0].mxu0
    %v2606 = vadd.f32 %v1175, %v2605
    %v2607 = vpop.f32.mrb[0].mxu0
    %v2608 = vadd.f32 %v1179, %v2607
    %2609 = vmatprep.mubr.bf16.mxu0 0
    %2610 = vmatmul.mubr.bf16.gmra.mrb[0].mxu0 %v1013
    %v2611 = vpop.f32.mrb[0].mxu0
    %v2612 = vadd.f32 %v1175, %v2611
    %v2613 = vpop.f32.mrb[0].mxu0
    %v2614 = vadd.f32 %v1179, %v2613
    %v2615 = vpop.f32.mrb[0].mxu0
    %v2616 = vadd.f32 %v1175, %v2615
    %v2617 = vpop.f32.mrb[0].mxu0
    %v2618 = vadd.f32 %v1179, %v2617
    %2619 = vmatprep.mubr.bf16.mxu0 0
    %2620 = vmatmul.mubr.bf16.gmra.mrb[0].mxu0 %v1014
    %v2621 = vpop.f32.mrb[0].mxu0
    %v2622 = vadd.f32 %v1175, %v2621
    %v2623 = vpop.f32.mrb[0].mxu0
    %v2624 = vadd.f32 %v1179, %v2623
    %v2625 = vpop.f32.mrb[0].mxu0
    %v2626 = vadd.f32 %v1175, %v2625
    %v2627 = vpop.f32.mrb[0].mxu0
    %v2628 = vadd.f32 %v1179, %v2627
    %2629 = vmatprep.mubr.bf16.mxu0 0
    %2630 = vmatmul.mubr.bf16.gmra.mrb[0].mxu0 %v1015
    %v2631 = vpop.f32.mrb[0].mxu0
    %v2632 = vadd.f32 %v1175, %v2631
    %v2633 = vpop.f32.mrb[0].mxu0
    %v2634 = vadd.f32 %v1179, %v2633
    %v2635 = vpop.f32.mrb[0].mxu0
    %v2636 = vadd.f32 %v1175, %v2635
    %v2637 = vpop.f32.mrb[0].mxu0
    %v2638 = vadd.f32 %v1179, %v2637
    %2639 = vdwg.mxu0
    %2640 = vmatprep.subr.bf16.mxu0 %v1621
    %2641 = vmatpush1.bf16.msra.mxu0 %v1620
    %2642 = vmatprep.subr.bf16.mxu0 %v1637
    %2643 = vmatpush1.bf16.msra.mxu0 %v1636
    %2644 = vmatprep.subr.bf16.mxu0 %v1653
    %2645 = vmatpush1.bf16.msra.mxu0 %v1652
    %2646 = vmatprep.subr.bf16.mxu0 %v1669
    %2647 = vmatpush1.bf16.msra.mxu0 %v1668
    %2648 = vmatprep.subr.bf16.mxu0 %v1685
    %2649 = vmatpush1.bf16.msra.mxu0 %v1684
    %2650 = vmatprep.subr.bf16.mxu0 %v1701
    %2651 = vmatpush1.bf16.msra.mxu0 %v1700
    %2652 = vmatprep.subr.bf16.mxu0 %v1717
    %2653 = vmatpush1.bf16.msra.mxu0 %v1716
    %2654 = vmatprep.subr.bf16.mxu0 %v1733
    %2655 = vmatpush1.bf16.msra.mxu0 %v1732
    %2656 = vmatprep.subr.bf16.mxu0 0
    %2657 = vmatpush1.bf16.msra.mxu0 0
    %2658 = vmatprep.subr.bf16.mxu0 0
    %2659 = vmatpush1.bf16.msra.mxu0 0
    %2660 = vmatprep.subr.bf16.mxu0 0
    %2661 = vmatpush1.bf16.msra.mxu0 0
    %2662 = vmatprep.subr.bf16.mxu0 0
    %2663 = vmatpush1.bf16.msra.mxu0 0
    %2664 = vmatprep.subr.bf16.mxu0 0
    %2665 = vmatpush1.bf16.msra.mxu0 0
    %2666 = vmatprep.subr.bf16.mxu0 0
    %2667 = vmatpush1.bf16.msra.mxu0 0
    %2668 = vmatprep.subr.bf16.mxu0 0
    %2669 = vmatpush1.bf16.msra.mxu0 0
    %2670 = vmatprep.subr.bf16.mxu0 0
    %2671 = vmatpush1.bf16.msra.mxu0 0
    %2672 = vmatprep.mubr.bf16.mxu0 0
    %2673 = vmatmul.mubr.bf16.gmra.mrb[0].mxu0 %v1000
    %v2674 = vpop.f32.mrb[0].mxu0
    %v2675 = vadd.f32 %v1183, %v2674
    %v2676 = vpop.f32.mrb[0].mxu0
    %v2677 = vadd.f32 %v1187, %v2676
    %v2678 = vpop.f32.mrb[0].mxu0
    %v2679 = vadd.f32 %v1183, %v2678
    %v2680 = vpop.f32.mrb[0].mxu0
    %v2681 = vadd.f32 %v1187, %v2680
    %2682 = vmatprep.mubr.bf16.mxu0 0
    %2683 = vmatmul.mubr.bf16.gmra.mrb[0].mxu0 %v1001
    %v2684 = vpop.f32.mrb[0].mxu0
    %v2685 = vadd.f32 %v1183, %v2684
    %v2686 = vpop.f32.mrb[0].mxu0
    %v2687 = vadd.f32 %v1187, %v2686
    %v2688 = vpop.f32.mrb[0].mxu0
    %v2689 = vadd.f32 %v1183, %v2688
    %v2690 = vpop.f32.mrb[0].mxu0
    %v2691 = vadd.f32 %v1187, %v2690
    %2692 = vmatprep.mubr.bf16.mxu0 0
    %2693 = vmatmul.mubr.bf16.gmra.mrb[0].mxu0 %v1002
    %v2694 = vpop.f32.mrb[0].mxu0
    %v2695 = vadd.f32 %v1183, %v2694
    %v2696 = vpop.f32.mrb[0].mxu0
    %v2697 = vadd.f32 %v1187, %v2696
    %v2698 = vpop.f32.mrb[0].mxu0
    %v2699 = vadd.f32 %v1183, %v2698
    %v2700 = vpop.f32.mrb[0].mxu0
    %v2701 = vadd.f32 %v1187, %v2700
    %2702 = vmatprep.mubr.bf16.mxu0 0
    %2703 = vmatmul.mubr.bf16.gmra.mrb[0].mxu0 %v1003
    %v2704 = vpop.f32.mrb[0].mxu0
    %v2705 = vadd.f32 %v1183, %v2704
    %v2706 = vpop.f32.mrb[0].mxu0
    %v2707 = vadd.f32 %v1187, %v2706
    %v2708 = vpop.f32.mrb[0].mxu0
    %v2709 = vadd.f32 %v1183, %v2708
    %v2710 = vpop.f32.mrb[0].mxu0
    %v2711 = vadd.f32 %v1187, %v2710
    %2712 = vmatprep.mubr.bf16.mxu0 0
    %2713 = vmatmul.mubr.bf16.gmra.mrb[0].mxu0 %v1004
    %v2714 = vpop.f32.mrb[0].mxu0
    %v2715 = vadd.f32 %v1183, %v2714
    %v2716 = vpop.f32.mrb[0].mxu0
    %v2717 = vadd.f32 %v1187, %v2716
    %v2718 = vpop.f32.mrb[0].mxu0
    %v2719 = vadd.f32 %v1183, %v2718
    %v2720 = vpop.f32.mrb[0].mxu0
    %v2721 = vadd.f32 %v1187, %v2720
    %2722 = vmatprep.mubr.bf16.mxu0 0
    %2723 = vmatmul.mubr.bf16.gmra.mrb[0].mxu0 %v1005
    %v2724 = vpop.f32.mrb[0].mxu0
    %v2725 = vadd.f32 %v1183, %v2724
    %v2726 = vpop.f32.mrb[0].mxu0
    %v2727 = vadd.f32 %v1187, %v2726
    %v2728 = vpop.f32.mrb[0].mxu0
    %v2729 = vadd.f32 %v1183, %v2728
    %v2730 = vpop.f32.mrb[0].mxu0
    %v2731 = vadd.f32 %v1187, %v2730
    %2732 = vmatprep.mubr.bf16.mxu0 0
    %2733 = vmatmul.mubr.bf16.gmra.mrb[0].mxu0 %v1006
    %v2734 = vpop.f32.mrb[0].mxu0
    %v2735 = vadd.f32 %v1183, %v2734
    %v2736 = vpop.f32.mrb[0].mxu0
    %v2737 = vadd.f32 %v1187, %v2736
    %v2738 = vpop.f32.mrb[0].mxu0
    %v2739 = vadd.f32 %v1183, %v2738
    %v2740 = vpop.f32.mrb[0].mxu0
    %v2741 = vadd.f32 %v1187, %v2740
    %2742 = vmatprep.mubr.bf16.mxu0 0
    %2743 = vmatmul.mubr.bf16.gmra.mrb[0].mxu0 %v1007
    %v2744 = vpop.f32.mrb[0].mxu0
    %v2745 = vadd.f32 %v1183, %v2744
    %v2746 = vpop.f32.mrb[0].mxu0
    %v2747 = vadd.f32 %v1187, %v2746
    %v2748 = vpop.f32.mrb[0].mxu0
    %v2749 = vadd.f32 %v1183, %v2748
    %v2750 = vpop.f32.mrb[0].mxu0
    %v2751 = vadd.f32 %v1187, %v2750
    %2752 = vmatprep.mubr.bf16.mxu0 0
    %2753 = vmatmul.mubr.bf16.gmra.mrb[0].mxu0 %v1008
    %v2754 = vpop.f32.mrb[0].mxu0
    %v2755 = vadd.f32 %v1183, %v2754
    %v2756 = vpop.f32.mrb[0].mxu0
    %v2757 = vadd.f32 %v1187, %v2756
    %v2758 = vpop.f32.mrb[0].mxu0
    %v2759 = vadd.f32 %v1183, %v2758
    %v2760 = vpop.f32.mrb[0].mxu0
    %v2761 = vadd.f32 %v1187, %v2760
    %2762 = vmatprep.mubr.bf16.mxu0 0
    %2763 = vmatmul.mubr.bf16.gmra.mrb[0].mxu0 %v1009
    %v2764 = vpop.f32.mrb[0].mxu0
    %v2765 = vadd.f32 %v1183, %v2764
    %v2766 = vpop.f32.mrb[0].mxu0
    %v2767 = vadd.f32 %v1187, %v2766
    %v2768 = vpop.f32.mrb[0].mxu0
    %v2769 = vadd.f32 %v1183, %v2768
    %v2770 = vpop.f32.mrb[0].mxu0
    %v2771 = vadd.f32 %v1187, %v2770
    %2772 = vmatprep.mubr.bf16.mxu0 0
    %2773 = vmatmul.mubr.bf16.gmra.mrb[0].mxu0 %v1010
    %v2774 = vpop.f32.mrb[0].mxu0
    %v2775 = vadd.f32 %v1183, %v2774
    %v2776 = vpop.f32.mrb[0].mxu0
    %v2777 = vadd.f32 %v1187, %v2776
    %v2778 = vpop.f32.mrb[0].mxu0
    %v2779 = vadd.f32 %v1183, %v2778
    %v2780 = vpop.f32.mrb[0].mxu0
    %v2781 = vadd.f32 %v1187, %v2780
    %2782 = vmatprep.mubr.bf16.mxu0 0
    %2783 = vmatmul.mubr.bf16.gmra.mrb[0].mxu0 %v1011
    %v2784 = vpop.f32.mrb[0].mxu0
    %v2785 = vadd.f32 %v1183, %v2784
    %v2786 = vpop.f32.mrb[0].mxu0
    %v2787 = vadd.f32 %v1187, %v2786
    %v2788 = vpop.f32.mrb[0].mxu0
    %v2789 = vadd.f32 %v1183, %v2788
    %v2790 = vpop.f32.mrb[0].mxu0
    %v2791 = vadd.f32 %v1187, %v2790
    %2792 = vmatprep.mubr.bf16.mxu0 0
    %2793 = vmatmul.mubr.bf16.gmra.mrb[0].mxu0 %v1012
    %v2794 = vpop.f32.mrb[0].mxu0
    %v2795 = vadd.f32 %v1183, %v2794
    %v2796 = vpop.f32.mrb[0].mxu0
    %v2797 = vadd.f32 %v1187, %v2796
    %v2798 = vpop.f32.mrb[0].mxu0
    %v2799 = vadd.f32 %v1183, %v2798
    %v2800 = vpop.f32.mrb[0].mxu0
    %v2801 = vadd.f32 %v1187, %v2800
    %2802 = vmatprep.mubr.bf16.mxu0 0
    %2803 = vmatmul.mubr.bf16.gmra.mrb[0].mxu0 %v1013
    %v2804 = vpop.f32.mrb[0].mxu0
    %v2805 = vadd.f32 %v1183, %v2804
    %v2806 = vpop.f32.mrb[0].mxu0
    %v2807 = vadd.f32 %v1187, %v2806
    %v2808 = vpop.f32.mrb[0].mxu0
    %v2809 = vadd.f32 %v1183, %v2808
    %v2810 = vpop.f32.mrb[0].mxu0
    %v2811 = vadd.f32 %v1187, %v2810
    %2812 = vmatprep.mubr.bf16.mxu0 0
    %2813 = vmatmul.mubr.bf16.gmra.mrb[0].mxu0 %v1014
    %v2814 = vpop.f32.mrb[0].mxu0
    %v2815 = vadd.f32 %v1183, %v2814
    %v2816 = vpop.f32.mrb[0].mxu0
    %v2817 = vadd.f32 %v1187, %v2816
    %v2818 = vpop.f32.mrb[0].mxu0
    %v2819 = vadd.f32 %v1183, %v2818
    %v2820 = vpop.f32.mrb[0].mxu0
    %v2821 = vadd.f32 %v1187, %v2820
    %2822 = vmatprep.mubr.bf16.mxu0 0
    %2823 = vmatmul.mubr.bf16.gmra.mrb[0].mxu0 %v1015
    %v2824 = vpop.f32.mrb[0].mxu0
    %v2825 = vadd.f32 %v1183, %v2824
    %v2826 = vpop.f32.mrb[0].mxu0
    %v2827 = vadd.f32 %v1187, %v2826
    %v2828 = vpop.f32.mrb[0].mxu0
    %v2829 = vadd.f32 %v1183, %v2828
    %v2830 = vpop.f32.mrb[0].mxu0
    %v2831 = vadd.f32 %v1187, %v2830
    %2832 = vdwg.mxu0
    %2833 = vmatprep.subr.bf16.mxu0 %v1623
    %2834 = vmatpush1.bf16.msra.mxu0 %v1622
    %2835 = vmatprep.subr.bf16.mxu0 %v1639
    %2836 = vmatpush1.bf16.msra.mxu0 %v1638
    %2837 = vmatprep.subr.bf16.mxu0 %v1655
    %2838 = vmatpush1.bf16.msra.mxu0 %v1654
    %2839 = vmatprep.subr.bf16.mxu0 %v1671
    %2840 = vmatpush1.bf16.msra.mxu0 %v1670
    %2841 = vmatprep.subr.bf16.mxu0 %v1687
    %2842 = vmatpush1.bf16.msra.mxu0 %v1686
    %2843 = vmatprep.subr.bf16.mxu0 %v1703
    %2844 = vmatpush1.bf16.msra.mxu0 %v1702
    %2845 = vmatprep.subr.bf16.mxu0 %v1719
    %2846 = vmatpush1.bf16.msra.mxu0 %v1718
    %2847 = vmatprep.subr.bf16.mxu0 %v1735
    %2848 = vmatpush1.bf16.msra.mxu0 %v1734
    %2849 = vmatprep.subr.bf16.mxu0 0
    %2850 = vmatpush1.bf16.msra.mxu0 0
    %2851 = vmatprep.subr.bf16.mxu0 0
    %2852 = vmatpush1.bf16.msra.mxu0 0
    %2853 = vmatprep.subr.bf16.mxu0 0
    %2854 = vmatpush1.bf16.msra.mxu0 0
    %2855 = vmatprep.subr.bf16.mxu0 0
    %2856 = vmatpush1.bf16.msra.mxu0 0
    %2857 = vmatprep.subr.bf16.mxu0 0
    %2858 = vmatpush1.bf16.msra.mxu0 0
    %2859 = vmatprep.subr.bf16.mxu0 0
    %2860 = vmatpush1.bf16.msra.mxu0 0
    %2861 = vmatprep.subr.bf16.mxu0 0
    %2862 = vmatpush1.bf16.msra.mxu0 0
    %2863 = vmatprep.subr.bf16.mxu0 0
    %2864 = vmatpush1.bf16.msra.mxu0 0
    %2865 = vmatprep.mubr.bf16.mxu0 0
    %2866 = vmatmul.mubr.bf16.gmra.mrb[0].mxu0 %v1000
    %v2867 = vpop.f32.mrb[0].mxu0
    %v2868 = vadd.f32 %v1191, %v2867
    %v2869 = vpop.f32.mrb[0].mxu0
    %v2870 = vadd.f32 %v1195, %v2869
    %v2871 = vpop.f32.mrb[0].mxu0
    %v2872 = vadd.f32 %v1191, %v2871
    %v2873 = vpop.f32.mrb[0].mxu0
    %v2874 = vadd.f32 %v1195, %v2873
    %2875 = vmatprep.mubr.bf16.mxu0 0
    %2876 = vmatmul.mubr.bf16.gmra.mrb[0].mxu0 %v1001
    %v2877 = vpop.f32.mrb[0].mxu0
    %v2878 = vadd.f32 %v1191, %v2877
    %v2879 = vpop.f32.mrb[0].mxu0
    %v2880 = vadd.f32 %v1195, %v2879
    %v2881 = vpop.f32.mrb[0].mxu0
    %v2882 = vadd.f32 %v1191, %v2881
    %v2883 = vpop.f32.mrb[0].mxu0
    %v2884 = vadd.f32 %v1195, %v2883
    %2885 = vmatprep.mubr.bf16.mxu0 0
    %2886 = vmatmul.mubr.bf16.gmra.mrb[0].mxu0 %v1002
    %v2887 = vpop.f32.mrb[0].mxu0
    %v2888 = vadd.f32 %v1191, %v2887
    %v2889 = vpop.f32.mrb[0].mxu0
    %v2890 = vadd.f32 %v1195, %v2889
    %v2891 = vpop.f32.mrb[0].mxu0
    %v2892 = vadd.f32 %v1191, %v2891
    %v2893 = vpop.f32.mrb[0].mxu0
    %v2894 = vadd.f32 %v1195, %v2893
    %2895 = vmatprep.mubr.bf16.mxu0 0
    %2896 = vmatmul.mubr.bf16.gmra.mrb[0].mxu0 %v1003
    %v2897 = vpop.f32.mrb[0].mxu0
    %v2898 = vadd.f32 %v1191, %v2897
    %v2899 = vpop.f32.mrb[0].mxu0
    %v2900 = vadd.f32 %v1195, %v2899
    %v2901 = vpop.f32.mrb[0].mxu0
    %v2902 = vadd.f32 %v1191, %v2901
    %v2903 = vpop.f32.mrb[0].mxu0
    %v2904 = vadd.f32 %v1195, %v2903
    %2905 = vmatprep.mubr.bf16.mxu0 0
    %2906 = vmatmul.mubr.bf16.gmra.mrb[0].mxu0 %v1004
    %v2907 = vpop.f32.mrb[0].mxu0
    %v2908 = vadd.f32 %v1191, %v2907
    %v2909 = vpop.f32.mrb[0].mxu0
    %v2910 = vadd.f32 %v1195, %v2909
    %v2911 = vpop.f32.mrb[0].mxu0
    %v2912 = vadd.f32 %v1191, %v2911
    %v2913 = vpop.f32.mrb[0].mxu0
    %v2914 = vadd.f32 %v1195, %v2913
    %2915 = vmatprep.mubr.bf16.mxu0 0
    %2916 = vmatmul.mubr.bf16.gmra.mrb[0].mxu0 %v1005
    %v2917 = vpop.f32.mrb[0].mxu0
    %v2918 = vadd.f32 %v1191, %v2917
    %v2919 = vpop.f32.mrb[0].mxu0
    %v2920 = vadd.f32 %v1195, %v2919
    %v2921 = vpop.f32.mrb[0].mxu0
    %v2922 = vadd.f32 %v1191, %v2921
    %v2923 = vpop.f32.mrb[0].mxu0
    %v2924 = vadd.f32 %v1195, %v2923
    %2925 = vmatprep.mubr.bf16.mxu0 0
    %2926 = vmatmul.mubr.bf16.gmra.mrb[0].mxu0 %v1006
    %v2927 = vpop.f32.mrb[0].mxu0
    %v2928 = vadd.f32 %v1191, %v2927
    %v2929 = vpop.f32.mrb[0].mxu0
    %v2930 = vadd.f32 %v1195, %v2929
    %v2931 = vpop.f32.mrb[0].mxu0
    %v2932 = vadd.f32 %v1191, %v2931
    %v2933 = vpop.f32.mrb[0].mxu0
    %v2934 = vadd.f32 %v1195, %v2933
    %2935 = vmatprep.mubr.bf16.mxu0 0
    %2936 = vmatmul.mubr.bf16.gmra.mrb[0].mxu0 %v1007
    %v2937 = vpop.f32.mrb[0].mxu0
    %v2938 = vadd.f32 %v1191, %v2937
    %v2939 = vpop.f32.mrb[0].mxu0
    %v2940 = vadd.f32 %v1195, %v2939
    %v2941 = vpop.f32.mrb[0].mxu0
    %v2942 = vadd.f32 %v1191, %v2941
    %v2943 = vpop.f32.mrb[0].mxu0
    %v2944 = vadd.f32 %v1195, %v2943
    %2945 = vmatprep.mubr.bf16.mxu0 0
    %2946 = vmatmul.mubr.bf16.gmra.mrb[0].mxu0 %v1008
    %v2947 = vpop.f32.mrb[0].mxu0
    %v2948 = vadd.f32 %v1191, %v2947
    %v2949 = vpop.f32.mrb[0].mxu0
    %v2950 = vadd.f32 %v1195, %v2949
    %v2951 = vpop.f32.mrb[0].mxu0
    %v2952 = vadd.f32 %v1191, %v2951
    %v2953 = vpop.f32.mrb[0].mxu0
    %v2954 = vadd.f32 %v1195, %v2953
    %2955 = vmatprep.mubr.bf16.mxu0 0
    %2956 = vmatmul.mubr.bf16.gmra.mrb[0].mxu0 %v1009
    %v2957 = vpop.f32.mrb[0].mxu0
    %v2958 = vadd.f32 %v1191, %v2957
    %v2959 = vpop.f32.mrb[0].mxu0
    %v2960 = vadd.f32 %v1195, %v2959
    %v2961 = vpop.f32.mrb[0].mxu0
    %v2962 = vadd.f32 %v1191, %v2961
    %v2963 = vpop.f32.mrb[0].mxu0
    %v2964 = vadd.f32 %v1195, %v2963
    %2965 = vmatprep.mubr.bf16.mxu0 0
    %2966 = vmatmul.mubr.bf16.gmra.mrb[0].mxu0 %v1010
    %v2967 = vpop.f32.mrb[0].mxu0
    %v2968 = vadd.f32 %v1191, %v2967
    %v2969 = vpop.f32.mrb[0].mxu0
    %v2970 = vadd.f32 %v1195, %v2969
    %v2971 = vpop.f32.mrb[0].mxu0
    %v2972 = vadd.f32 %v1191, %v2971
    %v2973 = vpop.f32.mrb[0].mxu0
    %v2974 = vadd.f32 %v1195, %v2973
    %2975 = vmatprep.mubr.bf16.mxu0 0
    %2976 = vmatmul.mubr.bf16.gmra.mrb[0].mxu0 %v1011
    %v2977 = vpop.f32.mrb[0].mxu0
    %v2978 = vadd.f32 %v1191, %v2977
    %v2979 = vpop.f32.mrb[0].mxu0
    %v2980 = vadd.f32 %v1195, %v2979
    %v2981 = vpop.f32.mrb[0].mxu0
    %v2982 = vadd.f32 %v1191, %v2981
    %v2983 = vpop.f32.mrb[0].mxu0
    %v2984 = vadd.f32 %v1195, %v2983
    %2985 = vmatprep.mubr.bf16.mxu0 0
    %2986 = vmatmul.mubr.bf16.gmra.mrb[0].mxu0 %v1012
    %v2987 = vpop.f32.mrb[0].mxu0
    %v2988 = vadd.f32 %v1191, %v2987
    %v2989 = vpop.f32.mrb[0].mxu0
    %v2990 = vadd.f32 %v1195, %v2989
    %v2991 = vpop.f32.mrb[0].mxu0
    %v2992 = vadd.f32 %v1191, %v2991
    %v2993 = vpop.f32.mrb[0].mxu0
    %v2994 = vadd.f32 %v1195, %v2993
    %2995 = vmatprep.mubr.bf16.mxu0 0
    %2996 = vmatmul.mubr.bf16.gmra.mrb[0].mxu0 %v1013
    %v2997 = vpop.f32.mrb[0].mxu0
    %v2998 = vadd.f32 %v1191, %v2997
    %v2999 = vpop.f32.mrb[0].mxu0
    %v3000 = vadd.f32 %v1195, %v2999
    %v3001 = vpop.f32.mrb[0].mxu0
    %v3002 = vadd.f32 %v1191, %v3001
    %v3003 = vpop.f32.mrb[0].mxu0
    %v3004 = vadd.f32 %v1195, %v3003
    %3005 = vmatprep.mubr.bf16.mxu0 0
    %3006 = vmatmul.mubr.bf16.gmra.mrb[0].mxu0 %v1014
    %v3007 = vpop.f32.mrb[0].mxu0
    %v3008 = vadd.f32 %v1191, %v3007
    %v3009 = vpop.f32.mrb[0].mxu0
    %v3010 = vadd.f32 %v1195, %v3009
    %v3011 = vpop.f32.mrb[0].mxu0
    %v3012 = vadd.f32 %v1191, %v3011
    %v3013 = vpop.f32.mrb[0].mxu0
    %v3014 = vadd.f32 %v1195, %v3013
    %3015 = vmatprep.mubr.bf16.mxu0 0
    %3016 = vmatmul.mubr.bf16.gmra.mrb[0].mxu0 %v1015
    %v3017 = vpop.f32.mrb[0].mxu0
    %v3018 = vadd.f32 %v1191, %v3017
    %v3019 = vpop.f32.mrb[0].mxu0
    %v3020 = vadd.f32 %v1195, %v3019
    %v3021 = vpop.f32.mrb[0].mxu0
    %v3022 = vadd.f32 %v1191, %v3021
    %v3023 = vpop.f32.mrb[0].mxu0
    %v3024 = vadd.f32 %v1195, %v3023
    %3025 = vdwg.mxu0
    %3026 = vmatprep.subr.bf16.mxu0 %v1625
    %3027 = vmatpush1.bf16.msra.mxu0 %v1624
    %3028 = vmatprep.subr.bf16.mxu0 %v1641
    %3029 = vmatpush1.bf16.msra.mxu0 %v1640
    %3030 = vmatprep.subr.bf16.mxu0 %v1657
    %3031 = vmatpush1.bf16.msra.mxu0 %v1656
    %3032 = vmatprep.subr.bf16.mxu0 %v1673
    %3033 = vmatpush1.bf16.msra.mxu0 %v1672
    %3034 = vmatprep.subr.bf16.mxu0 %v1689
    %3035 = vmatpush1.bf16.msra.mxu0 %v1688
    %3036 = vmatprep.subr.bf16.mxu0 %v1705
    %3037 = vmatpush1.bf16.msra.mxu0 %v1704
    %3038 = vmatprep.subr.bf16.mxu0 %v1721
    %3039 = vmatpush1.bf16.msra.mxu0 %v1720
    %3040 = vmatprep.subr.bf16.mxu0 %v1737
    %3041 = vmatpush1.bf16.msra.mxu0 %v1736
    %3042 = vmatprep.subr.bf16.mxu0 0
    %3043 = vmatpush1.bf16.msra.mxu0 0
    %3044 = vmatprep.subr.bf16.mxu0 0
    %3045 = vmatpush1.bf16.msra.mxu0 0
    %3046 = vmatprep.subr.bf16.mxu0 0
    %3047 = vmatpush1.bf16.msra.mxu0 0
    %3048 = vmatprep.subr.bf16.mxu0 0
    %3049 = vmatpush1.bf16.msra.mxu0 0
    %3050 = vmatprep.subr.bf16.mxu0 0
    %3051 = vmatpush1.bf16.msra.mxu0 0
    %3052 = vmatprep.subr.bf16.mxu0 0
    %3053 = vmatpush1.bf16.msra.mxu0 0
    %3054 = vmatprep.subr.bf16.mxu0 0
    %3055 = vmatpush1.bf16.msra.mxu0 0
    %3056 = vmatprep.subr.bf16.mxu0 0
    %3057 = vmatpush1.bf16.msra.mxu0 0
    %3058 = vmatprep.mubr.bf16.mxu0 0
    %3059 = vmatmul.mubr.bf16.gmra.mrb[0].mxu0 %v1000
    %v3060 = vpop.f32.mrb[0].mxu0
    %v3061 = vadd.f32 %v1199, %v3060
    %v3062 = vpop.f32.mrb[0].mxu0
    %v3063 = vadd.f32 %v1203, %v3062
    %v3064 = vpop.f32.mrb[0].mxu0
    %v3065 = vadd.f32 %v1199, %v3064
    %v3066 = vpop.f32.mrb[0].mxu0
    %v3067 = vadd.f32 %v1203, %v3066
    %3068 = vmatprep.mubr.bf16.mxu0 0
    %3069 = vmatmul.mubr.bf16.gmra.mrb[0].mxu0 %v1001
    %v3070 = vpop.f32.mrb[0].mxu0
    %v3071 = vadd.f32 %v1199, %v3070
    %v3072 = vpop.f32.mrb[0].mxu0
    %v3073 = vadd.f32 %v1203, %v3072
    %v3074 = vpop.f32.mrb[0].mxu0
    %v3075 = vadd.f32 %v1199, %v3074
    %v3076 = vpop.f32.mrb[0].mxu0
    %v3077 = vadd.f32 %v1203, %v3076
    %3078 = vmatprep.mubr.bf16.mxu0 0
    %3079 = vmatmul.mubr.bf16.gmra.mrb[0].mxu0 %v1002
    %v3080 = vpop.f32.mrb[0].mxu0
    %v3081 = vadd.f32 %v1199, %v3080
    %v3082 = vpop.f32.mrb[0].mxu0
    %v3083 = vadd.f32 %v1203, %v3082
    %v3084 = vpop.f32.mrb[0].mxu0
    %v3085 = vadd.f32 %v1199, %v3084
    %v3086 = vpop.f32.mrb[0].mxu0
    %v3087 = vadd.f32 %v1203, %v3086
    %3088 = vmatprep.mubr.bf16.mxu0 0
    %3089 = vmatmul.mubr.bf16.gmra.mrb[0].mxu0 %v1003
    %v3090 = vpop.f32.mrb[0].mxu0
    %v3091 = vadd.f32 %v1199, %v3090
    %v3092 = vpop.f32.mrb[0].mxu0
    %v3093 = vadd.f32 %v1203, %v3092
    %v3094 = vpop.f32.mrb[0].mxu0
    %v3095 = vadd.f32 %v1199, %v3094
    %v3096 = vpop.f32.mrb[0].mxu0
    %v3097 = vadd.f32 %v1203, %v3096
    %3098 = vmatprep.mubr.bf16.mxu0 0
    %3099 = vmatmul.mubr.bf16.gmra.mrb[0].mxu0 %v1004
    %v3100 = vpop.f32.mrb[0].mxu0
    %v3101 = vadd.f32 %v1199, %v3100
    %v3102 = vpop.f32.mrb[0].mxu0
    %v3103 = vadd.f32 %v1203, %v3102
    %v3104 = vpop.f32.mrb[0].mxu0
    %v3105 = vadd.f32 %v1199, %v3104
    %v3106 = vpop.f32.mrb[0].mxu0
    %v3107 = vadd.f32 %v1203, %v3106
    %3108 = vmatprep.mubr.bf16.mxu0 0
    %3109 = vmatmul.mubr.bf16.gmra.mrb[0].mxu0 %v1005
    %v3110 = vpop.f32.mrb[0].mxu0
    %v3111 = vadd.f32 %v1199, %v3110
    %v3112 = vpop.f32.mrb[0].mxu0
    %v3113 = vadd.f32 %v1203, %v3112
    %v3114 = vpop.f32.mrb[0].mxu0
    %v3115 = vadd.f32 %v1199, %v3114
    %v3116 = vpop.f32.mrb[0].mxu0
    %v3117 = vadd.f32 %v1203, %v3116
    %3118 = vmatprep.mubr.bf16.mxu0 0
    %3119 = vmatmul.mubr.bf16.gmra.mrb[0].mxu0 %v1006
    %v3120 = vpop.f32.mrb[0].mxu0
    %v3121 = vadd.f32 %v1199, %v3120
    %v3122 = vpop.f32.mrb[0].mxu0
    %v3123 = vadd.f32 %v1203, %v3122
    %v3124 = vpop.f32.mrb[0].mxu0
    %v3125 = vadd.f32 %v1199, %v3124
    %v3126 = vpop.f32.mrb[0].mxu0
    %v3127 = vadd.f32 %v1203, %v3126
    %3128 = vmatprep.mubr.bf16.mxu0 0
    %3129 = vmatmul.mubr.bf16.gmra.mrb[0].mxu0 %v1007
    %v3130 = vpop.f32.mrb[0].mxu0
    %v3131 = vadd.f32 %v1199, %v3130
    %v3132 = vpop.f32.mrb[0].mxu0
    %v3133 = vadd.f32 %v1203, %v3132
    %v3134 = vpop.f32.mrb[0].mxu0
    %v3135 = vadd.f32 %v1199, %v3134
    %v3136 = vpop.f32.mrb[0].mxu0
    %v3137 = vadd.f32 %v1203, %v3136
    %3138 = vmatprep.mubr.bf16.mxu0 0
    %3139 = vmatmul.mubr.bf16.gmra.mrb[0].mxu0 %v1008
    %v3140 = vpop.f32.mrb[0].mxu0
    %v3141 = vadd.f32 %v1199, %v3140
    %v3142 = vpop.f32.mrb[0].mxu0
    %v3143 = vadd.f32 %v1203, %v3142
    %v3144 = vpop.f32.mrb[0].mxu0
    %v3145 = vadd.f32 %v1199, %v3144
    %v3146 = vpop.f32.mrb[0].mxu0
    %v3147 = vadd.f32 %v1203, %v3146
    %3148 = vmatprep.mubr.bf16.mxu0 0
    %3149 = vmatmul.mubr.bf16.gmra.mrb[0].mxu0 %v1009
    %v3150 = vpop.f32.mrb[0].mxu0
    %v3151 = vadd.f32 %v1199, %v3150
    %v3152 = vpop.f32.mrb[0].mxu0
    %v3153 = vadd.f32 %v1203, %v3152
    %v3154 = vpop.f32.mrb[0].mxu0
    %v3155 = vadd.f32 %v1199, %v3154
    %v3156 = vpop.f32.mrb[0].mxu0
    %v3157 = vadd.f32 %v1203, %v3156
    %3158 = vmatprep.mubr.bf16.mxu0 0
    %3159 = vmatmul.mubr.bf16.gmra.mrb[0].mxu0 %v1010
    %v3160 = vpop.f32.mrb[0].mxu0
    %v3161 = vadd.f32 %v1199, %v3160
    %v3162 = vpop.f32.mrb[0].mxu0
    %v3163 = vadd.f32 %v1203, %v3162
    %v3164 = vpop.f32.mrb[0].mxu0
    %v3165 = vadd.f32 %v1199, %v3164
    %v3166 = vpop.f32.mrb[0].mxu0
    %v3167 = vadd.f32 %v1203, %v3166
    %3168 = vmatprep.mubr.bf16.mxu0 0
    %3169 = vmatmul.mubr.bf16.gmra.mrb[0].mxu0 %v1011
    %v3170 = vpop.f32.mrb[0].mxu0
    %v3171 = vadd.f32 %v1199, %v3170
    %v3172 = vpop.f32.mrb[0].mxu0
    %v3173 = vadd.f32 %v1203, %v3172
    %v3174 = vpop.f32.mrb[0].mxu0
    %v3175 = vadd.f32 %v1199, %v3174
    %v3176 = vpop.f32.mrb[0].mxu0
    %v3177 = vadd.f32 %v1203, %v3176
    %3178 = vmatprep.mubr.bf16.mxu0 0
    %3179 = vmatmul.mubr.bf16.gmra.mrb[0].mxu0 %v1012
    %v3180 = vpop.f32.mrb[0].mxu0
    %v3181 = vadd.f32 %v1199, %v3180
    %v3182 = vpop.f32.mrb[0].mxu0
    %v3183 = vadd.f32 %v1203, %v3182
    %v3184 = vpop.f32.mrb[0].mxu0
    %v3185 = vadd.f32 %v1199, %v3184
    %v3186 = vpop.f32.mrb[0].mxu0
    %v3187 = vadd.f32 %v1203, %v3186
    %3188 = vmatprep.mubr.bf16.mxu0 0
    %3189 = vmatmul.mubr.bf16.gmra.mrb[0].mxu0 %v1013
    %v3190 = vpop.f32.mrb[0].mxu0
    %v3191 = vadd.f32 %v1199, %v3190
    %v3192 = vpop.f32.mrb[0].mxu0
    %v3193 = vadd.f32 %v1203, %v3192
    %v3194 = vpop.f32.mrb[0].mxu0
    %v3195 = vadd.f32 %v1199, %v3194
    %v3196 = vpop.f32.mrb[0].mxu0
    %v3197 = vadd.f32 %v1203, %v3196
    %3198 = vmatprep.mubr.bf16.mxu0 0
    %3199 = vmatmul.mubr.bf16.gmra.mrb[0].mxu0 %v1014
    %v3200 = vpop.f32.mrb[0].mxu0
    %v3201 = vadd.f32 %v1199, %v3200
    %v3202 = vpop.f32.mrb[0].mxu0
    %v3203 = vadd.f32 %v1203, %v3202
    %v3204 = vpop.f32.mrb[0].mxu0
    %v3205 = vadd.f32 %v1199, %v3204
    %v3206 = vpop.f32.mrb[0].mxu0
    %v3207 = vadd.f32 %v1203, %v3206
    %3208 = vmatprep.mubr.bf16.mxu0 0
    %3209 = vmatmul.mubr.bf16.gmra.mrb[0].mxu0 %v1015
    %v3210 = vpop.f32.mrb[0].mxu0
    %v3211 = vadd.f32 %v1199, %v3210
    %v3212 = vpop.f32.mrb[0].mxu0
    %v3213 = vadd.f32 %v1203, %v3212
    %v3214 = vpop.f32.mrb[0].mxu0
    %v3215 = vadd.f32 %v1199, %v3214
    %v3216 = vpop.f32.mrb[0].mxu0
    %v3217 = vadd.f32 %v1203, %v3216
    %3218 = vdwg.mxu0
    %3219 = vmatprep.subr.bf16.mxu0 %v1627
    %3220 = vmatpush1.bf16.msra.mxu0 %v1626
    %3221 = vmatprep.subr.bf16.mxu0 %v1643
    %3222 = vmatpush1.bf16.msra.mxu0 %v1642
    %3223 = vmatprep.subr.bf16.mxu0 %v1659
    %3224 = vmatpush1.bf16.msra.mxu0 %v1658
    %3225 = vmatprep.subr.bf16.mxu0 %v1675
    %3226 = vmatpush1.bf16.msra.mxu0 %v1674
    %3227 = vmatprep.subr.bf16.mxu0 %v1691
    %3228 = vmatpush1.bf16.msra.mxu0 %v1690
    %3229 = vmatprep.subr.bf16.mxu0 %v1707
    %3230 = vmatpush1.bf16.msra.mxu0 %v1706
    %3231 = vmatprep.subr.bf16.mxu0 %v1723
    %3232 = vmatpush1.bf16.msra.mxu0 %v1722
    %3233 = vmatprep.subr.bf16.mxu0 %v1739
    %3234 = vmatpush1.bf16.msra.mxu0 %v1738
    %3235 = vmatprep.subr.bf16.mxu0 0
    %3236 = vmatpush1.bf16.msra.mxu0 0
    %3237 = vmatprep.subr.bf16.mxu0 0
    %3238 = vmatpush1.bf16.msra.mxu0 0
    %3239 = vmatprep.subr.bf16.mxu0 0
    %3240 = vmatpush1.bf16.msra.mxu0 0
    %3241 = vmatprep.subr.bf16.mxu0 0
    %3242 = vmatpush1.bf16.msra.mxu0 0
    %3243 = vmatprep.subr.bf16.mxu0 0
    %3244 = vmatpush1.bf16.msra.mxu0 0
    %3245 = vmatprep.subr.bf16.mxu0 0
    %3246 = vmatpush1.bf16.msra.mxu0 0
    %3247 = vmatprep.subr.bf16.mxu0 0
    %3248 = vmatpush1.bf16.msra.mxu0 0
    %3249 = vmatprep.subr.bf16.mxu0 0
    %3250 = vmatpush1.bf16.msra.mxu0 0
    %3251 = vmatprep.mubr.bf16.mxu0 0
    %3252 = vmatmul.mubr.bf16.gmra.mrb[0].mxu0 %v1000
    %v3253 = vpop.f32.mrb[0].mxu0
    %v3254 = vadd.f32 %v1207, %v3253
    %v3255 = vpop.f32.mrb[0].mxu0
    %v3256 = vadd.f32 %v1211, %v3255
    %v3257 = vpop.f32.mrb[0].mxu0
    %v3258 = vadd.f32 %v1207, %v3257
    %v3259 = vpop.f32.mrb[0].mxu0
    %v3260 = vadd.f32 %v1211, %v3259
    %3261 = vmatprep.mubr.bf16.mxu0 0
    %3262 = vmatmul.mubr.bf16.gmra.mrb[0].mxu0 %v1001
    %v3263 = vpop.f32.mrb[0].mxu0
    %v3264 = vadd.f32 %v1207, %v3263
    %v3265 = vpop.f32.mrb[0].mxu0
    %v3266 = vadd.f32 %v1211, %v3265
    %v3267 = vpop.f32.mrb[0].mxu0
    %v3268 = vadd.f32 %v1207, %v3267
    %v3269 = vpop.f32.mrb[0].mxu0
    %v3270 = vadd.f32 %v1211, %v3269
    %3271 = vmatprep.mubr.bf16.mxu0 0
    %3272 = vmatmul.mubr.bf16.gmra.mrb[0].mxu0 %v1002
    %v3273 = vpop.f32.mrb[0].mxu0
    %v3274 = vadd.f32 %v1207, %v3273
    %v3275 = vpop.f32.mrb[0].mxu0
    %v3276 = vadd.f32 %v1211, %v3275
    %v3277 = vpop.f32.mrb[0].mxu0
    %v3278 = vadd.f32 %v1207, %v3277
    %v3279 = vpop.f32.mrb[0].mxu0
    %v3280 = vadd.f32 %v1211, %v3279
    %3281 = vmatprep.mubr.bf16.mxu0 0
    %3282 = vmatmul.mubr.bf16.gmra.mrb[0].mxu0 %v1003
    %v3283 = vpop.f32.mrb[0].mxu0
    %v3284 = vadd.f32 %v1207, %v3283
    %v3285 = vpop.f32.mrb[0].mxu0
    %v3286 = vadd.f32 %v1211, %v3285
    %v3287 = vpop.f32.mrb[0].mxu0
    %v3288 = vadd.f32 %v1207, %v3287
    %v3289 = vpop.f32.mrb[0].mxu0
    %v3290 = vadd.f32 %v1211, %v3289
    %3291 = vmatprep.mubr.bf16.mxu0 0
    %3292 = vmatmul.mubr.bf16.gmra.mrb[0].mxu0 %v1004
    %v3293 = vpop.f32.mrb[0].mxu0
    %v3294 = vadd.f32 %v1207, %v3293
    %v3295 = vpop.f32.mrb[0].mxu0
    %v3296 = vadd.f32 %v1211, %v3295
    %v3297 = vpop.f32.mrb[0].mxu0
    %v3298 = vadd.f32 %v1207, %v3297
    %v3299 = vpop.f32.mrb[0].mxu0
    %v3300 = vadd.f32 %v1211, %v3299
    %3301 = vmatprep.mubr.bf16.mxu0 0
    %3302 = vmatmul.mubr.bf16.gmra.mrb[0].mxu0 %v1005
    %v3303 = vpop.f32.mrb[0].mxu0
    %v3304 = vadd.f32 %v1207, %v3303
    %v3305 = vpop.f32.mrb[0].mxu0
    %v3306 = vadd.f32 %v1211, %v3305
    %v3307 = vpop.f32.mrb[0].mxu0
    %v3308 = vadd.f32 %v1207, %v3307
    %v3309 = vpop.f32.mrb[0].mxu0
    %v3310 = vadd.f32 %v1211, %v3309
    %3311 = vmatprep.mubr.bf16.mxu0 0
    %3312 = vmatmul.mubr.bf16.gmra.mrb[0].mxu0 %v1006
    %v3313 = vpop.f32.mrb[0].mxu0
    %v3314 = vadd.f32 %v1207, %v3313
    %v3315 = vpop.f32.mrb[0].mxu0
    %v3316 = vadd.f32 %v1211, %v3315
    %v3317 = vpop.f32.mrb[0].mxu0
    %v3318 = vadd.f32 %v1207, %v3317
    %v3319 = vpop.f32.mrb[0].mxu0
    %v3320 = vadd.f32 %v1211, %v3319
    %3321 = vmatprep.mubr.bf16.mxu0 0
    %3322 = vmatmul.mubr.bf16.gmra.mrb[0].mxu0 %v1007
    %v3323 = vpop.f32.mrb[0].mxu0
    %v3324 = vadd.f32 %v1207, %v3323
    %v3325 = vpop.f32.mrb[0].mxu0
    %v3326 = vadd.f32 %v1211, %v3325
    %v3327 = vpop.f32.mrb[0].mxu0
    %v3328 = vadd.f32 %v1207, %v3327
    %v3329 = vpop.f32.mrb[0].mxu0
    %v3330 = vadd.f32 %v1211, %v3329
    %3331 = vmatprep.mubr.bf16.mxu0 0
    %3332 = vmatmul.mubr.bf16.gmra.mrb[0].mxu0 %v1008
    %v3333 = vpop.f32.mrb[0].mxu0
    %v3334 = vadd.f32 %v1207, %v3333
    %v3335 = vpop.f32.mrb[0].mxu0
    %v3336 = vadd.f32 %v1211, %v3335
    %v3337 = vpop.f32.mrb[0].mxu0
    %v3338 = vadd.f32 %v1207, %v3337
    %v3339 = vpop.f32.mrb[0].mxu0
    %v3340 = vadd.f32 %v1211, %v3339
    %3341 = vmatprep.mubr.bf16.mxu0 0
    %3342 = vmatmul.mubr.bf16.gmra.mrb[0].mxu0 %v1009
    %v3343 = vpop.f32.mrb[0].mxu0
    %v3344 = vadd.f32 %v1207, %v3343
    %v3345 = vpop.f32.mrb[0].mxu0
    %v3346 = vadd.f32 %v1211, %v3345
    %v3347 = vpop.f32.mrb[0].mxu0
    %v3348 = vadd.f32 %v1207, %v3347
    %v3349 = vpop.f32.mrb[0].mxu0
    %v3350 = vadd.f32 %v1211, %v3349
    %3351 = vmatprep.mubr.bf16.mxu0 0
    %3352 = vmatmul.mubr.bf16.gmra.mrb[0].mxu0 %v1010
    %v3353 = vpop.f32.mrb[0].mxu0
    %v3354 = vadd.f32 %v1207, %v3353
    %v3355 = vpop.f32.mrb[0].mxu0
    %v3356 = vadd.f32 %v1211, %v3355
    %v3357 = vpop.f32.mrb[0].mxu0
    %v3358 = vadd.f32 %v1207, %v3357
    %v3359 = vpop.f32.mrb[0].mxu0
    %v3360 = vadd.f32 %v1211, %v3359
    %3361 = vmatprep.mubr.bf16.mxu0 0
    %3362 = vmatmul.mubr.bf16.gmra.mrb[0].mxu0 %v1011
    %v3363 = vpop.f32.mrb[0].mxu0
    %v3364 = vadd.f32 %v1207, %v3363
    %v3365 = vpop.f32.mrb[0].mxu0
    %v3366 = vadd.f32 %v1211, %v3365
    %v3367 = vpop.f32.mrb[0].mxu0
    %v3368 = vadd.f32 %v1207, %v3367
    %v3369 = vpop.f32.mrb[0].mxu0
    %v3370 = vadd.f32 %v1211, %v3369
    %3371 = vmatprep.mubr.bf16.mxu0 0
    %3372 = vmatmul.mubr.bf16.gmra.mrb[0].mxu0 %v1012
    %v3373 = vpop.f32.mrb[0].mxu0
    %v3374 = vadd.f32 %v1207, %v3373
    %v3375 = vpop.f32.mrb[0].mxu0
    %v3376 = vadd.f32 %v1211, %v3375
    %v3377 = vpop.f32.mrb[0].mxu0
    %v3378 = vadd.f32 %v1207, %v3377
    %v3379 = vpop.f32.mrb[0].mxu0
    %v3380 = vadd.f32 %v1211, %v3379
    %3381 = vmatprep.mubr.bf16.mxu0 0
    %3382 = vmatmul.mubr.bf16.gmra.mrb[0].mxu0 %v1013
    %v3383 = vpop.f32.mrb[0].mxu0
    %v3384 = vadd.f32 %v1207, %v3383
    %v3385 = vpop.f32.mrb[0].mxu0
    %v3386 = vadd.f32 %v1211, %v3385
    %v3387 = vpop.f32.mrb[0].mxu0
    %v3388 = vadd.f32 %v1207, %v3387
    %v3389 = vpop.f32.mrb[0].mxu0
    %v3390 = vadd.f32 %v1211, %v3389
    %3391 = vmatprep.mubr.bf16.mxu0 0
    %3392 = vmatmul.mubr.bf16.gmra.mrb[0].mxu0 %v1014
    %v3393 = vpop.f32.mrb[0].mxu0
    %v3394 = vadd.f32 %v1207, %v3393
    %v3395 = vpop.f32.mrb[0].mxu0
    %v3396 = vadd.f32 %v1211, %v3395
    %v3397 = vpop.f32.mrb[0].mxu0
    %v3398 = vadd.f32 %v1207, %v3397
    %v3399 = vpop.f32.mrb[0].mxu0
    %v3400 = vadd.f32 %v1211, %v3399
    %3401 = vmatprep.mubr.bf16.mxu0 0
    %3402 = vmatmul.mubr.bf16.gmra.mrb[0].mxu0 %v1015
    %v3403 = vpop.f32.mrb[0].mxu0
    %v3404 = vadd.f32 %v1207, %v3403
    %v3405 = vpop.f32.mrb[0].mxu0
    %v3406 = vadd.f32 %v1211, %v3405
    %v3407 = vpop.f32.mrb[0].mxu0
    %v3408 = vadd.f32 %v1207, %v3407
    %v3409 = vpop.f32.mrb[0].mxu0
    %v3410 = vadd.f32 %v1211, %v3409
    %3411 = vdwg.mxu0
    %v3412 = vpack.c.bf16 %v1907, %v1903
    %v3413 = vpack.c.bf16 %v1909, %v1905
    %v3414 = vpack.c.bf16 %v2100, %v2096
    %v3415 = vpack.c.bf16 %v2102, %v2098
    %v3416 = vpack.c.bf16 %v2293, %v2289
    %v3417 = vpack.c.bf16 %v2295, %v2291
    %v3418 = vpack.c.bf16 %v2486, %v2482
    %v3419 = vpack.c.bf16 %v2488, %v2484
    %v3420 = vpack.c.bf16 %v2679, %v2675
    %v3421 = vpack.c.bf16 %v2681, %v2677
    %v3422 = vpack.c.bf16 %v2872, %v2868
    %v3423 = vpack.c.bf16 %v2874, %v2870
    %v3424 = vpack.c.bf16 %v3065, %v3061
    %v3425 = vpack.c.bf16 %v3067, %v3063
    %v3426 = vpack.c.bf16 %v3258, %v3254
    %v3427 = vpack.c.bf16 %v3260, %v3256
    %v3428 = vpack.c.bf16 %v1917, %v1913
    %v3429 = vpack.c.bf16 %v1919, %v1915
    %v3430 = vpack.c.bf16 %v2110, %v2106
    %v3431 = vpack.c.bf16 %v2112, %v2108
    %v3432 = vpack.c.bf16 %v2303, %v2299
    %v3433 = vpack.c.bf16 %v2305, %v2301
    %v3434 = vpack.c.bf16 %v2496, %v2492
    %v3435 = vpack.c.bf16 %v2498, %v2494
    %v3436 = vpack.c.bf16 %v2689, %v2685
    %v3437 = vpack.c.bf16 %v2691, %v2687
    %v3438 = vpack.c.bf16 %v2882, %v2878
    %v3439 = vpack.c.bf16 %v2884, %v2880
    %v3440 = vpack.c.bf16 %v3075, %v3071
    %v3441 = vpack.c.bf16 %v3077, %v3073
    %v3442 = vpack.c.bf16 %v3268, %v3264
    %v3443 = vpack.c.bf16 %v3270, %v3266
    %v3444 = vpack.c.bf16 %v1927, %v1923
    %v3445 = vpack.c.bf16 %v1929, %v1925
    %v3446 = vpack.c.bf16 %v2120, %v2116
    %v3447 = vpack.c.bf16 %v2122, %v2118
    %v3448 = vpack.c.bf16 %v2313, %v2309
    %v3449 = vpack.c.bf16 %v2315, %v2311
    %v3450 = vpack.c.bf16 %v2506, %v2502
    %v3451 = vpack.c.bf16 %v2508, %v2504
    %v3452 = vpack.c.bf16 %v2699, %v2695
    %v3453 = vpack.c.bf16 %v2701, %v2697
    %v3454 = vpack.c.bf16 %v2892, %v2888
    %v3455 = vpack.c.bf16 %v2894, %v2890
    %v3456 = vpack.c.bf16 %v3085, %v3081
    %v3457 = vpack.c.bf16 %v3087, %v3083
    %v3458 = vpack.c.bf16 %v3278, %v3274
    %v3459 = vpack.c.bf16 %v3280, %v3276
    %v3460 = vpack.c.bf16 %v1937, %v1933
    %v3461 = vpack.c.bf16 %v1939, %v1935
    %v3462 = vpack.c.bf16 %v2130, %v2126
    %v3463 = vpack.c.bf16 %v2132, %v2128
    %v3464 = vpack.c.bf16 %v2323, %v2319
    %v3465 = vpack.c.bf16 %v2325, %v2321
    %v3466 = vpack.c.bf16 %v2516, %v2512
    %v3467 = vpack.c.bf16 %v2518, %v2514
    %v3468 = vpack.c.bf16 %v2709, %v2705
    %v3469 = vpack.c.bf16 %v2711, %v2707
    %v3470 = vpack.c.bf16 %v2902, %v2898
    %v3471 = vpack.c.bf16 %v2904, %v2900
    %v3472 = vpack.c.bf16 %v3095, %v3091
    %v3473 = vpack.c.bf16 %v3097, %v3093
    %v3474 = vpack.c.bf16 %v3288, %v3284
    %v3475 = vpack.c.bf16 %v3290, %v3286
    %v3476 = vpack.c.bf16 %v1947, %v1943
    %v3477 = vpack.c.bf16 %v1949, %v1945
    %v3478 = vpack.c.bf16 %v2140, %v2136
    %v3479 = vpack.c.bf16 %v2142, %v2138
    %v3480 = vpack.c.bf16 %v2333, %v2329
    %v3481 = vpack.c.bf16 %v2335, %v2331
    %v3482 = vpack.c.bf16 %v2526, %v2522
    %v3483 = vpack.c.bf16 %v2528, %v2524
    %v3484 = vpack.c.bf16 %v2719, %v2715
    %v3485 = vpack.c.bf16 %v2721, %v2717
    %v3486 = vpack.c.bf16 %v2912, %v2908
    %v3487 = vpack.c.bf16 %v2914, %v2910
    %v3488 = vpack.c.bf16 %v3105, %v3101
    %v3489 = vpack.c.bf16 %v3107, %v3103
    %v3490 = vpack.c.bf16 %v3298, %v3294
    %v3491 = vpack.c.bf16 %v3300, %v3296
    %v3492 = vpack.c.bf16 %v1957, %v1953
    %v3493 = vpack.c.bf16 %v1959, %v1955
    %v3494 = vpack.c.bf16 %v2150, %v2146
    %v3495 = vpack.c.bf16 %v2152, %v2148
    %v3496 = vpack.c.bf16 %v2343, %v2339
    %v3497 = vpack.c.bf16 %v2345, %v2341
    %v3498 = vpack.c.bf16 %v2536, %v2532
    %v3499 = vpack.c.bf16 %v2538, %v2534
    %v3500 = vpack.c.bf16 %v2729, %v2725
    %v3501 = vpack.c.bf16 %v2731, %v2727
    %v3502 = vpack.c.bf16 %v2922, %v2918
    %v3503 = vpack.c.bf16 %v2924, %v2920
    %v3504 = vpack.c.bf16 %v3115, %v3111
    %v3505 = vpack.c.bf16 %v3117, %v3113
    %v3506 = vpack.c.bf16 %v3308, %v3304
    %v3507 = vpack.c.bf16 %v3310, %v3306
    %v3508 = vpack.c.bf16 %v1967, %v1963
    %v3509 = vpack.c.bf16 %v1969, %v1965
    %v3510 = vpack.c.bf16 %v2160, %v2156
    %v3511 = vpack.c.bf16 %v2162, %v2158
    %v3512 = vpack.c.bf16 %v2353, %v2349
    %v3513 = vpack.c.bf16 %v2355, %v2351
    %v3514 = vpack.c.bf16 %v2546, %v2542
    %v3515 = vpack.c.bf16 %v2548, %v2544
    %v3516 = vpack.c.bf16 %v2739, %v2735
    %v3517 = vpack.c.bf16 %v2741, %v2737
    %v3518 = vpack.c.bf16 %v2932, %v2928
    %v3519 = vpack.c.bf16 %v2934, %v2930
    %v3520 = vpack.c.bf16 %v3125, %v3121
    %v3521 = vpack.c.bf16 %v3127, %v3123
    %v3522 = vpack.c.bf16 %v3318, %v3314
    %v3523 = vpack.c.bf16 %v3320, %v3316
    %v3524 = vpack.c.bf16 %v1977, %v1973
    %v3525 = vpack.c.bf16 %v1979, %v1975
    %v3526 = vpack.c.bf16 %v2170, %v2166
    %v3527 = vpack.c.bf16 %v2172, %v2168
    %v3528 = vpack.c.bf16 %v2363, %v2359
    %v3529 = vpack.c.bf16 %v2365, %v2361
    %v3530 = vpack.c.bf16 %v2556, %v2552
    %v3531 = vpack.c.bf16 %v2558, %v2554
    %v3532 = vpack.c.bf16 %v2749, %v2745
    %v3533 = vpack.c.bf16 %v2751, %v2747
    %v3534 = vpack.c.bf16 %v2942, %v2938
    %v3535 = vpack.c.bf16 %v2944, %v2940
    %v3536 = vpack.c.bf16 %v3135, %v3131
    %v3537 = vpack.c.bf16 %v3137, %v3133
    %v3538 = vpack.c.bf16 %v3328, %v3324
    %v3539 = vpack.c.bf16 %v3330, %v3326
    %v3540 = vpack.c.bf16 %v1987, %v1983
    %v3541 = vpack.c.bf16 %v1989, %v1985
    %v3542 = vpack.c.bf16 %v2180, %v2176
    %v3543 = vpack.c.bf16 %v2182, %v2178
    %v3544 = vpack.c.bf16 %v2373, %v2369
    %v3545 = vpack.c.bf16 %v2375, %v2371
    %v3546 = vpack.c.bf16 %v2566, %v2562
    %v3547 = vpack.c.bf16 %v2568, %v2564
    %v3548 = vpack.c.bf16 %v2759, %v2755
    %v3549 = vpack.c.bf16 %v2761, %v2757
    %v3550 = vpack.c.bf16 %v2952, %v2948
    %v3551 = vpack.c.bf16 %v2954, %v2950
    %v3552 = vpack.c.bf16 %v3145, %v3141
    %v3553 = vpack.c.bf16 %v3147, %v3143
    %v3554 = vpack.c.bf16 %v3338, %v3334
    %v3555 = vpack.c.bf16 %v3340, %v3336
    %v3556 = vpack.c.bf16 %v1997, %v1993
    %v3557 = vpack.c.bf16 %v1999, %v1995
    %v3558 = vpack.c.bf16 %v2190, %v2186
    %v3559 = vpack.c.bf16 %v2192, %v2188
    %v3560 = vpack.c.bf16 %v2383, %v2379
    %v3561 = vpack.c.bf16 %v2385, %v2381
    %v3562 = vpack.c.bf16 %v2576, %v2572
    %v3563 = vpack.c.bf16 %v2578, %v2574
    %v3564 = vpack.c.bf16 %v2769, %v2765
    %v3565 = vpack.c.bf16 %v2771, %v2767
    %v3566 = vpack.c.bf16 %v2962, %v2958
    %v3567 = vpack.c.bf16 %v2964, %v2960
    %v3568 = vpack.c.bf16 %v3155, %v3151
    %v3569 = vpack.c.bf16 %v3157, %v3153
    %v3570 = vpack.c.bf16 %v3348, %v3344
    %v3571 = vpack.c.bf16 %v3350, %v3346
    %v3572 = vpack.c.bf16 %v2007, %v2003
    %v3573 = vpack.c.bf16 %v2009, %v2005
    %v3574 = vpack.c.bf16 %v2200, %v2196
    %v3575 = vpack.c.bf16 %v2202, %v2198
    %v3576 = vpack.c.bf16 %v2393, %v2389
    %v3577 = vpack.c.bf16 %v2395, %v2391
    %v3578 = vpack.c.bf16 %v2586, %v2582
    %v3579 = vpack.c.bf16 %v2588, %v2584
    %v3580 = vpack.c.bf16 %v2779, %v2775
    %v3581 = vpack.c.bf16 %v2781, %v2777
    %v3582 = vpack.c.bf16 %v2972, %v2968
    %v3583 = vpack.c.bf16 %v2974, %v2970
    %v3584 = vpack.c.bf16 %v3165, %v3161
    %v3585 = vpack.c.bf16 %v3167, %v3163
    %v3586 = vpack.c.bf16 %v3358, %v3354
    %v3587 = vpack.c.bf16 %v3360, %v3356
    %v3588 = vpack.c.bf16 %v2017, %v2013
    %v3589 = vpack.c.bf16 %v2019, %v2015
    %v3590 = vpack.c.bf16 %v2210, %v2206
    %v3591 = vpack.c.bf16 %v2212, %v2208
    %v3592 = vpack.c.bf16 %v2403, %v2399
    %v3593 = vpack.c.bf16 %v2405, %v2401
    %v3594 = vpack.c.bf16 %v2596, %v2592
    %v3595 = vpack.c.bf16 %v2598, %v2594
    %v3596 = vpack.c.bf16 %v2789, %v2785
    %v3597 = vpack.c.bf16 %v2791, %v2787
    %v3598 = vpack.c.bf16 %v2982, %v2978
    %v3599 = vpack.c.bf16 %v2984, %v2980
    %v3600 = vpack.c.bf16 %v3175, %v3171
    %v3601 = vpack.c.bf16 %v3177, %v3173
    %v3602 = vpack.c.bf16 %v3368, %v3364
    %v3603 = vpack.c.bf16 %v3370, %v3366
    %v3604 = vpack.c.bf16 %v2027, %v2023
    %v3605 = vpack.c.bf16 %v2029, %v2025
    %v3606 = vpack.c.bf16 %v2220, %v2216
    %v3607 = vpack.c.bf16 %v2222, %v2218
    %v3608 = vpack.c.bf16 %v2413, %v2409
    %v3609 = vpack.c.bf16 %v2415, %v2411
    %v3610 = vpack.c.bf16 %v2606, %v2602
    %v3611 = vpack.c.bf16 %v2608, %v2604
    %v3612 = vpack.c.bf16 %v2799, %v2795
    %v3613 = vpack.c.bf16 %v2801, %v2797
    %v3614 = vpack.c.bf16 %v2992, %v2988
    %v3615 = vpack.c.bf16 %v2994, %v2990
    %v3616 = vpack.c.bf16 %v3185, %v3181
    %v3617 = vpack.c.bf16 %v3187, %v3183
    %v3618 = vpack.c.bf16 %v3378, %v3374
    %v3619 = vpack.c.bf16 %v3380, %v3376
    %v3620 = vpack.c.bf16 %v2037, %v2033
    %v3621 = vpack.c.bf16 %v2039, %v2035
    %v3622 = vpack.c.bf16 %v2230, %v2226
    %v3623 = vpack.c.bf16 %v2232, %v2228
    %v3624 = vpack.c.bf16 %v2423, %v2419
    %v3625 = vpack.c.bf16 %v2425, %v2421
    %v3626 = vpack.c.bf16 %v2616, %v2612
    %v3627 = vpack.c.bf16 %v2618, %v2614
    %v3628 = vpack.c.bf16 %v2809, %v2805
    %v3629 = vpack.c.bf16 %v2811, %v2807
    %v3630 = vpack.c.bf16 %v3002, %v2998
    %v3631 = vpack.c.bf16 %v3004, %v3000
    %v3632 = vpack.c.bf16 %v3195, %v3191
    %v3633 = vpack.c.bf16 %v3197, %v3193
    %v3634 = vpack.c.bf16 %v3388, %v3384
    %v3635 = vpack.c.bf16 %v3390, %v3386
    %v3636 = vpack.c.bf16 %v2047, %v2043
    %v3637 = vpack.c.bf16 %v2049, %v2045
    %v3638 = vpack.c.bf16 %v2240, %v2236
    %v3639 = vpack.c.bf16 %v2242, %v2238
    %v3640 = vpack.c.bf16 %v2433, %v2429
    %v3641 = vpack.c.bf16 %v2435, %v2431
    %v3642 = vpack.c.bf16 %v2626, %v2622
    %v3643 = vpack.c.bf16 %v2628, %v2624
    %v3644 = vpack.c.bf16 %v2819, %v2815
    %v3645 = vpack.c.bf16 %v2821, %v2817
    %v3646 = vpack.c.bf16 %v3012, %v3008
    %v3647 = vpack.c.bf16 %v3014, %v3010
    %v3648 = vpack.c.bf16 %v3205, %v3201
    %v3649 = vpack.c.bf16 %v3207, %v3203
    %v3650 = vpack.c.bf16 %v3398, %v3394
    %v3651 = vpack.c.bf16 %v3400, %v3396
    %v3652 = vpack.c.bf16 %v2057, %v2053
    %v3653 = vpack.c.bf16 %v2059, %v2055
    %v3654 = vpack.c.bf16 %v2250, %v2246
    %v3655 = vpack.c.bf16 %v2252, %v2248
    %v3656 = vpack.c.bf16 %v2443, %v2439
    %v3657 = vpack.c.bf16 %v2445, %v2441
    %v3658 = vpack.c.bf16 %v2636, %v2632
    %v3659 = vpack.c.bf16 %v2638, %v2634
    %v3660 = vpack.c.bf16 %v2829, %v2825
    %v3661 = vpack.c.bf16 %v2831, %v2827
    %v3662 = vpack.c.bf16 %v3022, %v3018
    %v3663 = vpack.c.bf16 %v3024, %v3020
    %v3664 = vpack.c.bf16 %v3215, %v3211
    %v3665 = vpack.c.bf16 %v3217, %v3213
    %v3666 = vpack.c.bf16 %v3408, %v3404
    %v3667 = vpack.c.bf16 %v3410, %v3406
    %v3668 = vmul.bf16 %v3412, %v3420
    %v3669 = vmul.bf16 %v3413, %v3421
    %v3670 = vmul.bf16 %v3414, %v3422
    %v3671 = vmul.bf16 %v3415, %v3423
    %v3672 = vmul.bf16 %v3416, %v3424
    %v3673 = vmul.bf16 %v3417, %v3425
    %v3674 = vmul.bf16 %v3418, %v3426
    %v3675 = vmul.bf16 %v3419, %v3427
    %v3676 = vmul.bf16 %v3428, %v3436
    %v3677 = vmul.bf16 %v3429, %v3437
    %v3678 = vmul.bf16 %v3430, %v3438
    %v3679 = vmul.bf16 %v3431, %v3439
    %v3680 = vmul.bf16 %v3432, %v3440
    %v3681 = vmul.bf16 %v3433, %v3441
    %v3682 = vmul.bf16 %v3434, %v3442
    %v3683 = vmul.bf16 %v3435, %v3443
    %v3684 = vmul.bf16 %v3444, %v3452
    %v3685 = vmul.bf16 %v3445, %v3453
    %v3686 = vmul.bf16 %v3446, %v3454
    %v3687 = vmul.bf16 %v3447, %v3455
    %v3688 = vmul.bf16 %v3448, %v3456
    %v3689 = vmul.bf16 %v3449, %v3457
    %v3690 = vmul.bf16 %v3450, %v3458
    %v3691 = vmul.bf16 %v3451, %v3459
    %v3692 = vmul.bf16 %v3460, %v3468
    %v3693 = vmul.bf16 %v3461, %v3469
    %v3694 = vmul.bf16 %v3462, %v3470
    %v3695 = vmul.bf16 %v3463, %v3471
    %v3696 = vmul.bf16 %v3464, %v3472
    %v3697 = vmul.bf16 %v3465, %v3473
    %v3698 = vmul.bf16 %v3466, %v3474
    %v3699 = vmul.bf16 %v3467, %v3475
    %v3700 = vmul.bf16 %v3476, %v3484
    %v3701 = vmul.bf16 %v3477, %v3485
    %v3702 = vmul.bf16 %v3478, %v3486
    %v3703 = vmul.bf16 %v3479, %v3487
    %v3704 = vmul.bf16 %v3480, %v3488
    %v3705 = vmul.bf16 %v3481, %v3489
    %v3706 = vmul.bf16 %v3482, %v3490
    %v3707 = vmul.bf16 %v3483, %v3491
    %v3708 = vmul.bf16 %v3492, %v3500
    %v3709 = vmul.bf16 %v3493, %v3501
    %v3710 = vmul.bf16 %v3494, %v3502
    %v3711 = vmul.bf16 %v3495, %v3503
    %v3712 = vmul.bf16 %v3496, %v3504
    %v3713 = vmul.bf16 %v3497, %v3505
    %v3714 = vmul.bf16 %v3498, %v3506
    %v3715 = vmul.bf16 %v3499, %v3507
    %v3716 = vmul.bf16 %v3508, %v3516
    %v3717 = vmul.bf16 %v3509, %v3517
    %v3718 = vmul.bf16 %v3510, %v3518
    %v3719 = vmul.bf16 %v3511, %v3519
    %v3720 = vmul.bf16 %v3512, %v3520
    %v3721 = vmul.bf16 %v3513, %v3521
    %v3722 = vmul.bf16 %v3514, %v3522
    %v3723 = vmul.bf16 %v3515, %v3523
    %v3724 = vmul.bf16 %v3524, %v3532
    %v3725 = vmul.bf16 %v3525, %v3533
    %v3726 = vmul.bf16 %v3526, %v3534
    %v3727 = vmul.bf16 %v3527, %v3535
    %v3728 = vmul.bf16 %v3528, %v3536
    %v3729 = vmul.bf16 %v3529, %v3537
    %v3730 = vmul.bf16 %v3530, %v3538
    %v3731 = vmul.bf16 %v3531, %v3539
    %v3732 = vmul.bf16 %v3540, %v3548
    %v3733 = vmul.bf16 %v3541, %v3549
    %v3734 = vmul.bf16 %v3542, %v3550
    %v3735 = vmul.bf16 %v3543, %v3551
    %v3736 = vmul.bf16 %v3544, %v3552
    %v3737 = vmul.bf16 %v3545, %v3553
    %v3738 = vmul.bf16 %v3546, %v3554
    %v3739 = vmul.bf16 %v3547, %v3555
    %v3740 = vmul.bf16 %v3556, %v3564
    %v3741 = vmul.bf16 %v3557, %v3565
    %v3742 = vmul.bf16 %v3558, %v3566
    %v3743 = vmul.bf16 %v3559, %v3567
    %v3744 = vmul.bf16 %v3560, %v3568
    %v3745 = vmul.bf16 %v3561, %v3569
    %v3746 = vmul.bf16 %v3562, %v3570
    %v3747 = vmul.bf16 %v3563, %v3571
    %v3748 = vmul.bf16 %v3572, %v3580
    %v3749 = vmul.bf16 %v3573, %v3581
    %v3750 = vmul.bf16 %v3574, %v3582
    %v3751 = vmul.bf16 %v3575, %v3583
    %v3752 = vmul.bf16 %v3576, %v3584
    %v3753 = vmul.bf16 %v3577, %v3585
    %v3754 = vmul.bf16 %v3578, %v3586
    %v3755 = vmul.bf16 %v3579, %v3587
    %v3756 = vmul.bf16 %v3588, %v3596
    %v3757 = vmul.bf16 %v3589, %v3597
    %v3758 = vmul.bf16 %v3590, %v3598
    %v3759 = vmul.bf16 %v3591, %v3599
    %v3760 = vmul.bf16 %v3592, %v3600
    %v3761 = vmul.bf16 %v3593, %v3601
    %v3762 = vmul.bf16 %v3594, %v3602
    %v3763 = vmul.bf16 %v3595, %v3603
    %v3764 = vmul.bf16 %v3604, %v3612
    %v3765 = vmul.bf16 %v3605, %v3613
    %v3766 = vmul.bf16 %v3606, %v3614
    %v3767 = vmul.bf16 %v3607, %v3615
    %v3768 = vmul.bf16 %v3608, %v3616
    %v3769 = vmul.bf16 %v3609, %v3617
    %v3770 = vmul.bf16 %v3610, %v3618
    %v3771 = vmul.bf16 %v3611, %v3619
    %v3772 = vmul.bf16 %v3620, %v3628
    %v3773 = vmul.bf16 %v3621, %v3629
    %v3774 = vmul.bf16 %v3622, %v3630
    %v3775 = vmul.bf16 %v3623, %v3631
    %v3776 = vmul.bf16 %v3624, %v3632
    %v3777 = vmul.bf16 %v3625, %v3633
    %v3778 = vmul.bf16 %v3626, %v3634
    %v3779 = vmul.bf16 %v3627, %v3635
    %v3780 = vmul.bf16 %v3636, %v3644
    %v3781 = vmul.bf16 %v3637, %v3645
    %v3782 = vmul.bf16 %v3638, %v3646
    %v3783 = vmul.bf16 %v3639, %v3647
    %v3784 = vmul.bf16 %v3640, %v3648
    %v3785 = vmul.bf16 %v3641, %v3649
    %v3786 = vmul.bf16 %v3642, %v3650
    %v3787 = vmul.bf16 %v3643, %v3651
    %v3788 = vmul.bf16 %v3652, %v3660
    %v3789 = vmul.bf16 %v3653, %v3661
    %v3790 = vmul.bf16 %v3654, %v3662
    %v3791 = vmul.bf16 %v3655, %v3663
    %v3792 = vmul.bf16 %v3656, %v3664
    %v3793 = vmul.bf16 %v3657, %v3665
    %v3794 = vmul.bf16 %v3658, %v3666
    %v3795 = vmul.bf16 %v3659, %v3667
    %v3796 = vld [vmem:[#allocation10] sm:$0xf]
    %v3797 = vld [vmem:[#allocation10 + $0x4] sm:$0xf]
    %v3798 = vld [vmem:[#allocation10 + $0x8] sm:$0xf]
    %v3799 = vld [vmem:[#allocation10 + $0xc] sm:$0xf]
    %v3800 = vld [vmem:[#allocation10 + $0x10] sm:$0xf]
    %v3801 = vld [vmem:[#allocation10 + $0x14] sm:$0xf]
    %v3802 = vld [vmem:[#allocation10 + $0x18] sm:$0xf]
    %v3803 = vld [vmem:[#allocation10 + $0x1c] sm:$0xf]
    %v3804 = vld [vmem:[#allocation10 + $0x20] sm:$0xf]
    %v3805 = vld [vmem:[#allocation10 + $0x24] sm:$0xf]
    %v3806 = vld [vmem:[#allocation10 + $0x28] sm:$0xf]
    %v3807 = vld [vmem:[#allocation10 + $0x2c] sm:$0xf]
    %v3808 = vld [vmem:[#allocation10 + $0x30] sm:$0xf]
    %v3809 = vld [vmem:[#allocation10 + $0x34] sm:$0xf]
    %v3810 = vld [vmem:[#allocation10 + $0x38] sm:$0xf]
    %v3811 = vld [vmem:[#allocation10 + $0x3c] sm:$0xf]
    %v3812 = vld [vmem:[#allocation10 + $0x40] sm:$0xf]
    %v3813 = vld [vmem:[#allocation10 + $0x44] sm:$0xf]
    %v3814 = vld [vmem:[#allocation10 + $0x48] sm:$0xf]
    %v3815 = vld [vmem:[#allocation10 + $0x4c] sm:$0xf]
    %v3816 = vld [vmem:[#allocation10 + $0x50] sm:$0xf]
    %v3817 = vld [vmem:[#allocation10 + $0x54] sm:$0xf]
    %v3818 = vld [vmem:[#allocation10 + $0x58] sm:$0xf]
    %v3819 = vld [vmem:[#allocation10 + $0x5c] sm:$0xf]
    %v3820 = vld [vmem:[#allocation10 + $0x60] sm:$0xf]
    %v3821 = vld [vmem:[#allocation10 + $0x64] sm:$0xf]
    %v3822 = vld [vmem:[#allocation10 + $0x68] sm:$0xf]
    %v3823 = vld [vmem:[#allocation10 + $0x6c] sm:$0xf]
    %v3824 = vld [vmem:[#allocation10 + $0x70] sm:$0xf]
    %v3825 = vld [vmem:[#allocation10 + $0x74] sm:$0xf]
    %v3826 = vld [vmem:[#allocation10 + $0x78] sm:$0xf]
    %v3827 = vld [vmem:[#allocation10 + $0x7c] sm:$0xf]
    %v3828 = vld [vmem:[#allocation10 + $0x80] sm:$0xf]
    %v3829 = vld [vmem:[#allocation10 + $0x84] sm:$0xf]
    %v3830 = vld [vmem:[#allocation10 + $0x88] sm:$0xf]
    %v3831 = vld [vmem:[#allocation10 + $0x8c] sm:$0xf]
    %v3832 = vld [vmem:[#allocation10 + $0x90] sm:$0xf]
    %v3833 = vld [vmem:[#allocation10 + $0x94] sm:$0xf]
    %v3834 = vld [vmem:[#allocation10 + $0x98] sm:$0xf]
    %v3835 = vld [vmem:[#allocation10 + $0x9c] sm:$0xf]
    %v3836 = vld [vmem:[#allocation10 + $0xa0] sm:$0xf]
    %v3837 = vld [vmem:[#allocation10 + $0xa4] sm:$0xf]
    %v3838 = vld [vmem:[#allocation10 + $0xa8] sm:$0xf]
    %v3839 = vld [vmem:[#allocation10 + $0xac] sm:$0xf]
    %v3840 = vld [vmem:[#allocation10 + $0xb0] sm:$0xf]
    %v3841 = vld [vmem:[#allocation10 + $0xb4] sm:$0xf]
    %v3842 = vld [vmem:[#allocation10 + $0xb8] sm:$0xf]
    %v3843 = vld [vmem:[#allocation10 + $0xbc] sm:$0xf]
    %v3844 = vld [vmem:[#allocation10 + $0xc0] sm:$0xf]
    %v3845 = vld [vmem:[#allocation10 + $0xc4] sm:$0xf]
    %v3846 = vld [vmem:[#allocation10 + $0xc8] sm:$0xf]
    %v3847 = vld [vmem:[#allocation10 + $0xcc] sm:$0xf]
    %v3848 = vld [vmem:[#allocation10 + $0xd0] sm:$0xf]
    %v3849 = vld [vmem:[#allocation10 + $0xd4] sm:$0xf]
    %v3850 = vld [vmem:[#allocation10 + $0xd8] sm:$0xf]
    %v3851 = vld [vmem:[#allocation10 + $0xdc] sm:$0xf]
    %v3852 = vld [vmem:[#allocation10 + $0xe0] sm:$0xf]
    %v3853 = vld [vmem:[#allocation10 + $0xe4] sm:$0xf]
    %v3854 = vld [vmem:[#allocation10 + $0xe8] sm:$0xf]
    %v3855 = vld [vmem:[#allocation10 + $0xec] sm:$0xf]
    %v3856 = vld [vmem:[#allocation10 + $0xf0] sm:$0xf]
    %v3857 = vld [vmem:[#allocation10 + $0xf4] sm:$0xf]
    %v3858 = vld [vmem:[#allocation10 + $0xf8] sm:$0xf]
    %v3859 = vld [vmem:[#allocation10 + $0xfc] sm:$0xf]
    %v3860 = vld [vmem:[#allocation10 + $0x100] sm:$0xf]
    %v3861 = vld [vmem:[#allocation10 + $0x104] sm:$0xf]
    %v3862 = vld [vmem:[#allocation10 + $0x108] sm:$0xf]
    %v3863 = vld [vmem:[#allocation10 + $0x10c] sm:$0xf]
    %v3864 = vld [vmem:[#allocation10 + $0x110] sm:$0xf]
    %v3865 = vld [vmem:[#allocation10 + $0x114] sm:$0xf]
    %v3866 = vld [vmem:[#allocation10 + $0x118] sm:$0xf]
    %v3867 = vld [vmem:[#allocation10 + $0x11c] sm:$0xf]
    %v3868 = vld [vmem:[#allocation10 + $0x120] sm:$0xf]
    %v3869 = vld [vmem:[#allocation10 + $0x124] sm:$0xf]
    %v3870 = vld [vmem:[#allocation10 + $0x128] sm:$0xf]
    %v3871 = vld [vmem:[#allocation10 + $0x12c] sm:$0xf]
    %v3872 = vld [vmem:[#allocation10 + $0x130] sm:$0xf]
    %v3873 = vld [vmem:[#allocation10 + $0x134] sm:$0xf]
    %v3874 = vld [vmem:[#allocation10 + $0x138] sm:$0xf]
    %v3875 = vld [vmem:[#allocation10 + $0x13c] sm:$0xf]
    %v3876 = vld [vmem:[#allocation10 + $0x140] sm:$0xf]
    %v3877 = vld [vmem:[#allocation10 + $0x144] sm:$0xf]
    %v3878 = vld [vmem:[#allocation10 + $0x148] sm:$0xf]
    %v3879 = vld [vmem:[#allocation10 + $0x14c] sm:$0xf]
    %v3880 = vld [vmem:[#allocation10 + $0x150] sm:$0xf]
    %v3881 = vld [vmem:[#allocation10 + $0x154] sm:$0xf]
    %v3882 = vld [vmem:[#allocation10 + $0x158] sm:$0xf]
    %v3883 = vld [vmem:[#allocation10 + $0x15c] sm:$0xf]
    %v3884 = vld [vmem:[#allocation10 + $0x160] sm:$0xf]
    %v3885 = vld [vmem:[#allocation10 + $0x164] sm:$0xf]
    %v3886 = vld [vmem:[#allocation10 + $0x168] sm:$0xf]
    %v3887 = vld [vmem:[#allocation10 + $0x16c] sm:$0xf]
    %v3888 = vld [vmem:[#allocation10 + $0x170] sm:$0xf]
    %v3889 = vld [vmem:[#allocation10 + $0x174] sm:$0xf]
    %v3890 = vld [vmem:[#allocation10 + $0x178] sm:$0xf]
    %v3891 = vld [vmem:[#allocation10 + $0x17c] sm:$0xf]
    %v3892 = vld [vmem:[#allocation10 + $0x180] sm:$0xf]
    %v3893 = vld [vmem:[#allocation10 + $0x184] sm:$0xf]
    %v3894 = vld [vmem:[#allocation10 + $0x188] sm:$0xf]
    %v3895 = vld [vmem:[#allocation10 + $0x18c] sm:$0xf]
    %v3896 = vld [vmem:[#allocation10 + $0x190] sm:$0xf]
    %v3897 = vld [vmem:[#allocation10 + $0x194] sm:$0xf]
    %v3898 = vld [vmem:[#allocation10 + $0x198] sm:$0xf]
    %v3899 = vld [vmem:[#allocation10 + $0x19c] sm:$0xf]
    %v3900 = vld [vmem:[#allocation10 + $0x1a0] sm:$0xf]
    %v3901 = vld [vmem:[#allocation10 + $0x1a4] sm:$0xf]
    %v3902 = vld [vmem:[#allocation10 + $0x1a8] sm:$0xf]
    %v3903 = vld [vmem:[#allocation10 + $0x1ac] sm:$0xf]
    %v3904 = vld [vmem:[#allocation10 + $0x1b0] sm:$0xf]
    %v3905 = vld [vmem:[#allocation10 + $0x1b4] sm:$0xf]
    %v3906 = vld [vmem:[#allocation10 + $0x1b8] sm:$0xf]
    %v3907 = vld [vmem:[#allocation10 + $0x1bc] sm:$0xf]
    %v3908 = vld [vmem:[#allocation10 + $0x1c0] sm:$0xf]
    %v3909 = vld [vmem:[#allocation10 + $0x1c4] sm:$0xf]
    %v3910 = vld [vmem:[#allocation10 + $0x1c8] sm:$0xf]
    %v3911 = vld [vmem:[#allocation10 + $0x1cc] sm:$0xf]
    %v3912 = vld [vmem:[#allocation10 + $0x1d0] sm:$0xf]
    %v3913 = vld [vmem:[#allocation10 + $0x1d4] sm:$0xf]
    %v3914 = vld [vmem:[#allocation10 + $0x1d8] sm:$0xf]
    %v3915 = vld [vmem:[#allocation10 + $0x1dc] sm:$0xf]
    %v3916 = vld [vmem:[#allocation10 + $0x1e0] sm:$0xf]
    %v3917 = vld [vmem:[#allocation10 + $0x1e4] sm:$0xf]
    %v3918 = vld [vmem:[#allocation10 + $0x1e8] sm:$0xf]
    %v3919 = vld [vmem:[#allocation10 + $0x1ec] sm:$0xf]
    %v3920 = vld [vmem:[#allocation10 + $0x1f0] sm:$0xf]
    %v3921 = vld [vmem:[#allocation10 + $0x1f4] sm:$0xf]
    %v3922 = vld [vmem:[#allocation10 + $0x1f8] sm:$0xf]
    %v3923 = vld [vmem:[#allocation10 + $0x1fc] sm:$0xf]
    %v4052 = vunpack.c.l.b16 %v3796
    %v4053 = vunpack.c.l.b16 %v3797
    %v4054 = vunpack.c.l.b16 %v3798
    %v4055 = vunpack.c.l.b16 %v3799
    %v4056 = vunpack.c.l.b16 %v3800
    %v4057 = vunpack.c.l.b16 %v3801
    %v4058 = vunpack.c.l.b16 %v3802
    %v4059 = vunpack.c.l.b16 %v3803
    %v4060 = vunpack.c.l.b16 %v3804
    %v4061 = vunpack.c.l.b16 %v3805
    %v4062 = vunpack.c.l.b16 %v3806
    %v4063 = vunpack.c.l.b16 %v3807
    %v4064 = vunpack.c.l.b16 %v3808
    %v4065 = vunpack.c.l.b16 %v3809
    %v4066 = vunpack.c.l.b16 %v3810
    %v4067 = vunpack.c.l.b16 %v3811
    %v4068 = vunpack.c.l.b16 %v3812
    %v4069 = vunpack.c.l.b16 %v3813
    %v4070 = vunpack.c.l.b16 %v3814
    %v4071 = vunpack.c.l.b16 %v3815
    %v4072 = vunpack.c.l.b16 %v3816
    %v4073 = vunpack.c.l.b16 %v3817
    %v4074 = vunpack.c.l.b16 %v3818
    %v4075 = vunpack.c.l.b16 %v3819
    %v4076 = vunpack.c.l.b16 %v3820
    %v4077 = vunpack.c.l.b16 %v3821
    %v4078 = vunpack.c.l.b16 %v3822
    %v4079 = vunpack.c.l.b16 %v3823
    %v4080 = vunpack.c.l.b16 %v3824
    %v4081 = vunpack.c.l.b16 %v3825
    %v4082 = vunpack.c.l.b16 %v3826
    %v4083 = vunpack.c.l.b16 %v3827
    %v4084 = vunpack.c.l.b16 %v3828
    %v4085 = vunpack.c.l.b16 %v3829
    %v4086 = vunpack.c.l.b16 %v3830
    %v4087 = vunpack.c.l.b16 %v3831
    %v4088 = vunpack.c.l.b16 %v3832
    %v4089 = vunpack.c.l.b16 %v3833
    %v4090 = vunpack.c.l.b16 %v3834
    %v4091 = vunpack.c.l.b16 %v3835
    %v4092 = vunpack.c.l.b16 %v3836
    %v4093 = vunpack.c.l.b16 %v3837
    %v4094 = vunpack.c.l.b16 %v3838
    %v4095 = vunpack.c.l.b16 %v3839
    %v4096 = vunpack.c.l.b16 %v3840
    %v4097 = vunpack.c.l.b16 %v3841
    %v4098 = vunpack.c.l.b16 %v3842
    %v4099 = vunpack.c.l.b16 %v3843
    %v4100 = vunpack.c.l.b16 %v3844
    %v4101 = vunpack.c.l.b16 %v3845
    %v4102 = vunpack.c.l.b16 %v3846
    %v4103 = vunpack.c.l.b16 %v3847
    %v4104 = vunpack.c.l.b16 %v3848
    %v4105 = vunpack.c.l.b16 %v3849
    %v4106 = vunpack.c.l.b16 %v3850
    %v4107 = vunpack.c.l.b16 %v3851
    %v4108 = vunpack.c.l.b16 %v3852
    %v4109 = vunpack.c.l.b16 %v3853
    %v4110 = vunpack.c.l.b16 %v3854
    %v4111 = vunpack.c.l.b16 %v3855
    %v4112 = vunpack.c.l.b16 %v3856
    %v4113 = vunpack.c.l.b16 %v3857
    %v4114 = vunpack.c.l.b16 %v3858
    %v4115 = vunpack.c.l.b16 %v3859
    %v4116 = vunpack.c.l.b16 %v3860
    %v4117 = vunpack.c.l.b16 %v3861
    %v4118 = vunpack.c.l.b16 %v3862
    %v4119 = vunpack.c.l.b16 %v3863
    %v4120 = vunpack.c.l.b16 %v3864
    %v4121 = vunpack.c.l.b16 %v3865
    %v4122 = vunpack.c.l.b16 %v3866
    %v4123 = vunpack.c.l.b16 %v3867
    %v4124 = vunpack.c.l.b16 %v3868
    %v4125 = vunpack.c.l.b16 %v3869
    %v4126 = vunpack.c.l.b16 %v3870
    %v4127 = vunpack.c.l.b16 %v3871
    %v4128 = vunpack.c.l.b16 %v3872
    %v4129 = vunpack.c.l.b16 %v3873
    %v4130 = vunpack.c.l.b16 %v3874
    %v4131 = vunpack.c.l.b16 %v3875
    %v4132 = vunpack.c.l.b16 %v3876
    %v4133 = vunpack.c.l.b16 %v3877
    %v4134 = vunpack.c.l.b16 %v3878
    %v4135 = vunpack.c.l.b16 %v3879
    %v4136 = vunpack.c.l.b16 %v3880
    %v4137 = vunpack.c.l.b16 %v3881
    %v4138 = vunpack.c.l.b16 %v3882
    %v4139 = vunpack.c.l.b16 %v3883
    %v4140 = vunpack.c.l.b16 %v3884
    %v4141 = vunpack.c.l.b16 %v3885
    %v4142 = vunpack.c.l.b16 %v3886
    %v4143 = vunpack.c.l.b16 %v3887
    %v4144 = vunpack.c.l.b16 %v3888
    %v4145 = vunpack.c.l.b16 %v3889
    %v4146 = vunpack.c.l.b16 %v3890
    %v4147 = vunpack.c.l.b16 %v3891
    %v4148 = vunpack.c.l.b16 %v3892
    %v4149 = vunpack.c.l.b16 %v3893
    %v4150 = vunpack.c.l.b16 %v3894
    %v4151 = vunpack.c.l.b16 %v3895
    %v4152 = vunpack.c.l.b16 %v3896
    %v4153 = vunpack.c.l.b16 %v3897
    %v4154 = vunpack.c.l.b16 %v3898
    %v4155 = vunpack.c.l.b16 %v3899
    %v4156 = vunpack.c.l.b16 %v3900
    %v4157 = vunpack.c.l.b16 %v3901
    %v4158 = vunpack.c.l.b16 %v3902
    %v4159 = vunpack.c.l.b16 %v3903
    %v4160 = vunpack.c.l.b16 %v3904
    %v4161 = vunpack.c.l.b16 %v3905
    %v4162 = vunpack.c.l.b16 %v3906
    %v4163 = vunpack.c.l.b16 %v3907
    %v4164 = vunpack.c.l.b16 %v3908
    %v4165 = vunpack.c.l.b16 %v3909
    %v4166 = vunpack.c.l.b16 %v3910
    %v4167 = vunpack.c.l.b16 %v3911
    %v4168 = vunpack.c.l.b16 %v3912
    %v4169 = vunpack.c.l.b16 %v3913
    %v4170 = vunpack.c.l.b16 %v3914
    %v4171 = vunpack.c.l.b16 %v3915
    %v4172 = vunpack.c.l.b16 %v3916
    %v4173 = vunpack.c.l.b16 %v3917
    %v4174 = vunpack.c.l.b16 %v3918
    %v4175 = vunpack.c.l.b16 %v3919
    %v4176 = vunpack.c.l.b16 %v3920
    %v4177 = vunpack.c.l.b16 %v3921
    %v4178 = vunpack.c.l.b16 %v3922
    %v4179 = vunpack.c.l.b16 %v3923
    %v4180 = vpack.c.b16 %v4053, %v4052
    %v4181 = vpack.c.b16 %v4055, %v4054
    %v4182 = vpack.c.b16 %v4057, %v4056
    %v4183 = vpack.c.b16 %v4059, %v4058
    %v4184 = vpack.c.b16 %v4061, %v4060
    %v4185 = vpack.c.b16 %v4063, %v4062
    %v4186 = vpack.c.b16 %v4065, %v4064
    %v4187 = vpack.c.b16 %v4067, %v4066
    %v4188 = vpack.c.b16 %v4069, %v4068
    %v4189 = vpack.c.b16 %v4071, %v4070
    %v4190 = vpack.c.b16 %v4073, %v4072
    %v4191 = vpack.c.b16 %v4075, %v4074
    %v4192 = vpack.c.b16 %v4077, %v4076
    %v4193 = vpack.c.b16 %v4079, %v4078
    %v4194 = vpack.c.b16 %v4081, %v4080
    %v4195 = vpack.c.b16 %v4083, %v4082
    %v4196 = vpack.c.b16 %v4085, %v4084
    %v4197 = vpack.c.b16 %v4087, %v4086
    %v4198 = vpack.c.b16 %v4089, %v4088
    %v4199 = vpack.c.b16 %v4091, %v4090
    %v4200 = vpack.c.b16 %v4093, %v4092
    %v4201 = vpack.c.b16 %v4095, %v4094
    %v4202 = vpack.c.b16 %v4097, %v4096
    %v4203 = vpack.c.b16 %v4099, %v4098
    %v4204 = vpack.c.b16 %v4101, %v4100
    %v4205 = vpack.c.b16 %v4103, %v4102
    %v4206 = vpack.c.b16 %v4105, %v4104
    %v4207 = vpack.c.b16 %v4107, %v4106
    %v4208 = vpack.c.b16 %v4109, %v4108
    %v4209 = vpack.c.b16 %v4111, %v4110
    %v4210 = vpack.c.b16 %v4113, %v4112
    %v4211 = vpack.c.b16 %v4115, %v4114
    %v4212 = vpack.c.b16 %v4117, %v4116
    %v4213 = vpack.c.b16 %v4119, %v4118
    %v4214 = vpack.c.b16 %v4121, %v4120
    %v4215 = vpack.c.b16 %v4123, %v4122
    %v4216 = vpack.c.b16 %v4125, %v4124
    %v4217 = vpack.c.b16 %v4127, %v4126
    %v4218 = vpack.c.b16 %v4129, %v4128
    %v4219 = vpack.c.b16 %v4131, %v4130
    %v4220 = vpack.c.b16 %v4133, %v4132
    %v4221 = vpack.c.b16 %v4135, %v4134
    %v4222 = vpack.c.b16 %v4137, %v4136
    %v4223 = vpack.c.b16 %v4139, %v4138
    %v4224 = vpack.c.b16 %v4141, %v4140
    %v4225 = vpack.c.b16 %v4143, %v4142
    %v4226 = vpack.c.b16 %v4145, %v4144
    %v4227 = vpack.c.b16 %v4147, %v4146
    %v4228 = vpack.c.b16 %v4149, %v4148
    %v4229 = vpack.c.b16 %v4151, %v4150
    %v4230 = vpack.c.b16 %v4153, %v4152
    %v4231 = vpack.c.b16 %v4155, %v4154
    %v4232 = vpack.c.b16 %v4157, %v4156
    %v4233 = vpack.c.b16 %v4159, %v4158
    %v4234 = vpack.c.b16 %v4161, %v4160
    %v4235 = vpack.c.b16 %v4163, %v4162
    %v4236 = vpack.c.b16 %v4165, %v4164
    %v4237 = vpack.c.b16 %v4167, %v4166
    %v4238 = vpack.c.b16 %v4169, %v4168
    %v4239 = vpack.c.b16 %v4171, %v4170
    %v4240 = vpack.c.b16 %v4173, %v4172
    %v4241 = vpack.c.b16 %v4175, %v4174
    %v4242 = vpack.c.b16 %v4177, %v4176
    %v4243 = vpack.c.b16 %v4179, %v4178
    %4308 = vmatprep.subr.bf16.mxu0 0
    %4309 = vmatpush1.bf16.msra.mxu0 %v4180
    %4310 = vmatprep.subr.bf16.mxu0 0
    %4311 = vmatpush1.bf16.msra.mxu0 %v4181
    %4312 = vmatprep.subr.bf16.mxu0 0
    %4313 = vmatpush1.bf16.msra.mxu0 %v4182
    %4314 = vmatprep.subr.bf16.mxu0 0
    %4315 = vmatpush1.bf16.msra.mxu0 %v4183
    %4316 = vmatprep.subr.bf16.mxu0 0
    %4317 = vmatpush1.bf16.msra.mxu0 %v4184
    %4318 = vmatprep.subr.bf16.mxu0 0
    %4319 = vmatpush1.bf16.msra.mxu0 %v4185
    %4320 = vmatprep.subr.bf16.mxu0 0
    %4321 = vmatpush1.bf16.msra.mxu0 %v4186
    %4322 = vmatprep.subr.bf16.mxu0 0
    %4323 = vmatpush1.bf16.msra.mxu0 %v4187
    %4324 = vmatprep.subr.bf16.mxu0 0
    %4325 = vmatpush1.bf16.msra.mxu0 %v4188
    %4326 = vmatprep.subr.bf16.mxu0 0
    %4327 = vmatpush1.bf16.msra.mxu0 %v4189
    %4328 = vmatprep.subr.bf16.mxu0 0
    %4329 = vmatpush1.bf16.msra.mxu0 %v4190
    %4330 = vmatprep.subr.bf16.mxu0 0
    %4331 = vmatpush1.bf16.msra.mxu0 %v4191
    %4332 = vmatprep.subr.bf16.mxu0 0
    %4333 = vmatpush1.bf16.msra.mxu0 %v4192
    %4334 = vmatprep.subr.bf16.mxu0 0
    %4335 = vmatpush1.bf16.msra.mxu0 %v4193
    %4336 = vmatprep.subr.bf16.mxu0 0
    %4337 = vmatpush1.bf16.msra.mxu0 %v4194
    %4338 = vmatprep.subr.bf16.mxu0 0
    %4339 = vmatpush1.bf16.msra.mxu0 %v4195
    %4340 = vmatprep.mubr.bf16.mxu0 %v3669
    %4341 = vmatmul.mubr.bf16.gmra.mrb[0].mxu0 %v3668
    %v4342 = vpop.f32.mrb[0].mxu0
    %v4343 = vadd.f32 0.0, %v4342
    %v4344 = vpop.f32.mrb[0].mxu0
    %v4345 = vpop.f32.mrb[0].mxu0
    %v4346 = vadd.f32 0.0, %v4345
    %v4347 = vpop.f32.mrb[0].mxu0
    %4348 = vmatprep.mubr.bf16.mxu0 %v3677
    %4349 = vmatmul.mubr.bf16.gmra.mrb[0].mxu0 %v3676
    %v4350 = vpop.f32.mrb[0].mxu0
    %v4351 = vadd.f32 0.0, %v4350
    %v4352 = vpop.f32.mrb[0].mxu0
    %v4353 = vpop.f32.mrb[0].mxu0
    %v4354 = vadd.f32 0.0, %v4353
    %v4355 = vpop.f32.mrb[0].mxu0
    %4356 = vmatprep.mubr.bf16.mxu0 %v3685
    %4357 = vmatmul.mubr.bf16.gmra.mrb[0].mxu0 %v3684
    %v4358 = vpop.f32.mrb[0].mxu0
    %v4359 = vadd.f32 0.0, %v4358
    %v4360 = vpop.f32.mrb[0].mxu0
    %v4361 = vpop.f32.mrb[0].mxu0
    %v4362 = vadd.f32 0.0, %v4361
    %v4363 = vpop.f32.mrb[0].mxu0
    %4364 = vmatprep.mubr.bf16.mxu0 %v3693
    %4365 = vmatmul.mubr.bf16.gmra.mrb[0].mxu0 %v3692
    %v4366 = vpop.f32.mrb[0].mxu0
    %v4367 = vadd.f32 0.0, %v4366
    %v4368 = vpop.f32.mrb[0].mxu0
    %v4369 = vpop.f32.mrb[0].mxu0
    %v4370 = vadd.f32 0.0, %v4369
    %v4371 = vpop.f32.mrb[0].mxu0
    %4372 = vmatprep.mubr.bf16.mxu0 %v3701
    %4373 = vmatmul.mubr.bf16.gmra.mrb[0].mxu0 %v3700
    %v4374 = vpop.f32.mrb[0].mxu0
    %v4375 = vadd.f32 0.0, %v4374
    %v4376 = vpop.f32.mrb[0].mxu0
    %v4377 = vpop.f32.mrb[0].mxu0
    %v4378 = vadd.f32 0.0, %v4377
    %v4379 = vpop.f32.mrb[0].mxu0
    %4380 = vmatprep.mubr.bf16.mxu0 %v3709
    %4381 = vmatmul.mubr.bf16.gmra.mrb[0].mxu0 %v3708
    %v4382 = vpop.f32.mrb[0].mxu0
    %v4383 = vadd.f32 0.0, %v4382
    %v4384 = vpop.f32.mrb[0].mxu0
    %v4385 = vpop.f32.mrb[0].mxu0
    %v4386 = vadd.f32 0.0, %v4385
    %v4387 = vpop.f32.mrb[0].mxu0
    %4388 = vmatprep.mubr.bf16.mxu0 %v3717
    %4389 = vmatmul.mubr.bf16.gmra.mrb[0].mxu0 %v3716
    %v4390 = vpop.f32.mrb[0].mxu0
    %v4391 = vadd.f32 0.0, %v4390
    %v4392 = vpop.f32.mrb[0].mxu0
    %v4393 = vpop.f32.mrb[0].mxu0
    %v4394 = vadd.f32 0.0, %v4393
    %v4395 = vpop.f32.mrb[0].mxu0
    %4396 = vmatprep.mubr.bf16.mxu0 %v3725
    %4397 = vmatmul.mubr.bf16.gmra.mrb[0].mxu0 %v3724
    %v4398 = vpop.f32.mrb[0].mxu0
    %v4399 = vadd.f32 0.0, %v4398
    %v4400 = vpop.f32.mrb[0].mxu0
    %v4401 = vpop.f32.mrb[0].mxu0
    %v4402 = vadd.f32 0.0, %v4401
    %v4403 = vpop.f32.mrb[0].mxu0
    %4404 = vmatprep.mubr.bf16.mxu0 %v3733
    %4405 = vmatmul.mubr.bf16.gmra.mrb[0].mxu0 %v3732
    %v4406 = vpop.f32.mrb[0].mxu0
    %v4407 = vadd.f32 0.0, %v4406
    %v4408 = vpop.f32.mrb[0].mxu0
    %v4409 = vpop.f32.mrb[0].mxu0
    %v4410 = vadd.f32 0.0, %v4409
    %v4411 = vpop.f32.mrb[0].mxu0
    %4412 = vmatprep.mubr.bf16.mxu0 %v3741
    %4413 = vmatmul.mubr.bf16.gmra.mrb[0].mxu0 %v3740
    %v4414 = vpop.f32.mrb[0].mxu0
    %v4415 = vadd.f32 0.0, %v4414
    %v4416 = vpop.f32.mrb[0].mxu0
    %v4417 = vpop.f32.mrb[0].mxu0
    %v4418 = vadd.f32 0.0, %v4417
    %v4419 = vpop.f32.mrb[0].mxu0
    %4420 = vmatprep.mubr.bf16.mxu0 %v3749
    %4421 = vmatmul.mubr.bf16.gmra.mrb[0].mxu0 %v3748
    %v4422 = vpop.f32.mrb[0].mxu0
    %v4423 = vadd.f32 0.0, %v4422
    %v4424 = vpop.f32.mrb[0].mxu0
    %v4425 = vpop.f32.mrb[0].mxu0
    %v4426 = vadd.f32 0.0, %v4425
    %v4427 = vpop.f32.mrb[0].mxu0
    %4428 = vmatprep.mubr.bf16.mxu0 %v3757
    %4429 = vmatmul.mubr.bf16.gmra.mrb[0].mxu0 %v3756
    %v4430 = vpop.f32.mrb[0].mxu0
    %v4431 = vadd.f32 0.0, %v4430
    %v4432 = vpop.f32.mrb[0].mxu0
    %v4433 = vpop.f32.mrb[0].mxu0
    %v4434 = vadd.f32 0.0, %v4433
    %v4435 = vpop.f32.mrb[0].mxu0
    %4436 = vmatprep.mubr.bf16.mxu0 %v3765
    %4437 = vmatmul.mubr.bf16.gmra.mrb[0].mxu0 %v3764
    %v4438 = vpop.f32.mrb[0].mxu0
    %v4439 = vadd.f32 0.0, %v4438
    %v4440 = vpop.f32.mrb[0].mxu0
    %v4441 = vpop.f32.mrb[0].mxu0
    %v4442 = vadd.f32 0.0, %v4441
    %v4443 = vpop.f32.mrb[0].mxu0
    %4444 = vmatprep.mubr.bf16.mxu0 %v3773
    %4445 = vmatmul.mubr.bf16.gmra.mrb[0].mxu0 %v3772
    %v4446 = vpop.f32.mrb[0].mxu0
    %v4447 = vadd.f32 0.0, %v4446
    %v4448 = vpop.f32.mrb[0].mxu0
    %v4449 = vpop.f32.mrb[0].mxu0
    %v4450 = vadd.f32 0.0, %v4449
    %v4451 = vpop.f32.mrb[0].mxu0
    %4452 = vmatprep.mubr.bf16.mxu0 %v3781
    %4453 = vmatmul.mubr.bf16.gmra.mrb[0].mxu0 %v3780
    %v4454 = vpop.f32.mrb[0].mxu0
    %v4455 = vadd.f32 0.0, %v4454
    %v4456 = vpop.f32.mrb[0].mxu0
    %v4457 = vpop.f32.mrb[0].mxu0
    %v4458 = vadd.f32 0.0, %v4457
    %v4459 = vpop.f32.mrb[0].mxu0
    %4460 = vmatprep.mubr.bf16.mxu0 %v3789
    %4461 = vmatmul.mubr.bf16.gmra.mrb[0].mxu0 %v3788
    %v4462 = vpop.f32.mrb[0].mxu0
    %v4463 = vadd.f32 0.0, %v4462
    %v4464 = vpop.f32.mrb[0].mxu0
    %v4465 = vpop.f32.mrb[0].mxu0
    %v4466 = vadd.f32 0.0, %v4465
    %v4467 = vpop.f32.mrb[0].mxu0
    %4468 = vdwg.mxu0
    %4469 = vmatprep.subr.bf16.mxu0 0
    %4470 = vmatpush1.bf16.msra.mxu0 %v4196
    %4471 = vmatprep.subr.bf16.mxu0 0
    %4472 = vmatpush1.bf16.msra.mxu0 %v4197
    %4473 = vmatprep.subr.bf16.mxu0 0
    %4474 = vmatpush1.bf16.msra.mxu0 %v4198
    %4475 = vmatprep.subr.bf16.mxu0 0
    %4476 = vmatpush1.bf16.msra.mxu0 %v4199
    %4477 = vmatprep.subr.bf16.mxu0 0
    %4478 = vmatpush1.bf16.msra.mxu0 %v4200
    %4479 = vmatprep.subr.bf16.mxu0 0
    %4480 = vmatpush1.bf16.msra.mxu0 %v4201
    %4481 = vmatprep.subr.bf16.mxu0 0
    %4482 = vmatpush1.bf16.msra.mxu0 %v4202
    %4483 = vmatprep.subr.bf16.mxu0 0
    %4484 = vmatpush1.bf16.msra.mxu0 %v4203
    %4485 = vmatprep.subr.bf16.mxu0 0
    %4486 = vmatpush1.bf16.msra.mxu0 %v4204
    %4487 = vmatprep.subr.bf16.mxu0 0
    %4488 = vmatpush1.bf16.msra.mxu0 %v4205
    %4489 = vmatprep.subr.bf16.mxu0 0
    %4490 = vmatpush1.bf16.msra.mxu0 %v4206
    %4491 = vmatprep.subr.bf16.mxu0 0
    %4492 = vmatpush1.bf16.msra.mxu0 %v4207
    %4493 = vmatprep.subr.bf16.mxu0 0
    %4494 = vmatpush1.bf16.msra.mxu0 %v4208
    %4495 = vmatprep.subr.bf16.mxu0 0
    %4496 = vmatpush1.bf16.msra.mxu0 %v4209
    %4497 = vmatprep.subr.bf16.mxu0 0
    %4498 = vmatpush1.bf16.msra.mxu0 %v4210
    %4499 = vmatprep.subr.bf16.mxu0 0
    %4500 = vmatpush1.bf16.msra.mxu0 %v4211
    %4501 = vmatprep.mubr.bf16.mxu0 %v3671
    %4502 = vmatmul.mubr.bf16.gmra.mrb[0].mxu0 %v3670
    %v4503 = vpop.f32.mrb[0].mxu0
    %v4504 = vadd.f32 %v4343, %v4503
    %v4505 = vpop.f32.mrb[0].mxu0
    %v4506 = vpop.f32.mrb[0].mxu0
    %v4507 = vadd.f32 %v4346, %v4506
    %v4508 = vpop.f32.mrb[0].mxu0
    %4509 = vmatprep.mubr.bf16.mxu0 %v3679
    %4510 = vmatmul.mubr.bf16.gmra.mrb[0].mxu0 %v3678
    %v4511 = vpop.f32.mrb[0].mxu0
    %v4512 = vadd.f32 %v4351, %v4511
    %v4513 = vpop.f32.mrb[0].mxu0
    %v4514 = vpop.f32.mrb[0].mxu0
    %v4515 = vadd.f32 %v4354, %v4514
    %v4516 = vpop.f32.mrb[0].mxu0
    %4517 = vmatprep.mubr.bf16.mxu0 %v3687
    %4518 = vmatmul.mubr.bf16.gmra.mrb[0].mxu0 %v3686
    %v4519 = vpop.f32.mrb[0].mxu0
    %v4520 = vadd.f32 %v4359, %v4519
    %v4521 = vpop.f32.mrb[0].mxu0
    %v4522 = vpop.f32.mrb[0].mxu0
    %v4523 = vadd.f32 %v4362, %v4522
    %v4524 = vpop.f32.mrb[0].mxu0
    %4525 = vmatprep.mubr.bf16.mxu0 %v3695
    %4526 = vmatmul.mubr.bf16.gmra.mrb[0].mxu0 %v3694
    %v4527 = vpop.f32.mrb[0].mxu0
    %v4528 = vadd.f32 %v4367, %v4527
    %v4529 = vpop.f32.mrb[0].mxu0
    %v4530 = vpop.f32.mrb[0].mxu0
    %v4531 = vadd.f32 %v4370, %v4530
    %v4532 = vpop.f32.mrb[0].mxu0
    %4533 = vmatprep.mubr.bf16.mxu0 %v3703
    %4534 = vmatmul.mubr.bf16.gmra.mrb[0].mxu0 %v3702
    %v4535 = vpop.f32.mrb[0].mxu0
    %v4536 = vadd.f32 %v4375, %v4535
    %v4537 = vpop.f32.mrb[0].mxu0
    %v4538 = vpop.f32.mrb[0].mxu0
    %v4539 = vadd.f32 %v4378, %v4538
    %v4540 = vpop.f32.mrb[0].mxu0
    %4541 = vmatprep.mubr.bf16.mxu0 %v3711
    %4542 = vmatmul.mubr.bf16.gmra.mrb[0].mxu0 %v3710
    %v4543 = vpop.f32.mrb[0].mxu0
    %v4544 = vadd.f32 %v4383, %v4543
    %v4545 = vpop.f32.mrb[0].mxu0
    %v4546 = vpop.f32.mrb[0].mxu0
    %v4547 = vadd.f32 %v4386, %v4546
    %v4548 = vpop.f32.mrb[0].mxu0
    %4549 = vmatprep.mubr.bf16.mxu0 %v3719
    %4550 = vmatmul.mubr.bf16.gmra.mrb[0].mxu0 %v3718
    %v4551 = vpop.f32.mrb[0].mxu0
    %v4552 = vadd.f32 %v4391, %v4551
    %v4553 = vpop.f32.mrb[0].mxu0
    %v4554 = vpop.f32.mrb[0].mxu0
    %v4555 = vadd.f32 %v4394, %v4554
    %v4556 = vpop.f32.mrb[0].mxu0
    %4557 = vmatprep.mubr.bf16.mxu0 %v3727
    %4558 = vmatmul.mubr.bf16.gmra.mrb[0].mxu0 %v3726
    %v4559 = vpop.f32.mrb[0].mxu0
    %v4560 = vadd.f32 %v4399, %v4559
    %v4561 = vpop.f32.mrb[0].mxu0
    %v4562 = vpop.f32.mrb[0].mxu0
    %v4563 = vadd.f32 %v4402, %v4562
    %v4564 = vpop.f32.mrb[0].mxu0
    %4565 = vmatprep.mubr.bf16.mxu0 %v3735
    %4566 = vmatmul.mubr.bf16.gmra.mrb[0].mxu0 %v3734
    %v4567 = vpop.f32.mrb[0].mxu0
    %v4568 = vadd.f32 %v4407, %v4567
    %v4569 = vpop.f32.mrb[0].mxu0
    %v4570 = vpop.f32.mrb[0].mxu0
    %v4571 = vadd.f32 %v4410, %v4570
    %v4572 = vpop.f32.mrb[0].mxu0
    %4573 = vmatprep.mubr.bf16.mxu0 %v3743
    %4574 = vmatmul.mubr.bf16.gmra.mrb[0].mxu0 %v3742
    %v4575 = vpop.f32.mrb[0].mxu0
    %v4576 = vadd.f32 %v4415, %v4575
    %v4577 = vpop.f32.mrb[0].mxu0
    %v4578 = vpop.f32.mrb[0].mxu0
    %v4579 = vadd.f32 %v4418, %v4578
    %v4580 = vpop.f32.mrb[0].mxu0
    %4581 = vmatprep.mubr.bf16.mxu0 %v3751
    %4582 = vmatmul.mubr.bf16.gmra.mrb[0].mxu0 %v3750
    %v4583 = vpop.f32.mrb[0].mxu0
    %v4584 = vadd.f32 %v4423, %v4583
    %v4585 = vpop.f32.mrb[0].mxu0
    %v4586 = vpop.f32.mrb[0].mxu0
    %v4587 = vadd.f32 %v4426, %v4586
    %v4588 = vpop.f32.mrb[0].mxu0
    %4589 = vmatprep.mubr.bf16.mxu0 %v3759
    %4590 = vmatmul.mubr.bf16.gmra.mrb[0].mxu0 %v3758
    %v4591 = vpop.f32.mrb[0].mxu0
    %v4592 = vadd.f32 %v4431, %v4591
    %v4593 = vpop.f32.mrb[0].mxu0
    %v4594 = vpop.f32.mrb[0].mxu0
    %v4595 = vadd.f32 %v4434, %v4594
    %v4596 = vpop.f32.mrb[0].mxu0
    %4597 = vmatprep.mubr.bf16.mxu0 %v3767
    %4598 = vmatmul.mubr.bf16.gmra.mrb[0].mxu0 %v3766
    %v4599 = vpop.f32.mrb[0].mxu0
    %v4600 = vadd.f32 %v4439, %v4599
    %v4601 = vpop.f32.mrb[0].mxu0
    %v4602 = vpop.f32.mrb[0].mxu0
    %v4603 = vadd.f32 %v4442, %v4602
    %v4604 = vpop.f32.mrb[0].mxu0
    %4605 = vmatprep.mubr.bf16.mxu0 %v3775
    %4606 = vmatmul.mubr.bf16.gmra.mrb[0].mxu0 %v3774
    %v4607 = vpop.f32.mrb[0].mxu0
    %v4608 = vadd.f32 %v4447, %v4607
    %v4609 = vpop.f32.mrb[0].mxu0
    %v4610 = vpop.f32.mrb[0].mxu0
    %v4611 = vadd.f32 %v4450, %v4610
    %v4612 = vpop.f32.mrb[0].mxu0
    %4613 = vmatprep.mubr.bf16.mxu0 %v3783
    %4614 = vmatmul.mubr.bf16.gmra.mrb[0].mxu0 %v3782
    %v4615 = vpop.f32.mrb[0].mxu0
    %v4616 = vadd.f32 %v4455, %v4615
    %v4617 = vpop.f32.mrb[0].mxu0
    %v4618 = vpop.f32.mrb[0].mxu0
    %v4619 = vadd.f32 %v4458, %v4618
    %v4620 = vpop.f32.mrb[0].mxu0
    %4621 = vmatprep.mubr.bf16.mxu0 %v3791
    %4622 = vmatmul.mubr.bf16.gmra.mrb[0].mxu0 %v3790
    %v4623 = vpop.f32.mrb[0].mxu0
    %v4624 = vadd.f32 %v4463, %v4623
    %v4625 = vpop.f32.mrb[0].mxu0
    %v4626 = vpop.f32.mrb[0].mxu0
    %v4627 = vadd.f32 %v4466, %v4626
    %v4628 = vpop.f32.mrb[0].mxu0
    %4629 = vdwg.mxu0
    %4630 = vmatprep.subr.bf16.mxu0 0
    %4631 = vmatpush1.bf16.msra.mxu0 %v4212
    %4632 = vmatprep.subr.bf16.mxu0 0
    %4633 = vmatpush1.bf16.msra.mxu0 %v4213
    %4634 = vmatprep.subr.bf16.mxu0 0
    %4635 = vmatpush1.bf16.msra.mxu0 %v4214
    %4636 = vmatprep.subr.bf16.mxu0 0
    %4637 = vmatpush1.bf16.msra.mxu0 %v4215
    %4638 = vmatprep.subr.bf16.mxu0 0
    %4639 = vmatpush1.bf16.msra.mxu0 %v4216
    %4640 = vmatprep.subr.bf16.mxu0 0
    %4641 = vmatpush1.bf16.msra.mxu0 %v4217
    %4642 = vmatprep.subr.bf16.mxu0 0
    %4643 = vmatpush1.bf16.msra.mxu0 %v4218
    %4644 = vmatprep.subr.bf16.mxu0 0
    %4645 = vmatpush1.bf16.msra.mxu0 %v4219
    %4646 = vmatprep.subr.bf16.mxu0 0
    %4647 = vmatpush1.bf16.msra.mxu0 %v4220
    %4648 = vmatprep.subr.bf16.mxu0 0
    %4649 = vmatpush1.bf16.msra.mxu0 %v4221
    %4650 = vmatprep.subr.bf16.mxu0 0
    %4651 = vmatpush1.bf16.msra.mxu0 %v4222
    %4652 = vmatprep.subr.bf16.mxu0 0
    %4653 = vmatpush1.bf16.msra.mxu0 %v4223
    %4654 = vmatprep.subr.bf16.mxu0 0
    %4655 = vmatpush1.bf16.msra.mxu0 %v4224
    %4656 = vmatprep.subr.bf16.mxu0 0
    %4657 = vmatpush1.bf16.msra.mxu0 %v4225
    %4658 = vmatprep.subr.bf16.mxu0 0
    %4659 = vmatpush1.bf16.msra.mxu0 %v4226
    %4660 = vmatprep.subr.bf16.mxu0 0
    %4661 = vmatpush1.bf16.msra.mxu0 %v4227
    %4662 = vmatprep.mubr.bf16.mxu0 %v3673
    %4663 = vmatmul.mubr.bf16.gmra.mrb[0].mxu0 %v3672
    %v4664 = vpop.f32.mrb[0].mxu0
    %v4665 = vadd.f32 %v4504, %v4664
    %v4666 = vpop.f32.mrb[0].mxu0
    %v4667 = vpop.f32.mrb[0].mxu0
    %v4668 = vadd.f32 %v4507, %v4667
    %v4669 = vpop.f32.mrb[0].mxu0
    %4670 = vmatprep.mubr.bf16.mxu0 %v3681
    %4671 = vmatmul.mubr.bf16.gmra.mrb[0].mxu0 %v3680
    %v4672 = vpop.f32.mrb[0].mxu0
    %v4673 = vadd.f32 %v4512, %v4672
    %v4674 = vpop.f32.mrb[0].mxu0
    %v4675 = vpop.f32.mrb[0].mxu0
    %v4676 = vadd.f32 %v4515, %v4675
    %v4677 = vpop.f32.mrb[0].mxu0
    %4678 = vmatprep.mubr.bf16.mxu0 %v3689
    %4679 = vmatmul.mubr.bf16.gmra.mrb[0].mxu0 %v3688
    %v4680 = vpop.f32.mrb[0].mxu0
    %v4681 = vadd.f32 %v4520, %v4680
    %v4682 = vpop.f32.mrb[0].mxu0
    %v4683 = vpop.f32.mrb[0].mxu0
    %v4684 = vadd.f32 %v4523, %v4683
    %v4685 = vpop.f32.mrb[0].mxu0
    %4686 = vmatprep.mubr.bf16.mxu0 %v3697
    %4687 = vmatmul.mubr.bf16.gmra.mrb[0].mxu0 %v3696
    %v4688 = vpop.f32.mrb[0].mxu0
    %v4689 = vadd.f32 %v4528, %v4688
    %v4690 = vpop.f32.mrb[0].mxu0
    %v4691 = vpop.f32.mrb[0].mxu0
    %v4692 = vadd.f32 %v4531, %v4691
    %v4693 = vpop.f32.mrb[0].mxu0
    %4694 = vmatprep.mubr.bf16.mxu0 %v3705
    %4695 = vmatmul.mubr.bf16.gmra.mrb[0].mxu0 %v3704
    %v4696 = vpop.f32.mrb[0].mxu0
    %v4697 = vadd.f32 %v4536, %v4696
    %v4698 = vpop.f32.mrb[0].mxu0
    %v4699 = vpop.f32.mrb[0].mxu0
    %v4700 = vadd.f32 %v4539, %v4699
    %v4701 = vpop.f32.mrb[0].mxu0
    %4702 = vmatprep.mubr.bf16.mxu0 %v3713
    %4703 = vmatmul.mubr.bf16.gmra.mrb[0].mxu0 %v3712
    %v4704 = vpop.f32.mrb[0].mxu0
    %v4705 = vadd.f32 %v4544, %v4704
    %v4706 = vpop.f32.mrb[0].mxu0
    %v4707 = vpop.f32.mrb[0].mxu0
    %v4708 = vadd.f32 %v4547, %v4707
    %v4709 = vpop.f32.mrb[0].mxu0
    %4710 = vmatprep.mubr.bf16.mxu0 %v3721
    %4711 = vmatmul.mubr.bf16.gmra.mrb[0].mxu0 %v3720
    %v4712 = vpop.f32.mrb[0].mxu0
    %v4713 = vadd.f32 %v4552, %v4712
    %v4714 = vpop.f32.mrb[0].mxu0
    %v4715 = vpop.f32.mrb[0].mxu0
    %v4716 = vadd.f32 %v4555, %v4715
    %v4717 = vpop.f32.mrb[0].mxu0
    %4718 = vmatprep.mubr.bf16.mxu0 %v3729
    %4719 = vmatmul.mubr.bf16.gmra.mrb[0].mxu0 %v3728
    %v4720 = vpop.f32.mrb[0].mxu0
    %v4721 = vadd.f32 %v4560, %v4720
    %v4722 = vpop.f32.mrb[0].mxu0
    %v4723 = vpop.f32.mrb[0].mxu0
    %v4724 = vadd.f32 %v4563, %v4723
    %v4725 = vpop.f32.mrb[0].mxu0
    %4726 = vmatprep.mubr.bf16.mxu0 %v3737
    %4727 = vmatmul.mubr.bf16.gmra.mrb[0].mxu0 %v3736
    %v4728 = vpop.f32.mrb[0].mxu0
    %v4729 = vadd.f32 %v4568, %v4728
    %v4730 = vpop.f32.mrb[0].mxu0
    %v4731 = vpop.f32.mrb[0].mxu0
    %v4732 = vadd.f32 %v4571, %v4731
    %v4733 = vpop.f32.mrb[0].mxu0
    %4734 = vmatprep.mubr.bf16.mxu0 %v3745
    %4735 = vmatmul.mubr.bf16.gmra.mrb[0].mxu0 %v3744
    %v4736 = vpop.f32.mrb[0].mxu0
    %v4737 = vadd.f32 %v4576, %v4736
    %v4738 = vpop.f32.mrb[0].mxu0
    %v4739 = vpop.f32.mrb[0].mxu0
    %v4740 = vadd.f32 %v4579, %v4739
    %v4741 = vpop.f32.mrb[0].mxu0
    %4742 = vmatprep.mubr.bf16.mxu0 %v3753
    %4743 = vmatmul.mubr.bf16.gmra.mrb[0].mxu0 %v3752
    %v4744 = vpop.f32.mrb[0].mxu0
    %v4745 = vadd.f32 %v4584, %v4744
    %v4746 = vpop.f32.mrb[0].mxu0
    %v4747 = vpop.f32.mrb[0].mxu0
    %v4748 = vadd.f32 %v4587, %v4747
    %v4749 = vpop.f32.mrb[0].mxu0
    %4750 = vmatprep.mubr.bf16.mxu0 %v3761
    %4751 = vmatmul.mubr.bf16.gmra.mrb[0].mxu0 %v3760
    %v4752 = vpop.f32.mrb[0].mxu0
    %v4753 = vadd.f32 %v4592, %v4752
    %v4754 = vpop.f32.mrb[0].mxu0
    %v4755 = vpop.f32.mrb[0].mxu0
    %v4756 = vadd.f32 %v4595, %v4755
    %v4757 = vpop.f32.mrb[0].mxu0
    %4758 = vmatprep.mubr.bf16.mxu0 %v3769
    %4759 = vmatmul.mubr.bf16.gmra.mrb[0].mxu0 %v3768
    %v4760 = vpop.f32.mrb[0].mxu0
    %v4761 = vadd.f32 %v4600, %v4760
    %v4762 = vpop.f32.mrb[0].mxu0
    %v4763 = vpop.f32.mrb[0].mxu0
    %v4764 = vadd.f32 %v4603, %v4763
    %v4765 = vpop.f32.mrb[0].mxu0
    %4766 = vmatprep.mubr.bf16.mxu0 %v3777
    %4767 = vmatmul.mubr.bf16.gmra.mrb[0].mxu0 %v3776
    %v4768 = vpop.f32.mrb[0].mxu0
    %v4769 = vadd.f32 %v4608, %v4768
    %v4770 = vpop.f32.mrb[0].mxu0
    %v4771 = vpop.f32.mrb[0].mxu0
    %v4772 = vadd.f32 %v4611, %v4771
    %v4773 = vpop.f32.mrb[0].mxu0
    %4774 = vmatprep.mubr.bf16.mxu0 %v3785
    %4775 = vmatmul.mubr.bf16.gmra.mrb[0].mxu0 %v3784
    %v4776 = vpop.f32.mrb[0].mxu0
    %v4777 = vadd.f32 %v4616, %v4776
    %v4778 = vpop.f32.mrb[0].mxu0
    %v4779 = vpop.f32.mrb[0].mxu0
    %v4780 = vadd.f32 %v4619, %v4779
    %v4781 = vpop.f32.mrb[0].mxu0
    %4782 = vmatprep.mubr.bf16.mxu0 %v3793
    %4783 = vmatmul.mubr.bf16.gmra.mrb[0].mxu0 %v3792
    %v4784 = vpop.f32.mrb[0].mxu0
    %v4785 = vadd.f32 %v4624, %v4784
    %v4786 = vpop.f32.mrb[0].mxu0
    %v4787 = vpop.f32.mrb[0].mxu0
    %v4788 = vadd.f32 %v4627, %v4787
    %v4789 = vpop.f32.mrb[0].mxu0
    %4790 = vdwg.mxu0
    %4791 = vmatprep.subr.bf16.mxu0 0
    %4792 = vmatpush1.bf16.msra.mxu0 %v4228
    %4793 = vmatprep.subr.bf16.mxu0 0
    %4794 = vmatpush1.bf16.msra.mxu0 %v4229
    %4795 = vmatprep.subr.bf16.mxu0 0
    %4796 = vmatpush1.bf16.msra.mxu0 %v4230
    %4797 = vmatprep.subr.bf16.mxu0 0
    %4798 = vmatpush1.bf16.msra.mxu0 %v4231
    %4799 = vmatprep.subr.bf16.mxu0 0
    %4800 = vmatpush1.bf16.msra.mxu0 %v4232
    %4801 = vmatprep.subr.bf16.mxu0 0
    %4802 = vmatpush1.bf16.msra.mxu0 %v4233
    %4803 = vmatprep.subr.bf16.mxu0 0
    %4804 = vmatpush1.bf16.msra.mxu0 %v4234
    %4805 = vmatprep.subr.bf16.mxu0 0
    %4806 = vmatpush1.bf16.msra.mxu0 %v4235
    %4807 = vmatprep.subr.bf16.mxu0 0
    %4808 = vmatpush1.bf16.msra.mxu0 %v4236
    %4809 = vmatprep.subr.bf16.mxu0 0
    %4810 = vmatpush1.bf16.msra.mxu0 %v4237
    %4811 = vmatprep.subr.bf16.mxu0 0
    %4812 = vmatpush1.bf16.msra.mxu0 %v4238
    %4813 = vmatprep.subr.bf16.mxu0 0
    %4814 = vmatpush1.bf16.msra.mxu0 %v4239
    %4815 = vmatprep.subr.bf16.mxu0 0
    %4816 = vmatpush1.bf16.msra.mxu0 %v4240
    %4817 = vmatprep.subr.bf16.mxu0 0
    %4818 = vmatpush1.bf16.msra.mxu0 %v4241
    %4819 = vmatprep.subr.bf16.mxu0 0
    %4820 = vmatpush1.bf16.msra.mxu0 %v4242
    %4821 = vmatprep.subr.bf16.mxu0 0
    %4822 = vmatpush1.bf16.msra.mxu0 %v4243
    %4823 = vmatprep.mubr.bf16.mxu0 %v3675
    %4824 = vmatmul.mubr.bf16.gmra.mrb[0].mxu0 %v3674
    %v4825 = vpop.f32.mrb[0].mxu0
    %v4826 = vadd.f32 %v4665, %v4825
    %v4827 = vpop.f32.mrb[0].mxu0
    %v4828 = vpop.f32.mrb[0].mxu0
    %v4829 = vadd.f32 %v4668, %v4828
    %v4830 = vpop.f32.mrb[0].mxu0
    %4831 = vmatprep.mubr.bf16.mxu0 %v3683
    %4832 = vmatmul.mubr.bf16.gmra.mrb[0].mxu0 %v3682
    %v4833 = vpop.f32.mrb[0].mxu0
    %v4834 = vadd.f32 %v4673, %v4833
    %v4835 = vpop.f32.mrb[0].mxu0
    %v4836 = vpop.f32.mrb[0].mxu0
    %v4837 = vadd.f32 %v4676, %v4836
    %v4838 = vpop.f32.mrb[0].mxu0
    %4839 = vmatprep.mubr.bf16.mxu0 %v3691
    %4840 = vmatmul.mubr.bf16.gmra.mrb[0].mxu0 %v3690
    %v4841 = vpop.f32.mrb[0].mxu0
    %v4842 = vadd.f32 %v4681, %v4841
    %v4843 = vpop.f32.mrb[0].mxu0
    %v4844 = vpop.f32.mrb[0].mxu0
    %v4845 = vadd.f32 %v4684, %v4844
    %v4846 = vpop.f32.mrb[0].mxu0
    %4847 = vmatprep.mubr.bf16.mxu0 %v3699
    %4848 = vmatmul.mubr.bf16.gmra.mrb[0].mxu0 %v3698
    %v4849 = vpop.f32.mrb[0].mxu0
    %v4850 = vadd.f32 %v4689, %v4849
    %v4851 = vpop.f32.mrb[0].mxu0
    %v4852 = vpop.f32.mrb[0].mxu0
    %v4853 = vadd.f32 %v4692, %v4852
    %v4854 = vpop.f32.mrb[0].mxu0
    %4855 = vmatprep.mubr.bf16.mxu0 %v3707
    %4856 = vmatmul.mubr.bf16.gmra.mrb[0].mxu0 %v3706
    %v4857 = vpop.f32.mrb[0].mxu0
    %v4858 = vadd.f32 %v4697, %v4857
    %v4859 = vpop.f32.mrb[0].mxu0
    %v4860 = vpop.f32.mrb[0].mxu0
    %v4861 = vadd.f32 %v4700, %v4860
    %v4862 = vpop.f32.mrb[0].mxu0
    %4863 = vmatprep.mubr.bf16.mxu0 %v3715
    %4864 = vmatmul.mubr.bf16.gmra.mrb[0].mxu0 %v3714
    %v4865 = vpop.f32.mrb[0].mxu0
    %v4866 = vadd.f32 %v4705, %v4865
    %v4867 = vpop.f32.mrb[0].mxu0
    %v4868 = vpop.f32.mrb[0].mxu0
    %v4869 = vadd.f32 %v4708, %v4868
    %v4870 = vpop.f32.mrb[0].mxu0
    %4871 = vmatprep.mubr.bf16.mxu0 %v3723
    %4872 = vmatmul.mubr.bf16.gmra.mrb[0].mxu0 %v3722
    %v4873 = vpop.f32.mrb[0].mxu0
    %v4874 = vadd.f32 %v4713, %v4873
    %v4875 = vpop.f32.mrb[0].mxu0
    %v4876 = vpop.f32.mrb[0].mxu0
    %v4877 = vadd.f32 %v4716, %v4876
    %v4878 = vpop.f32.mrb[0].mxu0
    %4879 = vmatprep.mubr.bf16.mxu0 %v3731
    %4880 = vmatmul.mubr.bf16.gmra.mrb[0].mxu0 %v3730
    %v4881 = vpop.f32.mrb[0].mxu0
    %v4882 = vadd.f32 %v4721, %v4881
    %v4883 = vpop.f32.mrb[0].mxu0
    %v4884 = vpop.f32.mrb[0].mxu0
    %v4885 = vadd.f32 %v4724, %v4884
    %v4886 = vpop.f32.mrb[0].mxu0
    %4887 = vmatprep.mubr.bf16.mxu0 %v3739
    %4888 = vmatmul.mubr.bf16.gmra.mrb[0].mxu0 %v3738
    %v4889 = vpop.f32.mrb[0].mxu0
    %v4890 = vadd.f32 %v4729, %v4889
    %v4891 = vpop.f32.mrb[0].mxu0
    %v4892 = vpop.f32.mrb[0].mxu0
    %v4893 = vadd.f32 %v4732, %v4892
    %v4894 = vpop.f32.mrb[0].mxu0
    %4895 = vmatprep.mubr.bf16.mxu0 %v3747
    %4896 = vmatmul.mubr.bf16.gmra.mrb[0].mxu0 %v3746
    %v4897 = vpop.f32.mrb[0].mxu0
    %v4898 = vadd.f32 %v4737, %v4897
    %v4899 = vpop.f32.mrb[0].mxu0
    %v4900 = vpop.f32.mrb[0].mxu0
    %v4901 = vadd.f32 %v4740, %v4900
    %v4902 = vpop.f32.mrb[0].mxu0
    %4903 = vmatprep.mubr.bf16.mxu0 %v3755
    %4904 = vmatmul.mubr.bf16.gmra.mrb[0].mxu0 %v3754
    %v4905 = vpop.f32.mrb[0].mxu0
    %v4906 = vadd.f32 %v4745, %v4905
    %v4907 = vpop.f32.mrb[0].mxu0
    %v4908 = vpop.f32.mrb[0].mxu0
    %v4909 = vadd.f32 %v4748, %v4908
    %v4910 = vpop.f32.mrb[0].mxu0
    %4911 = vmatprep.mubr.bf16.mxu0 %v3763
    %4912 = vmatmul.mubr.bf16.gmra.mrb[0].mxu0 %v3762
    %v4913 = vpop.f32.mrb[0].mxu0
    %v4914 = vadd.f32 %v4753, %v4913
    %v4915 = vpop.f32.mrb[0].mxu0
    %v4916 = vpop.f32.mrb[0].mxu0
    %v4917 = vadd.f32 %v4756, %v4916
    %v4918 = vpop.f32.mrb[0].mxu0
    %4919 = vmatprep.mubr.bf16.mxu0 %v3771
    %4920 = vmatmul.mubr.bf16.gmra.mrb[0].mxu0 %v3770
    %v4921 = vpop.f32.mrb[0].mxu0
    %v4922 = vadd.f32 %v4761, %v4921
    %v4923 = vpop.f32.mrb[0].mxu0
    %v4924 = vpop.f32.mrb[0].mxu0
    %v4925 = vadd.f32 %v4764, %v4924
    %v4926 = vpop.f32.mrb[0].mxu0
    %4927 = vmatprep.mubr.bf16.mxu0 %v3779
    %4928 = vmatmul.mubr.bf16.gmra.mrb[0].mxu0 %v3778
    %v4929 = vpop.f32.mrb[0].mxu0
    %v4930 = vadd.f32 %v4769, %v4929
    %v4931 = vpop.f32.mrb[0].mxu0
    %v4932 = vpop.f32.mrb[0].mxu0
    %v4933 = vadd.f32 %v4772, %v4932
    %v4934 = vpop.f32.mrb[0].mxu0
    %4935 = vmatprep.mubr.bf16.mxu0 %v3787
    %4936 = vmatmul.mubr.bf16.gmra.mrb[0].mxu0 %v3786
    %v4937 = vpop.f32.mrb[0].mxu0
    %v4938 = vadd.f32 %v4777, %v4937
    %v4939 = vpop.f32.mrb[0].mxu0
    %v4940 = vpop.f32.mrb[0].mxu0
    %v4941 = vadd.f32 %v4780, %v4940
    %v4942 = vpop.f32.mrb[0].mxu0
    %4943 = vmatprep.mubr.bf16.mxu0 %v3795
    %4944 = vmatmul.mubr.bf16.gmra.mrb[0].mxu0 %v3794
    %v4945 = vpop.f32.mrb[0].mxu0
    %v4946 = vadd.f32 %v4785, %v4945
    %v4947 = vpop.f32.mrb[0].mxu0
    %v4948 = vpop.f32.mrb[0].mxu0
    %v4949 = vadd.f32 %v4788, %v4948
    %v4950 = vpop.f32.mrb[0].mxu0
    %4951 = vdwg.mxu0
    %4952 = vmax.xlane.f32.xlu0 %v4826
    %v4953 = vpop.xlane.xlu0 %4952
    %4954 = vmax.xlane.f32.xlu0 %v4829
    %v4955 = vpop.xlane.xlu0 %4954
    %4956 = vmax.xlane.f32.xlu0 %v4834
    %v4957 = vpop.xlane.xlu0 %4956
    %4958 = vmax.xlane.f32.xlu0 %v4837
    %v4959 = vpop.xlane.xlu0 %4958
    %4960 = vmax.xlane.f32.xlu0 %v4842
    %v4961 = vpop.xlane.xlu0 %4960
    %4962 = vmax.xlane.f32.xlu0 %v4845
    %v4963 = vpop.xlane.xlu0 %4962
    %4964 = vmax.xlane.f32.xlu0 %v4850
    %v4965 = vpop.xlane.xlu0 %4964
    %4966 = vmax.xlane.f32.xlu0 %v4853
    %v4967 = vpop.xlane.xlu0 %4966
    %4968 = vmax.xlane.f32.xlu0 %v4858
    %v4969 = vpop.xlane.xlu0 %4968
    %4970 = vmax.xlane.f32.xlu0 %v4861
    %v4971 = vpop.xlane.xlu0 %4970
    %4972 = vmax.xlane.f32.xlu0 %v4866
    %v4973 = vpop.xlane.xlu0 %4972
    %4974 = vmax.xlane.f32.xlu0 %v4869
    %v4975 = vpop.xlane.xlu0 %4974
    %4976 = vmax.xlane.f32.xlu0 %v4874
    %v4977 = vpop.xlane.xlu0 %4976
    %4978 = vmax.xlane.f32.xlu0 %v4877
    %v4979 = vpop.xlane.xlu0 %4978
    %4980 = vmax.xlane.f32.xlu0 %v4882
    %v4981 = vpop.xlane.xlu0 %4980
    %4982 = vmax.xlane.f32.xlu0 %v4885
    %v4983 = vpop.xlane.xlu0 %4982
    %4984 = vmax.xlane.f32.xlu0 %v4890
    %v4985 = vpop.xlane.xlu0 %4984
    %4986 = vmax.xlane.f32.xlu0 %v4893
    %v4987 = vpop.xlane.xlu0 %4986
    %4988 = vmax.xlane.f32.xlu0 %v4898
    %v4989 = vpop.xlane.xlu0 %4988
    %4990 = vmax.xlane.f32.xlu0 %v4901
    %v4991 = vpop.xlane.xlu0 %4990
    %4992 = vmax.xlane.f32.xlu0 %v4906
    %v4993 = vpop.xlane.xlu0 %4992
    %4994 = vmax.xlane.f32.xlu0 %v4909
    %v4995 = vpop.xlane.xlu0 %4994
    %4996 = vmax.xlane.f32.xlu0 %v4914
    %v4997 = vpop.xlane.xlu0 %4996
    %4998 = vmax.xlane.f32.xlu0 %v4917
    %v4999 = vpop.xlane.xlu0 %4998
    %5000 = vmax.xlane.f32.xlu0 %v4922
    %v5001 = vpop.xlane.xlu0 %5000
    %5002 = vmax.xlane.f32.xlu0 %v4925
    %v5003 = vpop.xlane.xlu0 %5002
    %5004 = vmax.xlane.f32.xlu0 %v4930
    %v5005 = vpop.xlane.xlu0 %5004
    %5006 = vmax.xlane.f32.xlu0 %v4933
    %v5007 = vpop.xlane.xlu0 %5006
    %5008 = vmax.xlane.f32.xlu0 %v4938
    %v5009 = vpop.xlane.xlu0 %5008
    %5010 = vmax.xlane.f32.xlu0 %v4941
    %v5011 = vpop.xlane.xlu0 %5010
    %5012 = vmax.xlane.f32.xlu0 %v4946
    %v5013 = vpop.xlane.xlu0 %5012
    %5014 = vmax.xlane.f32.xlu0 %v4949
    %v5015 = vpop.xlane.xlu0 %5014
    %v5016 = vsub.f32 %v4826, %v4953
    %v5017 = vsub.f32 %v4829, %v4955
    %v5018 = vsub.f32 %v4834, %v4957
    %v5019 = vsub.f32 %v4837, %v4959
    %v5020 = vsub.f32 %v4842, %v4961
    %v5021 = vsub.f32 %v4845, %v4963
    %v5022 = vsub.f32 %v4850, %v4965
    %v5023 = vsub.f32 %v4853, %v4967
    %v5024 = vsub.f32 %v4858, %v4969
    %v5025 = vsub.f32 %v4861, %v4971
    %v5026 = vsub.f32 %v4866, %v4973
    %v5027 = vsub.f32 %v4869, %v4975
    %v5028 = vsub.f32 %v4874, %v4977
    %v5029 = vsub.f32 %v4877, %v4979
    %v5030 = vsub.f32 %v4882, %v4981
    %v5031 = vsub.f32 %v4885, %v4983
    %v5032 = vsub.f32 %v4890, %v4985
    %v5033 = vsub.f32 %v4893, %v4987
    %v5034 = vsub.f32 %v4898, %v4989
    %v5035 = vsub.f32 %v4901, %v4991
    %v5036 = vsub.f32 %v4906, %v4993
    %v5037 = vsub.f32 %v4909, %v4995
    %v5038 = vsub.f32 %v4914, %v4997
    %v5039 = vsub.f32 %v4917, %v4999
    %v5040 = vsub.f32 %v4922, %v5001
    %v5041 = vsub.f32 %v4925, %v5003
    %v5042 = vsub.f32 %v4930, %v5005
    %v5043 = vsub.f32 %v4933, %v5007
    %v5044 = vsub.f32 %v4938, %v5009
    %v5045 = vsub.f32 %v4941, %v5011
    %v5046 = vsub.f32 %v4946, %v5013
    %v5047 = vsub.f32 %v4949, %v5015
    %v5048 = vmul.f32 %v5016, 1.442695
    %v5049 = vpow.pop %v5048
    %v5050 = vmul.f32 %v5017, 1.442695
    %v5051 = vpow.pop %v5050
    %v5052 = vmul.f32 %v5018, 1.442695
    %v5053 = vpow.pop %v5052
    %v5054 = vmul.f32 %v5019, 1.442695
    %v5055 = vpow.pop %v5054
    %v5056 = vmul.f32 %v5020, 1.442695
    %v5057 = vpow.pop %v5056
    %v5058 = vmul.f32 %v5021, 1.442695
    %v5059 = vpow.pop %v5058
    %v5060 = vmul.f32 %v5022, 1.442695
    %v5061 = vpow.pop %v5060
    %v5062 = vmul.f32 %v5023, 1.442695
    %v5063 = vpow.pop %v5062
    %v5064 = vmul.f32 %v5024, 1.442695
    %v5065 = vpow.pop %v5064
    %v5066 = vmul.f32 %v5025, 1.442695
    %v5067 = vpow.pop %v5066
    %v5068 = vmul.f32 %v5026, 1.442695
    %v5069 = vpow.pop %v5068
    %v5070 = vmul.f32 %v5027, 1.442695
    %v5071 = vpow.pop %v5070
    %v5072 = vmul.f32 %v5028, 1.442695
    %v5073 = vpow.pop %v5072
    %v5074 = vmul.f32 %v5029, 1.442695
    %v5075 = vpow.pop %v5074
    %v5076 = vmul.f32 %v5030, 1.442695
    %v5077 = vpow.pop %v5076
    %v5078 = vmul.f32 %v5031, 1.442695
    %v5079 = vpow.pop %v5078
    %v5080 = vmul.f32 %v5032, 1.442695
    %v5081 = vpow.pop %v5080
    %v5082 = vmul.f32 %v5033, 1.442695
    %v5083 = vpow.pop %v5082
    %v5084 = vmul.f32 %v5034, 1.442695
    %v5085 = vpow.pop %v5084
    %v5086 = vmul.f32 %v5035, 1.442695
    %v5087 = vpow.pop %v5086
    %v5088 = vmul.f32 %v5036, 1.442695
    %v5089 = vpow.pop %v5088
    %v5090 = vmul.f32 %v5037, 1.442695
    %v5091 = vpow.pop %v5090
    %v5092 = vmul.f32 %v5038, 1.442695
    %v5093 = vpow.pop %v5092
    %v5094 = vmul.f32 %v5039, 1.442695
    %v5095 = vpow.pop %v5094
    %v5096 = vmul.f32 %v5040, 1.442695
    %v5097 = vpow.pop %v5096
    %v5098 = vmul.f32 %v5041, 1.442695
    %v5099 = vpow.pop %v5098
    %v5100 = vmul.f32 %v5042, 1.442695
    %v5101 = vpow.pop %v5100
    %v5102 = vmul.f32 %v5043, 1.442695
    %v5103 = vpow.pop %v5102
    %v5104 = vmul.f32 %v5044, 1.442695
    %v5105 = vpow.pop %v5104
    %v5106 = vmul.f32 %v5045, 1.442695
    %v5107 = vpow.pop %v5106
    %v5108 = vmul.f32 %v5046, 1.442695
    %v5109 = vpow.pop %v5108
    %v5110 = vmul.f32 %v5047, 1.442695
    %v5111 = vpow.pop %v5110
    %v5112 = vpack.c.bf16 %v5051, %v5049
    %v5113 = vpack.c.bf16 %v5055, %v5053
    %v5114 = vpack.c.bf16 %v5059, %v5057
    %v5115 = vpack.c.bf16 %v5063, %v5061
    %v5116 = vpack.c.bf16 %v5067, %v5065
    %v5117 = vpack.c.bf16 %v5071, %v5069
    %v5118 = vpack.c.bf16 %v5075, %v5073
    %v5119 = vpack.c.bf16 %v5079, %v5077
    %v5120 = vpack.c.bf16 %v5083, %v5081
    %v5121 = vpack.c.bf16 %v5087, %v5085
    %v5122 = vpack.c.bf16 %v5091, %v5089
    %v5123 = vpack.c.bf16 %v5095, %v5093
    %v5124 = vpack.c.bf16 %v5099, %v5097
    %v5125 = vpack.c.bf16 %v5103, %v5101
    %v5126 = vpack.c.bf16 %v5107, %v5105
    %v5127 = vpack.c.bf16 %v5111, %v5109
    %v5128 = vld [vmem:[#allocation11] sm:$0xf]
    %v5129 = vld [vmem:[#allocation11 + $0x4] sm:$0xf]
    %v5130 = vld [vmem:[#allocation11 + $0x8] sm:$0xf]
    %v5131 = vld [vmem:[#allocation11 + $0xc] sm:$0xf]
    %v5132 = vld [vmem:[#allocation11 + $0x10] sm:$0xf]
    %v5133 = vld [vmem:[#allocation11 + $0x14] sm:$0xf]
    %v5134 = vld [vmem:[#allocation11 + $0x18] sm:$0xf]
    %v5135 = vld [vmem:[#allocation11 + $0x1c] sm:$0xf]
    %v5136 = vld [vmem:[#allocation11 + $0x20] sm:$0xf]
    %v5137 = vld [vmem:[#allocation11 + $0x24] sm:$0xf]
    %v5138 = vld [vmem:[#allocation11 + $0x28] sm:$0xf]
    %v5139 = vld [vmem:[#allocation11 + $0x2c] sm:$0xf]
    %v5140 = vld [vmem:[#allocation11 + $0x30] sm:$0xf]
    %v5141 = vld [vmem:[#allocation11 + $0x34] sm:$0xf]
    %v5142 = vld [vmem:[#allocation11 + $0x38] sm:$0xf]
    %v5143 = vld [vmem:[#allocation11 + $0x3c] sm:$0xf]
    %v5160 = vunpack.c.l.b16 %v5128
    %v5161 = vunpack.c.l.b16 %v5129
    %v5162 = vunpack.c.l.b16 %v5130
    %v5163 = vunpack.c.l.b16 %v5131
    %v5164 = vunpack.c.l.b16 %v5132
    %v5165 = vunpack.c.l.b16 %v5133
    %v5166 = vunpack.c.l.b16 %v5134
    %v5167 = vunpack.c.l.b16 %v5135
    %v5168 = vunpack.c.l.b16 %v5136
    %v5169 = vunpack.c.l.b16 %v5137
    %v5170 = vunpack.c.l.b16 %v5138
    %v5171 = vunpack.c.l.b16 %v5139
    %v5172 = vunpack.c.l.b16 %v5140
    %v5173 = vunpack.c.l.b16 %v5141
    %v5174 = vunpack.c.l.b16 %v5142
    %v5175 = vunpack.c.l.b16 %v5143
    %v5176 = vpack.c.b16 %v5161, %v5160
    %v5177 = vpack.c.b16 %v5163, %v5162
    %v5178 = vpack.c.b16 %v5165, %v5164
    %v5179 = vpack.c.b16 %v5167, %v5166
    %v5180 = vpack.c.b16 %v5169, %v5168
    %v5181 = vpack.c.b16 %v5171, %v5170
    %v5182 = vpack.c.b16 %v5173, %v5172
    %v5183 = vpack.c.b16 %v5175, %v5174
    %5192 = vmatprep.subr.bf16.mxu0 0
    %5193 = vmatpush1.bf16.msra.mxu0 %v5176
    %5194 = vmatprep.subr.bf16.mxu0 0
    %5195 = vmatpush1.bf16.msra.mxu0 %v5177
    %5196 = vmatprep.subr.bf16.mxu0 0
    %5197 = vmatpush1.bf16.msra.mxu0 %v5178
    %5198 = vmatprep.subr.bf16.mxu0 0
    %5199 = vmatpush1.bf16.msra.mxu0 %v5179
    %5200 = vmatprep.subr.bf16.mxu0 0
    %5201 = vmatpush1.bf16.msra.mxu0 %v5180
    %5202 = vmatprep.subr.bf16.mxu0 0
    %5203 = vmatpush1.bf16.msra.mxu0 %v5181
    %5204 = vmatprep.subr.bf16.mxu0 0
    %5205 = vmatpush1.bf16.msra.mxu0 %v5182
    %5206 = vmatprep.subr.bf16.mxu0 0
    %5207 = vmatpush1.bf16.msra.mxu0 %v5183
    %5208 = vmatprep.subr.bf16.mxu0 0
    %5209 = vmatpush1.bf16.msra.mxu0 0
    %5210 = vmatprep.subr.bf16.mxu0 0
    %5211 = vmatpush1.bf16.msra.mxu0 0
    %5212 = vmatprep.subr.bf16.mxu0 0
    %5213 = vmatpush1.bf16.msra.mxu0 0
    %5214 = vmatprep.subr.bf16.mxu0 0
    %5215 = vmatpush1.bf16.msra.mxu0 0
    %5216 = vmatprep.subr.bf16.mxu0 0
    %5217 = vmatpush1.bf16.msra.mxu0 0
    %5218 = vmatprep.subr.bf16.mxu0 0
    %5219 = vmatpush1.bf16.msra.mxu0 0
    %5220 = vmatprep.subr.bf16.mxu0 0
    %5221 = vmatpush1.bf16.msra.mxu0 0
    %5222 = vmatprep.subr.bf16.mxu0 0
    %5223 = vmatpush1.bf16.msra.mxu0 0
    %5224 = vmatprep.mubr.bf16.mxu0 0
    %5225 = vmatmul.mubr.bf16.gmra.mrb[0].mxu0 %v5112
    %v5226 = vpop.f32.mrb[0].mxu0
    %v5227 = vadd.f32 0.0, %v5226
    %v5228 = vpop.f32.mrb[0].mxu0
    %v5229 = vpop.f32.mrb[0].mxu0
    %v5230 = vadd.f32 0.0, %v5229
    %v5231 = vpop.f32.mrb[0].mxu0
    %5232 = vmatprep.mubr.bf16.mxu0 0
    %5233 = vmatmul.mubr.bf16.gmra.mrb[0].mxu0 %v5113
    %v5234 = vpop.f32.mrb[0].mxu0
    %v5235 = vadd.f32 0.0, %v5234
    %v5236 = vpop.f32.mrb[0].mxu0
    %v5237 = vpop.f32.mrb[0].mxu0
    %v5238 = vadd.f32 0.0, %v5237
    %v5239 = vpop.f32.mrb[0].mxu0
    %5240 = vmatprep.mubr.bf16.mxu0 0
    %5241 = vmatmul.mubr.bf16.gmra.mrb[0].mxu0 %v5114
    %v5242 = vpop.f32.mrb[0].mxu0
    %v5243 = vadd.f32 0.0, %v5242
    %v5244 = vpop.f32.mrb[0].mxu0
    %v5245 = vpop.f32.mrb[0].mxu0
    %v5246 = vadd.f32 0.0, %v5245
    %v5247 = vpop.f32.mrb[0].mxu0
    %5248 = vmatprep.mubr.bf16.mxu0 0
    %5249 = vmatmul.mubr.bf16.gmra.mrb[0].mxu0 %v5115
    %v5250 = vpop.f32.mrb[0].mxu0
    %v5251 = vadd.f32 0.0, %v5250
    %v5252 = vpop.f32.mrb[0].mxu0
    %v5253 = vpop.f32.mrb[0].mxu0
    %v5254 = vadd.f32 0.0, %v5253
    %v5255 = vpop.f32.mrb[0].mxu0
    %5256 = vmatprep.mubr.bf16.mxu0 0
    %5257 = vmatmul.mubr.bf16.gmra.mrb[0].mxu0 %v5116
    %v5258 = vpop.f32.mrb[0].mxu0
    %v5259 = vadd.f32 0.0, %v5258
    %v5260 = vpop.f32.mrb[0].mxu0
    %v5261 = vpop.f32.mrb[0].mxu0
    %v5262 = vadd.f32 0.0, %v5261
    %v5263 = vpop.f32.mrb[0].mxu0
    %5264 = vmatprep.mubr.bf16.mxu0 0
    %5265 = vmatmul.mubr.bf16.gmra.mrb[0].mxu0 %v5117
    %v5266 = vpop.f32.mrb[0].mxu0
    %v5267 = vadd.f32 0.0, %v5266
    %v5268 = vpop.f32.mrb[0].mxu0
    %v5269 = vpop.f32.mrb[0].mxu0
    %v5270 = vadd.f32 0.0, %v5269
    %v5271 = vpop.f32.mrb[0].mxu0
    %5272 = vmatprep.mubr.bf16.mxu0 0
    %5273 = vmatmul.mubr.bf16.gmra.mrb[0].mxu0 %v5118
    %v5274 = vpop.f32.mrb[0].mxu0
    %v5275 = vadd.f32 0.0, %v5274
    %v5276 = vpop.f32.mrb[0].mxu0
    %v5277 = vpop.f32.mrb[0].mxu0
    %v5278 = vadd.f32 0.0, %v5277
    %v5279 = vpop.f32.mrb[0].mxu0
    %5280 = vmatprep.mubr.bf16.mxu0 0
    %5281 = vmatmul.mubr.bf16.gmra.mrb[0].mxu0 %v5119
    %v5282 = vpop.f32.mrb[0].mxu0
    %v5283 = vadd.f32 0.0, %v5282
    %v5284 = vpop.f32.mrb[0].mxu0
    %v5285 = vpop.f32.mrb[0].mxu0
    %v5286 = vadd.f32 0.0, %v5285
    %v5287 = vpop.f32.mrb[0].mxu0
    %5288 = vmatprep.mubr.bf16.mxu0 0
    %5289 = vmatmul.mubr.bf16.gmra.mrb[0].mxu0 %v5120
    %v5290 = vpop.f32.mrb[0].mxu0
    %v5291 = vadd.f32 0.0, %v5290
    %v5292 = vpop.f32.mrb[0].mxu0
    %v5293 = vpop.f32.mrb[0].mxu0
    %v5294 = vadd.f32 0.0, %v5293
    %v5295 = vpop.f32.mrb[0].mxu0
    %5296 = vmatprep.mubr.bf16.mxu0 0
    %5297 = vmatmul.mubr.bf16.gmra.mrb[0].mxu0 %v5121
    %v5298 = vpop.f32.mrb[0].mxu0
    %v5299 = vadd.f32 0.0, %v5298
    %v5300 = vpop.f32.mrb[0].mxu0
    %v5301 = vpop.f32.mrb[0].mxu0
    %v5302 = vadd.f32 0.0, %v5301
    %v5303 = vpop.f32.mrb[0].mxu0
    %5304 = vmatprep.mubr.bf16.mxu0 0
    %5305 = vmatmul.mubr.bf16.gmra.mrb[0].mxu0 %v5122
    %v5306 = vpop.f32.mrb[0].mxu0
    %v5307 = vadd.f32 0.0, %v5306
    %v5308 = vpop.f32.mrb[0].mxu0
    %v5309 = vpop.f32.mrb[0].mxu0
    %v5310 = vadd.f32 0.0, %v5309
    %v5311 = vpop.f32.mrb[0].mxu0
    %5312 = vmatprep.mubr.bf16.mxu0 0
    %5313 = vmatmul.mubr.bf16.gmra.mrb[0].mxu0 %v5123
    %v5314 = vpop.f32.mrb[0].mxu0
    %v5315 = vadd.f32 0.0, %v5314
    %v5316 = vpop.f32.mrb[0].mxu0
    %v5317 = vpop.f32.mrb[0].mxu0
    %v5318 = vadd.f32 0.0, %v5317
    %v5319 = vpop.f32.mrb[0].mxu0
    %5320 = vmatprep.mubr.bf16.mxu0 0
    %5321 = vmatmul.mubr.bf16.gmra.mrb[0].mxu0 %v5124
    %v5322 = vpop.f32.mrb[0].mxu0
    %v5323 = vadd.f32 0.0, %v5322
    %v5324 = vpop.f32.mrb[0].mxu0
    %v5325 = vpop.f32.mrb[0].mxu0
    %v5326 = vadd.f32 0.0, %v5325
    %v5327 = vpop.f32.mrb[0].mxu0
    %5328 = vmatprep.mubr.bf16.mxu0 0
    %5329 = vmatmul.mubr.bf16.gmra.mrb[0].mxu0 %v5125
    %v5330 = vpop.f32.mrb[0].mxu0
    %v5331 = vadd.f32 0.0, %v5330
    %v5332 = vpop.f32.mrb[0].mxu0
    %v5333 = vpop.f32.mrb[0].mxu0
    %v5334 = vadd.f32 0.0, %v5333
    %v5335 = vpop.f32.mrb[0].mxu0
    %5336 = vmatprep.mubr.bf16.mxu0 0
    %5337 = vmatmul.mubr.bf16.gmra.mrb[0].mxu0 %v5126
    %v5338 = vpop.f32.mrb[0].mxu0
    %v5339 = vadd.f32 0.0, %v5338
    %v5340 = vpop.f32.mrb[0].mxu0
    %v5341 = vpop.f32.mrb[0].mxu0
    %v5342 = vadd.f32 0.0, %v5341
    %v5343 = vpop.f32.mrb[0].mxu0
    %5344 = vmatprep.mubr.bf16.mxu0 0
    %5345 = vmatmul.mubr.bf16.gmra.mrb[0].mxu0 %v5127
    %v5346 = vpop.f32.mrb[0].mxu0
    %v5347 = vadd.f32 0.0, %v5346
    %v5348 = vpop.f32.mrb[0].mxu0
    %v5349 = vpop.f32.mrb[0].mxu0
    %v5350 = vadd.f32 0.0, %v5349
    %v5351 = vpop.f32.mrb[0].mxu0
    %5352 = vdwg.mxu0
    %v5353 = vmax.f32 %v5227, 1e-20
    %v5354 = vmax.f32 %v5230, 1e-20
    %v5355 = vmax.f32 %v5235, 1e-20
    %v5356 = vmax.f32 %v5238, 1e-20
    %v5357 = vmax.f32 %v5243, 1e-20
    %v5358 = vmax.f32 %v5246, 1e-20
    %v5359 = vmax.f32 %v5251, 1e-20
    %v5360 = vmax.f32 %v5254, 1e-20
    %v5361 = vmax.f32 %v5259, 1e-20
    %v5362 = vmax.f32 %v5262, 1e-20
    %v5363 = vmax.f32 %v5267, 1e-20
    %v5364 = vmax.f32 %v5270, 1e-20
    %v5365 = vmax.f32 %v5275, 1e-20
    %v5366 = vmax.f32 %v5278, 1e-20
    %v5367 = vmax.f32 %v5283, 1e-20
    %v5368 = vmax.f32 %v5286, 1e-20
    %v5369 = vmax.f32 %v5291, 1e-20
    %v5370 = vmax.f32 %v5294, 1e-20
    %v5371 = vmax.f32 %v5299, 1e-20
    %v5372 = vmax.f32 %v5302, 1e-20
    %v5373 = vmax.f32 %v5307, 1e-20
    %v5374 = vmax.f32 %v5310, 1e-20
    %v5375 = vmax.f32 %v5315, 1e-20
    %v5376 = vmax.f32 %v5318, 1e-20
    %v5377 = vmax.f32 %v5323, 1e-20
    %v5378 = vmax.f32 %v5326, 1e-20
    %v5379 = vmax.f32 %v5331, 1e-20
    %v5380 = vmax.f32 %v5334, 1e-20
    %v5381 = vmax.f32 %v5339, 1e-20
    %v5382 = vmax.f32 %v5342, 1e-20
    %v5383 = vmax.f32 %v5347, 1e-20
    %v5384 = vmax.f32 %v5350, 1e-20
    %v5385 = vrcp.pop %v5353
    %v5386 = vrcp.pop %v5354
    %v5387 = vrcp.pop %v5355
    %v5388 = vrcp.pop %v5356
    %v5389 = vrcp.pop %v5357
    %v5390 = vrcp.pop %v5358
    %v5391 = vrcp.pop %v5359
    %v5392 = vrcp.pop %v5360
    %v5393 = vrcp.pop %v5361
    %v5394 = vrcp.pop %v5362
    %v5395 = vrcp.pop %v5363
    %v5396 = vrcp.pop %v5364
    %v5397 = vrcp.pop %v5365
    %v5398 = vrcp.pop %v5366
    %v5399 = vrcp.pop %v5367
    %v5400 = vrcp.pop %v5368
    %v5401 = vrcp.pop %v5369
    %v5402 = vrcp.pop %v5370
    %v5403 = vrcp.pop %v5371
    %v5404 = vrcp.pop %v5372
    %v5405 = vrcp.pop %v5373
    %v5406 = vrcp.pop %v5374
    %v5407 = vrcp.pop %v5375
    %v5408 = vrcp.pop %v5376
    %v5409 = vrcp.pop %v5377
    %v5410 = vrcp.pop %v5378
    %v5411 = vrcp.pop %v5379
    %v5412 = vrcp.pop %v5380
    %v5413 = vrcp.pop %v5381
    %v5414 = vrcp.pop %v5382
    %v5415 = vrcp.pop %v5383
    %v5416 = vrcp.pop %v5384
    %v5417 = vmul.f32 %v5049, %v5385
    %v5418 = vmul.f32 %v5051, %v5386
    %v5419 = vmul.f32 %v5053, %v5387
    %v5420 = vmul.f32 %v5055, %v5388
    %v5421 = vmul.f32 %v5057, %v5389
    %v5422 = vmul.f32 %v5059, %v5390
    %v5423 = vmul.f32 %v5061, %v5391
    %v5424 = vmul.f32 %v5063, %v5392
    %v5425 = vmul.f32 %v5065, %v5393
    %v5426 = vmul.f32 %v5067, %v5394
    %v5427 = vmul.f32 %v5069, %v5395
    %v5428 = vmul.f32 %v5071, %v5396
    %v5429 = vmul.f32 %v5073, %v5397
    %v5430 = vmul.f32 %v5075, %v5398
    %v5431 = vmul.f32 %v5077, %v5399
    %v5432 = vmul.f32 %v5079, %v5400
    %v5433 = vmul.f32 %v5081, %v5401
    %v5434 = vmul.f32 %v5083, %v5402
    %v5435 = vmul.f32 %v5085, %v5403
    %v5436 = vmul.f32 %v5087, %v5404
    %v5437 = vmul.f32 %v5089, %v5405
    %v5438 = vmul.f32 %v5091, %v5406
    %v5439 = vmul.f32 %v5093, %v5407
    %v5440 = vmul.f32 %v5095, %v5408
    %v5441 = vmul.f32 %v5097, %v5409
    %v5442 = vmul.f32 %v5099, %v5410
    %v5443 = vmul.f32 %v5101, %v5411
    %v5444 = vmul.f32 %v5103, %v5412
    %v5445 = vmul.f32 %v5105, %v5413
    %v5446 = vmul.f32 %v5107, %v5414
    %v5447 = vmul.f32 %v5109, %v5415
    %v5448 = vmul.f32 %v5111, %v5416
    %v5449 = vld [vmem:[#allocation8] sm:$0xff]
    %v5450 = vld [vmem:[#allocation8 + $0x8] sm:$0xff]
    %v5451 = vld [vmem:[#allocation8 + $0x10] sm:$0xff]
    %v5452 = vld [vmem:[#allocation8 + $0x18] sm:$0xff]
    %v5453 = vld [vmem:[#allocation8 + $0x20] sm:$0xff]
    %v5454 = vld [vmem:[#allocation8 + $0x28] sm:$0xff]
    %v5455 = vld [vmem:[#allocation8 + $0x30] sm:$0xff]
    %v5456 = vld [vmem:[#allocation8 + $0x38] sm:$0xff]
    %v5457 = vld [vmem:[#allocation8 + $0x40] sm:$0xff]
    %v5458 = vld [vmem:[#allocation8 + $0x48] sm:$0xff]
    %v5459 = vld [vmem:[#allocation8 + $0x50] sm:$0xff]
    %v5460 = vld [vmem:[#allocation8 + $0x58] sm:$0xff]
    %v5461 = vld [vmem:[#allocation8 + $0x60] sm:$0xff]
    %v5462 = vld [vmem:[#allocation8 + $0x68] sm:$0xff]
    %v5463 = vld [vmem:[#allocation8 + $0x70] sm:$0xff]
    %v5464 = vld [vmem:[#allocation8 + $0x78] sm:$0xff]
    %v5465 = vld [vmem:[#allocation8 + $0x80] sm:$0xff]
    %v5466 = vld [vmem:[#allocation8 + $0x88] sm:$0xff]
    %v5467 = vld [vmem:[#allocation8 + $0x90] sm:$0xff]
    %v5468 = vld [vmem:[#allocation8 + $0x98] sm:$0xff]
    %v5469 = vld [vmem:[#allocation8 + $0xa0] sm:$0xff]
    %v5470 = vld [vmem:[#allocation8 + $0xa8] sm:$0xff]
    %v5471 = vld [vmem:[#allocation8 + $0xb0] sm:$0xff]
    %v5472 = vld [vmem:[#allocation8 + $0xb8] sm:$0xff]
    %v5473 = vld [vmem:[#allocation8 + $0xc0] sm:$0xff]
    %v5474 = vld [vmem:[#allocation8 + $0xc8] sm:$0xff]
    %v5475 = vld [vmem:[#allocation8 + $0xd0] sm:$0xff]
    %v5476 = vld [vmem:[#allocation8 + $0xd8] sm:$0xff]
    %v5477 = vld [vmem:[#allocation8 + $0xe0] sm:$0xff]
    %v5478 = vld [vmem:[#allocation8 + $0xe8] sm:$0xff]
    %v5479 = vld [vmem:[#allocation8 + $0xf0] sm:$0xff]
    %v5480 = vld [vmem:[#allocation8 + $0xf8] sm:$0xff]
    %v5481 = vld [vmem:[#allocation8 + $0x100] sm:$0xff]
    %v5482 = vld [vmem:[#allocation8 + $0x108] sm:$0xff]
    %v5483 = vld [vmem:[#allocation8 + $0x110] sm:$0xff]
    %v5484 = vld [vmem:[#allocation8 + $0x118] sm:$0xff]
    %v5485 = vld [vmem:[#allocation8 + $0x120] sm:$0xff]
    %v5486 = vld [vmem:[#allocation8 + $0x128] sm:$0xff]
    %v5487 = vld [vmem:[#allocation8 + $0x130] sm:$0xff]
    %v5488 = vld [vmem:[#allocation8 + $0x138] sm:$0xff]
    %v5489 = vld [vmem:[#allocation8 + $0x140] sm:$0xff]
    %v5490 = vld [vmem:[#allocation8 + $0x148] sm:$0xff]
    %v5491 = vld [vmem:[#allocation8 + $0x150] sm:$0xff]
    %v5492 = vld [vmem:[#allocation8 + $0x158] sm:$0xff]
    %v5493 = vld [vmem:[#allocation8 + $0x160] sm:$0xff]
    %v5494 = vld [vmem:[#allocation8 + $0x168] sm:$0xff]
    %v5495 = vld [vmem:[#allocation8 + $0x170] sm:$0xff]
    %v5496 = vld [vmem:[#allocation8 + $0x178] sm:$0xff]
    %v5497 = vld [vmem:[#allocation8 + $0x180] sm:$0xff]
    %v5498 = vld [vmem:[#allocation8 + $0x188] sm:$0xff]
    %v5499 = vld [vmem:[#allocation8 + $0x190] sm:$0xff]
    %v5500 = vld [vmem:[#allocation8 + $0x198] sm:$0xff]
    %v5501 = vld [vmem:[#allocation8 + $0x1a0] sm:$0xff]
    %v5502 = vld [vmem:[#allocation8 + $0x1a8] sm:$0xff]
    %v5503 = vld [vmem:[#allocation8 + $0x1b0] sm:$0xff]
    %v5504 = vld [vmem:[#allocation8 + $0x1b8] sm:$0xff]
    %v5505 = vld [vmem:[#allocation8 + $0x1c0] sm:$0xff]
    %v5506 = vld [vmem:[#allocation8 + $0x1c8] sm:$0xff]
    %v5507 = vld [vmem:[#allocation8 + $0x1d0] sm:$0xff]
    %v5508 = vld [vmem:[#allocation8 + $0x1d8] sm:$0xff]
    %v5509 = vld [vmem:[#allocation8 + $0x1e0] sm:$0xff]
    %v5510 = vld [vmem:[#allocation8 + $0x1e8] sm:$0xff]
    %v5511 = vld [vmem:[#allocation8 + $0x1f0] sm:$0xff]
    %v5512 = vld [vmem:[#allocation8 + $0x1f8] sm:$0xff]
    %v5513 = vld [vmem:[%s7] sm:$0xff]
    %v5515 = vlaneseq
    %v5516 = vshrl.u32 %v5515, 7
    %v5517 = vsub.s32 0, %v5516
    %v5518 = vrot.slane %v5513, %v5517
    %v5519 = vlaneseq
    %v5520 = vshrl.u32 %v5519, 7
    %v5521 = vsub.s32 1, %v5520
    %v5522 = vrot.slane %v5513, %v5521
    %v5523 = vlaneseq
    %v5524 = vshrl.u32 %v5523, 7
    %v5525 = vsub.s32 2, %v5524
    %v5526 = vrot.slane %v5513, %v5525
    %v5527 = vlaneseq
    %v5528 = vshrl.u32 %v5527, 7
    %v5529 = vsub.s32 3, %v5528
    %v5530 = vrot.slane %v5513, %v5529
    %v5531 = vlaneseq
    %v5532 = vshrl.u32 %v5531, 7
    %v5533 = vsub.s32 4, %v5532
    %v5534 = vrot.slane %v5513, %v5533
    %v5535 = vlaneseq
    %v5536 = vshrl.u32 %v5535, 7
    %v5537 = vsub.s32 5, %v5536
    %v5538 = vrot.slane %v5513, %v5537
    %v5539 = vlaneseq
    %v5540 = vshrl.u32 %v5539, 7
    %v5541 = vsub.s32 6, %v5540
    %v5542 = vrot.slane %v5513, %v5541
    %v5543 = vlaneseq
    %v5544 = vshrl.u32 %v5543, 7
    %v5545 = vsub.s32 7, %v5544
    %v5546 = vrot.slane %v5513, %v5545
    %v5619 = vunpack.c.l.b16 %v5449
    %v5620 = vunpack.c.h.b16 %v5449
    %v5621 = vunpack.c.l.b16 %v5450
    %v5622 = vunpack.c.h.b16 %v5450
    %v5623 = vunpack.c.l.b16 %v5451
    %v5624 = vunpack.c.h.b16 %v5451
    %v5625 = vunpack.c.l.b16 %v5452
    %v5626 = vunpack.c.h.b16 %v5452
    %v5627 = vunpack.c.l.b16 %v5453
    %v5628 = vunpack.c.h.b16 %v5453
    %v5629 = vunpack.c.l.b16 %v5454
    %v5630 = vunpack.c.h.b16 %v5454
    %v5631 = vunpack.c.l.b16 %v5455
    %v5632 = vunpack.c.h.b16 %v5455
    %v5633 = vunpack.c.l.b16 %v5456
    %v5634 = vunpack.c.h.b16 %v5456
    %v5635 = vunpack.c.l.b16 %v5457
    %v5636 = vunpack.c.h.b16 %v5457
    %v5637 = vunpack.c.l.b16 %v5458
    %v5638 = vunpack.c.h.b16 %v5458
    %v5639 = vunpack.c.l.b16 %v5459
    %v5640 = vunpack.c.h.b16 %v5459
    %v5641 = vunpack.c.l.b16 %v5460
    %v5642 = vunpack.c.h.b16 %v5460
    %v5643 = vunpack.c.l.b16 %v5461
    %v5644 = vunpack.c.h.b16 %v5461
    %v5645 = vunpack.c.l.b16 %v5462
    %v5646 = vunpack.c.h.b16 %v5462
    %v5647 = vunpack.c.l.b16 %v5463
    %v5648 = vunpack.c.h.b16 %v5463
    %v5649 = vunpack.c.l.b16 %v5464
    %v5650 = vunpack.c.h.b16 %v5464
    %v5651 = vunpack.c.l.b16 %v5465
    %v5652 = vunpack.c.h.b16 %v5465
    %v5653 = vunpack.c.l.b16 %v5466
    %v5654 = vunpack.c.h.b16 %v5466
    %v5655 = vunpack.c.l.b16 %v5467
    %v5656 = vunpack.c.h.b16 %v5467
    %v5657 = vunpack.c.l.b16 %v5468
    %v5658 = vunpack.c.h.b16 %v5468
    %v5659 = vunpack.c.l.b16 %v5469
    %v5660 = vunpack.c.h.b16 %v5469
    %v5661 = vunpack.c.l.b16 %v5470
    %v5662 = vunpack.c.h.b16 %v5470
    %v5663 = vunpack.c.l.b16 %v5471
    %v5664 = vunpack.c.h.b16 %v5471
    %v5665 = vunpack.c.l.b16 %v5472
    %v5666 = vunpack.c.h.b16 %v5472
    %v5667 = vunpack.c.l.b16 %v5473
    %v5668 = vunpack.c.h.b16 %v5473
    %v5669 = vunpack.c.l.b16 %v5474
    %v5670 = vunpack.c.h.b16 %v5474
    %v5671 = vunpack.c.l.b16 %v5475
    %v5672 = vunpack.c.h.b16 %v5475
    %v5673 = vunpack.c.l.b16 %v5476
    %v5674 = vunpack.c.h.b16 %v5476
    %v5675 = vunpack.c.l.b16 %v5477
    %v5676 = vunpack.c.h.b16 %v5477
    %v5677 = vunpack.c.l.b16 %v5478
    %v5678 = vunpack.c.h.b16 %v5478
    %v5679 = vunpack.c.l.b16 %v5479
    %v5680 = vunpack.c.h.b16 %v5479
    %v5681 = vunpack.c.l.b16 %v5480
    %v5682 = vunpack.c.h.b16 %v5480
    %v5683 = vunpack.c.l.b16 %v5481
    %v5684 = vunpack.c.h.b16 %v5481
    %v5685 = vunpack.c.l.b16 %v5482
    %v5686 = vunpack.c.h.b16 %v5482
    %v5687 = vunpack.c.l.b16 %v5483
    %v5688 = vunpack.c.h.b16 %v5483
    %v5689 = vunpack.c.l.b16 %v5484
    %v5690 = vunpack.c.h.b16 %v5484
    %v5691 = vunpack.c.l.b16 %v5485
    %v5692 = vunpack.c.h.b16 %v5485
    %v5693 = vunpack.c.l.b16 %v5486
    %v5694 = vunpack.c.h.b16 %v5486
    %v5695 = vunpack.c.l.b16 %v5487
    %v5696 = vunpack.c.h.b16 %v5487
    %v5697 = vunpack.c.l.b16 %v5488
    %v5698 = vunpack.c.h.b16 %v5488
    %v5699 = vunpack.c.l.b16 %v5489
    %v5700 = vunpack.c.h.b16 %v5489
    %v5701 = vunpack.c.l.b16 %v5490
    %v5702 = vunpack.c.h.b16 %v5490
    %v5703 = vunpack.c.l.b16 %v5491
    %v5704 = vunpack.c.h.b16 %v5491
    %v5705 = vunpack.c.l.b16 %v5492
    %v5706 = vunpack.c.h.b16 %v5492
    %v5707 = vunpack.c.l.b16 %v5493
    %v5708 = vunpack.c.h.b16 %v5493
    %v5709 = vunpack.c.l.b16 %v5494
    %v5710 = vunpack.c.h.b16 %v5494
    %v5711 = vunpack.c.l.b16 %v5495
    %v5712 = vunpack.c.h.b16 %v5495
    %v5713 = vunpack.c.l.b16 %v5496
    %v5714 = vunpack.c.h.b16 %v5496
    %v5715 = vunpack.c.l.b16 %v5497
    %v5716 = vunpack.c.h.b16 %v5497
    %v5717 = vunpack.c.l.b16 %v5498
    %v5718 = vunpack.c.h.b16 %v5498
    %v5719 = vunpack.c.l.b16 %v5499
    %v5720 = vunpack.c.h.b16 %v5499
    %v5721 = vunpack.c.l.b16 %v5500
    %v5722 = vunpack.c.h.b16 %v5500
    %v5723 = vunpack.c.l.b16 %v5501
    %v5724 = vunpack.c.h.b16 %v5501
    %v5725 = vunpack.c.l.b16 %v5502
    %v5726 = vunpack.c.h.b16 %v5502
    %v5727 = vunpack.c.l.b16 %v5503
    %v5728 = vunpack.c.h.b16 %v5503
    %v5729 = vunpack.c.l.b16 %v5504
    %v5730 = vunpack.c.h.b16 %v5504
    %v5731 = vunpack.c.l.b16 %v5505
    %v5732 = vunpack.c.h.b16 %v5505
    %v5733 = vunpack.c.l.b16 %v5506
    %v5734 = vunpack.c.h.b16 %v5506
    %v5735 = vunpack.c.l.b16 %v5507
    %v5736 = vunpack.c.h.b16 %v5507
    %v5737 = vunpack.c.l.b16 %v5508
    %v5738 = vunpack.c.h.b16 %v5508
    %v5739 = vunpack.c.l.b16 %v5509
    %v5740 = vunpack.c.h.b16 %v5509
    %v5741 = vunpack.c.l.b16 %v5510
    %v5742 = vunpack.c.h.b16 %v5510
    %v5743 = vunpack.c.l.b16 %v5511
    %v5744 = vunpack.c.h.b16 %v5511
    %v5745 = vunpack.c.l.b16 %v5512
    %v5746 = vunpack.c.h.b16 %v5512
    %v5747 = vpack.c.b16 %v5627, %v5619
    %v5748 = vpack.c.b16 %v5628, %v5620
    %v5749 = vpack.c.b16 %v5629, %v5621
    %v5750 = vpack.c.b16 %v5630, %v5622
    %v5751 = vpack.c.b16 %v5631, %v5623
    %v5752 = vpack.c.b16 %v5632, %v5624
    %v5753 = vpack.c.b16 %v5633, %v5625
    %v5754 = vpack.c.b16 %v5634, %v5626
    %v5755 = vpack.c.b16 %v5643, %v5635
    %v5756 = vpack.c.b16 %v5644, %v5636
    %v5757 = vpack.c.b16 %v5645, %v5637
    %v5758 = vpack.c.b16 %v5646, %v5638
    %v5759 = vpack.c.b16 %v5647, %v5639
    %v5760 = vpack.c.b16 %v5648, %v5640
    %v5761 = vpack.c.b16 %v5649, %v5641
    %v5762 = vpack.c.b16 %v5650, %v5642
    %v5763 = vpack.c.b16 %v5659, %v5651
    %v5764 = vpack.c.b16 %v5660, %v5652
    %v5765 = vpack.c.b16 %v5661, %v5653
    %v5766 = vpack.c.b16 %v5662, %v5654
    %v5767 = vpack.c.b16 %v5663, %v5655
    %v5768 = vpack.c.b16 %v5664, %v5656
    %v5769 = vpack.c.b16 %v5665, %v5657
    %v5770 = vpack.c.b16 %v5666, %v5658
    %v5771 = vpack.c.b16 %v5675, %v5667
    %v5772 = vpack.c.b16 %v5676, %v5668
    %v5773 = vpack.c.b16 %v5677, %v5669
    %v5774 = vpack.c.b16 %v5678, %v5670
    %v5775 = vpack.c.b16 %v5679, %v5671
    %v5776 = vpack.c.b16 %v5680, %v5672
    %v5777 = vpack.c.b16 %v5681, %v5673
    %v5778 = vpack.c.b16 %v5682, %v5674
    %v5779 = vpack.c.b16 %v5691, %v5683
    %v5780 = vpack.c.b16 %v5692, %v5684
    %v5781 = vpack.c.b16 %v5693, %v5685
    %v5782 = vpack.c.b16 %v5694, %v5686
    %v5783 = vpack.c.b16 %v5695, %v5687
    %v5784 = vpack.c.b16 %v5696, %v5688
    %v5785 = vpack.c.b16 %v5697, %v5689
    %v5786 = vpack.c.b16 %v5698, %v5690
    %v5787 = vpack.c.b16 %v5707, %v5699
    %v5788 = vpack.c.b16 %v5708, %v5700
    %v5789 = vpack.c.b16 %v5709, %v5701
    %v5790 = vpack.c.b16 %v5710, %v5702
    %v5791 = vpack.c.b16 %v5711, %v5703
    %v5792 = vpack.c.b16 %v5712, %v5704
    %v5793 = vpack.c.b16 %v5713, %v5705
    %v5794 = vpack.c.b16 %v5714, %v5706
    %v5795 = vpack.c.b16 %v5723, %v5715
    %v5796 = vpack.c.b16 %v5724, %v5716
    %v5797 = vpack.c.b16 %v5725, %v5717
    %v5798 = vpack.c.b16 %v5726, %v5718
    %v5799 = vpack.c.b16 %v5727, %v5719
    %v5800 = vpack.c.b16 %v5728, %v5720
    %v5801 = vpack.c.b16 %v5729, %v5721
    %v5802 = vpack.c.b16 %v5730, %v5722
    %v5803 = vpack.c.b16 %v5739, %v5731
    %v5804 = vpack.c.b16 %v5740, %v5732
    %v5805 = vpack.c.b16 %v5741, %v5733
    %v5806 = vpack.c.b16 %v5742, %v5734
    %v5807 = vpack.c.b16 %v5743, %v5735
    %v5808 = vpack.c.b16 %v5744, %v5736
    %v5809 = vpack.c.b16 %v5745, %v5737
    %v5810 = vpack.c.b16 %v5746, %v5738
    %5875 = vmatprep.subr.bf16.mxu0 %v5748
    %5876 = vmatpush1.bf16.msra.mxu0 %v5747
    %5877 = vmatprep.subr.bf16.mxu0 %v5756
    %5878 = vmatpush1.bf16.msra.mxu0 %v5755
    %5879 = vmatprep.subr.bf16.mxu0 %v5764
    %5880 = vmatpush1.bf16.msra.mxu0 %v5763
    %5881 = vmatprep.subr.bf16.mxu0 %v5772
    %5882 = vmatpush1.bf16.msra.mxu0 %v5771
    %5883 = vmatprep.subr.bf16.mxu0 %v5780
    %5884 = vmatpush1.bf16.msra.mxu0 %v5779
    %5885 = vmatprep.subr.bf16.mxu0 %v5788
    %5886 = vmatpush1.bf16.msra.mxu0 %v5787
    %5887 = vmatprep.subr.bf16.mxu0 %v5796
    %5888 = vmatpush1.bf16.msra.mxu0 %v5795
    %5889 = vmatprep.subr.bf16.mxu0 %v5804
    %5890 = vmatpush1.bf16.msra.mxu0 %v5803
    %5891 = vmatprep.subr.bf16.mxu0 0
    %5892 = vmatpush1.bf16.msra.mxu0 0
    %5893 = vmatprep.subr.bf16.mxu0 0
    %5894 = vmatpush1.bf16.msra.mxu0 0
    %5895 = vmatprep.subr.bf16.mxu0 0
    %5896 = vmatpush1.bf16.msra.mxu0 0
    %5897 = vmatprep.subr.bf16.mxu0 0
    %5898 = vmatpush1.bf16.msra.mxu0 0
    %5899 = vmatprep.subr.bf16.mxu0 0
    %5900 = vmatpush1.bf16.msra.mxu0 0
    %5901 = vmatprep.subr.bf16.mxu0 0
    %5902 = vmatpush1.bf16.msra.mxu0 0
    %5903 = vmatprep.subr.bf16.mxu0 0
    %5904 = vmatpush1.bf16.msra.mxu0 0
    %5905 = vmatprep.subr.bf16.mxu0 0
    %5906 = vmatpush1.bf16.msra.mxu0 0
    %5907 = vmatprep.mubr.bf16.mxu0 0
    %5908 = vmatmul.mubr.bf16.gmra.mrb[0].mxu0 %v1000
    %v5909 = vpop.f32.mrb[0].mxu0
    %v5910 = vadd.f32 %v5518, %v5909
    %v5911 = vpop.f32.mrb[0].mxu0
    %v5912 = vadd.f32 %v5522, %v5911
    %v5913 = vpop.f32.mrb[0].mxu0
    %v5914 = vadd.f32 %v5518, %v5913
    %v5915 = vpop.f32.mrb[0].mxu0
    %v5916 = vadd.f32 %v5522, %v5915
    %5917 = vmatprep.mubr.bf16.mxu0 0
    %5918 = vmatmul.mubr.bf16.gmra.mrb[0].mxu0 %v1001
    %v5919 = vpop.f32.mrb[0].mxu0
    %v5920 = vadd.f32 %v5518, %v5919
    %v5921 = vpop.f32.mrb[0].mxu0
    %v5922 = vadd.f32 %v5522, %v5921
    %v5923 = vpop.f32.mrb[0].mxu0
    %v5924 = vadd.f32 %v5518, %v5923
    %v5925 = vpop.f32.mrb[0].mxu0
    %v5926 = vadd.f32 %v5522, %v5925
    %5927 = vmatprep.mubr.bf16.mxu0 0
    %5928 = vmatmul.mubr.bf16.gmra.mrb[0].mxu0 %v1002
    %v5929 = vpop.f32.mrb[0].mxu0
    %v5930 = vadd.f32 %v5518, %v5929
    %v5931 = vpop.f32.mrb[0].mxu0
    %v5932 = vadd.f32 %v5522, %v5931
    %v5933 = vpop.f32.mrb[0].mxu0
    %v5934 = vadd.f32 %v5518, %v5933
    %v5935 = vpop.f32.mrb[0].mxu0
    %v5936 = vadd.f32 %v5522, %v5935
    %5937 = vmatprep.mubr.bf16.mxu0 0
    %5938 = vmatmul.mubr.bf16.gmra.mrb[0].mxu0 %v1003
    %v5939 = vpop.f32.mrb[0].mxu0
    %v5940 = vadd.f32 %v5518, %v5939
    %v5941 = vpop.f32.mrb[0].mxu0
    %v5942 = vadd.f32 %v5522, %v5941
    %v5943 = vpop.f32.mrb[0].mxu0
    %v5944 = vadd.f32 %v5518, %v5943
    %v5945 = vpop.f32.mrb[0].mxu0
    %v5946 = vadd.f32 %v5522, %v5945
    %5947 = vmatprep.mubr.bf16.mxu0 0
    %5948 = vmatmul.mubr.bf16.gmra.mrb[0].mxu0 %v1004
    %v5949 = vpop.f32.mrb[0].mxu0
    %v5950 = vadd.f32 %v5518, %v5949
    %v5951 = vpop.f32.mrb[0].mxu0
    %v5952 = vadd.f32 %v5522, %v5951
    %v5953 = vpop.f32.mrb[0].mxu0
    %v5954 = vadd.f32 %v5518, %v5953
    %v5955 = vpop.f32.mrb[0].mxu0
    %v5956 = vadd.f32 %v5522, %v5955
    %5957 = vmatprep.mubr.bf16.mxu0 0
    %5958 = vmatmul.mubr.bf16.gmra.mrb[0].mxu0 %v1005
    %v5959 = vpop.f32.mrb[0].mxu0
    %v5960 = vadd.f32 %v5518, %v5959
    %v5961 = vpop.f32.mrb[0].mxu0
    %v5962 = vadd.f32 %v5522, %v5961
    %v5963 = vpop.f32.mrb[0].mxu0
    %v5964 = vadd.f32 %v5518, %v5963
    %v5965 = vpop.f32.mrb[0].mxu0
    %v5966 = vadd.f32 %v5522, %v5965
    %5967 = vmatprep.mubr.bf16.mxu0 0
    %5968 = vmatmul.mubr.bf16.gmra.mrb[0].mxu0 %v1006
    %v5969 = vpop.f32.mrb[0].mxu0
    %v5970 = vadd.f32 %v5518, %v5969
    %v5971 = vpop.f32.mrb[0].mxu0
    %v5972 = vadd.f32 %v5522, %v5971
    %v5973 = vpop.f32.mrb[0].mxu0
    %v5974 = vadd.f32 %v5518, %v5973
    %v5975 = vpop.f32.mrb[0].mxu0
    %v5976 = vadd.f32 %v5522, %v5975
    %5977 = vmatprep.mubr.bf16.mxu0 0
    %5978 = vmatmul.mubr.bf16.gmra.mrb[0].mxu0 %v1007
    %v5979 = vpop.f32.mrb[0].mxu0
    %v5980 = vadd.f32 %v5518, %v5979
    %v5981 = vpop.f32.mrb[0].mxu0
    %v5982 = vadd.f32 %v5522, %v5981
    %v5983 = vpop.f32.mrb[0].mxu0
    %v5984 = vadd.f32 %v5518, %v5983
    %v5985 = vpop.f32.mrb[0].mxu0
    %v5986 = vadd.f32 %v5522, %v5985
    %5987 = vmatprep.mubr.bf16.mxu0 0
    %5988 = vmatmul.mubr.bf16.gmra.mrb[0].mxu0 %v1008
    %v5989 = vpop.f32.mrb[0].mxu0
    %v5990 = vadd.f32 %v5518, %v5989
    %v5991 = vpop.f32.mrb[0].mxu0
    %v5992 = vadd.f32 %v5522, %v5991
    %v5993 = vpop.f32.mrb[0].mxu0
    %v5994 = vadd.f32 %v5518, %v5993
    %v5995 = vpop.f32.mrb[0].mxu0
    %v5996 = vadd.f32 %v5522, %v5995
    %5997 = vmatprep.mubr.bf16.mxu0 0
    %5998 = vmatmul.mubr.bf16.gmra.mrb[0].mxu0 %v1009
    %v5999 = vpop.f32.mrb[0].mxu0
    %v6000 = vadd.f32 %v5518, %v5999
    %v6001 = vpop.f32.mrb[0].mxu0
    %v6002 = vadd.f32 %v5522, %v6001
    %v6003 = vpop.f32.mrb[0].mxu0
    %v6004 = vadd.f32 %v5518, %v6003
    %v6005 = vpop.f32.mrb[0].mxu0
    %v6006 = vadd.f32 %v5522, %v6005
    %6007 = vmatprep.mubr.bf16.mxu0 0
    %6008 = vmatmul.mubr.bf16.gmra.mrb[0].mxu0 %v1010
    %v6009 = vpop.f32.mrb[0].mxu0
    %v6010 = vadd.f32 %v5518, %v6009
    %v6011 = vpop.f32.mrb[0].mxu0
    %v6012 = vadd.f32 %v5522, %v6011
    %v6013 = vpop.f32.mrb[0].mxu0
    %v6014 = vadd.f32 %v5518, %v6013
    %v6015 = vpop.f32.mrb[0].mxu0
    %v6016 = vadd.f32 %v5522, %v6015
    %6017 = vmatprep.mubr.bf16.mxu0 0
    %6018 = vmatmul.mubr.bf16.gmra.mrb[0].mxu0 %v1011
    %v6019 = vpop.f32.mrb[0].mxu0
    %v6020 = vadd.f32 %v5518, %v6019
    %v6021 = vpop.f32.mrb[0].mxu0
    %v6022 = vadd.f32 %v5522, %v6021
    %v6023 = vpop.f32.mrb[0].mxu0
    %v6024 = vadd.f32 %v5518, %v6023
    %v6025 = vpop.f32.mrb[0].mxu0
    %v6026 = vadd.f32 %v5522, %v6025
    %6027 = vmatprep.mubr.bf16.mxu0 0
    %6028 = vmatmul.mubr.bf16.gmra.mrb[0].mxu0 %v1012
    %v6029 = vpop.f32.mrb[0].mxu0
    %v6030 = vadd.f32 %v5518, %v6029
    %v6031 = vpop.f32.mrb[0].mxu0
    %v6032 = vadd.f32 %v5522, %v6031
    %v6033 = vpop.f32.mrb[0].mxu0
    %v6034 = vadd.f32 %v5518, %v6033
    %v6035 = vpop.f32.mrb[0].mxu0
    %v6036 = vadd.f32 %v5522, %v6035
    %6037 = vmatprep.mubr.bf16.mxu0 0
    %6038 = vmatmul.mubr.bf16.gmra.mrb[0].mxu0 %v1013
    %v6039 = vpop.f32.mrb[0].mxu0
    %v6040 = vadd.f32 %v5518, %v6039
    %v6041 = vpop.f32.mrb[0].mxu0
    %v6042 = vadd.f32 %v5522, %v6041
    %v6043 = vpop.f32.mrb[0].mxu0
    %v6044 = vadd.f32 %v5518, %v6043
    %v6045 = vpop.f32.mrb[0].mxu0
    %v6046 = vadd.f32 %v5522, %v6045
    %6047 = vmatprep.mubr.bf16.mxu0 0
    %6048 = vmatmul.mubr.bf16.gmra.mrb[0].mxu0 %v1014
    %v6049 = vpop.f32.mrb[0].mxu0
    %v6050 = vadd.f32 %v5518, %v6049
    %v6051 = vpop.f32.mrb[0].mxu0
    %v6052 = vadd.f32 %v5522, %v6051
    %v6053 = vpop.f32.mrb[0].mxu0
    %v6054 = vadd.f32 %v5518, %v6053
    %v6055 = vpop.f32.mrb[0].mxu0
    %v6056 = vadd.f32 %v5522, %v6055
    %6057 = vmatprep.mubr.bf16.mxu0 0
    %6058 = vmatmul.mubr.bf16.gmra.mrb[0].mxu0 %v1015
    %v6059 = vpop.f32.mrb[0].mxu0
    %v6060 = vadd.f32 %v5518, %v6059
    %v6061 = vpop.f32.mrb[0].mxu0
    %v6062 = vadd.f32 %v5522, %v6061
    %v6063 = vpop.f32.mrb[0].mxu0
    %v6064 = vadd.f32 %v5518, %v6063
    %v6065 = vpop.f32.mrb[0].mxu0
    %v6066 = vadd.f32 %v5522, %v6065
    %6067 = vdwg.mxu0
    %6068 = vmatprep.subr.bf16.mxu0 %v5750
    %6069 = vmatpush1.bf16.msra.mxu0 %v5749
    %6070 = vmatprep.subr.bf16.mxu0 %v5758
    %6071 = vmatpush1.bf16.msra.mxu0 %v5757
    %6072 = vmatprep.subr.bf16.mxu0 %v5766
    %6073 = vmatpush1.bf16.msra.mxu0 %v5765
    %6074 = vmatprep.subr.bf16.mxu0 %v5774
    %6075 = vmatpush1.bf16.msra.mxu0 %v5773
    %6076 = vmatprep.subr.bf16.mxu0 %v5782
    %6077 = vmatpush1.bf16.msra.mxu0 %v5781
    %6078 = vmatprep.subr.bf16.mxu0 %v5790
    %6079 = vmatpush1.bf16.msra.mxu0 %v5789
    %6080 = vmatprep.subr.bf16.mxu0 %v5798
    %6081 = vmatpush1.bf16.msra.mxu0 %v5797
    %6082 = vmatprep.subr.bf16.mxu0 %v5806
    %6083 = vmatpush1.bf16.msra.mxu0 %v5805
    %6084 = vmatprep.subr.bf16.mxu0 0
    %6085 = vmatpush1.bf16.msra.mxu0 0
    %6086 = vmatprep.subr.bf16.mxu0 0
    %6087 = vmatpush1.bf16.msra.mxu0 0
    %6088 = vmatprep.subr.bf16.mxu0 0
    %6089 = vmatpush1.bf16.msra.mxu0 0
    %6090 = vmatprep.subr.bf16.mxu0 0
    %6091 = vmatpush1.bf16.msra.mxu0 0
    %6092 = vmatprep.subr.bf16.mxu0 0
    %6093 = vmatpush1.bf16.msra.mxu0 0
    %6094 = vmatprep.subr.bf16.mxu0 0
    %6095 = vmatpush1.bf16.msra.mxu0 0
    %6096 = vmatprep.subr.bf16.mxu0 0
    %6097 = vmatpush1.bf16.msra.mxu0 0
    %6098 = vmatprep.subr.bf16.mxu0 0
    %6099 = vmatpush1.bf16.msra.mxu0 0
    %6100 = vmatprep.mubr.bf16.mxu0 0
    %6101 = vmatmul.mubr.bf16.gmra.mrb[0].mxu0 %v1000
    %v6102 = vpop.f32.mrb[0].mxu0
    %v6103 = vadd.f32 %v5526, %v6102
    %v6104 = vpop.f32.mrb[0].mxu0
    %v6105 = vadd.f32 %v5530, %v6104
    %v6106 = vpop.f32.mrb[0].mxu0
    %v6107 = vadd.f32 %v5526, %v6106
    %v6108 = vpop.f32.mrb[0].mxu0
    %v6109 = vadd.f32 %v5530, %v6108
    %6110 = vmatprep.mubr.bf16.mxu0 0
    %6111 = vmatmul.mubr.bf16.gmra.mrb[0].mxu0 %v1001
    %v6112 = vpop.f32.mrb[0].mxu0
    %v6113 = vadd.f32 %v5526, %v6112
    %v6114 = vpop.f32.mrb[0].mxu0
    %v6115 = vadd.f32 %v5530, %v6114
    %v6116 = vpop.f32.mrb[0].mxu0
    %v6117 = vadd.f32 %v5526, %v6116
    %v6118 = vpop.f32.mrb[0].mxu0
    %v6119 = vadd.f32 %v5530, %v6118
    %6120 = vmatprep.mubr.bf16.mxu0 0
    %6121 = vmatmul.mubr.bf16.gmra.mrb[0].mxu0 %v1002
    %v6122 = vpop.f32.mrb[0].mxu0
    %v6123 = vadd.f32 %v5526, %v6122
    %v6124 = vpop.f32.mrb[0].mxu0
    %v6125 = vadd.f32 %v5530, %v6124
    %v6126 = vpop.f32.mrb[0].mxu0
    %v6127 = vadd.f32 %v5526, %v6126
    %v6128 = vpop.f32.mrb[0].mxu0
    %v6129 = vadd.f32 %v5530, %v6128
    %6130 = vmatprep.mubr.bf16.mxu0 0
    %6131 = vmatmul.mubr.bf16.gmra.mrb[0].mxu0 %v1003
    %v6132 = vpop.f32.mrb[0].mxu0
    %v6133 = vadd.f32 %v5526, %v6132
    %v6134 = vpop.f32.mrb[0].mxu0
    %v6135 = vadd.f32 %v5530, %v6134
    %v6136 = vpop.f32.mrb[0].mxu0
    %v6137 = vadd.f32 %v5526, %v6136
    %v6138 = vpop.f32.mrb[0].mxu0
    %v6139 = vadd.f32 %v5530, %v6138
    %6140 = vmatprep.mubr.bf16.mxu0 0
    %6141 = vmatmul.mubr.bf16.gmra.mrb[0].mxu0 %v1004
    %v6142 = vpop.f32.mrb[0].mxu0
    %v6143 = vadd.f32 %v5526, %v6142
    %v6144 = vpop.f32.mrb[0].mxu0
    %v6145 = vadd.f32 %v5530, %v6144
    %v6146 = vpop.f32.mrb[0].mxu0
    %v6147 = vadd.f32 %v5526, %v6146
    %v6148 = vpop.f32.mrb[0].mxu0
    %v6149 = vadd.f32 %v5530, %v6148
    %6150 = vmatprep.mubr.bf16.mxu0 0
    %6151 = vmatmul.mubr.bf16.gmra.mrb[0].mxu0 %v1005
    %v6152 = vpop.f32.mrb[0].mxu0
    %v6153 = vadd.f32 %v5526, %v6152
    %v6154 = vpop.f32.mrb[0].mxu0
    %v6155 = vadd.f32 %v5530, %v6154
    %v6156 = vpop.f32.mrb[0].mxu0
    %v6157 = vadd.f32 %v5526, %v6156
    %v6158 = vpop.f32.mrb[0].mxu0
    %v6159 = vadd.f32 %v5530, %v6158
    %6160 = vmatprep.mubr.bf16.mxu0 0
    %6161 = vmatmul.mubr.bf16.gmra.mrb[0].mxu0 %v1006
    %v6162 = vpop.f32.mrb[0].mxu0
    %v6163 = vadd.f32 %v5526, %v6162
    %v6164 = vpop.f32.mrb[0].mxu0
    %v6165 = vadd.f32 %v5530, %v6164
    %v6166 = vpop.f32.mrb[0].mxu0
    %v6167 = vadd.f32 %v5526, %v6166
    %v6168 = vpop.f32.mrb[0].mxu0
    %v6169 = vadd.f32 %v5530, %v6168
    %6170 = vmatprep.mubr.bf16.mxu0 0
    %6171 = vmatmul.mubr.bf16.gmra.mrb[0].mxu0 %v1007
    %v6172 = vpop.f32.mrb[0].mxu0
    %v6173 = vadd.f32 %v5526, %v6172
    %v6174 = vpop.f32.mrb[0].mxu0
    %v6175 = vadd.f32 %v5530, %v6174
    %v6176 = vpop.f32.mrb[0].mxu0
    %v6177 = vadd.f32 %v5526, %v6176
    %v6178 = vpop.f32.mrb[0].mxu0
    %v6179 = vadd.f32 %v5530, %v6178
    %6180 = vmatprep.mubr.bf16.mxu0 0
    %6181 = vmatmul.mubr.bf16.gmra.mrb[0].mxu0 %v1008
    %v6182 = vpop.f32.mrb[0].mxu0
    %v6183 = vadd.f32 %v5526, %v6182
    %v6184 = vpop.f32.mrb[0].mxu0
    %v6185 = vadd.f32 %v5530, %v6184
    %v6186 = vpop.f32.mrb[0].mxu0
    %v6187 = vadd.f32 %v5526, %v6186
    %v6188 = vpop.f32.mrb[0].mxu0
    %v6189 = vadd.f32 %v5530, %v6188
    %6190 = vmatprep.mubr.bf16.mxu0 0
    %6191 = vmatmul.mubr.bf16.gmra.mrb[0].mxu0 %v1009
    %v6192 = vpop.f32.mrb[0].mxu0
    %v6193 = vadd.f32 %v5526, %v6192
    %v6194 = vpop.f32.mrb[0].mxu0
    %v6195 = vadd.f32 %v5530, %v6194
    %v6196 = vpop.f32.mrb[0].mxu0
    %v6197 = vadd.f32 %v5526, %v6196
    %v6198 = vpop.f32.mrb[0].mxu0
    %v6199 = vadd.f32 %v5530, %v6198
    %6200 = vmatprep.mubr.bf16.mxu0 0
    %6201 = vmatmul.mubr.bf16.gmra.mrb[0].mxu0 %v1010
    %v6202 = vpop.f32.mrb[0].mxu0
    %v6203 = vadd.f32 %v5526, %v6202
    %v6204 = vpop.f32.mrb[0].mxu0
    %v6205 = vadd.f32 %v5530, %v6204
    %v6206 = vpop.f32.mrb[0].mxu0
    %v6207 = vadd.f32 %v5526, %v6206
    %v6208 = vpop.f32.mrb[0].mxu0
    %v6209 = vadd.f32 %v5530, %v6208
    %6210 = vmatprep.mubr.bf16.mxu0 0
    %6211 = vmatmul.mubr.bf16.gmra.mrb[0].mxu0 %v1011
    %v6212 = vpop.f32.mrb[0].mxu0
    %v6213 = vadd.f32 %v5526, %v6212
    %v6214 = vpop.f32.mrb[0].mxu0
    %v6215 = vadd.f32 %v5530, %v6214
    %v6216 = vpop.f32.mrb[0].mxu0
    %v6217 = vadd.f32 %v5526, %v6216
    %v6218 = vpop.f32.mrb[0].mxu0
    %v6219 = vadd.f32 %v5530, %v6218
    %6220 = vmatprep.mubr.bf16.mxu0 0
    %6221 = vmatmul.mubr.bf16.gmra.mrb[0].mxu0 %v1012
    %v6222 = vpop.f32.mrb[0].mxu0
    %v6223 = vadd.f32 %v5526, %v6222
    %v6224 = vpop.f32.mrb[0].mxu0
    %v6225 = vadd.f32 %v5530, %v6224
    %v6226 = vpop.f32.mrb[0].mxu0
    %v6227 = vadd.f32 %v5526, %v6226
    %v6228 = vpop.f32.mrb[0].mxu0
    %v6229 = vadd.f32 %v5530, %v6228
    %6230 = vmatprep.mubr.bf16.mxu0 0
    %6231 = vmatmul.mubr.bf16.gmra.mrb[0].mxu0 %v1013
    %v6232 = vpop.f32.mrb[0].mxu0
    %v6233 = vadd.f32 %v5526, %v6232
    %v6234 = vpop.f32.mrb[0].mxu0
    %v6235 = vadd.f32 %v5530, %v6234
    %v6236 = vpop.f32.mrb[0].mxu0
    %v6237 = vadd.f32 %v5526, %v6236
    %v6238 = vpop.f32.mrb[0].mxu0
    %v6239 = vadd.f32 %v5530, %v6238
    %6240 = vmatprep.mubr.bf16.mxu0 0
    %6241 = vmatmul.mubr.bf16.gmra.mrb[0].mxu0 %v1014
    %v6242 = vpop.f32.mrb[0].mxu0
    %v6243 = vadd.f32 %v5526, %v6242
    %v6244 = vpop.f32.mrb[0].mxu0
    %v6245 = vadd.f32 %v5530, %v6244
    %v6246 = vpop.f32.mrb[0].mxu0
    %v6247 = vadd.f32 %v5526, %v6246
    %v6248 = vpop.f32.mrb[0].mxu0
    %v6249 = vadd.f32 %v5530, %v6248
    %6250 = vmatprep.mubr.bf16.mxu0 0
    %6251 = vmatmul.mubr.bf16.gmra.mrb[0].mxu0 %v1015
    %v6252 = vpop.f32.mrb[0].mxu0
    %v6253 = vadd.f32 %v5526, %v6252
    %v6254 = vpop.f32.mrb[0].mxu0
    %v6255 = vadd.f32 %v5530, %v6254
    %v6256 = vpop.f32.mrb[0].mxu0
    %v6257 = vadd.f32 %v5526, %v6256
    %v6258 = vpop.f32.mrb[0].mxu0
    %v6259 = vadd.f32 %v5530, %v6258
    %6260 = vdwg.mxu0
    %6261 = vmatprep.subr.bf16.mxu0 %v5752
    %6262 = vmatpush1.bf16.msra.mxu0 %v5751
    %6263 = vmatprep.subr.bf16.mxu0 %v5760
    %6264 = vmatpush1.bf16.msra.mxu0 %v5759
    %6265 = vmatprep.subr.bf16.mxu0 %v5768
    %6266 = vmatpush1.bf16.msra.mxu0 %v5767
    %6267 = vmatprep.subr.bf16.mxu0 %v5776
    %6268 = vmatpush1.bf16.msra.mxu0 %v5775
    %6269 = vmatprep.subr.bf16.mxu0 %v5784
    %6270 = vmatpush1.bf16.msra.mxu0 %v5783
    %6271 = vmatprep.subr.bf16.mxu0 %v5792
    %6272 = vmatpush1.bf16.msra.mxu0 %v5791
    %6273 = vmatprep.subr.bf16.mxu0 %v5800
    %6274 = vmatpush1.bf16.msra.mxu0 %v5799
    %6275 = vmatprep.subr.bf16.mxu0 %v5808
    %6276 = vmatpush1.bf16.msra.mxu0 %v5807
    %6277 = vmatprep.subr.bf16.mxu0 0
    %6278 = vmatpush1.bf16.msra.mxu0 0
    %6279 = vmatprep.subr.bf16.mxu0 0
    %6280 = vmatpush1.bf16.msra.mxu0 0
    %6281 = vmatprep.subr.bf16.mxu0 0
    %6282 = vmatpush1.bf16.msra.mxu0 0
    %6283 = vmatprep.subr.bf16.mxu0 0
    %6284 = vmatpush1.bf16.msra.mxu0 0
    %6285 = vmatprep.subr.bf16.mxu0 0
    %6286 = vmatpush1.bf16.msra.mxu0 0
    %6287 = vmatprep.subr.bf16.mxu0 0
    %6288 = vmatpush1.bf16.msra.mxu0 0
    %6289 = vmatprep.subr.bf16.mxu0 0
    %6290 = vmatpush1.bf16.msra.mxu0 0
    %6291 = vmatprep.subr.bf16.mxu0 0
    %6292 = vmatpush1.bf16.msra.mxu0 0
    %6293 = vmatprep.mubr.bf16.mxu0 0
    %6294 = vmatmul.mubr.bf16.gmra.mrb[0].mxu0 %v1000
    %v6295 = vpop.f32.mrb[0].mxu0
    %v6296 = vadd.f32 %v5534, %v6295
    %v6297 = vpop.f32.mrb[0].mxu0
    %v6298 = vadd.f32 %v5538, %v6297
    %v6299 = vpop.f32.mrb[0].mxu0
    %v6300 = vadd.f32 %v5534, %v6299
    %v6301 = vpop.f32.mrb[0].mxu0
    %v6302 = vadd.f32 %v5538, %v6301
    %6303 = vmatprep.mubr.bf16.mxu0 0
    %6304 = vmatmul.mubr.bf16.gmra.mrb[0].mxu0 %v1001
    %v6305 = vpop.f32.mrb[0].mxu0
    %v6306 = vadd.f32 %v5534, %v6305
    %v6307 = vpop.f32.mrb[0].mxu0
    %v6308 = vadd.f32 %v5538, %v6307
    %v6309 = vpop.f32.mrb[0].mxu0
    %v6310 = vadd.f32 %v5534, %v6309
    %v6311 = vpop.f32.mrb[0].mxu0
    %v6312 = vadd.f32 %v5538, %v6311
    %6313 = vmatprep.mubr.bf16.mxu0 0
    %6314 = vmatmul.mubr.bf16.gmra.mrb[0].mxu0 %v1002
    %v6315 = vpop.f32.mrb[0].mxu0
    %v6316 = vadd.f32 %v5534, %v6315
    %v6317 = vpop.f32.mrb[0].mxu0
    %v6318 = vadd.f32 %v5538, %v6317
    %v6319 = vpop.f32.mrb[0].mxu0
    %v6320 = vadd.f32 %v5534, %v6319
    %v6321 = vpop.f32.mrb[0].mxu0
    %v6322 = vadd.f32 %v5538, %v6321
    %6323 = vmatprep.mubr.bf16.mxu0 0
    %6324 = vmatmul.mubr.bf16.gmra.mrb[0].mxu0 %v1003
    %v6325 = vpop.f32.mrb[0].mxu0
    %v6326 = vadd.f32 %v5534, %v6325
    %v6327 = vpop.f32.mrb[0].mxu0
    %v6328 = vadd.f32 %v5538, %v6327
    %v6329 = vpop.f32.mrb[0].mxu0
    %v6330 = vadd.f32 %v5534, %v6329
    %v6331 = vpop.f32.mrb[0].mxu0
    %v6332 = vadd.f32 %v5538, %v6331
    %6333 = vmatprep.mubr.bf16.mxu0 0
    %6334 = vmatmul.mubr.bf16.gmra.mrb[0].mxu0 %v1004
    %v6335 = vpop.f32.mrb[0].mxu0
    %v6336 = vadd.f32 %v5534, %v6335
    %v6337 = vpop.f32.mrb[0].mxu0
    %v6338 = vadd.f32 %v5538, %v6337
    %v6339 = vpop.f32.mrb[0].mxu0
    %v6340 = vadd.f32 %v5534, %v6339
    %v6341 = vpop.f32.mrb[0].mxu0
    %v6342 = vadd.f32 %v5538, %v6341
    %6343 = vmatprep.mubr.bf16.mxu0 0
    %6344 = vmatmul.mubr.bf16.gmra.mrb[0].mxu0 %v1005
    %v6345 = vpop.f32.mrb[0].mxu0
    %v6346 = vadd.f32 %v5534, %v6345
    %v6347 = vpop.f32.mrb[0].mxu0
    %v6348 = vadd.f32 %v5538, %v6347
    %v6349 = vpop.f32.mrb[0].mxu0
    %v6350 = vadd.f32 %v5534, %v6349
    %v6351 = vpop.f32.mrb[0].mxu0
    %v6352 = vadd.f32 %v5538, %v6351
    %6353 = vmatprep.mubr.bf16.mxu0 0
    %6354 = vmatmul.mubr.bf16.gmra.mrb[0].mxu0 %v1006
    %v6355 = vpop.f32.mrb[0].mxu0
    %v6356 = vadd.f32 %v5534, %v6355
    %v6357 = vpop.f32.mrb[0].mxu0
    %v6358 = vadd.f32 %v5538, %v6357
    %v6359 = vpop.f32.mrb[0].mxu0
    %v6360 = vadd.f32 %v5534, %v6359
    %v6361 = vpop.f32.mrb[0].mxu0
    %v6362 = vadd.f32 %v5538, %v6361
    %6363 = vmatprep.mubr.bf16.mxu0 0
    %6364 = vmatmul.mubr.bf16.gmra.mrb[0].mxu0 %v1007
    %v6365 = vpop.f32.mrb[0].mxu0
    %v6366 = vadd.f32 %v5534, %v6365
    %v6367 = vpop.f32.mrb[0].mxu0
    %v6368 = vadd.f32 %v5538, %v6367
    %v6369 = vpop.f32.mrb[0].mxu0
    %v6370 = vadd.f32 %v5534, %v6369
    %v6371 = vpop.f32.mrb[0].mxu0
    %v6372 = vadd.f32 %v5538, %v6371
    %6373 = vmatprep.mubr.bf16.mxu0 0
    %6374 = vmatmul.mubr.bf16.gmra.mrb[0].mxu0 %v1008
    %v6375 = vpop.f32.mrb[0].mxu0
    %v6376 = vadd.f32 %v5534, %v6375
    %v6377 = vpop.f32.mrb[0].mxu0
    %v6378 = vadd.f32 %v5538, %v6377
    %v6379 = vpop.f32.mrb[0].mxu0
    %v6380 = vadd.f32 %v5534, %v6379
    %v6381 = vpop.f32.mrb[0].mxu0
    %v6382 = vadd.f32 %v5538, %v6381
    %6383 = vmatprep.mubr.bf16.mxu0 0
    %6384 = vmatmul.mubr.bf16.gmra.mrb[0].mxu0 %v1009
    %v6385 = vpop.f32.mrb[0].mxu0
    %v6386 = vadd.f32 %v5534, %v6385
    %v6387 = vpop.f32.mrb[0].mxu0
    %v6388 = vadd.f32 %v5538, %v6387
    %v6389 = vpop.f32.mrb[0].mxu0
    %v6390 = vadd.f32 %v5534, %v6389
    %v6391 = vpop.f32.mrb[0].mxu0
    %v6392 = vadd.f32 %v5538, %v6391
    %6393 = vmatprep.mubr.bf16.mxu0 0
    %6394 = vmatmul.mubr.bf16.gmra.mrb[0].mxu0 %v1010
    %v6395 = vpop.f32.mrb[0].mxu0
    %v6396 = vadd.f32 %v5534, %v6395
    %v6397 = vpop.f32.mrb[0].mxu0
    %v6398 = vadd.f32 %v5538, %v6397
    %v6399 = vpop.f32.mrb[0].mxu0
    %v6400 = vadd.f32 %v5534, %v6399
    %v6401 = vpop.f32.mrb[0].mxu0
    %v6402 = vadd.f32 %v5538, %v6401
    %6403 = vmatprep.mubr.bf16.mxu0 0
    %6404 = vmatmul.mubr.bf16.gmra.mrb[0].mxu0 %v1011
    %v6405 = vpop.f32.mrb[0].mxu0
    %v6406 = vadd.f32 %v5534, %v6405
    %v6407 = vpop.f32.mrb[0].mxu0
    %v6408 = vadd.f32 %v5538, %v6407
    %v6409 = vpop.f32.mrb[0].mxu0
    %v6410 = vadd.f32 %v5534, %v6409
    %v6411 = vpop.f32.mrb[0].mxu0
    %v6412 = vadd.f32 %v5538, %v6411
    %6413 = vmatprep.mubr.bf16.mxu0 0
    %6414 = vmatmul.mubr.bf16.gmra.mrb[0].mxu0 %v1012
    %v6415 = vpop.f32.mrb[0].mxu0
    %v6416 = vadd.f32 %v5534, %v6415
    %v6417 = vpop.f32.mrb[0].mxu0
    %v6418 = vadd.f32 %v5538, %v6417
    %v6419 = vpop.f32.mrb[0].mxu0
    %v6420 = vadd.f32 %v5534, %v6419
    %v6421 = vpop.f32.mrb[0].mxu0
    %v6422 = vadd.f32 %v5538, %v6421
    %6423 = vmatprep.mubr.bf16.mxu0 0
    %6424 = vmatmul.mubr.bf16.gmra.mrb[0].mxu0 %v1013
    %v6425 = vpop.f32.mrb[0].mxu0
    %v6426 = vadd.f32 %v5534, %v6425
    %v6427 = vpop.f32.mrb[0].mxu0
    %v6428 = vadd.f32 %v5538, %v6427
    %v6429 = vpop.f32.mrb[0].mxu0
    %v6430 = vadd.f32 %v5534, %v6429
    %v6431 = vpop.f32.mrb[0].mxu0
    %v6432 = vadd.f32 %v5538, %v6431
    %6433 = vmatprep.mubr.bf16.mxu0 0
    %6434 = vmatmul.mubr.bf16.gmra.mrb[0].mxu0 %v1014
    %v6435 = vpop.f32.mrb[0].mxu0
    %v6436 = vadd.f32 %v5534, %v6435
    %v6437 = vpop.f32.mrb[0].mxu0
    %v6438 = vadd.f32 %v5538, %v6437
    %v6439 = vpop.f32.mrb[0].mxu0
    %v6440 = vadd.f32 %v5534, %v6439
    %v6441 = vpop.f32.mrb[0].mxu0
    %v6442 = vadd.f32 %v5538, %v6441
    %6443 = vmatprep.mubr.bf16.mxu0 0
    %6444 = vmatmul.mubr.bf16.gmra.mrb[0].mxu0 %v1015
    %v6445 = vpop.f32.mrb[0].mxu0
    %v6446 = vadd.f32 %v5534, %v6445
    %v6447 = vpop.f32.mrb[0].mxu0
    %v6448 = vadd.f32 %v5538, %v6447
    %v6449 = vpop.f32.mrb[0].mxu0
    %v6450 = vadd.f32 %v5534, %v6449
    %v6451 = vpop.f32.mrb[0].mxu0
    %v6452 = vadd.f32 %v5538, %v6451
    %6453 = vdwg.mxu0
    %6454 = vmatprep.subr.bf16.mxu0 %v5754
    %6455 = vmatpush1.bf16.msra.mxu0 %v5753
    %6456 = vmatprep.subr.bf16.mxu0 %v5762
    %6457 = vmatpush1.bf16.msra.mxu0 %v5761
    %6458 = vmatprep.subr.bf16.mxu0 %v5770
    %6459 = vmatpush1.bf16.msra.mxu0 %v5769
    %6460 = vmatprep.subr.bf16.mxu0 %v5778
    %6461 = vmatpush1.bf16.msra.mxu0 %v5777
    %6462 = vmatprep.subr.bf16.mxu0 %v5786
    %6463 = vmatpush1.bf16.msra.mxu0 %v5785
    %6464 = vmatprep.subr.bf16.mxu0 %v5794
    %6465 = vmatpush1.bf16.msra.mxu0 %v5793
    %6466 = vmatprep.subr.bf16.mxu0 %v5802
    %6467 = vmatpush1.bf16.msra.mxu0 %v5801
    %6468 = vmatprep.subr.bf16.mxu0 %v5810
    %6469 = vmatpush1.bf16.msra.mxu0 %v5809
    %6470 = vmatprep.subr.bf16.mxu0 0
    %6471 = vmatpush1.bf16.msra.mxu0 0
    %6472 = vmatprep.subr.bf16.mxu0 0
    %6473 = vmatpush1.bf16.msra.mxu0 0
    %6474 = vmatprep.subr.bf16.mxu0 0
    %6475 = vmatpush1.bf16.msra.mxu0 0
    %6476 = vmatprep.subr.bf16.mxu0 0
    %6477 = vmatpush1.bf16.msra.mxu0 0
    %6478 = vmatprep.subr.bf16.mxu0 0
    %6479 = vmatpush1.bf16.msra.mxu0 0
    %6480 = vmatprep.subr.bf16.mxu0 0
    %6481 = vmatpush1.bf16.msra.mxu0 0
    %6482 = vmatprep.subr.bf16.mxu0 0
    %6483 = vmatpush1.bf16.msra.mxu0 0
    %6484 = vmatprep.subr.bf16.mxu0 0
    %6485 = vmatpush1.bf16.msra.mxu0 0
    %6486 = vmatprep.mubr.bf16.mxu0 0
    %6487 = vmatmul.mubr.bf16.gmra.mrb[0].mxu0 %v1000
    %v6488 = vpop.f32.mrb[0].mxu0
    %v6489 = vadd.f32 %v5542, %v6488
    %v6490 = vpop.f32.mrb[0].mxu0
    %v6491 = vadd.f32 %v5546, %v6490
    %v6492 = vpop.f32.mrb[0].mxu0
    %v6493 = vadd.f32 %v5542, %v6492
    %v6494 = vpop.f32.mrb[0].mxu0
    %v6495 = vadd.f32 %v5546, %v6494
    %6496 = vmatprep.mubr.bf16.mxu0 0
    %6497 = vmatmul.mubr.bf16.gmra.mrb[0].mxu0 %v1001
    %v6498 = vpop.f32.mrb[0].mxu0
    %v6499 = vadd.f32 %v5542, %v6498
    %v6500 = vpop.f32.mrb[0].mxu0
    %v6501 = vadd.f32 %v5546, %v6500
    %v6502 = vpop.f32.mrb[0].mxu0
    %v6503 = vadd.f32 %v5542, %v6502
    %v6504 = vpop.f32.mrb[0].mxu0
    %v6505 = vadd.f32 %v5546, %v6504
    %6506 = vmatprep.mubr.bf16.mxu0 0
    %6507 = vmatmul.mubr.bf16.gmra.mrb[0].mxu0 %v1002
    %v6508 = vpop.f32.mrb[0].mxu0
    %v6509 = vadd.f32 %v5542, %v6508
    %v6510 = vpop.f32.mrb[0].mxu0
    %v6511 = vadd.f32 %v5546, %v6510
    %v6512 = vpop.f32.mrb[0].mxu0
    %v6513 = vadd.f32 %v5542, %v6512
    %v6514 = vpop.f32.mrb[0].mxu0
    %v6515 = vadd.f32 %v5546, %v6514
    %6516 = vmatprep.mubr.bf16.mxu0 0
    %6517 = vmatmul.mubr.bf16.gmra.mrb[0].mxu0 %v1003
    %v6518 = vpop.f32.mrb[0].mxu0
    %v6519 = vadd.f32 %v5542, %v6518
    %v6520 = vpop.f32.mrb[0].mxu0
    %v6521 = vadd.f32 %v5546, %v6520
    %v6522 = vpop.f32.mrb[0].mxu0
    %v6523 = vadd.f32 %v5542, %v6522
    %v6524 = vpop.f32.mrb[0].mxu0
    %v6525 = vadd.f32 %v5546, %v6524
    %6526 = vmatprep.mubr.bf16.mxu0 0
    %6527 = vmatmul.mubr.bf16.gmra.mrb[0].mxu0 %v1004
    %v6528 = vpop.f32.mrb[0].mxu0
    %v6529 = vadd.f32 %v5542, %v6528
    %v6530 = vpop.f32.mrb[0].mxu0
    %v6531 = vadd.f32 %v5546, %v6530
    %v6532 = vpop.f32.mrb[0].mxu0
    %v6533 = vadd.f32 %v5542, %v6532
    %v6534 = vpop.f32.mrb[0].mxu0
    %v6535 = vadd.f32 %v5546, %v6534
    %6536 = vmatprep.mubr.bf16.mxu0 0
    %6537 = vmatmul.mubr.bf16.gmra.mrb[0].mxu0 %v1005
    %v6538 = vpop.f32.mrb[0].mxu0
    %v6539 = vadd.f32 %v5542, %v6538
    %v6540 = vpop.f32.mrb[0].mxu0
    %v6541 = vadd.f32 %v5546, %v6540
    %v6542 = vpop.f32.mrb[0].mxu0
    %v6543 = vadd.f32 %v5542, %v6542
    %v6544 = vpop.f32.mrb[0].mxu0
    %v6545 = vadd.f32 %v5546, %v6544
    %6546 = vmatprep.mubr.bf16.mxu0 0
    %6547 = vmatmul.mubr.bf16.gmra.mrb[0].mxu0 %v1006
    %v6548 = vpop.f32.mrb[0].mxu0
    %v6549 = vadd.f32 %v5542, %v6548
    %v6550 = vpop.f32.mrb[0].mxu0
    %v6551 = vadd.f32 %v5546, %v6550
    %v6552 = vpop.f32.mrb[0].mxu0
    %v6553 = vadd.f32 %v5542, %v6552
    %v6554 = vpop.f32.mrb[0].mxu0
    %v6555 = vadd.f32 %v5546, %v6554
    %6556 = vmatprep.mubr.bf16.mxu0 0
    %6557 = vmatmul.mubr.bf16.gmra.mrb[0].mxu0 %v1007
    %v6558 = vpop.f32.mrb[0].mxu0
    %v6559 = vadd.f32 %v5542, %v6558
    %v6560 = vpop.f32.mrb[0].mxu0
    %v6561 = vadd.f32 %v5546, %v6560
    %v6562 = vpop.f32.mrb[0].mxu0
    %v6563 = vadd.f32 %v5542, %v6562
    %v6564 = vpop.f32.mrb[0].mxu0
    %v6565 = vadd.f32 %v5546, %v6564
    %6566 = vmatprep.mubr.bf16.mxu0 0
    %6567 = vmatmul.mubr.bf16.gmra.mrb[0].mxu0 %v1008
    %v6568 = vpop.f32.mrb[0].mxu0
    %v6569 = vadd.f32 %v5542, %v6568
    %v6570 = vpop.f32.mrb[0].mxu0
    %v6571 = vadd.f32 %v5546, %v6570
    %v6572 = vpop.f32.mrb[0].mxu0
    %v6573 = vadd.f32 %v5542, %v6572
    %v6574 = vpop.f32.mrb[0].mxu0
    %v6575 = vadd.f32 %v5546, %v6574
    %6576 = vmatprep.mubr.bf16.mxu0 0
    %6577 = vmatmul.mubr.bf16.gmra.mrb[0].mxu0 %v1009
    %v6578 = vpop.f32.mrb[0].mxu0
    %v6579 = vadd.f32 %v5542, %v6578
    %v6580 = vpop.f32.mrb[0].mxu0
    %v6581 = vadd.f32 %v5546, %v6580
    %v6582 = vpop.f32.mrb[0].mxu0
    %v6583 = vadd.f32 %v5542, %v6582
    %v6584 = vpop.f32.mrb[0].mxu0
    %v6585 = vadd.f32 %v5546, %v6584
    %6586 = vmatprep.mubr.bf16.mxu0 0
    %6587 = vmatmul.mubr.bf16.gmra.mrb[0].mxu0 %v1010
    %v6588 = vpop.f32.mrb[0].mxu0
    %v6589 = vadd.f32 %v5542, %v6588
    %v6590 = vpop.f32.mrb[0].mxu0
    %v6591 = vadd.f32 %v5546, %v6590
    %v6592 = vpop.f32.mrb[0].mxu0
    %v6593 = vadd.f32 %v5542, %v6592
    %v6594 = vpop.f32.mrb[0].mxu0
    %v6595 = vadd.f32 %v5546, %v6594
    %6596 = vmatprep.mubr.bf16.mxu0 0
    %6597 = vmatmul.mubr.bf16.gmra.mrb[0].mxu0 %v1011
    %v6598 = vpop.f32.mrb[0].mxu0
    %v6599 = vadd.f32 %v5542, %v6598
    %v6600 = vpop.f32.mrb[0].mxu0
    %v6601 = vadd.f32 %v5546, %v6600
    %v6602 = vpop.f32.mrb[0].mxu0
    %v6603 = vadd.f32 %v5542, %v6602
    %v6604 = vpop.f32.mrb[0].mxu0
    %v6605 = vadd.f32 %v5546, %v6604
    %6606 = vmatprep.mubr.bf16.mxu0 0
    %6607 = vmatmul.mubr.bf16.gmra.mrb[0].mxu0 %v1012
    %v6608 = vpop.f32.mrb[0].mxu0
    %v6609 = vadd.f32 %v5542, %v6608
    %v6610 = vpop.f32.mrb[0].mxu0
    %v6611 = vadd.f32 %v5546, %v6610
    %v6612 = vpop.f32.mrb[0].mxu0
    %v6613 = vadd.f32 %v5542, %v6612
    %v6614 = vpop.f32.mrb[0].mxu0
    %v6615 = vadd.f32 %v5546, %v6614
    %6616 = vmatprep.mubr.bf16.mxu0 0
    %6617 = vmatmul.mubr.bf16.gmra.mrb[0].mxu0 %v1013
    %v6618 = vpop.f32.mrb[0].mxu0
    %v6619 = vadd.f32 %v5542, %v6618
    %v6620 = vpop.f32.mrb[0].mxu0
    %v6621 = vadd.f32 %v5546, %v6620
    %v6622 = vpop.f32.mrb[0].mxu0
    %v6623 = vadd.f32 %v5542, %v6622
    %v6624 = vpop.f32.mrb[0].mxu0
    %v6625 = vadd.f32 %v5546, %v6624
    %6626 = vmatprep.mubr.bf16.mxu0 0
    %6627 = vmatmul.mubr.bf16.gmra.mrb[0].mxu0 %v1014
    %v6628 = vpop.f32.mrb[0].mxu0
    %v6629 = vadd.f32 %v5542, %v6628
    %v6630 = vpop.f32.mrb[0].mxu0
    %v6631 = vadd.f32 %v5546, %v6630
    %v6632 = vpop.f32.mrb[0].mxu0
    %v6633 = vadd.f32 %v5542, %v6632
    %v6634 = vpop.f32.mrb[0].mxu0
    %v6635 = vadd.f32 %v5546, %v6634
    %6636 = vmatprep.mubr.bf16.mxu0 0
    %6637 = vmatmul.mubr.bf16.gmra.mrb[0].mxu0 %v1015
    %v6638 = vpop.f32.mrb[0].mxu0
    %v6639 = vadd.f32 %v5542, %v6638
    %v6640 = vpop.f32.mrb[0].mxu0
    %v6641 = vadd.f32 %v5546, %v6640
    %v6642 = vpop.f32.mrb[0].mxu0
    %v6643 = vadd.f32 %v5542, %v6642
    %v6644 = vpop.f32.mrb[0].mxu0
    %v6645 = vadd.f32 %v5546, %v6644
    %6646 = vdwg.mxu0
    %v6647 = vpack.c.bf16 %v5914, %v5910
    %v6648 = vpack.c.bf16 %v5916, %v5912
    %v6649 = vpack.c.bf16 %v6107, %v6103
    %v6650 = vpack.c.bf16 %v6109, %v6105
    %v6651 = vpack.c.bf16 %v6300, %v6296
    %v6652 = vpack.c.bf16 %v6302, %v6298
    %v6653 = vpack.c.bf16 %v6493, %v6489
    %v6654 = vpack.c.bf16 %v6495, %v6491
    %v6655 = vpack.c.bf16 %v5924, %v5920
    %v6656 = vpack.c.bf16 %v5926, %v5922
    %v6657 = vpack.c.bf16 %v6117, %v6113
    %v6658 = vpack.c.bf16 %v6119, %v6115
    %v6659 = vpack.c.bf16 %v6310, %v6306
    %v6660 = vpack.c.bf16 %v6312, %v6308
    %v6661 = vpack.c.bf16 %v6503, %v6499
    %v6662 = vpack.c.bf16 %v6505, %v6501
    %v6663 = vpack.c.bf16 %v5934, %v5930
    %v6664 = vpack.c.bf16 %v5936, %v5932
    %v6665 = vpack.c.bf16 %v6127, %v6123
    %v6666 = vpack.c.bf16 %v6129, %v6125
    %v6667 = vpack.c.bf16 %v6320, %v6316
    %v6668 = vpack.c.bf16 %v6322, %v6318
    %v6669 = vpack.c.bf16 %v6513, %v6509
    %v6670 = vpack.c.bf16 %v6515, %v6511
    %v6671 = vpack.c.bf16 %v5944, %v5940
    %v6672 = vpack.c.bf16 %v5946, %v5942
    %v6673 = vpack.c.bf16 %v6137, %v6133
    %v6674 = vpack.c.bf16 %v6139, %v6135
    %v6675 = vpack.c.bf16 %v6330, %v6326
    %v6676 = vpack.c.bf16 %v6332, %v6328
    %v6677 = vpack.c.bf16 %v6523, %v6519
    %v6678 = vpack.c.bf16 %v6525, %v6521
    %v6679 = vpack.c.bf16 %v5954, %v5950
    %v6680 = vpack.c.bf16 %v5956, %v5952
    %v6681 = vpack.c.bf16 %v6147, %v6143
    %v6682 = vpack.c.bf16 %v6149, %v6145
    %v6683 = vpack.c.bf16 %v6340, %v6336
    %v6684 = vpack.c.bf16 %v6342, %v6338
    %v6685 = vpack.c.bf16 %v6533, %v6529
    %v6686 = vpack.c.bf16 %v6535, %v6531
    %v6687 = vpack.c.bf16 %v5964, %v5960
    %v6688 = vpack.c.bf16 %v5966, %v5962
    %v6689 = vpack.c.bf16 %v6157, %v6153
    %v6690 = vpack.c.bf16 %v6159, %v6155
    %v6691 = vpack.c.bf16 %v6350, %v6346
    %v6692 = vpack.c.bf16 %v6352, %v6348
    %v6693 = vpack.c.bf16 %v6543, %v6539
    %v6694 = vpack.c.bf16 %v6545, %v6541
    %v6695 = vpack.c.bf16 %v5974, %v5970
    %v6696 = vpack.c.bf16 %v5976, %v5972
    %v6697 = vpack.c.bf16 %v6167, %v6163
    %v6698 = vpack.c.bf16 %v6169, %v6165
    %v6699 = vpack.c.bf16 %v6360, %v6356
    %v6700 = vpack.c.bf16 %v6362, %v6358
    %v6701 = vpack.c.bf16 %v6553, %v6549
    %v6702 = vpack.c.bf16 %v6555, %v6551
    %v6703 = vpack.c.bf16 %v5984, %v5980
    %v6704 = vpack.c.bf16 %v5986, %v5982
    %v6705 = vpack.c.bf16 %v6177, %v6173
    %v6706 = vpack.c.bf16 %v6179, %v6175
    %v6707 = vpack.c.bf16 %v6370, %v6366
    %v6708 = vpack.c.bf16 %v6372, %v6368
    %v6709 = vpack.c.bf16 %v6563, %v6559
    %v6710 = vpack.c.bf16 %v6565, %v6561
    %v6711 = vpack.c.bf16 %v5994, %v5990
    %v6712 = vpack.c.bf16 %v5996, %v5992
    %v6713 = vpack.c.bf16 %v6187, %v6183
    %v6714 = vpack.c.bf16 %v6189, %v6185
    %v6715 = vpack.c.bf16 %v6380, %v6376
    %v6716 = vpack.c.bf16 %v6382, %v6378
    %v6717 = vpack.c.bf16 %v6573, %v6569
    %v6718 = vpack.c.bf16 %v6575, %v6571
    %v6719 = vpack.c.bf16 %v6004, %v6000
    %v6720 = vpack.c.bf16 %v6006, %v6002
    %v6721 = vpack.c.bf16 %v6197, %v6193
    %v6722 = vpack.c.bf16 %v6199, %v6195
    %v6723 = vpack.c.bf16 %v6390, %v6386
    %v6724 = vpack.c.bf16 %v6392, %v6388
    %v6725 = vpack.c.bf16 %v6583, %v6579
    %v6726 = vpack.c.bf16 %v6585, %v6581
    %v6727 = vpack.c.bf16 %v6014, %v6010
    %v6728 = vpack.c.bf16 %v6016, %v6012
    %v6729 = vpack.c.bf16 %v6207, %v6203
    %v6730 = vpack.c.bf16 %v6209, %v6205
    %v6731 = vpack.c.bf16 %v6400, %v6396
    %v6732 = vpack.c.bf16 %v6402, %v6398
    %v6733 = vpack.c.bf16 %v6593, %v6589
    %v6734 = vpack.c.bf16 %v6595, %v6591
    %v6735 = vpack.c.bf16 %v6024, %v6020
    %v6736 = vpack.c.bf16 %v6026, %v6022
    %v6737 = vpack.c.bf16 %v6217, %v6213
    %v6738 = vpack.c.bf16 %v6219, %v6215
    %v6739 = vpack.c.bf16 %v6410, %v6406
    %v6740 = vpack.c.bf16 %v6412, %v6408
    %v6741 = vpack.c.bf16 %v6603, %v6599
    %v6742 = vpack.c.bf16 %v6605, %v6601
    %v6743 = vpack.c.bf16 %v6034, %v6030
    %v6744 = vpack.c.bf16 %v6036, %v6032
    %v6745 = vpack.c.bf16 %v6227, %v6223
    %v6746 = vpack.c.bf16 %v6229, %v6225
    %v6747 = vpack.c.bf16 %v6420, %v6416
    %v6748 = vpack.c.bf16 %v6422, %v6418
    %v6749 = vpack.c.bf16 %v6613, %v6609
    %v6750 = vpack.c.bf16 %v6615, %v6611
    %v6751 = vpack.c.bf16 %v6044, %v6040
    %v6752 = vpack.c.bf16 %v6046, %v6042
    %v6753 = vpack.c.bf16 %v6237, %v6233
    %v6754 = vpack.c.bf16 %v6239, %v6235
    %v6755 = vpack.c.bf16 %v6430, %v6426
    %v6756 = vpack.c.bf16 %v6432, %v6428
    %v6757 = vpack.c.bf16 %v6623, %v6619
    %v6758 = vpack.c.bf16 %v6625, %v6621
    %v6759 = vpack.c.bf16 %v6054, %v6050
    %v6760 = vpack.c.bf16 %v6056, %v6052
    %v6761 = vpack.c.bf16 %v6247, %v6243
    %v6762 = vpack.c.bf16 %v6249, %v6245
    %v6763 = vpack.c.bf16 %v6440, %v6436
    %v6764 = vpack.c.bf16 %v6442, %v6438
    %v6765 = vpack.c.bf16 %v6633, %v6629
    %v6766 = vpack.c.bf16 %v6635, %v6631
    %v6767 = vpack.c.bf16 %v6064, %v6060
    %v6768 = vpack.c.bf16 %v6066, %v6062
    %v6769 = vpack.c.bf16 %v6257, %v6253
    %v6770 = vpack.c.bf16 %v6259, %v6255
    %v6771 = vpack.c.bf16 %v6450, %v6446
    %v6772 = vpack.c.bf16 %v6452, %v6448
    %v6773 = vpack.c.bf16 %v6643, %v6639
    %v6774 = vpack.c.bf16 %v6645, %v6641
    %v6775 = vpack.c.bf16 %v5418, %v5417
    %v6776 = vpack.c.bf16 %v5420, %v5419
    %v6777 = vpack.c.bf16 %v5422, %v5421
    %v6778 = vpack.c.bf16 %v5424, %v5423
    %v6779 = vpack.c.bf16 %v5426, %v5425
    %v6780 = vpack.c.bf16 %v5428, %v5427
    %v6781 = vpack.c.bf16 %v5430, %v5429
    %v6782 = vpack.c.bf16 %v5432, %v5431
    %v6783 = vpack.c.bf16 %v5434, %v5433
    %v6784 = vpack.c.bf16 %v5436, %v5435
    %v6785 = vpack.c.bf16 %v5438, %v5437
    %v6786 = vpack.c.bf16 %v5440, %v5439
    %v6787 = vpack.c.bf16 %v5442, %v5441
    %v6788 = vpack.c.bf16 %v5444, %v5443
    %v6789 = vpack.c.bf16 %v5446, %v5445
    %v6790 = vpack.c.bf16 %v5448, %v5447
    %v6791 = vld [vmem:[#allocation13] sm:$0xff]
    %v6792 = vld [vmem:[#allocation13 + $0x8] sm:$0xff]
    %v6793 = vld [vmem:[#allocation13 + $0x10] sm:$0xff]
    %v6794 = vld [vmem:[#allocation13 + $0x18] sm:$0xff]
    %v6795 = vld [vmem:[#allocation13 + $0x20] sm:$0xff]
    %v6796 = vld [vmem:[#allocation13 + $0x28] sm:$0xff]
    %v6797 = vld [vmem:[#allocation13 + $0x30] sm:$0xff]
    %v6798 = vld [vmem:[#allocation13 + $0x38] sm:$0xff]
    %v6799 = vld [vmem:[#allocation13 + $0x40] sm:$0xff]
    %v6800 = vld [vmem:[#allocation13 + $0x48] sm:$0xff]
    %v6801 = vld [vmem:[#allocation13 + $0x50] sm:$0xff]
    %v6802 = vld [vmem:[#allocation13 + $0x58] sm:$0xff]
    %v6803 = vld [vmem:[#allocation13 + $0x60] sm:$0xff]
    %v6804 = vld [vmem:[#allocation13 + $0x68] sm:$0xff]
    %v6805 = vld [vmem:[#allocation13 + $0x70] sm:$0xff]
    %v6806 = vld [vmem:[#allocation13 + $0x78] sm:$0xff]
    %v6807 = vld [vmem:[#allocation13 + $0x80] sm:$0xff]
    %v6808 = vld [vmem:[#allocation13 + $0x88] sm:$0xff]
    %v6809 = vld [vmem:[#allocation13 + $0x90] sm:$0xff]
    %v6810 = vld [vmem:[#allocation13 + $0x98] sm:$0xff]
    %v6811 = vld [vmem:[#allocation13 + $0xa0] sm:$0xff]
    %v6812 = vld [vmem:[#allocation13 + $0xa8] sm:$0xff]
    %v6813 = vld [vmem:[#allocation13 + $0xb0] sm:$0xff]
    %v6814 = vld [vmem:[#allocation13 + $0xb8] sm:$0xff]
    %v6815 = vld [vmem:[#allocation13 + $0xc0] sm:$0xff]
    %v6816 = vld [vmem:[#allocation13 + $0xc8] sm:$0xff]
    %v6817 = vld [vmem:[#allocation13 + $0xd0] sm:$0xff]
    %v6818 = vld [vmem:[#allocation13 + $0xd8] sm:$0xff]
    %v6819 = vld [vmem:[#allocation13 + $0xe0] sm:$0xff]
    %v6820 = vld [vmem:[#allocation13 + $0xe8] sm:$0xff]
    %v6821 = vld [vmem:[#allocation13 + $0xf0] sm:$0xff]
    %v6822 = vld [vmem:[#allocation13 + $0xf8] sm:$0xff]
    %v6823 = vld [vmem:[#allocation13 + $0x100] sm:$0xff]
    %v6824 = vld [vmem:[#allocation13 + $0x108] sm:$0xff]
    %v6825 = vld [vmem:[#allocation13 + $0x110] sm:$0xff]
    %v6826 = vld [vmem:[#allocation13 + $0x118] sm:$0xff]
    %v6827 = vld [vmem:[#allocation13 + $0x120] sm:$0xff]
    %v6828 = vld [vmem:[#allocation13 + $0x128] sm:$0xff]
    %v6829 = vld [vmem:[#allocation13 + $0x130] sm:$0xff]
    %v6830 = vld [vmem:[#allocation13 + $0x138] sm:$0xff]
    %v6831 = vld [vmem:[#allocation13 + $0x140] sm:$0xff]
    %v6832 = vld [vmem:[#allocation13 + $0x148] sm:$0xff]
    %v6833 = vld [vmem:[#allocation13 + $0x150] sm:$0xff]
    %v6834 = vld [vmem:[#allocation13 + $0x158] sm:$0xff]
    %v6835 = vld [vmem:[#allocation13 + $0x160] sm:$0xff]
    %v6836 = vld [vmem:[#allocation13 + $0x168] sm:$0xff]
    %v6837 = vld [vmem:[#allocation13 + $0x170] sm:$0xff]
    %v6838 = vld [vmem:[#allocation13 + $0x178] sm:$0xff]
    %v6839 = vld [vmem:[#allocation13 + $0x180] sm:$0xff]
    %v6840 = vld [vmem:[#allocation13 + $0x188] sm:$0xff]
    %v6841 = vld [vmem:[#allocation13 + $0x190] sm:$0xff]
    %v6842 = vld [vmem:[#allocation13 + $0x198] sm:$0xff]
    %v6843 = vld [vmem:[#allocation13 + $0x1a0] sm:$0xff]
    %v6844 = vld [vmem:[#allocation13 + $0x1a8] sm:$0xff]
    %v6845 = vld [vmem:[#allocation13 + $0x1b0] sm:$0xff]
    %v6846 = vld [vmem:[#allocation13 + $0x1b8] sm:$0xff]
    %v6847 = vld [vmem:[#allocation13 + $0x1c0] sm:$0xff]
    %v6848 = vld [vmem:[#allocation13 + $0x1c8] sm:$0xff]
    %v6849 = vld [vmem:[#allocation13 + $0x1d0] sm:$0xff]
    %v6850 = vld [vmem:[#allocation13 + $0x1d8] sm:$0xff]
    %v6851 = vld [vmem:[#allocation13 + $0x1e0] sm:$0xff]
    %v6852 = vld [vmem:[#allocation13 + $0x1e8] sm:$0xff]
    %v6853 = vld [vmem:[#allocation13 + $0x1f0] sm:$0xff]
    %v6854 = vld [vmem:[#allocation13 + $0x1f8] sm:$0xff]
    %v6919 = vunpack.c.l.b16 %v6791
    %v6920 = vunpack.c.h.b16 %v6791
    %v6921 = vunpack.c.l.b16 %v6792
    %v6922 = vunpack.c.h.b16 %v6792
    %v6923 = vunpack.c.l.b16 %v6793
    %v6924 = vunpack.c.h.b16 %v6793
    %v6925 = vunpack.c.l.b16 %v6794
    %v6926 = vunpack.c.h.b16 %v6794
    %v6927 = vunpack.c.l.b16 %v6795
    %v6928 = vunpack.c.h.b16 %v6795
    %v6929 = vunpack.c.l.b16 %v6796
    %v6930 = vunpack.c.h.b16 %v6796
    %v6931 = vunpack.c.l.b16 %v6797
    %v6932 = vunpack.c.h.b16 %v6797
    %v6933 = vunpack.c.l.b16 %v6798
    %v6934 = vunpack.c.h.b16 %v6798
    %v6935 = vunpack.c.l.b16 %v6799
    %v6936 = vunpack.c.h.b16 %v6799
    %v6937 = vunpack.c.l.b16 %v6800
    %v6938 = vunpack.c.h.b16 %v6800
    %v6939 = vunpack.c.l.b16 %v6801
    %v6940 = vunpack.c.h.b16 %v6801
    %v6941 = vunpack.c.l.b16 %v6802
    %v6942 = vunpack.c.h.b16 %v6802
    %v6943 = vunpack.c.l.b16 %v6803
    %v6944 = vunpack.c.h.b16 %v6803
    %v6945 = vunpack.c.l.b16 %v6804
    %v6946 = vunpack.c.h.b16 %v6804
    %v6947 = vunpack.c.l.b16 %v6805
    %v6948 = vunpack.c.h.b16 %v6805
    %v6949 = vunpack.c.l.b16 %v6806
    %v6950 = vunpack.c.h.b16 %v6806
    %v6951 = vunpack.c.l.b16 %v6807
    %v6952 = vunpack.c.h.b16 %v6807
    %v6953 = vunpack.c.l.b16 %v6808
    %v6954 = vunpack.c.h.b16 %v6808
    %v6955 = vunpack.c.l.b16 %v6809
    %v6956 = vunpack.c.h.b16 %v6809
    %v6957 = vunpack.c.l.b16 %v6810
    %v6958 = vunpack.c.h.b16 %v6810
    %v6959 = vunpack.c.l.b16 %v6811
    %v6960 = vunpack.c.h.b16 %v6811
    %v6961 = vunpack.c.l.b16 %v6812
    %v6962 = vunpack.c.h.b16 %v6812
    %v6963 = vunpack.c.l.b16 %v6813
    %v6964 = vunpack.c.h.b16 %v6813
    %v6965 = vunpack.c.l.b16 %v6814
    %v6966 = vunpack.c.h.b16 %v6814
    %v6967 = vunpack.c.l.b16 %v6815
    %v6968 = vunpack.c.h.b16 %v6815
    %v6969 = vunpack.c.l.b16 %v6816
    %v6970 = vunpack.c.h.b16 %v6816
    %v6971 = vunpack.c.l.b16 %v6817
    %v6972 = vunpack.c.h.b16 %v6817
    %v6973 = vunpack.c.l.b16 %v6818
    %v6974 = vunpack.c.h.b16 %v6818
    %v6975 = vunpack.c.l.b16 %v6819
    %v6976 = vunpack.c.h.b16 %v6819
    %v6977 = vunpack.c.l.b16 %v6820
    %v6978 = vunpack.c.h.b16 %v6820
    %v6979 = vunpack.c.l.b16 %v6821
    %v6980 = vunpack.c.h.b16 %v6821
    %v6981 = vunpack.c.l.b16 %v6822
    %v6982 = vunpack.c.h.b16 %v6822
    %v6983 = vunpack.c.l.b16 %v6823
    %v6984 = vunpack.c.h.b16 %v6823
    %v6985 = vunpack.c.l.b16 %v6824
    %v6986 = vunpack.c.h.b16 %v6824
    %v6987 = vunpack.c.l.b16 %v6825
    %v6988 = vunpack.c.h.b16 %v6825
    %v6989 = vunpack.c.l.b16 %v6826
    %v6990 = vunpack.c.h.b16 %v6826
    %v6991 = vunpack.c.l.b16 %v6827
    %v6992 = vunpack.c.h.b16 %v6827
    %v6993 = vunpack.c.l.b16 %v6828
    %v6994 = vunpack.c.h.b16 %v6828
    %v6995 = vunpack.c.l.b16 %v6829
    %v6996 = vunpack.c.h.b16 %v6829
    %v6997 = vunpack.c.l.b16 %v6830
    %v6998 = vunpack.c.h.b16 %v6830
    %v6999 = vunpack.c.l.b16 %v6831
    %v7000 = vunpack.c.h.b16 %v6831
    %v7001 = vunpack.c.l.b16 %v6832
    %v7002 = vunpack.c.h.b16 %v6832
    %v7003 = vunpack.c.l.b16 %v6833
    %v7004 = vunpack.c.h.b16 %v6833
    %v7005 = vunpack.c.l.b16 %v6834
    %v7006 = vunpack.c.h.b16 %v6834
    %v7007 = vunpack.c.l.b16 %v6835
    %v7008 = vunpack.c.h.b16 %v6835
    %v7009 = vunpack.c.l.b16 %v6836
    %v7010 = vunpack.c.h.b16 %v6836
    %v7011 = vunpack.c.l.b16 %v6837
    %v7012 = vunpack.c.h.b16 %v6837
    %v7013 = vunpack.c.l.b16 %v6838
    %v7014 = vunpack.c.h.b16 %v6838
    %v7015 = vunpack.c.l.b16 %v6839
    %v7016 = vunpack.c.h.b16 %v6839
    %v7017 = vunpack.c.l.b16 %v6840
    %v7018 = vunpack.c.h.b16 %v6840
    %v7019 = vunpack.c.l.b16 %v6841
    %v7020 = vunpack.c.h.b16 %v6841
    %v7021 = vunpack.c.l.b16 %v6842
    %v7022 = vunpack.c.h.b16 %v6842
    %v7023 = vunpack.c.l.b16 %v6843
    %v7024 = vunpack.c.h.b16 %v6843
    %v7025 = vunpack.c.l.b16 %v6844
    %v7026 = vunpack.c.h.b16 %v6844
    %v7027 = vunpack.c.l.b16 %v6845
    %v7028 = vunpack.c.h.b16 %v6845
    %v7029 = vunpack.c.l.b16 %v6846
    %v7030 = vunpack.c.h.b16 %v6846
    %v7031 = vunpack.c.l.b16 %v6847
    %v7032 = vunpack.c.h.b16 %v6847
    %v7033 = vunpack.c.l.b16 %v6848
    %v7034 = vunpack.c.h.b16 %v6848
    %v7035 = vunpack.c.l.b16 %v6849
    %v7036 = vunpack.c.h.b16 %v6849
    %v7037 = vunpack.c.l.b16 %v6850
    %v7038 = vunpack.c.h.b16 %v6850
    %v7039 = vunpack.c.l.b16 %v6851
    %v7040 = vunpack.c.h.b16 %v6851
    %v7041 = vunpack.c.l.b16 %v6852
    %v7042 = vunpack.c.h.b16 %v6852
    %v7043 = vunpack.c.l.b16 %v6853
    %v7044 = vunpack.c.h.b16 %v6853
    %v7045 = vunpack.c.l.b16 %v6854
    %v7046 = vunpack.c.h.b16 %v6854
    %v7047 = vpack.c.b16 %v6927, %v6919
    %v7048 = vpack.c.b16 %v6928, %v6920
    %v7049 = vpack.c.b16 %v6929, %v6921
    %v7050 = vpack.c.b16 %v6930, %v6922
    %v7051 = vpack.c.b16 %v6931, %v6923
    %v7052 = vpack.c.b16 %v6932, %v6924
    %v7053 = vpack.c.b16 %v6933, %v6925
    %v7054 = vpack.c.b16 %v6934, %v6926
    %v7055 = vpack.c.b16 %v6943, %v6935
    %v7056 = vpack.c.b16 %v6944, %v6936
    %v7057 = vpack.c.b16 %v6945, %v6937
    %v7058 = vpack.c.b16 %v6946, %v6938
    %v7059 = vpack.c.b16 %v6947, %v6939
    %v7060 = vpack.c.b16 %v6948, %v6940
    %v7061 = vpack.c.b16 %v6949, %v6941
    %v7062 = vpack.c.b16 %v6950, %v6942
    %v7063 = vpack.c.b16 %v6959, %v6951
    %v7064 = vpack.c.b16 %v6960, %v6952
    %v7065 = vpack.c.b16 %v6961, %v6953
    %v7066 = vpack.c.b16 %v6962, %v6954
    %v7067 = vpack.c.b16 %v6963, %v6955
    %v7068 = vpack.c.b16 %v6964, %v6956
    %v7069 = vpack.c.b16 %v6965, %v6957
    %v7070 = vpack.c.b16 %v6966, %v6958
    %v7071 = vpack.c.b16 %v6975, %v6967
    %v7072 = vpack.c.b16 %v6976, %v6968
    %v7073 = vpack.c.b16 %v6977, %v6969
    %v7074 = vpack.c.b16 %v6978, %v6970
    %v7075 = vpack.c.b16 %v6979, %v6971
    %v7076 = vpack.c.b16 %v6980, %v6972
    %v7077 = vpack.c.b16 %v6981, %v6973
    %v7078 = vpack.c.b16 %v6982, %v6974
    %v7079 = vpack.c.b16 %v6991, %v6983
    %v7080 = vpack.c.b16 %v6992, %v6984
    %v7081 = vpack.c.b16 %v6993, %v6985
    %v7082 = vpack.c.b16 %v6994, %v6986
    %v7083 = vpack.c.b16 %v6995, %v6987
    %v7084 = vpack.c.b16 %v6996, %v6988
    %v7085 = vpack.c.b16 %v6997, %v6989
    %v7086 = vpack.c.b16 %v6998, %v6990
    %v7087 = vpack.c.b16 %v7007, %v6999
    %v7088 = vpack.c.b16 %v7008, %v7000
    %v7089 = vpack.c.b16 %v7009, %v7001
    %v7090 = vpack.c.b16 %v7010, %v7002
    %v7091 = vpack.c.b16 %v7011, %v7003
    %v7092 = vpack.c.b16 %v7012, %v7004
    %v7093 = vpack.c.b16 %v7013, %v7005
    %v7094 = vpack.c.b16 %v7014, %v7006
    %v7095 = vpack.c.b16 %v7023, %v7015
    %v7096 = vpack.c.b16 %v7024, %v7016
    %v7097 = vpack.c.b16 %v7025, %v7017
    %v7098 = vpack.c.b16 %v7026, %v7018
    %v7099 = vpack.c.b16 %v7027, %v7019
    %v7100 = vpack.c.b16 %v7028, %v7020
    %v7101 = vpack.c.b16 %v7029, %v7021
    %v7102 = vpack.c.b16 %v7030, %v7022
    %v7103 = vpack.c.b16 %v7039, %v7031
    %v7104 = vpack.c.b16 %v7040, %v7032
    %v7105 = vpack.c.b16 %v7041, %v7033
    %v7106 = vpack.c.b16 %v7042, %v7034
    %v7107 = vpack.c.b16 %v7043, %v7035
    %v7108 = vpack.c.b16 %v7044, %v7036
    %v7109 = vpack.c.b16 %v7045, %v7037
    %v7110 = vpack.c.b16 %v7046, %v7038
    %7175 = vmatprep.subr.bf16.mxu0 %v7048
    %7176 = vmatpush1.bf16.msra.mxu0 %v7047
    %7177 = vmatprep.subr.bf16.mxu0 %v7056
    %7178 = vmatpush1.bf16.msra.mxu0 %v7055
    %7179 = vmatprep.subr.bf16.mxu0 %v7064
    %7180 = vmatpush1.bf16.msra.mxu0 %v7063
    %7181 = vmatprep.subr.bf16.mxu0 %v7072
    %7182 = vmatpush1.bf16.msra.mxu0 %v7071
    %7183 = vmatprep.subr.bf16.mxu0 %v7080
    %7184 = vmatpush1.bf16.msra.mxu0 %v7079
    %7185 = vmatprep.subr.bf16.mxu0 %v7088
    %7186 = vmatpush1.bf16.msra.mxu0 %v7087
    %7187 = vmatprep.subr.bf16.mxu0 %v7096
    %7188 = vmatpush1.bf16.msra.mxu0 %v7095
    %7189 = vmatprep.subr.bf16.mxu0 %v7104
    %7190 = vmatpush1.bf16.msra.mxu0 %v7103
    %7191 = vmatprep.subr.bf16.mxu0 0
    %7192 = vmatpush1.bf16.msra.mxu0 0
    %7193 = vmatprep.subr.bf16.mxu0 0
    %7194 = vmatpush1.bf16.msra.mxu0 0
    %7195 = vmatprep.subr.bf16.mxu0 0
    %7196 = vmatpush1.bf16.msra.mxu0 0
    %7197 = vmatprep.subr.bf16.mxu0 0
    %7198 = vmatpush1.bf16.msra.mxu0 0
    %7199 = vmatprep.subr.bf16.mxu0 0
    %7200 = vmatpush1.bf16.msra.mxu0 0
    %7201 = vmatprep.subr.bf16.mxu0 0
    %7202 = vmatpush1.bf16.msra.mxu0 0
    %7203 = vmatprep.subr.bf16.mxu0 0
    %7204 = vmatpush1.bf16.msra.mxu0 0
    %7205 = vmatprep.subr.bf16.mxu0 0
    %7206 = vmatpush1.bf16.msra.mxu0 0
    %7207 = vmatprep.mubr.bf16.mxu0 0
    %7208 = vmatmul.mubr.bf16.gmra.mrb[0].mxu0 %v6775
    %v7209 = vpop.f32.mrb[0].mxu0
    %v7210 = vadd.f32 0.0, %v7209
    %v7211 = vpop.f32.mrb[0].mxu0
    %v7212 = vadd.f32 0.0, %v7211
    %v7213 = vpop.f32.mrb[0].mxu0
    %v7214 = vadd.f32 0.0, %v7213
    %v7215 = vpop.f32.mrb[0].mxu0
    %v7216 = vadd.f32 0.0, %v7215
    %7217 = vmatprep.mubr.bf16.mxu0 0
    %7218 = vmatmul.mubr.bf16.gmra.mrb[0].mxu0 %v6776
    %v7219 = vpop.f32.mrb[0].mxu0
    %v7220 = vadd.f32 0.0, %v7219
    %v7221 = vpop.f32.mrb[0].mxu0
    %v7222 = vadd.f32 0.0, %v7221
    %v7223 = vpop.f32.mrb[0].mxu0
    %v7224 = vadd.f32 0.0, %v7223
    %v7225 = vpop.f32.mrb[0].mxu0
    %v7226 = vadd.f32 0.0, %v7225
    %7227 = vmatprep.mubr.bf16.mxu0 0
    %7228 = vmatmul.mubr.bf16.gmra.mrb[0].mxu0 %v6777
    %v7229 = vpop.f32.mrb[0].mxu0
    %v7230 = vadd.f32 0.0, %v7229
    %v7231 = vpop.f32.mrb[0].mxu0
    %v7232 = vadd.f32 0.0, %v7231
    %v7233 = vpop.f32.mrb[0].mxu0
    %v7234 = vadd.f32 0.0, %v7233
    %v7235 = vpop.f32.mrb[0].mxu0
    %v7236 = vadd.f32 0.0, %v7235
    %7237 = vmatprep.mubr.bf16.mxu0 0
    %7238 = vmatmul.mubr.bf16.gmra.mrb[0].mxu0 %v6778
    %v7239 = vpop.f32.mrb[0].mxu0
    %v7240 = vadd.f32 0.0, %v7239
    %v7241 = vpop.f32.mrb[0].mxu0
    %v7242 = vadd.f32 0.0, %v7241
    %v7243 = vpop.f32.mrb[0].mxu0
    %v7244 = vadd.f32 0.0, %v7243
    %v7245 = vpop.f32.mrb[0].mxu0
    %v7246 = vadd.f32 0.0, %v7245
    %7247 = vmatprep.mubr.bf16.mxu0 0
    %7248 = vmatmul.mubr.bf16.gmra.mrb[0].mxu0 %v6779
    %v7249 = vpop.f32.mrb[0].mxu0
    %v7250 = vadd.f32 0.0, %v7249
    %v7251 = vpop.f32.mrb[0].mxu0
    %v7252 = vadd.f32 0.0, %v7251
    %v7253 = vpop.f32.mrb[0].mxu0
    %v7254 = vadd.f32 0.0, %v7253
    %v7255 = vpop.f32.mrb[0].mxu0
    %v7256 = vadd.f32 0.0, %v7255
    %7257 = vmatprep.mubr.bf16.mxu0 0
    %7258 = vmatmul.mubr.bf16.gmra.mrb[0].mxu0 %v6780
    %v7259 = vpop.f32.mrb[0].mxu0
    %v7260 = vadd.f32 0.0, %v7259
    %v7261 = vpop.f32.mrb[0].mxu0
    %v7262 = vadd.f32 0.0, %v7261
    %v7263 = vpop.f32.mrb[0].mxu0
    %v7264 = vadd.f32 0.0, %v7263
    %v7265 = vpop.f32.mrb[0].mxu0
    %v7266 = vadd.f32 0.0, %v7265
    %7267 = vmatprep.mubr.bf16.mxu0 0
    %7268 = vmatmul.mubr.bf16.gmra.mrb[0].mxu0 %v6781
    %v7269 = vpop.f32.mrb[0].mxu0
    %v7270 = vadd.f32 0.0, %v7269
    %v7271 = vpop.f32.mrb[0].mxu0
    %v7272 = vadd.f32 0.0, %v7271
    %v7273 = vpop.f32.mrb[0].mxu0
    %v7274 = vadd.f32 0.0, %v7273
    %v7275 = vpop.f32.mrb[0].mxu0
    %v7276 = vadd.f32 0.0, %v7275
    %7277 = vmatprep.mubr.bf16.mxu0 0
    %7278 = vmatmul.mubr.bf16.gmra.mrb[0].mxu0 %v6782
    %v7279 = vpop.f32.mrb[0].mxu0
    %v7280 = vadd.f32 0.0, %v7279
    %v7281 = vpop.f32.mrb[0].mxu0
    %v7282 = vadd.f32 0.0, %v7281
    %v7283 = vpop.f32.mrb[0].mxu0
    %v7284 = vadd.f32 0.0, %v7283
    %v7285 = vpop.f32.mrb[0].mxu0
    %v7286 = vadd.f32 0.0, %v7285
    %7287 = vmatprep.mubr.bf16.mxu0 0
    %7288 = vmatmul.mubr.bf16.gmra.mrb[0].mxu0 %v6783
    %v7289 = vpop.f32.mrb[0].mxu0
    %v7290 = vadd.f32 0.0, %v7289
    %v7291 = vpop.f32.mrb[0].mxu0
    %v7292 = vadd.f32 0.0, %v7291
    %v7293 = vpop.f32.mrb[0].mxu0
    %v7294 = vadd.f32 0.0, %v7293
    %v7295 = vpop.f32.mrb[0].mxu0
    %v7296 = vadd.f32 0.0, %v7295
    %7297 = vmatprep.mubr.bf16.mxu0 0
    %7298 = vmatmul.mubr.bf16.gmra.mrb[0].mxu0 %v6784
    %v7299 = vpop.f32.mrb[0].mxu0
    %v7300 = vadd.f32 0.0, %v7299
    %v7301 = vpop.f32.mrb[0].mxu0
    %v7302 = vadd.f32 0.0, %v7301
    %v7303 = vpop.f32.mrb[0].mxu0
    %v7304 = vadd.f32 0.0, %v7303
    %v7305 = vpop.f32.mrb[0].mxu0
    %v7306 = vadd.f32 0.0, %v7305
    %7307 = vmatprep.mubr.bf16.mxu0 0
    %7308 = vmatmul.mubr.bf16.gmra.mrb[0].mxu0 %v6785
    %v7309 = vpop.f32.mrb[0].mxu0
    %v7310 = vadd.f32 0.0, %v7309
    %v7311 = vpop.f32.mrb[0].mxu0
    %v7312 = vadd.f32 0.0, %v7311
    %v7313 = vpop.f32.mrb[0].mxu0
    %v7314 = vadd.f32 0.0, %v7313
    %v7315 = vpop.f32.mrb[0].mxu0
    %v7316 = vadd.f32 0.0, %v7315
    %7317 = vmatprep.mubr.bf16.mxu0 0
    %7318 = vmatmul.mubr.bf16.gmra.mrb[0].mxu0 %v6786
    %v7319 = vpop.f32.mrb[0].mxu0
    %v7320 = vadd.f32 0.0, %v7319
    %v7321 = vpop.f32.mrb[0].mxu0
    %v7322 = vadd.f32 0.0, %v7321
    %v7323 = vpop.f32.mrb[0].mxu0
    %v7324 = vadd.f32 0.0, %v7323
    %v7325 = vpop.f32.mrb[0].mxu0
    %v7326 = vadd.f32 0.0, %v7325
    %7327 = vmatprep.mubr.bf16.mxu0 0
    %7328 = vmatmul.mubr.bf16.gmra.mrb[0].mxu0 %v6787
    %v7329 = vpop.f32.mrb[0].mxu0
    %v7330 = vadd.f32 0.0, %v7329
    %v7331 = vpop.f32.mrb[0].mxu0
    %v7332 = vadd.f32 0.0, %v7331
    %v7333 = vpop.f32.mrb[0].mxu0
    %v7334 = vadd.f32 0.0, %v7333
    %v7335 = vpop.f32.mrb[0].mxu0
    %v7336 = vadd.f32 0.0, %v7335
    %7337 = vmatprep.mubr.bf16.mxu0 0
    %7338 = vmatmul.mubr.bf16.gmra.mrb[0].mxu0 %v6788
    %v7339 = vpop.f32.mrb[0].mxu0
    %v7340 = vadd.f32 0.0, %v7339
    %v7341 = vpop.f32.mrb[0].mxu0
    %v7342 = vadd.f32 0.0, %v7341
    %v7343 = vpop.f32.mrb[0].mxu0
    %v7344 = vadd.f32 0.0, %v7343
    %v7345 = vpop.f32.mrb[0].mxu0
    %v7346 = vadd.f32 0.0, %v7345
    %7347 = vmatprep.mubr.bf16.mxu0 0
    %7348 = vmatmul.mubr.bf16.gmra.mrb[0].mxu0 %v6789
    %v7349 = vpop.f32.mrb[0].mxu0
    %v7350 = vadd.f32 0.0, %v7349
    %v7351 = vpop.f32.mrb[0].mxu0
    %v7352 = vadd.f32 0.0, %v7351
    %v7353 = vpop.f32.mrb[0].mxu0
    %v7354 = vadd.f32 0.0, %v7353
    %v7355 = vpop.f32.mrb[0].mxu0
    %v7356 = vadd.f32 0.0, %v7355
    %7357 = vmatprep.mubr.bf16.mxu0 0
    %7358 = vmatmul.mubr.bf16.gmra.mrb[0].mxu0 %v6790
    %v7359 = vpop.f32.mrb[0].mxu0
    %v7360 = vadd.f32 0.0, %v7359
    %v7361 = vpop.f32.mrb[0].mxu0
    %v7362 = vadd.f32 0.0, %v7361
    %v7363 = vpop.f32.mrb[0].mxu0
    %v7364 = vadd.f32 0.0, %v7363
    %v7365 = vpop.f32.mrb[0].mxu0
    %v7366 = vadd.f32 0.0, %v7365
    %7367 = vdwg.mxu0
    %7368 = vmatprep.subr.bf16.mxu0 %v7050
    %7369 = vmatpush1.bf16.msra.mxu0 %v7049
    %7370 = vmatprep.subr.bf16.mxu0 %v7058
    %7371 = vmatpush1.bf16.msra.mxu0 %v7057
    %7372 = vmatprep.subr.bf16.mxu0 %v7066
    %7373 = vmatpush1.bf16.msra.mxu0 %v7065
    %7374 = vmatprep.subr.bf16.mxu0 %v7074
    %7375 = vmatpush1.bf16.msra.mxu0 %v7073
    %7376 = vmatprep.subr.bf16.mxu0 %v7082
    %7377 = vmatpush1.bf16.msra.mxu0 %v7081
    %7378 = vmatprep.subr.bf16.mxu0 %v7090
    %7379 = vmatpush1.bf16.msra.mxu0 %v7089
    %7380 = vmatprep.subr.bf16.mxu0 %v7098
    %7381 = vmatpush1.bf16.msra.mxu0 %v7097
    %7382 = vmatprep.subr.bf16.mxu0 %v7106
    %7383 = vmatpush1.bf16.msra.mxu0 %v7105
    %7384 = vmatprep.subr.bf16.mxu0 0
    %7385 = vmatpush1.bf16.msra.mxu0 0
    %7386 = vmatprep.subr.bf16.mxu0 0
    %7387 = vmatpush1.bf16.msra.mxu0 0
    %7388 = vmatprep.subr.bf16.mxu0 0
    %7389 = vmatpush1.bf16.msra.mxu0 0
    %7390 = vmatprep.subr.bf16.mxu0 0
    %7391 = vmatpush1.bf16.msra.mxu0 0
    %7392 = vmatprep.subr.bf16.mxu0 0
    %7393 = vmatpush1.bf16.msra.mxu0 0
    %7394 = vmatprep.subr.bf16.mxu0 0
    %7395 = vmatpush1.bf16.msra.mxu0 0
    %7396 = vmatprep.subr.bf16.mxu0 0
    %7397 = vmatpush1.bf16.msra.mxu0 0
    %7398 = vmatprep.subr.bf16.mxu0 0
    %7399 = vmatpush1.bf16.msra.mxu0 0
    %7400 = vmatprep.mubr.bf16.mxu0 0
    %7401 = vmatmul.mubr.bf16.gmra.mrb[0].mxu0 %v6775
    %v7402 = vpop.f32.mrb[0].mxu0
    %v7403 = vadd.f32 0.0, %v7402
    %v7404 = vpop.f32.mrb[0].mxu0
    %v7405 = vadd.f32 0.0, %v7404
    %v7406 = vpop.f32.mrb[0].mxu0
    %v7407 = vadd.f32 0.0, %v7406
    %v7408 = vpop.f32.mrb[0].mxu0
    %v7409 = vadd.f32 0.0, %v7408
    %7410 = vmatprep.mubr.bf16.mxu0 0
    %7411 = vmatmul.mubr.bf16.gmra.mrb[0].mxu0 %v6776
    %v7412 = vpop.f32.mrb[0].mxu0
    %v7413 = vadd.f32 0.0, %v7412
    %v7414 = vpop.f32.mrb[0].mxu0
    %v7415 = vadd.f32 0.0, %v7414
    %v7416 = vpop.f32.mrb[0].mxu0
    %v7417 = vadd.f32 0.0, %v7416
    %v7418 = vpop.f32.mrb[0].mxu0
    %v7419 = vadd.f32 0.0, %v7418
    %7420 = vmatprep.mubr.bf16.mxu0 0
    %7421 = vmatmul.mubr.bf16.gmra.mrb[0].mxu0 %v6777
    %v7422 = vpop.f32.mrb[0].mxu0
    %v7423 = vadd.f32 0.0, %v7422
    %v7424 = vpop.f32.mrb[0].mxu0
    %v7425 = vadd.f32 0.0, %v7424
    %v7426 = vpop.f32.mrb[0].mxu0
    %v7427 = vadd.f32 0.0, %v7426
    %v7428 = vpop.f32.mrb[0].mxu0
    %v7429 = vadd.f32 0.0, %v7428
    %7430 = vmatprep.mubr.bf16.mxu0 0
    %7431 = vmatmul.mubr.bf16.gmra.mrb[0].mxu0 %v6778
    %v7432 = vpop.f32.mrb[0].mxu0
    %v7433 = vadd.f32 0.0, %v7432
    %v7434 = vpop.f32.mrb[0].mxu0
    %v7435 = vadd.f32 0.0, %v7434
    %v7436 = vpop.f32.mrb[0].mxu0
    %v7437 = vadd.f32 0.0, %v7436
    %v7438 = vpop.f32.mrb[0].mxu0
    %v7439 = vadd.f32 0.0, %v7438
    %7440 = vmatprep.mubr.bf16.mxu0 0
    %7441 = vmatmul.mubr.bf16.gmra.mrb[0].mxu0 %v6779
    %v7442 = vpop.f32.mrb[0].mxu0
    %v7443 = vadd.f32 0.0, %v7442
    %v7444 = vpop.f32.mrb[0].mxu0
    %v7445 = vadd.f32 0.0, %v7444
    %v7446 = vpop.f32.mrb[0].mxu0
    %v7447 = vadd.f32 0.0, %v7446
    %v7448 = vpop.f32.mrb[0].mxu0
    %v7449 = vadd.f32 0.0, %v7448
    %7450 = vmatprep.mubr.bf16.mxu0 0
    %7451 = vmatmul.mubr.bf16.gmra.mrb[0].mxu0 %v6780
    %v7452 = vpop.f32.mrb[0].mxu0
    %v7453 = vadd.f32 0.0, %v7452
    %v7454 = vpop.f32.mrb[0].mxu0
    %v7455 = vadd.f32 0.0, %v7454
    %v7456 = vpop.f32.mrb[0].mxu0
    %v7457 = vadd.f32 0.0, %v7456
    %v7458 = vpop.f32.mrb[0].mxu0
    %v7459 = vadd.f32 0.0, %v7458
    %7460 = vmatprep.mubr.bf16.mxu0 0
    %7461 = vmatmul.mubr.bf16.gmra.mrb[0].mxu0 %v6781
    %v7462 = vpop.f32.mrb[0].mxu0
    %v7463 = vadd.f32 0.0, %v7462
    %v7464 = vpop.f32.mrb[0].mxu0
    %v7465 = vadd.f32 0.0, %v7464
    %v7466 = vpop.f32.mrb[0].mxu0
    %v7467 = vadd.f32 0.0, %v7466
    %v7468 = vpop.f32.mrb[0].mxu0
    %v7469 = vadd.f32 0.0, %v7468
    %7470 = vmatprep.mubr.bf16.mxu0 0
    %7471 = vmatmul.mubr.bf16.gmra.mrb[0].mxu0 %v6782
    %v7472 = vpop.f32.mrb[0].mxu0
    %v7473 = vadd.f32 0.0, %v7472
    %v7474 = vpop.f32.mrb[0].mxu0
    %v7475 = vadd.f32 0.0, %v7474
    %v7476 = vpop.f32.mrb[0].mxu0
    %v7477 = vadd.f32 0.0, %v7476
    %v7478 = vpop.f32.mrb[0].mxu0
    %v7479 = vadd.f32 0.0, %v7478
    %7480 = vmatprep.mubr.bf16.mxu0 0
    %7481 = vmatmul.mubr.bf16.gmra.mrb[0].mxu0 %v6783
    %v7482 = vpop.f32.mrb[0].mxu0
    %v7483 = vadd.f32 0.0, %v7482
    %v7484 = vpop.f32.mrb[0].mxu0
    %v7485 = vadd.f32 0.0, %v7484
    %v7486 = vpop.f32.mrb[0].mxu0
    %v7487 = vadd.f32 0.0, %v7486
    %v7488 = vpop.f32.mrb[0].mxu0
    %v7489 = vadd.f32 0.0, %v7488
    %7490 = vmatprep.mubr.bf16.mxu0 0
    %7491 = vmatmul.mubr.bf16.gmra.mrb[0].mxu0 %v6784
    %v7492 = vpop.f32.mrb[0].mxu0
    %v7493 = vadd.f32 0.0, %v7492
    %v7494 = vpop.f32.mrb[0].mxu0
    %v7495 = vadd.f32 0.0, %v7494
    %v7496 = vpop.f32.mrb[0].mxu0
    %v7497 = vadd.f32 0.0, %v7496
    %v7498 = vpop.f32.mrb[0].mxu0
    %v7499 = vadd.f32 0.0, %v7498
    %7500 = vmatprep.mubr.bf16.mxu0 0
    %7501 = vmatmul.mubr.bf16.gmra.mrb[0].mxu0 %v6785
    %v7502 = vpop.f32.mrb[0].mxu0
    %v7503 = vadd.f32 0.0, %v7502
    %v7504 = vpop.f32.mrb[0].mxu0
    %v7505 = vadd.f32 0.0, %v7504
    %v7506 = vpop.f32.mrb[0].mxu0
    %v7507 = vadd.f32 0.0, %v7506
    %v7508 = vpop.f32.mrb[0].mxu0
    %v7509 = vadd.f32 0.0, %v7508
    %7510 = vmatprep.mubr.bf16.mxu0 0
    %7511 = vmatmul.mubr.bf16.gmra.mrb[0].mxu0 %v6786
    %v7512 = vpop.f32.mrb[0].mxu0
    %v7513 = vadd.f32 0.0, %v7512
    %v7514 = vpop.f32.mrb[0].mxu0
    %v7515 = vadd.f32 0.0, %v7514
    %v7516 = vpop.f32.mrb[0].mxu0
    %v7517 = vadd.f32 0.0, %v7516
    %v7518 = vpop.f32.mrb[0].mxu0
    %v7519 = vadd.f32 0.0, %v7518
    %7520 = vmatprep.mubr.bf16.mxu0 0
    %7521 = vmatmul.mubr.bf16.gmra.mrb[0].mxu0 %v6787
    %v7522 = vpop.f32.mrb[0].mxu0
    %v7523 = vadd.f32 0.0, %v7522
    %v7524 = vpop.f32.mrb[0].mxu0
    %v7525 = vadd.f32 0.0, %v7524
    %v7526 = vpop.f32.mrb[0].mxu0
    %v7527 = vadd.f32 0.0, %v7526
    %v7528 = vpop.f32.mrb[0].mxu0
    %v7529 = vadd.f32 0.0, %v7528
    %7530 = vmatprep.mubr.bf16.mxu0 0
    %7531 = vmatmul.mubr.bf16.gmra.mrb[0].mxu0 %v6788
    %v7532 = vpop.f32.mrb[0].mxu0
    %v7533 = vadd.f32 0.0, %v7532
    %v7534 = vpop.f32.mrb[0].mxu0
    %v7535 = vadd.f32 0.0, %v7534
    %v7536 = vpop.f32.mrb[0].mxu0
    %v7537 = vadd.f32 0.0, %v7536
    %v7538 = vpop.f32.mrb[0].mxu0
    %v7539 = vadd.f32 0.0, %v7538
    %7540 = vmatprep.mubr.bf16.mxu0 0
    %7541 = vmatmul.mubr.bf16.gmra.mrb[0].mxu0 %v6789
    %v7542 = vpop.f32.mrb[0].mxu0
    %v7543 = vadd.f32 0.0, %v7542
    %v7544 = vpop.f32.mrb[0].mxu0
    %v7545 = vadd.f32 0.0, %v7544
    %v7546 = vpop.f32.mrb[0].mxu0
    %v7547 = vadd.f32 0.0, %v7546
    %v7548 = vpop.f32.mrb[0].mxu0
    %v7549 = vadd.f32 0.0, %v7548
    %7550 = vmatprep.mubr.bf16.mxu0 0
    %7551 = vmatmul.mubr.bf16.gmra.mrb[0].mxu0 %v6790
    %v7552 = vpop.f32.mrb[0].mxu0
    %v7553 = vadd.f32 0.0, %v7552
    %v7554 = vpop.f32.mrb[0].mxu0
    %v7555 = vadd.f32 0.0, %v7554
    %v7556 = vpop.f32.mrb[0].mxu0
    %v7557 = vadd.f32 0.0, %v7556
    %v7558 = vpop.f32.mrb[0].mxu0
    %v7559 = vadd.f32 0.0, %v7558
    %7560 = vdwg.mxu0
    %7561 = vmatprep.subr.bf16.mxu0 %v7052
    %7562 = vmatpush1.bf16.msra.mxu0 %v7051
    %7563 = vmatprep.subr.bf16.mxu0 %v7060
    %7564 = vmatpush1.bf16.msra.mxu0 %v7059
    %7565 = vmatprep.subr.bf16.mxu0 %v7068
    %7566 = vmatpush1.bf16.msra.mxu0 %v7067
    %7567 = vmatprep.subr.bf16.mxu0 %v7076
    %7568 = vmatpush1.bf16.msra.mxu0 %v7075
    %7569 = vmatprep.subr.bf16.mxu0 %v7084
    %7570 = vmatpush1.bf16.msra.mxu0 %v7083
    %7571 = vmatprep.subr.bf16.mxu0 %v7092
    %7572 = vmatpush1.bf16.msra.mxu0 %v7091
    %7573 = vmatprep.subr.bf16.mxu0 %v7100
    %7574 = vmatpush1.bf16.msra.mxu0 %v7099
    %7575 = vmatprep.subr.bf16.mxu0 %v7108
    %7576 = vmatpush1.bf16.msra.mxu0 %v7107
    %7577 = vmatprep.subr.bf16.mxu0 0
    %7578 = vmatpush1.bf16.msra.mxu0 0
    %7579 = vmatprep.subr.bf16.mxu0 0
    %7580 = vmatpush1.bf16.msra.mxu0 0
    %7581 = vmatprep.subr.bf16.mxu0 0
    %7582 = vmatpush1.bf16.msra.mxu0 0
    %7583 = vmatprep.subr.bf16.mxu0 0
    %7584 = vmatpush1.bf16.msra.mxu0 0
    %7585 = vmatprep.subr.bf16.mxu0 0
    %7586 = vmatpush1.bf16.msra.mxu0 0
    %7587 = vmatprep.subr.bf16.mxu0 0
    %7588 = vmatpush1.bf16.msra.mxu0 0
    %7589 = vmatprep.subr.bf16.mxu0 0
    %7590 = vmatpush1.bf16.msra.mxu0 0
    %7591 = vmatprep.subr.bf16.mxu0 0
    %7592 = vmatpush1.bf16.msra.mxu0 0
    %7593 = vmatprep.mubr.bf16.mxu0 0
    %7594 = vmatmul.mubr.bf16.gmra.mrb[0].mxu0 %v6775
    %v7595 = vpop.f32.mrb[0].mxu0
    %v7596 = vadd.f32 0.0, %v7595
    %v7597 = vpop.f32.mrb[0].mxu0
    %v7598 = vadd.f32 0.0, %v7597
    %v7599 = vpop.f32.mrb[0].mxu0
    %v7600 = vadd.f32 0.0, %v7599
    %v7601 = vpop.f32.mrb[0].mxu0
    %v7602 = vadd.f32 0.0, %v7601
    %7603 = vmatprep.mubr.bf16.mxu0 0
    %7604 = vmatmul.mubr.bf16.gmra.mrb[0].mxu0 %v6776
    %v7605 = vpop.f32.mrb[0].mxu0
    %v7606 = vadd.f32 0.0, %v7605
    %v7607 = vpop.f32.mrb[0].mxu0
    %v7608 = vadd.f32 0.0, %v7607
    %v7609 = vpop.f32.mrb[0].mxu0
    %v7610 = vadd.f32 0.0, %v7609
    %v7611 = vpop.f32.mrb[0].mxu0
    %v7612 = vadd.f32 0.0, %v7611
    %7613 = vmatprep.mubr.bf16.mxu0 0
    %7614 = vmatmul.mubr.bf16.gmra.mrb[0].mxu0 %v6777
    %v7615 = vpop.f32.mrb[0].mxu0
    %v7616 = vadd.f32 0.0, %v7615
    %v7617 = vpop.f32.mrb[0].mxu0
    %v7618 = vadd.f32 0.0, %v7617
    %v7619 = vpop.f32.mrb[0].mxu0
    %v7620 = vadd.f32 0.0, %v7619
    %v7621 = vpop.f32.mrb[0].mxu0
    %v7622 = vadd.f32 0.0, %v7621
    %7623 = vmatprep.mubr.bf16.mxu0 0
    %7624 = vmatmul.mubr.bf16.gmra.mrb[0].mxu0 %v6778
    %v7625 = vpop.f32.mrb[0].mxu0
    %v7626 = vadd.f32 0.0, %v7625
    %v7627 = vpop.f32.mrb[0].mxu0
    %v7628 = vadd.f32 0.0, %v7627
    %v7629 = vpop.f32.mrb[0].mxu0
    %v7630 = vadd.f32 0.0, %v7629
    %v7631 = vpop.f32.mrb[0].mxu0
    %v7632 = vadd.f32 0.0, %v7631
    %7633 = vmatprep.mubr.bf16.mxu0 0
    %7634 = vmatmul.mubr.bf16.gmra.mrb[0].mxu0 %v6779
    %v7635 = vpop.f32.mrb[0].mxu0
    %v7636 = vadd.f32 0.0, %v7635
    %v7637 = vpop.f32.mrb[0].mxu0
    %v7638 = vadd.f32 0.0, %v7637
    %v7639 = vpop.f32.mrb[0].mxu0
    %v7640 = vadd.f32 0.0, %v7639
    %v7641 = vpop.f32.mrb[0].mxu0
    %v7642 = vadd.f32 0.0, %v7641
    %7643 = vmatprep.mubr.bf16.mxu0 0
    %7644 = vmatmul.mubr.bf16.gmra.mrb[0].mxu0 %v6780
    %v7645 = vpop.f32.mrb[0].mxu0
    %v7646 = vadd.f32 0.0, %v7645
    %v7647 = vpop.f32.mrb[0].mxu0
    %v7648 = vadd.f32 0.0, %v7647
    %v7649 = vpop.f32.mrb[0].mxu0
    %v7650 = vadd.f32 0.0, %v7649
    %v7651 = vpop.f32.mrb[0].mxu0
    %v7652 = vadd.f32 0.0, %v7651
    %7653 = vmatprep.mubr.bf16.mxu0 0
    %7654 = vmatmul.mubr.bf16.gmra.mrb[0].mxu0 %v6781
    %v7655 = vpop.f32.mrb[0].mxu0
    %v7656 = vadd.f32 0.0, %v7655
    %v7657 = vpop.f32.mrb[0].mxu0
    %v7658 = vadd.f32 0.0, %v7657
    %v7659 = vpop.f32.mrb[0].mxu0
    %v7660 = vadd.f32 0.0, %v7659
    %v7661 = vpop.f32.mrb[0].mxu0
    %v7662 = vadd.f32 0.0, %v7661
    %7663 = vmatprep.mubr.bf16.mxu0 0
    %7664 = vmatmul.mubr.bf16.gmra.mrb[0].mxu0 %v6782
    %v7665 = vpop.f32.mrb[0].mxu0
    %v7666 = vadd.f32 0.0, %v7665
    %v7667 = vpop.f32.mrb[0].mxu0
    %v7668 = vadd.f32 0.0, %v7667
    %v7669 = vpop.f32.mrb[0].mxu0
    %v7670 = vadd.f32 0.0, %v7669
    %v7671 = vpop.f32.mrb[0].mxu0
    %v7672 = vadd.f32 0.0, %v7671
    %7673 = vmatprep.mubr.bf16.mxu0 0
    %7674 = vmatmul.mubr.bf16.gmra.mrb[0].mxu0 %v6783
    %v7675 = vpop.f32.mrb[0].mxu0
    %v7676 = vadd.f32 0.0, %v7675
    %v7677 = vpop.f32.mrb[0].mxu0
    %v7678 = vadd.f32 0.0, %v7677
    %v7679 = vpop.f32.mrb[0].mxu0
    %v7680 = vadd.f32 0.0, %v7679
    %v7681 = vpop.f32.mrb[0].mxu0
    %v7682 = vadd.f32 0.0, %v7681
    %7683 = vmatprep.mubr.bf16.mxu0 0
    %7684 = vmatmul.mubr.bf16.gmra.mrb[0].mxu0 %v6784
    %v7685 = vpop.f32.mrb[0].mxu0
    %v7686 = vadd.f32 0.0, %v7685
    %v7687 = vpop.f32.mrb[0].mxu0
    %v7688 = vadd.f32 0.0, %v7687
    %v7689 = vpop.f32.mrb[0].mxu0
    %v7690 = vadd.f32 0.0, %v7689
    %v7691 = vpop.f32.mrb[0].mxu0
    %v7692 = vadd.f32 0.0, %v7691
    %7693 = vmatprep.mubr.bf16.mxu0 0
    %7694 = vmatmul.mubr.bf16.gmra.mrb[0].mxu0 %v6785
    %v7695 = vpop.f32.mrb[0].mxu0
    %v7696 = vadd.f32 0.0, %v7695
    %v7697 = vpop.f32.mrb[0].mxu0
    %v7698 = vadd.f32 0.0, %v7697
    %v7699 = vpop.f32.mrb[0].mxu0
    %v7700 = vadd.f32 0.0, %v7699
    %v7701 = vpop.f32.mrb[0].mxu0
    %v7702 = vadd.f32 0.0, %v7701
    %7703 = vmatprep.mubr.bf16.mxu0 0
    %7704 = vmatmul.mubr.bf16.gmra.mrb[0].mxu0 %v6786
    %v7705 = vpop.f32.mrb[0].mxu0
    %v7706 = vadd.f32 0.0, %v7705
    %v7707 = vpop.f32.mrb[0].mxu0
    %v7708 = vadd.f32 0.0, %v7707
    %v7709 = vpop.f32.mrb[0].mxu0
    %v7710 = vadd.f32 0.0, %v7709
    %v7711 = vpop.f32.mrb[0].mxu0
    %v7712 = vadd.f32 0.0, %v7711
    %7713 = vmatprep.mubr.bf16.mxu0 0
    %7714 = vmatmul.mubr.bf16.gmra.mrb[0].mxu0 %v6787
    %v7715 = vpop.f32.mrb[0].mxu0
    %v7716 = vadd.f32 0.0, %v7715
    %v7717 = vpop.f32.mrb[0].mxu0
    %v7718 = vadd.f32 0.0, %v7717
    %v7719 = vpop.f32.mrb[0].mxu0
    %v7720 = vadd.f32 0.0, %v7719
    %v7721 = vpop.f32.mrb[0].mxu0
    %v7722 = vadd.f32 0.0, %v7721
    %7723 = vmatprep.mubr.bf16.mxu0 0
    %7724 = vmatmul.mubr.bf16.gmra.mrb[0].mxu0 %v6788
    %v7725 = vpop.f32.mrb[0].mxu0
    %v7726 = vadd.f32 0.0, %v7725
    %v7727 = vpop.f32.mrb[0].mxu0
    %v7728 = vadd.f32 0.0, %v7727
    %v7729 = vpop.f32.mrb[0].mxu0
    %v7730 = vadd.f32 0.0, %v7729
    %v7731 = vpop.f32.mrb[0].mxu0
    %v7732 = vadd.f32 0.0, %v7731
    %7733 = vmatprep.mubr.bf16.mxu0 0
    %7734 = vmatmul.mubr.bf16.gmra.mrb[0].mxu0 %v6789
    %v7735 = vpop.f32.mrb[0].mxu0
    %v7736 = vadd.f32 0.0, %v7735
    %v7737 = vpop.f32.mrb[0].mxu0
    %v7738 = vadd.f32 0.0, %v7737
    %v7739 = vpop.f32.mrb[0].mxu0
    %v7740 = vadd.f32 0.0, %v7739
    %v7741 = vpop.f32.mrb[0].mxu0
    %v7742 = vadd.f32 0.0, %v7741
    %7743 = vmatprep.mubr.bf16.mxu0 0
    %7744 = vmatmul.mubr.bf16.gmra.mrb[0].mxu0 %v6790
    %v7745 = vpop.f32.mrb[0].mxu0
    %v7746 = vadd.f32 0.0, %v7745
    %v7747 = vpop.f32.mrb[0].mxu0
    %v7748 = vadd.f32 0.0, %v7747
    %v7749 = vpop.f32.mrb[0].mxu0
    %v7750 = vadd.f32 0.0, %v7749
    %v7751 = vpop.f32.mrb[0].mxu0
    %v7752 = vadd.f32 0.0, %v7751
    %7753 = vdwg.mxu0
    %7754 = vmatprep.subr.bf16.mxu0 %v7054
    %7755 = vmatpush1.bf16.msra.mxu0 %v7053
    %7756 = vmatprep.subr.bf16.mxu0 %v7062
    %7757 = vmatpush1.bf16.msra.mxu0 %v7061
    %7758 = vmatprep.subr.bf16.mxu0 %v7070
    %7759 = vmatpush1.bf16.msra.mxu0 %v7069
    %7760 = vmatprep.subr.bf16.mxu0 %v7078
    %7761 = vmatpush1.bf16.msra.mxu0 %v7077
    %7762 = vmatprep.subr.bf16.mxu0 %v7086
    %7763 = vmatpush1.bf16.msra.mxu0 %v7085
    %7764 = vmatprep.subr.bf16.mxu0 %v7094
    %7765 = vmatpush1.bf16.msra.mxu0 %v7093
    %7766 = vmatprep.subr.bf16.mxu0 %v7102
    %7767 = vmatpush1.bf16.msra.mxu0 %v7101
    %7768 = vmatprep.subr.bf16.mxu0 %v7110
    %7769 = vmatpush1.bf16.msra.mxu0 %v7109
    %7770 = vmatprep.subr.bf16.mxu0 0
    %7771 = vmatpush1.bf16.msra.mxu0 0
    %7772 = vmatprep.subr.bf16.mxu0 0
    %7773 = vmatpush1.bf16.msra.mxu0 0
    %7774 = vmatprep.subr.bf16.mxu0 0
    %7775 = vmatpush1.bf16.msra.mxu0 0
    %7776 = vmatprep.subr.bf16.mxu0 0
    %7777 = vmatpush1.bf16.msra.mxu0 0
    %7778 = vmatprep.subr.bf16.mxu0 0
    %7779 = vmatpush1.bf16.msra.mxu0 0
    %7780 = vmatprep.subr.bf16.mxu0 0
    %7781 = vmatpush1.bf16.msra.mxu0 0
    %7782 = vmatprep.subr.bf16.mxu0 0
    %7783 = vmatpush1.bf16.msra.mxu0 0
    %7784 = vmatprep.subr.bf16.mxu0 0
    %7785 = vmatpush1.bf16.msra.mxu0 0
    %7786 = vmatprep.mubr.bf16.mxu0 0
    %7787 = vmatmul.mubr.bf16.gmra.mrb[0].mxu0 %v6775
    %v7788 = vpop.f32.mrb[0].mxu0
    %v7789 = vadd.f32 0.0, %v7788
    %v7790 = vpop.f32.mrb[0].mxu0
    %v7791 = vadd.f32 0.0, %v7790
    %v7792 = vpop.f32.mrb[0].mxu0
    %v7793 = vadd.f32 0.0, %v7792
    %v7794 = vpop.f32.mrb[0].mxu0
    %v7795 = vadd.f32 0.0, %v7794
    %7796 = vmatprep.mubr.bf16.mxu0 0
    %7797 = vmatmul.mubr.bf16.gmra.mrb[0].mxu0 %v6776
    %v7798 = vpop.f32.mrb[0].mxu0
    %v7799 = vadd.f32 0.0, %v7798
    %v7800 = vpop.f32.mrb[0].mxu0
    %v7801 = vadd.f32 0.0, %v7800
    %v7802 = vpop.f32.mrb[0].mxu0
    %v7803 = vadd.f32 0.0, %v7802
    %v7804 = vpop.f32.mrb[0].mxu0
    %v7805 = vadd.f32 0.0, %v7804
    %7806 = vmatprep.mubr.bf16.mxu0 0
    %7807 = vmatmul.mubr.bf16.gmra.mrb[0].mxu0 %v6777
    %v7808 = vpop.f32.mrb[0].mxu0
    %v7809 = vadd.f32 0.0, %v7808
    %v7810 = vpop.f32.mrb[0].mxu0
    %v7811 = vadd.f32 0.0, %v7810
    %v7812 = vpop.f32.mrb[0].mxu0
    %v7813 = vadd.f32 0.0, %v7812
    %v7814 = vpop.f32.mrb[0].mxu0
    %v7815 = vadd.f32 0.0, %v7814
    %7816 = vmatprep.mubr.bf16.mxu0 0
    %7817 = vmatmul.mubr.bf16.gmra.mrb[0].mxu0 %v6778
    %v7818 = vpop.f32.mrb[0].mxu0
    %v7819 = vadd.f32 0.0, %v7818
    %v7820 = vpop.f32.mrb[0].mxu0
    %v7821 = vadd.f32 0.0, %v7820
    %v7822 = vpop.f32.mrb[0].mxu0
    %v7823 = vadd.f32 0.0, %v7822
    %v7824 = vpop.f32.mrb[0].mxu0
    %v7825 = vadd.f32 0.0, %v7824
    %7826 = vmatprep.mubr.bf16.mxu0 0
    %7827 = vmatmul.mubr.bf16.gmra.mrb[0].mxu0 %v6779
    %v7828 = vpop.f32.mrb[0].mxu0
    %v7829 = vadd.f32 0.0, %v7828
    %v7830 = vpop.f32.mrb[0].mxu0
    %v7831 = vadd.f32 0.0, %v7830
    %v7832 = vpop.f32.mrb[0].mxu0
    %v7833 = vadd.f32 0.0, %v7832
    %v7834 = vpop.f32.mrb[0].mxu0
    %v7835 = vadd.f32 0.0, %v7834
    %7836 = vmatprep.mubr.bf16.mxu0 0
    %7837 = vmatmul.mubr.bf16.gmra.mrb[0].mxu0 %v6780
    %v7838 = vpop.f32.mrb[0].mxu0
    %v7839 = vadd.f32 0.0, %v7838
    %v7840 = vpop.f32.mrb[0].mxu0
    %v7841 = vadd.f32 0.0, %v7840
    %v7842 = vpop.f32.mrb[0].mxu0
    %v7843 = vadd.f32 0.0, %v7842
    %v7844 = vpop.f32.mrb[0].mxu0
    %v7845 = vadd.f32 0.0, %v7844
    %7846 = vmatprep.mubr.bf16.mxu0 0
    %7847 = vmatmul.mubr.bf16.gmra.mrb[0].mxu0 %v6781
    %v7848 = vpop.f32.mrb[0].mxu0
    %v7849 = vadd.f32 0.0, %v7848
    %v7850 = vpop.f32.mrb[0].mxu0
    %v7851 = vadd.f32 0.0, %v7850
    %v7852 = vpop.f32.mrb[0].mxu0
    %v7853 = vadd.f32 0.0, %v7852
    %v7854 = vpop.f32.mrb[0].mxu0
    %v7855 = vadd.f32 0.0, %v7854
    %7856 = vmatprep.mubr.bf16.mxu0 0
    %7857 = vmatmul.mubr.bf16.gmra.mrb[0].mxu0 %v6782
    %v7858 = vpop.f32.mrb[0].mxu0
    %v7859 = vadd.f32 0.0, %v7858
    %v7860 = vpop.f32.mrb[0].mxu0
    %v7861 = vadd.f32 0.0, %v7860
    %v7862 = vpop.f32.mrb[0].mxu0
    %v7863 = vadd.f32 0.0, %v7862
    %v7864 = vpop.f32.mrb[0].mxu0
    %v7865 = vadd.f32 0.0, %v7864
    %7866 = vmatprep.mubr.bf16.mxu0 0
    %7867 = vmatmul.mubr.bf16.gmra.mrb[0].mxu0 %v6783
    %v7868 = vpop.f32.mrb[0].mxu0
    %v7869 = vadd.f32 0.0, %v7868
    %v7870 = vpop.f32.mrb[0].mxu0
    %v7871 = vadd.f32 0.0, %v7870
    %v7872 = vpop.f32.mrb[0].mxu0
    %v7873 = vadd.f32 0.0, %v7872
    %v7874 = vpop.f32.mrb[0].mxu0
    %v7875 = vadd.f32 0.0, %v7874
    %7876 = vmatprep.mubr.bf16.mxu0 0
    %7877 = vmatmul.mubr.bf16.gmra.mrb[0].mxu0 %v6784
    %v7878 = vpop.f32.mrb[0].mxu0
    %v7879 = vadd.f32 0.0, %v7878
    %v7880 = vpop.f32.mrb[0].mxu0
    %v7881 = vadd.f32 0.0, %v7880
    %v7882 = vpop.f32.mrb[0].mxu0
    %v7883 = vadd.f32 0.0, %v7882
    %v7884 = vpop.f32.mrb[0].mxu0
    %v7885 = vadd.f32 0.0, %v7884
    %7886 = vmatprep.mubr.bf16.mxu0 0
    %7887 = vmatmul.mubr.bf16.gmra.mrb[0].mxu0 %v6785
    %v7888 = vpop.f32.mrb[0].mxu0
    %v7889 = vadd.f32 0.0, %v7888
    %v7890 = vpop.f32.mrb[0].mxu0
    %v7891 = vadd.f32 0.0, %v7890
    %v7892 = vpop.f32.mrb[0].mxu0
    %v7893 = vadd.f32 0.0, %v7892
    %v7894 = vpop.f32.mrb[0].mxu0
    %v7895 = vadd.f32 0.0, %v7894
    %7896 = vmatprep.mubr.bf16.mxu0 0
    %7897 = vmatmul.mubr.bf16.gmra.mrb[0].mxu0 %v6786
    %v7898 = vpop.f32.mrb[0].mxu0
    %v7899 = vadd.f32 0.0, %v7898
    %v7900 = vpop.f32.mrb[0].mxu0
    %v7901 = vadd.f32 0.0, %v7900
    %v7902 = vpop.f32.mrb[0].mxu0
    %v7903 = vadd.f32 0.0, %v7902
    %v7904 = vpop.f32.mrb[0].mxu0
    %v7905 = vadd.f32 0.0, %v7904
    %7906 = vmatprep.mubr.bf16.mxu0 0
    %7907 = vmatmul.mubr.bf16.gmra.mrb[0].mxu0 %v6787
    %v7908 = vpop.f32.mrb[0].mxu0
    %v7909 = vadd.f32 0.0, %v7908
    %v7910 = vpop.f32.mrb[0].mxu0
    %v7911 = vadd.f32 0.0, %v7910
    %v7912 = vpop.f32.mrb[0].mxu0
    %v7913 = vadd.f32 0.0, %v7912
    %v7914 = vpop.f32.mrb[0].mxu0
    %v7915 = vadd.f32 0.0, %v7914
    %7916 = vmatprep.mubr.bf16.mxu0 0
    %7917 = vmatmul.mubr.bf16.gmra.mrb[0].mxu0 %v6788
    %v7918 = vpop.f32.mrb[0].mxu0
    %v7919 = vadd.f32 0.0, %v7918
    %v7920 = vpop.f32.mrb[0].mxu0
    %v7921 = vadd.f32 0.0, %v7920
    %v7922 = vpop.f32.mrb[0].mxu0
    %v7923 = vadd.f32 0.0, %v7922
    %v7924 = vpop.f32.mrb[0].mxu0
    %v7925 = vadd.f32 0.0, %v7924
    %7926 = vmatprep.mubr.bf16.mxu0 0
    %7927 = vmatmul.mubr.bf16.gmra.mrb[0].mxu0 %v6789
    %v7928 = vpop.f32.mrb[0].mxu0
    %v7929 = vadd.f32 0.0, %v7928
    %v7930 = vpop.f32.mrb[0].mxu0
    %v7931 = vadd.f32 0.0, %v7930
    %v7932 = vpop.f32.mrb[0].mxu0
    %v7933 = vadd.f32 0.0, %v7932
    %v7934 = vpop.f32.mrb[0].mxu0
    %v7935 = vadd.f32 0.0, %v7934
    %7936 = vmatprep.mubr.bf16.mxu0 0
    %7937 = vmatmul.mubr.bf16.gmra.mrb[0].mxu0 %v6790
    %v7938 = vpop.f32.mrb[0].mxu0
    %v7939 = vadd.f32 0.0, %v7938
    %v7940 = vpop.f32.mrb[0].mxu0
    %v7941 = vadd.f32 0.0, %v7940
    %v7942 = vpop.f32.mrb[0].mxu0
    %v7943 = vadd.f32 0.0, %v7942
    %v7944 = vpop.f32.mrb[0].mxu0
    %v7945 = vadd.f32 0.0, %v7944
    %7946 = vdwg.mxu0
    %v7947 = vpack.c.bf16 %v7214, %v7210
    %v7948 = vpack.c.bf16 %v7216, %v7212
    %v7949 = vpack.c.bf16 %v7407, %v7403
    %v7950 = vpack.c.bf16 %v7409, %v7405
    %v7951 = vpack.c.bf16 %v7600, %v7596
    %v7952 = vpack.c.bf16 %v7602, %v7598
    %v7953 = vpack.c.bf16 %v7793, %v7789
    %v7954 = vpack.c.bf16 %v7795, %v7791
    %v7955 = vpack.c.bf16 %v7224, %v7220
    %v7956 = vpack.c.bf16 %v7226, %v7222
    %v7957 = vpack.c.bf16 %v7417, %v7413
    %v7958 = vpack.c.bf16 %v7419, %v7415
    %v7959 = vpack.c.bf16 %v7610, %v7606
    %v7960 = vpack.c.bf16 %v7612, %v7608
    %v7961 = vpack.c.bf16 %v7803, %v7799
    %v7962 = vpack.c.bf16 %v7805, %v7801
    %v7963 = vpack.c.bf16 %v7234, %v7230
    %v7964 = vpack.c.bf16 %v7236, %v7232
    %v7965 = vpack.c.bf16 %v7427, %v7423
    %v7966 = vpack.c.bf16 %v7429, %v7425
    %v7967 = vpack.c.bf16 %v7620, %v7616
    %v7968 = vpack.c.bf16 %v7622, %v7618
    %v7969 = vpack.c.bf16 %v7813, %v7809
    %v7970 = vpack.c.bf16 %v7815, %v7811
    %v7971 = vpack.c.bf16 %v7244, %v7240
    %v7972 = vpack.c.bf16 %v7246, %v7242
    %v7973 = vpack.c.bf16 %v7437, %v7433
    %v7974 = vpack.c.bf16 %v7439, %v7435
    %v7975 = vpack.c.bf16 %v7630, %v7626
    %v7976 = vpack.c.bf16 %v7632, %v7628
    %v7977 = vpack.c.bf16 %v7823, %v7819
    %v7978 = vpack.c.bf16 %v7825, %v7821
    %v7979 = vpack.c.bf16 %v7254, %v7250
    %v7980 = vpack.c.bf16 %v7256, %v7252
    %v7981 = vpack.c.bf16 %v7447, %v7443
    %v7982 = vpack.c.bf16 %v7449, %v7445
    %v7983 = vpack.c.bf16 %v7640, %v7636
    %v7984 = vpack.c.bf16 %v7642, %v7638
    %v7985 = vpack.c.bf16 %v7833, %v7829
    %v7986 = vpack.c.bf16 %v7835, %v7831
    %v7987 = vpack.c.bf16 %v7264, %v7260
    %v7988 = vpack.c.bf16 %v7266, %v7262
    %v7989 = vpack.c.bf16 %v7457, %v7453
    %v7990 = vpack.c.bf16 %v7459, %v7455
    %v7991 = vpack.c.bf16 %v7650, %v7646
    %v7992 = vpack.c.bf16 %v7652, %v7648
    %v7993 = vpack.c.bf16 %v7843, %v7839
    %v7994 = vpack.c.bf16 %v7845, %v7841
    %v7995 = vpack.c.bf16 %v7274, %v7270
    %v7996 = vpack.c.bf16 %v7276, %v7272
    %v7997 = vpack.c.bf16 %v7467, %v7463
    %v7998 = vpack.c.bf16 %v7469, %v7465
    %v7999 = vpack.c.bf16 %v7660, %v7656
    %v8000 = vpack.c.bf16 %v7662, %v7658
    %v8001 = vpack.c.bf16 %v7853, %v7849
    %v8002 = vpack.c.bf16 %v7855, %v7851
    %v8003 = vpack.c.bf16 %v7284, %v7280
    %v8004 = vpack.c.bf16 %v7286, %v7282
    %v8005 = vpack.c.bf16 %v7477, %v7473
    %v8006 = vpack.c.bf16 %v7479, %v7475
    %v8007 = vpack.c.bf16 %v7670, %v7666
    %v8008 = vpack.c.bf16 %v7672, %v7668
    %v8009 = vpack.c.bf16 %v7863, %v7859
    %v8010 = vpack.c.bf16 %v7865, %v7861
    %v8011 = vpack.c.bf16 %v7294, %v7290
    %v8012 = vpack.c.bf16 %v7296, %v7292
    %v8013 = vpack.c.bf16 %v7487, %v7483
    %v8014 = vpack.c.bf16 %v7489, %v7485
    %v8015 = vpack.c.bf16 %v7680, %v7676
    %v8016 = vpack.c.bf16 %v7682, %v7678
    %v8017 = vpack.c.bf16 %v7873, %v7869
    %v8018 = vpack.c.bf16 %v7875, %v7871
    %v8019 = vpack.c.bf16 %v7304, %v7300
    %v8020 = vpack.c.bf16 %v7306, %v7302
    %v8021 = vpack.c.bf16 %v7497, %v7493
    %v8022 = vpack.c.bf16 %v7499, %v7495
    %v8023 = vpack.c.bf16 %v7690, %v7686
    %v8024 = vpack.c.bf16 %v7692, %v7688
    %v8025 = vpack.c.bf16 %v7883, %v7879
    %v8026 = vpack.c.bf16 %v7885, %v7881
    %v8027 = vpack.c.bf16 %v7314, %v7310
    %v8028 = vpack.c.bf16 %v7316, %v7312
    %v8029 = vpack.c.bf16 %v7507, %v7503
    %v8030 = vpack.c.bf16 %v7509, %v7505
    %v8031 = vpack.c.bf16 %v7700, %v7696
    %v8032 = vpack.c.bf16 %v7702, %v7698
    %v8033 = vpack.c.bf16 %v7893, %v7889
    %v8034 = vpack.c.bf16 %v7895, %v7891
    %v8035 = vpack.c.bf16 %v7324, %v7320
    %v8036 = vpack.c.bf16 %v7326, %v7322
    %v8037 = vpack.c.bf16 %v7517, %v7513
    %v8038 = vpack.c.bf16 %v7519, %v7515
    %v8039 = vpack.c.bf16 %v7710, %v7706
    %v8040 = vpack.c.bf16 %v7712, %v7708
    %v8041 = vpack.c.bf16 %v7903, %v7899
    %v8042 = vpack.c.bf16 %v7905, %v7901
    %v8043 = vpack.c.bf16 %v7334, %v7330
    %v8044 = vpack.c.bf16 %v7336, %v7332
    %v8045 = vpack.c.bf16 %v7527, %v7523
    %v8046 = vpack.c.bf16 %v7529, %v7525
    %v8047 = vpack.c.bf16 %v7720, %v7716
    %v8048 = vpack.c.bf16 %v7722, %v7718
    %v8049 = vpack.c.bf16 %v7913, %v7909
    %v8050 = vpack.c.bf16 %v7915, %v7911
    %v8051 = vpack.c.bf16 %v7344, %v7340
    %v8052 = vpack.c.bf16 %v7346, %v7342
    %v8053 = vpack.c.bf16 %v7537, %v7533
    %v8054 = vpack.c.bf16 %v7539, %v7535
    %v8055 = vpack.c.bf16 %v7730, %v7726
    %v8056 = vpack.c.bf16 %v7732, %v7728
    %v8057 = vpack.c.bf16 %v7923, %v7919
    %v8058 = vpack.c.bf16 %v7925, %v7921
    %v8059 = vpack.c.bf16 %v7354, %v7350
    %v8060 = vpack.c.bf16 %v7356, %v7352
    %v8061 = vpack.c.bf16 %v7547, %v7543
    %v8062 = vpack.c.bf16 %v7549, %v7545
    %v8063 = vpack.c.bf16 %v7740, %v7736
    %v8064 = vpack.c.bf16 %v7742, %v7738
    %v8065 = vpack.c.bf16 %v7933, %v7929
    %v8066 = vpack.c.bf16 %v7935, %v7931
    %v8067 = vpack.c.bf16 %v7364, %v7360
    %v8068 = vpack.c.bf16 %v7366, %v7362
    %v8069 = vpack.c.bf16 %v7557, %v7553
    %v8070 = vpack.c.bf16 %v7559, %v7555
    %v8071 = vpack.c.bf16 %v7750, %v7746
    %v8072 = vpack.c.bf16 %v7752, %v7748
    %v8073 = vpack.c.bf16 %v7943, %v7939
    %v8074 = vpack.c.bf16 %v7945, %v7941
    %v8075 = vmul.bf16 %v7947, %v6647
    %v8076 = vmul.bf16 %v7948, %v6648
    %v8077 = vmul.bf16 %v7949, %v6649
    %v8078 = vmul.bf16 %v7950, %v6650
    %v8079 = vmul.bf16 %v7951, %v6651
    %v8080 = vmul.bf16 %v7952, %v6652
    %v8081 = vmul.bf16 %v7953, %v6653
    %v8082 = vmul.bf16 %v7954, %v6654
    %v8083 = vmul.bf16 %v7955, %v6655
    %v8084 = vmul.bf16 %v7956, %v6656
    %v8085 = vmul.bf16 %v7957, %v6657
    %v8086 = vmul.bf16 %v7958, %v6658
    %v8087 = vmul.bf16 %v7959, %v6659
    %v8088 = vmul.bf16 %v7960, %v6660
    %v8089 = vmul.bf16 %v7961, %v6661
    %v8090 = vmul.bf16 %v7962, %v6662
    %v8091 = vmul.bf16 %v7963, %v6663
    %v8092 = vmul.bf16 %v7964, %v6664
    %v8093 = vmul.bf16 %v7965, %v6665
    %v8094 = vmul.bf16 %v7966, %v6666
    %v8095 = vmul.bf16 %v7967, %v6667
    %v8096 = vmul.bf16 %v7968, %v6668
    %v8097 = vmul.bf16 %v7969, %v6669
    %v8098 = vmul.bf16 %v7970, %v6670
    %v8099 = vmul.bf16 %v7971, %v6671
    %v8100 = vmul.bf16 %v7972, %v6672
    %v8101 = vmul.bf16 %v7973, %v6673
    %v8102 = vmul.bf16 %v7974, %v6674
    %v8103 = vmul.bf16 %v7975, %v6675
    %v8104 = vmul.bf16 %v7976, %v6676
    %v8105 = vmul.bf16 %v7977, %v6677
    %v8106 = vmul.bf16 %v7978, %v6678
    %v8107 = vmul.bf16 %v7979, %v6679
    %v8108 = vmul.bf16 %v7980, %v6680
    %v8109 = vmul.bf16 %v7981, %v6681
    %v8110 = vmul.bf16 %v7982, %v6682
    %v8111 = vmul.bf16 %v7983, %v6683
    %v8112 = vmul.bf16 %v7984, %v6684
    %v8113 = vmul.bf16 %v7985, %v6685
    %v8114 = vmul.bf16 %v7986, %v6686
    %v8115 = vmul.bf16 %v7987, %v6687
    %v8116 = vmul.bf16 %v7988, %v6688
    %v8117 = vmul.bf16 %v7989, %v6689
    %v8118 = vmul.bf16 %v7990, %v6690
    %v8119 = vmul.bf16 %v7991, %v6691
    %v8120 = vmul.bf16 %v7992, %v6692
    %v8121 = vmul.bf16 %v7993, %v6693
    %v8122 = vmul.bf16 %v7994, %v6694
    %v8123 = vmul.bf16 %v7995, %v6695
    %v8124 = vmul.bf16 %v7996, %v6696
    %v8125 = vmul.bf16 %v7997, %v6697
    %v8126 = vmul.bf16 %v7998, %v6698
    %v8127 = vmul.bf16 %v7999, %v6699
    %v8128 = vmul.bf16 %v8000, %v6700
    %v8129 = vmul.bf16 %v8001, %v6701
    %v8130 = vmul.bf16 %v8002, %v6702
    %v8131 = vmul.bf16 %v8003, %v6703
    %v8132 = vmul.bf16 %v8004, %v6704
    %v8133 = vmul.bf16 %v8005, %v6705
    %v8134 = vmul.bf16 %v8006, %v6706
    %v8135 = vmul.bf16 %v8007, %v6707
    %v8136 = vmul.bf16 %v8008, %v6708
    %v8137 = vmul.bf16 %v8009, %v6709
    %v8138 = vmul.bf16 %v8010, %v6710
    %v8139 = vmul.bf16 %v8011, %v6711
    %v8140 = vmul.bf16 %v8012, %v6712
    %v8141 = vmul.bf16 %v8013, %v6713
    %v8142 = vmul.bf16 %v8014, %v6714
    %v8143 = vmul.bf16 %v8015, %v6715
    %v8144 = vmul.bf16 %v8016, %v6716
    %v8145 = vmul.bf16 %v8017, %v6717
    %v8146 = vmul.bf16 %v8018, %v6718
    %v8147 = vmul.bf16 %v8019, %v6719
    %v8148 = vmul.bf16 %v8020, %v6720
    %v8149 = vmul.bf16 %v8021, %v6721
    %v8150 = vmul.bf16 %v8022, %v6722
    %v8151 = vmul.bf16 %v8023, %v6723
    %v8152 = vmul.bf16 %v8024, %v6724
    %v8153 = vmul.bf16 %v8025, %v6725
    %v8154 = vmul.bf16 %v8026, %v6726
    %v8155 = vmul.bf16 %v8027, %v6727
    %v8156 = vmul.bf16 %v8028, %v6728
    %v8157 = vmul.bf16 %v8029, %v6729
    %v8158 = vmul.bf16 %v8030, %v6730
    %v8159 = vmul.bf16 %v8031, %v6731
    %v8160 = vmul.bf16 %v8032, %v6732
    %v8161 = vmul.bf16 %v8033, %v6733
    %v8162 = vmul.bf16 %v8034, %v6734
    %v8163 = vmul.bf16 %v8035, %v6735
    %v8164 = vmul.bf16 %v8036, %v6736
    %v8165 = vmul.bf16 %v8037, %v6737
    %v8166 = vmul.bf16 %v8038, %v6738
    %v8167 = vmul.bf16 %v8039, %v6739
    %v8168 = vmul.bf16 %v8040, %v6740
    %v8169 = vmul.bf16 %v8041, %v6741
    %v8170 = vmul.bf16 %v8042, %v6742
    %v8171 = vmul.bf16 %v8043, %v6743
    %v8172 = vmul.bf16 %v8044, %v6744
    %v8173 = vmul.bf16 %v8045, %v6745
    %v8174 = vmul.bf16 %v8046, %v6746
    %v8175 = vmul.bf16 %v8047, %v6747
    %v8176 = vmul.bf16 %v8048, %v6748
    %v8177 = vmul.bf16 %v8049, %v6749
    %v8178 = vmul.bf16 %v8050, %v6750
    %v8179 = vmul.bf16 %v8051, %v6751
    %v8180 = vmul.bf16 %v8052, %v6752
    %v8181 = vmul.bf16 %v8053, %v6753
    %v8182 = vmul.bf16 %v8054, %v6754
    %v8183 = vmul.bf16 %v8055, %v6755
    %v8184 = vmul.bf16 %v8056, %v6756
    %v8185 = vmul.bf16 %v8057, %v6757
    %v8186 = vmul.bf16 %v8058, %v6758
    %v8187 = vmul.bf16 %v8059, %v6759
    %v8188 = vmul.bf16 %v8060, %v6760
    %v8189 = vmul.bf16 %v8061, %v6761
    %v8190 = vmul.bf16 %v8062, %v6762
    %v8191 = vmul.bf16 %v8063, %v6763
    %v8192 = vmul.bf16 %v8064, %v6764
    %v8193 = vmul.bf16 %v8065, %v6765
    %v8194 = vmul.bf16 %v8066, %v6766
    %v8195 = vmul.bf16 %v8067, %v6767
    %v8196 = vmul.bf16 %v8068, %v6768
    %v8197 = vmul.bf16 %v8069, %v6769
    %v8198 = vmul.bf16 %v8070, %v6770
    %v8199 = vmul.bf16 %v8071, %v6771
    %v8200 = vmul.bf16 %v8072, %v6772
    %v8201 = vmul.bf16 %v8073, %v6773
    %v8202 = vmul.bf16 %v8074, %v6774
    %v8203 = vld [vmem:[#allocation14] sm:$0xf]
    %v8204 = vld [vmem:[#allocation14 + $0x4] sm:$0xf]
    %v8205 = vld [vmem:[#allocation14 + $0x8] sm:$0xf]
    %v8206 = vld [vmem:[#allocation14 + $0xc] sm:$0xf]
    %v8207 = vld [vmem:[#allocation14 + $0x10] sm:$0xf]
    %v8208 = vld [vmem:[#allocation14 + $0x14] sm:$0xf]
    %v8209 = vld [vmem:[#allocation14 + $0x18] sm:$0xf]
    %v8210 = vld [vmem:[#allocation14 + $0x1c] sm:$0xf]
    %v8211 = vld [vmem:[#allocation14 + $0x20] sm:$0xf]
    %v8212 = vld [vmem:[#allocation14 + $0x24] sm:$0xf]
    %v8213 = vld [vmem:[#allocation14 + $0x28] sm:$0xf]
    %v8214 = vld [vmem:[#allocation14 + $0x2c] sm:$0xf]
    %v8215 = vld [vmem:[#allocation14 + $0x30] sm:$0xf]
    %v8216 = vld [vmem:[#allocation14 + $0x34] sm:$0xf]
    %v8217 = vld [vmem:[#allocation14 + $0x38] sm:$0xf]
    %v8218 = vld [vmem:[#allocation14 + $0x3c] sm:$0xf]
    %v8219 = vld [vmem:[#allocation14 + $0x40] sm:$0xf]
    %v8220 = vld [vmem:[#allocation14 + $0x44] sm:$0xf]
    %v8221 = vld [vmem:[#allocation14 + $0x48] sm:$0xf]
    %v8222 = vld [vmem:[#allocation14 + $0x4c] sm:$0xf]
    %v8223 = vld [vmem:[#allocation14 + $0x50] sm:$0xf]
    %v8224 = vld [vmem:[#allocation14 + $0x54] sm:$0xf]
    %v8225 = vld [vmem:[#allocation14 + $0x58] sm:$0xf]
    %v8226 = vld [vmem:[#allocation14 + $0x5c] sm:$0xf]
    %v8227 = vld [vmem:[#allocation14 + $0x60] sm:$0xf]
    %v8228 = vld [vmem:[#allocation14 + $0x64] sm:$0xf]
    %v8229 = vld [vmem:[#allocation14 + $0x68] sm:$0xf]
    %v8230 = vld [vmem:[#allocation14 + $0x6c] sm:$0xf]
    %v8231 = vld [vmem:[#allocation14 + $0x70] sm:$0xf]
    %v8232 = vld [vmem:[#allocation14 + $0x74] sm:$0xf]
    %v8233 = vld [vmem:[#allocation14 + $0x78] sm:$0xf]
    %v8234 = vld [vmem:[#allocation14 + $0x7c] sm:$0xf]
    %v8235 = vld [vmem:[#allocation14 + $0x80] sm:$0xf]
    %v8236 = vld [vmem:[#allocation14 + $0x84] sm:$0xf]
    %v8237 = vld [vmem:[#allocation14 + $0x88] sm:$0xf]
    %v8238 = vld [vmem:[#allocation14 + $0x8c] sm:$0xf]
    %v8239 = vld [vmem:[#allocation14 + $0x90] sm:$0xf]
    %v8240 = vld [vmem:[#allocation14 + $0x94] sm:$0xf]
    %v8241 = vld [vmem:[#allocation14 + $0x98] sm:$0xf]
    %v8242 = vld [vmem:[#allocation14 + $0x9c] sm:$0xf]
    %v8243 = vld [vmem:[#allocation14 + $0xa0] sm:$0xf]
    %v8244 = vld [vmem:[#allocation14 + $0xa4] sm:$0xf]
    %v8245 = vld [vmem:[#allocation14 + $0xa8] sm:$0xf]
    %v8246 = vld [vmem:[#allocation14 + $0xac] sm:$0xf]
    %v8247 = vld [vmem:[#allocation14 + $0xb0] sm:$0xf]
    %v8248 = vld [vmem:[#allocation14 + $0xb4] sm:$0xf]
    %v8249 = vld [vmem:[#allocation14 + $0xb8] sm:$0xf]
    %v8250 = vld [vmem:[#allocation14 + $0xbc] sm:$0xf]
    %v8251 = vld [vmem:[#allocation14 + $0xc0] sm:$0xf]
    %v8252 = vld [vmem:[#allocation14 + $0xc4] sm:$0xf]
    %v8253 = vld [vmem:[#allocation14 + $0xc8] sm:$0xf]
    %v8254 = vld [vmem:[#allocation14 + $0xcc] sm:$0xf]
    %v8255 = vld [vmem:[#allocation14 + $0xd0] sm:$0xf]
    %v8256 = vld [vmem:[#allocation14 + $0xd4] sm:$0xf]
    %v8257 = vld [vmem:[#allocation14 + $0xd8] sm:$0xf]
    %v8258 = vld [vmem:[#allocation14 + $0xdc] sm:$0xf]
    %v8259 = vld [vmem:[#allocation14 + $0xe0] sm:$0xf]
    %v8260 = vld [vmem:[#allocation14 + $0xe4] sm:$0xf]
    %v8261 = vld [vmem:[#allocation14 + $0xe8] sm:$0xf]
    %v8262 = vld [vmem:[#allocation14 + $0xec] sm:$0xf]
    %v8263 = vld [vmem:[#allocation14 + $0xf0] sm:$0xf]
    %v8264 = vld [vmem:[#allocation14 + $0xf4] sm:$0xf]
    %v8265 = vld [vmem:[#allocation14 + $0xf8] sm:$0xf]
    %v8266 = vld [vmem:[#allocation14 + $0xfc] sm:$0xf]
    %v8267 = vld [vmem:[#allocation14 + $0x100] sm:$0xf]
    %v8268 = vld [vmem:[#allocation14 + $0x104] sm:$0xf]
    %v8269 = vld [vmem:[#allocation14 + $0x108] sm:$0xf]
    %v8270 = vld [vmem:[#allocation14 + $0x10c] sm:$0xf]
    %v8271 = vld [vmem:[#allocation14 + $0x110] sm:$0xf]
    %v8272 = vld [vmem:[#allocation14 + $0x114] sm:$0xf]
    %v8273 = vld [vmem:[#allocation14 + $0x118] sm:$0xf]
    %v8274 = vld [vmem:[#allocation14 + $0x11c] sm:$0xf]
    %v8275 = vld [vmem:[#allocation14 + $0x120] sm:$0xf]
    %v8276 = vld [vmem:[#allocation14 + $0x124] sm:$0xf]
    %v8277 = vld [vmem:[#allocation14 + $0x128] sm:$0xf]
    %v8278 = vld [vmem:[#allocation14 + $0x12c] sm:$0xf]
    %v8279 = vld [vmem:[#allocation14 + $0x130] sm:$0xf]
    %v8280 = vld [vmem:[#allocation14 + $0x134] sm:$0xf]
    %v8281 = vld [vmem:[#allocation14 + $0x138] sm:$0xf]
    %v8282 = vld [vmem:[#allocation14 + $0x13c] sm:$0xf]
    %v8283 = vld [vmem:[#allocation14 + $0x140] sm:$0xf]
    %v8284 = vld [vmem:[#allocation14 + $0x144] sm:$0xf]
    %v8285 = vld [vmem:[#allocation14 + $0x148] sm:$0xf]
    %v8286 = vld [vmem:[#allocation14 + $0x14c] sm:$0xf]
    %v8287 = vld [vmem:[#allocation14 + $0x150] sm:$0xf]
    %v8288 = vld [vmem:[#allocation14 + $0x154] sm:$0xf]
    %v8289 = vld [vmem:[#allocation14 + $0x158] sm:$0xf]
    %v8290 = vld [vmem:[#allocation14 + $0x15c] sm:$0xf]
    %v8291 = vld [vmem:[#allocation14 + $0x160] sm:$0xf]
    %v8292 = vld [vmem:[#allocation14 + $0x164] sm:$0xf]
    %v8293 = vld [vmem:[#allocation14 + $0x168] sm:$0xf]
    %v8294 = vld [vmem:[#allocation14 + $0x16c] sm:$0xf]
    %v8295 = vld [vmem:[#allocation14 + $0x170] sm:$0xf]
    %v8296 = vld [vmem:[#allocation14 + $0x174] sm:$0xf]
    %v8297 = vld [vmem:[#allocation14 + $0x178] sm:$0xf]
    %v8298 = vld [vmem:[#allocation14 + $0x17c] sm:$0xf]
    %v8299 = vld [vmem:[#allocation14 + $0x180] sm:$0xf]
    %v8300 = vld [vmem:[#allocation14 + $0x184] sm:$0xf]
    %v8301 = vld [vmem:[#allocation14 + $0x188] sm:$0xf]
    %v8302 = vld [vmem:[#allocation14 + $0x18c] sm:$0xf]
    %v8303 = vld [vmem:[#allocation14 + $0x190] sm:$0xf]
    %v8304 = vld [vmem:[#allocation14 + $0x194] sm:$0xf]
    %v8305 = vld [vmem:[#allocation14 + $0x198] sm:$0xf]
    %v8306 = vld [vmem:[#allocation14 + $0x19c] sm:$0xf]
    %v8307 = vld [vmem:[#allocation14 + $0x1a0] sm:$0xf]
    %v8308 = vld [vmem:[#allocation14 + $0x1a4] sm:$0xf]
    %v8309 = vld [vmem:[#allocation14 + $0x1a8] sm:$0xf]
    %v8310 = vld [vmem:[#allocation14 + $0x1ac] sm:$0xf]
    %v8311 = vld [vmem:[#allocation14 + $0x1b0] sm:$0xf]
    %v8312 = vld [vmem:[#allocation14 + $0x1b4] sm:$0xf]
    %v8313 = vld [vmem:[#allocation14 + $0x1b8] sm:$0xf]
    %v8314 = vld [vmem:[#allocation14 + $0x1bc] sm:$0xf]
    %v8315 = vld [vmem:[#allocation14 + $0x1c0] sm:$0xf]
    %v8316 = vld [vmem:[#allocation14 + $0x1c4] sm:$0xf]
    %v8317 = vld [vmem:[#allocation14 + $0x1c8] sm:$0xf]
    %v8318 = vld [vmem:[#allocation14 + $0x1cc] sm:$0xf]
    %v8319 = vld [vmem:[#allocation14 + $0x1d0] sm:$0xf]
    %v8320 = vld [vmem:[#allocation14 + $0x1d4] sm:$0xf]
    %v8321 = vld [vmem:[#allocation14 + $0x1d8] sm:$0xf]
    %v8322 = vld [vmem:[#allocation14 + $0x1dc] sm:$0xf]
    %v8323 = vld [vmem:[#allocation14 + $0x1e0] sm:$0xf]
    %v8324 = vld [vmem:[#allocation14 + $0x1e4] sm:$0xf]
    %v8325 = vld [vmem:[#allocation14 + $0x1e8] sm:$0xf]
    %v8326 = vld [vmem:[#allocation14 + $0x1ec] sm:$0xf]
    %v8327 = vld [vmem:[#allocation14 + $0x1f0] sm:$0xf]
    %v8328 = vld [vmem:[#allocation14 + $0x1f4] sm:$0xf]
    %v8329 = vld [vmem:[#allocation14 + $0x1f8] sm:$0xf]
    %v8330 = vld [vmem:[#allocation14 + $0x1fc] sm:$0xf]
    %v8331 = vld [vmem:[%s12] sm:$0x1]
    %v8333 = vlaneseq
    %v8334 = vshrl.u32 %v8333, 7
    %v8335 = vsub.s32 0, %v8334
    %v8336 = vrot.slane %v8331, %v8335
    %v8466 = vunpack.c.l.b16 %v8203
    %v8467 = vunpack.c.l.b16 %v8204
    %v8468 = vunpack.c.l.b16 %v8205
    %v8469 = vunpack.c.l.b16 %v8206
    %v8470 = vunpack.c.l.b16 %v8207
    %v8471 = vunpack.c.l.b16 %v8208
    %v8472 = vunpack.c.l.b16 %v8209
    %v8473 = vunpack.c.l.b16 %v8210
    %v8474 = vunpack.c.l.b16 %v8211
    %v8475 = vunpack.c.l.b16 %v8212
    %v8476 = vunpack.c.l.b16 %v8213
    %v8477 = vunpack.c.l.b16 %v8214
    %v8478 = vunpack.c.l.b16 %v8215
    %v8479 = vunpack.c.l.b16 %v8216
    %v8480 = vunpack.c.l.b16 %v8217
    %v8481 = vunpack.c.l.b16 %v8218
    %v8482 = vunpack.c.l.b16 %v8219
    %v8483 = vunpack.c.l.b16 %v8220
    %v8484 = vunpack.c.l.b16 %v8221
    %v8485 = vunpack.c.l.b16 %v8222
    %v8486 = vunpack.c.l.b16 %v8223
    %v8487 = vunpack.c.l.b16 %v8224
    %v8488 = vunpack.c.l.b16 %v8225
    %v8489 = vunpack.c.l.b16 %v8226
    %v8490 = vunpack.c.l.b16 %v8227
    %v8491 = vunpack.c.l.b16 %v8228
    %v8492 = vunpack.c.l.b16 %v8229
    %v8493 = vunpack.c.l.b16 %v8230
    %v8494 = vunpack.c.l.b16 %v8231
    %v8495 = vunpack.c.l.b16 %v8232
    %v8496 = vunpack.c.l.b16 %v8233
    %v8497 = vunpack.c.l.b16 %v8234
    %v8498 = vunpack.c.l.b16 %v8235
    %v8499 = vunpack.c.l.b16 %v8236
    %v8500 = vunpack.c.l.b16 %v8237
    %v8501 = vunpack.c.l.b16 %v8238
    %v8502 = vunpack.c.l.b16 %v8239
    %v8503 = vunpack.c.l.b16 %v8240
    %v8504 = vunpack.c.l.b16 %v8241
    %v8505 = vunpack.c.l.b16 %v8242
    %v8506 = vunpack.c.l.b16 %v8243
    %v8507 = vunpack.c.l.b16 %v8244
    %v8508 = vunpack.c.l.b16 %v8245
    %v8509 = vunpack.c.l.b16 %v8246
    %v8510 = vunpack.c.l.b16 %v8247
    %v8511 = vunpack.c.l.b16 %v8248
    %v8512 = vunpack.c.l.b16 %v8249
    %v8513 = vunpack.c.l.b16 %v8250
    %v8514 = vunpack.c.l.b16 %v8251
    %v8515 = vunpack.c.l.b16 %v8252
    %v8516 = vunpack.c.l.b16 %v8253
    %v8517 = vunpack.c.l.b16 %v8254
    %v8518 = vunpack.c.l.b16 %v8255
    %v8519 = vunpack.c.l.b16 %v8256
    %v8520 = vunpack.c.l.b16 %v8257
    %v8521 = vunpack.c.l.b16 %v8258
    %v8522 = vunpack.c.l.b16 %v8259
    %v8523 = vunpack.c.l.b16 %v8260
    %v8524 = vunpack.c.l.b16 %v8261
    %v8525 = vunpack.c.l.b16 %v8262
    %v8526 = vunpack.c.l.b16 %v8263
    %v8527 = vunpack.c.l.b16 %v8264
    %v8528 = vunpack.c.l.b16 %v8265
    %v8529 = vunpack.c.l.b16 %v8266
    %v8530 = vunpack.c.l.b16 %v8267
    %v8531 = vunpack.c.l.b16 %v8268
    %v8532 = vunpack.c.l.b16 %v8269
    %v8533 = vunpack.c.l.b16 %v8270
    %v8534 = vunpack.c.l.b16 %v8271
    %v8535 = vunpack.c.l.b16 %v8272
    %v8536 = vunpack.c.l.b16 %v8273
    %v8537 = vunpack.c.l.b16 %v8274
    %v8538 = vunpack.c.l.b16 %v8275
    %v8539 = vunpack.c.l.b16 %v8276
    %v8540 = vunpack.c.l.b16 %v8277
    %v8541 = vunpack.c.l.b16 %v8278
    %v8542 = vunpack.c.l.b16 %v8279
    %v8543 = vunpack.c.l.b16 %v8280
    %v8544 = vunpack.c.l.b16 %v8281
    %v8545 = vunpack.c.l.b16 %v8282
    %v8546 = vunpack.c.l.b16 %v8283
    %v8547 = vunpack.c.l.b16 %v8284
    %v8548 = vunpack.c.l.b16 %v8285
    %v8549 = vunpack.c.l.b16 %v8286
    %v8550 = vunpack.c.l.b16 %v8287
    %v8551 = vunpack.c.l.b16 %v8288
    %v8552 = vunpack.c.l.b16 %v8289
    %v8553 = vunpack.c.l.b16 %v8290
    %v8554 = vunpack.c.l.b16 %v8291
    %v8555 = vunpack.c.l.b16 %v8292
    %v8556 = vunpack.c.l.b16 %v8293
    %v8557 = vunpack.c.l.b16 %v8294
    %v8558 = vunpack.c.l.b16 %v8295
    %v8559 = vunpack.c.l.b16 %v8296
    %v8560 = vunpack.c.l.b16 %v8297
    %v8561 = vunpack.c.l.b16 %v8298
    %v8562 = vunpack.c.l.b16 %v8299
    %v8563 = vunpack.c.l.b16 %v8300
    %v8564 = vunpack.c.l.b16 %v8301
    %v8565 = vunpack.c.l.b16 %v8302
    %v8566 = vunpack.c.l.b16 %v8303
    %v8567 = vunpack.c.l.b16 %v8304
    %v8568 = vunpack.c.l.b16 %v8305
    %v8569 = vunpack.c.l.b16 %v8306
    %v8570 = vunpack.c.l.b16 %v8307
    %v8571 = vunpack.c.l.b16 %v8308
    %v8572 = vunpack.c.l.b16 %v8309
    %v8573 = vunpack.c.l.b16 %v8310
    %v8574 = vunpack.c.l.b16 %v8311
    %v8575 = vunpack.c.l.b16 %v8312
    %v8576 = vunpack.c.l.b16 %v8313
    %v8577 = vunpack.c.l.b16 %v8314
    %v8578 = vunpack.c.l.b16 %v8315
    %v8579 = vunpack.c.l.b16 %v8316
    %v8580 = vunpack.c.l.b16 %v8317
    %v8581 = vunpack.c.l.b16 %v8318
    %v8582 = vunpack.c.l.b16 %v8319
    %v8583 = vunpack.c.l.b16 %v8320
    %v8584 = vunpack.c.l.b16 %v8321
    %v8585 = vunpack.c.l.b16 %v8322
    %v8586 = vunpack.c.l.b16 %v8323
    %v8587 = vunpack.c.l.b16 %v8324
    %v8588 = vunpack.c.l.b16 %v8325
    %v8589 = vunpack.c.l.b16 %v8326
    %v8590 = vunpack.c.l.b16 %v8327
    %v8591 = vunpack.c.l.b16 %v8328
    %v8592 = vunpack.c.l.b16 %v8329
    %v8593 = vunpack.c.l.b16 %v8330
    %v8594 = vpack.c.b16 %v8467, %v8466
    %v8595 = vpack.c.b16 %v8469, %v8468
    %v8596 = vpack.c.b16 %v8471, %v8470
    %v8597 = vpack.c.b16 %v8473, %v8472
    %v8598 = vpack.c.b16 %v8475, %v8474
    %v8599 = vpack.c.b16 %v8477, %v8476
    %v8600 = vpack.c.b16 %v8479, %v8478
    %v8601 = vpack.c.b16 %v8481, %v8480
    %v8602 = vpack.c.b16 %v8483, %v8482
    %v8603 = vpack.c.b16 %v8485, %v8484
    %v8604 = vpack.c.b16 %v8487, %v8486
    %v8605 = vpack.c.b16 %v8489, %v8488
    %v8606 = vpack.c.b16 %v8491, %v8490
    %v8607 = vpack.c.b16 %v8493, %v8492
    %v8608 = vpack.c.b16 %v8495, %v8494
    %v8609 = vpack.c.b16 %v8497, %v8496
    %v8610 = vpack.c.b16 %v8499, %v8498
    %v8611 = vpack.c.b16 %v8501, %v8500
    %v8612 = vpack.c.b16 %v8503, %v8502
    %v8613 = vpack.c.b16 %v8505, %v8504
    %v8614 = vpack.c.b16 %v8507, %v8506
    %v8615 = vpack.c.b16 %v8509, %v8508
    %v8616 = vpack.c.b16 %v8511, %v8510
    %v8617 = vpack.c.b16 %v8513, %v8512
    %v8618 = vpack.c.b16 %v8515, %v8514
    %v8619 = vpack.c.b16 %v8517, %v8516
    %v8620 = vpack.c.b16 %v8519, %v8518
    %v8621 = vpack.c.b16 %v8521, %v8520
    %v8622 = vpack.c.b16 %v8523, %v8522
    %v8623 = vpack.c.b16 %v8525, %v8524
    %v8624 = vpack.c.b16 %v8527, %v8526
    %v8625 = vpack.c.b16 %v8529, %v8528
    %v8626 = vpack.c.b16 %v8531, %v8530
    %v8627 = vpack.c.b16 %v8533, %v8532
    %v8628 = vpack.c.b16 %v8535, %v8534
    %v8629 = vpack.c.b16 %v8537, %v8536
    %v8630 = vpack.c.b16 %v8539, %v8538
    %v8631 = vpack.c.b16 %v8541, %v8540
    %v8632 = vpack.c.b16 %v8543, %v8542
    %v8633 = vpack.c.b16 %v8545, %v8544
    %v8634 = vpack.c.b16 %v8547, %v8546
    %v8635 = vpack.c.b16 %v8549, %v8548
    %v8636 = vpack.c.b16 %v8551, %v8550
    %v8637 = vpack.c.b16 %v8553, %v8552
    %v8638 = vpack.c.b16 %v8555, %v8554
    %v8639 = vpack.c.b16 %v8557, %v8556
    %v8640 = vpack.c.b16 %v8559, %v8558
    %v8641 = vpack.c.b16 %v8561, %v8560
    %v8642 = vpack.c.b16 %v8563, %v8562
    %v8643 = vpack.c.b16 %v8565, %v8564
    %v8644 = vpack.c.b16 %v8567, %v8566
    %v8645 = vpack.c.b16 %v8569, %v8568
    %v8646 = vpack.c.b16 %v8571, %v8570
    %v8647 = vpack.c.b16 %v8573, %v8572
    %v8648 = vpack.c.b16 %v8575, %v8574
    %v8649 = vpack.c.b16 %v8577, %v8576
    %v8650 = vpack.c.b16 %v8579, %v8578
    %v8651 = vpack.c.b16 %v8581, %v8580
    %v8652 = vpack.c.b16 %v8583, %v8582
    %v8653 = vpack.c.b16 %v8585, %v8584
    %v8654 = vpack.c.b16 %v8587, %v8586
    %v8655 = vpack.c.b16 %v8589, %v8588
    %v8656 = vpack.c.b16 %v8591, %v8590
    %v8657 = vpack.c.b16 %v8593, %v8592
    %8722 = vmatprep.subr.bf16.mxu0 0
    %8723 = vmatpush1.bf16.msra.mxu0 %v8594
    %8724 = vmatprep.subr.bf16.mxu0 0
    %8725 = vmatpush1.bf16.msra.mxu0 %v8595
    %8726 = vmatprep.subr.bf16.mxu0 0
    %8727 = vmatpush1.bf16.msra.mxu0 %v8596
    %8728 = vmatprep.subr.bf16.mxu0 0
    %8729 = vmatpush1.bf16.msra.mxu0 %v8597
    %8730 = vmatprep.subr.bf16.mxu0 0
    %8731 = vmatpush1.bf16.msra.mxu0 %v8598
    %8732 = vmatprep.subr.bf16.mxu0 0
    %8733 = vmatpush1.bf16.msra.mxu0 %v8599
    %8734 = vmatprep.subr.bf16.mxu0 0
    %8735 = vmatpush1.bf16.msra.mxu0 %v8600
    %8736 = vmatprep.subr.bf16.mxu0 0
    %8737 = vmatpush1.bf16.msra.mxu0 %v8601
    %8738 = vmatprep.subr.bf16.mxu0 0
    %8739 = vmatpush1.bf16.msra.mxu0 %v8602
    %8740 = vmatprep.subr.bf16.mxu0 0
    %8741 = vmatpush1.bf16.msra.mxu0 %v8603
    %8742 = vmatprep.subr.bf16.mxu0 0
    %8743 = vmatpush1.bf16.msra.mxu0 %v8604
    %8744 = vmatprep.subr.bf16.mxu0 0
    %8745 = vmatpush1.bf16.msra.mxu0 %v8605
    %8746 = vmatprep.subr.bf16.mxu0 0
    %8747 = vmatpush1.bf16.msra.mxu0 %v8606
    %8748 = vmatprep.subr.bf16.mxu0 0
    %8749 = vmatpush1.bf16.msra.mxu0 %v8607
    %8750 = vmatprep.subr.bf16.mxu0 0
    %8751 = vmatpush1.bf16.msra.mxu0 %v8608
    %8752 = vmatprep.subr.bf16.mxu0 0
    %8753 = vmatpush1.bf16.msra.mxu0 %v8609
    %8754 = vmatprep.mubr.bf16.mxu0 %v8076
    %8755 = vmatmul.mubr.bf16.gmra.mrb[0].mxu0 %v8075
    %v8756 = vpop.f32.mrb[0].mxu0
    %v8757 = vadd.f32 %v8336, %v8756
    %v8758 = vpop.f32.mrb[0].mxu0
    %v8759 = vpop.f32.mrb[0].mxu0
    %v8760 = vadd.f32 %v8336, %v8759
    %v8761 = vpop.f32.mrb[0].mxu0
    %8762 = vmatprep.mubr.bf16.mxu0 %v8084
    %8763 = vmatmul.mubr.bf16.gmra.mrb[0].mxu0 %v8083
    %v8764 = vpop.f32.mrb[0].mxu0
    %v8765 = vadd.f32 %v8336, %v8764
    %v8766 = vpop.f32.mrb[0].mxu0
    %v8767 = vpop.f32.mrb[0].mxu0
    %v8768 = vadd.f32 %v8336, %v8767
    %v8769 = vpop.f32.mrb[0].mxu0
    %8770 = vmatprep.mubr.bf16.mxu0 %v8092
    %8771 = vmatmul.mubr.bf16.gmra.mrb[0].mxu0 %v8091
    %v8772 = vpop.f32.mrb[0].mxu0
    %v8773 = vadd.f32 %v8336, %v8772
    %v8774 = vpop.f32.mrb[0].mxu0
    %v8775 = vpop.f32.mrb[0].mxu0
    %v8776 = vadd.f32 %v8336, %v8775
    %v8777 = vpop.f32.mrb[0].mxu0
    %8778 = vmatprep.mubr.bf16.mxu0 %v8100
    %8779 = vmatmul.mubr.bf16.gmra.mrb[0].mxu0 %v8099
    %v8780 = vpop.f32.mrb[0].mxu0
    %v8781 = vadd.f32 %v8336, %v8780
    %v8782 = vpop.f32.mrb[0].mxu0
    %v8783 = vpop.f32.mrb[0].mxu0
    %v8784 = vadd.f32 %v8336, %v8783
    %v8785 = vpop.f32.mrb[0].mxu0
    %8786 = vmatprep.mubr.bf16.mxu0 %v8108
    %8787 = vmatmul.mubr.bf16.gmra.mrb[0].mxu0 %v8107
    %v8788 = vpop.f32.mrb[0].mxu0
    %v8789 = vadd.f32 %v8336, %v8788
    %v8790 = vpop.f32.mrb[0].mxu0
    %v8791 = vpop.f32.mrb[0].mxu0
    %v8792 = vadd.f32 %v8336, %v8791
    %v8793 = vpop.f32.mrb[0].mxu0
    %8794 = vmatprep.mubr.bf16.mxu0 %v8116
    %8795 = vmatmul.mubr.bf16.gmra.mrb[0].mxu0 %v8115
    %v8796 = vpop.f32.mrb[0].mxu0
    %v8797 = vadd.f32 %v8336, %v8796
    %v8798 = vpop.f32.mrb[0].mxu0
    %v8799 = vpop.f32.mrb[0].mxu0
    %v8800 = vadd.f32 %v8336, %v8799
    %v8801 = vpop.f32.mrb[0].mxu0
    %8802 = vmatprep.mubr.bf16.mxu0 %v8124
    %8803 = vmatmul.mubr.bf16.gmra.mrb[0].mxu0 %v8123
    %v8804 = vpop.f32.mrb[0].mxu0
    %v8805 = vadd.f32 %v8336, %v8804
    %v8806 = vpop.f32.mrb[0].mxu0
    %v8807 = vpop.f32.mrb[0].mxu0
    %v8808 = vadd.f32 %v8336, %v8807
    %v8809 = vpop.f32.mrb[0].mxu0
    %8810 = vmatprep.mubr.bf16.mxu0 %v8132
    %8811 = vmatmul.mubr.bf16.gmra.mrb[0].mxu0 %v8131
    %v8812 = vpop.f32.mrb[0].mxu0
    %v8813 = vadd.f32 %v8336, %v8812
    %v8814 = vpop.f32.mrb[0].mxu0
    %v8815 = vpop.f32.mrb[0].mxu0
    %v8816 = vadd.f32 %v8336, %v8815
    %v8817 = vpop.f32.mrb[0].mxu0
    %8818 = vmatprep.mubr.bf16.mxu0 %v8140
    %8819 = vmatmul.mubr.bf16.gmra.mrb[0].mxu0 %v8139
    %v8820 = vpop.f32.mrb[0].mxu0
    %v8821 = vadd.f32 %v8336, %v8820
    %v8822 = vpop.f32.mrb[0].mxu0
    %v8823 = vpop.f32.mrb[0].mxu0
    %v8824 = vadd.f32 %v8336, %v8823
    %v8825 = vpop.f32.mrb[0].mxu0
    %8826 = vmatprep.mubr.bf16.mxu0 %v8148
    %8827 = vmatmul.mubr.bf16.gmra.mrb[0].mxu0 %v8147
    %v8828 = vpop.f32.mrb[0].mxu0
    %v8829 = vadd.f32 %v8336, %v8828
    %v8830 = vpop.f32.mrb[0].mxu0
    %v8831 = vpop.f32.mrb[0].mxu0
    %v8832 = vadd.f32 %v8336, %v8831
    %v8833 = vpop.f32.mrb[0].mxu0
    %8834 = vmatprep.mubr.bf16.mxu0 %v8156
    %8835 = vmatmul.mubr.bf16.gmra.mrb[0].mxu0 %v8155
    %v8836 = vpop.f32.mrb[0].mxu0
    %v8837 = vadd.f32 %v8336, %v8836
    %v8838 = vpop.f32.mrb[0].mxu0
    %v8839 = vpop.f32.mrb[0].mxu0
    %v8840 = vadd.f32 %v8336, %v8839
    %v8841 = vpop.f32.mrb[0].mxu0
    %8842 = vmatprep.mubr.bf16.mxu0 %v8164
    %8843 = vmatmul.mubr.bf16.gmra.mrb[0].mxu0 %v8163
    %v8844 = vpop.f32.mrb[0].mxu0
    %v8845 = vadd.f32 %v8336, %v8844
    %v8846 = vpop.f32.mrb[0].mxu0
    %v8847 = vpop.f32.mrb[0].mxu0
    %v8848 = vadd.f32 %v8336, %v8847
    %v8849 = vpop.f32.mrb[0].mxu0
    %8850 = vmatprep.mubr.bf16.mxu0 %v8172
    %8851 = vmatmul.mubr.bf16.gmra.mrb[0].mxu0 %v8171
    %v8852 = vpop.f32.mrb[0].mxu0
    %v8853 = vadd.f32 %v8336, %v8852
    %v8854 = vpop.f32.mrb[0].mxu0
    %v8855 = vpop.f32.mrb[0].mxu0
    %v8856 = vadd.f32 %v8336, %v8855
    %v8857 = vpop.f32.mrb[0].mxu0
    %8858 = vmatprep.mubr.bf16.mxu0 %v8180
    %8859 = vmatmul.mubr.bf16.gmra.mrb[0].mxu0 %v8179
    %v8860 = vpop.f32.mrb[0].mxu0
    %v8861 = vadd.f32 %v8336, %v8860
    %v8862 = vpop.f32.mrb[0].mxu0
    %v8863 = vpop.f32.mrb[0].mxu0
    %v8864 = vadd.f32 %v8336, %v8863
    %v8865 = vpop.f32.mrb[0].mxu0
    %8866 = vmatprep.mubr.bf16.mxu0 %v8188
    %8867 = vmatmul.mubr.bf16.gmra.mrb[0].mxu0 %v8187
    %v8868 = vpop.f32.mrb[0].mxu0
    %v8869 = vadd.f32 %v8336, %v8868
    %v8870 = vpop.f32.mrb[0].mxu0
    %v8871 = vpop.f32.mrb[0].mxu0
    %v8872 = vadd.f32 %v8336, %v8871
    %v8873 = vpop.f32.mrb[0].mxu0
    %8874 = vmatprep.mubr.bf16.mxu0 %v8196
    %8875 = vmatmul.mubr.bf16.gmra.mrb[0].mxu0 %v8195
    %v8876 = vpop.f32.mrb[0].mxu0
    %v8877 = vadd.f32 %v8336, %v8876
    %v8878 = vpop.f32.mrb[0].mxu0
    %v8879 = vpop.f32.mrb[0].mxu0
    %v8880 = vadd.f32 %v8336, %v8879
    %v8881 = vpop.f32.mrb[0].mxu0
    %8882 = vdwg.mxu0
    %8883 = vmatprep.subr.bf16.mxu0 0
    %8884 = vmatpush1.bf16.msra.mxu0 %v8610
    %8885 = vmatprep.subr.bf16.mxu0 0
    %8886 = vmatpush1.bf16.msra.mxu0 %v8611
    %8887 = vmatprep.subr.bf16.mxu0 0
    %8888 = vmatpush1.bf16.msra.mxu0 %v8612
    %8889 = vmatprep.subr.bf16.mxu0 0
    %8890 = vmatpush1.bf16.msra.mxu0 %v8613
    %8891 = vmatprep.subr.bf16.mxu0 0
    %8892 = vmatpush1.bf16.msra.mxu0 %v8614
    %8893 = vmatprep.subr.bf16.mxu0 0
    %8894 = vmatpush1.bf16.msra.mxu0 %v8615
    %8895 = vmatprep.subr.bf16.mxu0 0
    %8896 = vmatpush1.bf16.msra.mxu0 %v8616
    %8897 = vmatprep.subr.bf16.mxu0 0
    %8898 = vmatpush1.bf16.msra.mxu0 %v8617
    %8899 = vmatprep.subr.bf16.mxu0 0
    %8900 = vmatpush1.bf16.msra.mxu0 %v8618
    %8901 = vmatprep.subr.bf16.mxu0 0
    %8902 = vmatpush1.bf16.msra.mxu0 %v8619
    %8903 = vmatprep.subr.bf16.mxu0 0
    %8904 = vmatpush1.bf16.msra.mxu0 %v8620
    %8905 = vmatprep.subr.bf16.mxu0 0
    %8906 = vmatpush1.bf16.msra.mxu0 %v8621
    %8907 = vmatprep.subr.bf16.mxu0 0
    %8908 = vmatpush1.bf16.msra.mxu0 %v8622
    %8909 = vmatprep.subr.bf16.mxu0 0
    %8910 = vmatpush1.bf16.msra.mxu0 %v8623
    %8911 = vmatprep.subr.bf16.mxu0 0
    %8912 = vmatpush1.bf16.msra.mxu0 %v8624
    %8913 = vmatprep.subr.bf16.mxu0 0
    %8914 = vmatpush1.bf16.msra.mxu0 %v8625
    %8915 = vmatprep.mubr.bf16.mxu0 %v8078
    %8916 = vmatmul.mubr.bf16.gmra.mrb[0].mxu0 %v8077
    %v8917 = vpop.f32.mrb[0].mxu0
    %v8918 = vadd.f32 %v8757, %v8917
    %v8919 = vpop.f32.mrb[0].mxu0
    %v8920 = vpop.f32.mrb[0].mxu0
    %v8921 = vadd.f32 %v8760, %v8920
    %v8922 = vpop.f32.mrb[0].mxu0
    %8923 = vmatprep.mubr.bf16.mxu0 %v8086
    %8924 = vmatmul.mubr.bf16.gmra.mrb[0].mxu0 %v8085
    %v8925 = vpop.f32.mrb[0].mxu0
    %v8926 = vadd.f32 %v8765, %v8925
    %v8927 = vpop.f32.mrb[0].mxu0
    %v8928 = vpop.f32.mrb[0].mxu0
    %v8929 = vadd.f32 %v8768, %v8928
    %v8930 = vpop.f32.mrb[0].mxu0
    %8931 = vmatprep.mubr.bf16.mxu0 %v8094
    %8932 = vmatmul.mubr.bf16.gmra.mrb[0].mxu0 %v8093
    %v8933 = vpop.f32.mrb[0].mxu0
    %v8934 = vadd.f32 %v8773, %v8933
    %v8935 = vpop.f32.mrb[0].mxu0
    %v8936 = vpop.f32.mrb[0].mxu0
    %v8937 = vadd.f32 %v8776, %v8936
    %v8938 = vpop.f32.mrb[0].mxu0
    %8939 = vmatprep.mubr.bf16.mxu0 %v8102
    %8940 = vmatmul.mubr.bf16.gmra.mrb[0].mxu0 %v8101
    %v8941 = vpop.f32.mrb[0].mxu0
    %v8942 = vadd.f32 %v8781, %v8941
    %v8943 = vpop.f32.mrb[0].mxu0
    %v8944 = vpop.f32.mrb[0].mxu0
    %v8945 = vadd.f32 %v8784, %v8944
    %v8946 = vpop.f32.mrb[0].mxu0
    %8947 = vmatprep.mubr.bf16.mxu0 %v8110
    %8948 = vmatmul.mubr.bf16.gmra.mrb[0].mxu0 %v8109
    %v8949 = vpop.f32.mrb[0].mxu0
    %v8950 = vadd.f32 %v8789, %v8949
    %v8951 = vpop.f32.mrb[0].mxu0
    %v8952 = vpop.f32.mrb[0].mxu0
    %v8953 = vadd.f32 %v8792, %v8952
    %v8954 = vpop.f32.mrb[0].mxu0
    %8955 = vmatprep.mubr.bf16.mxu0 %v8118
    %8956 = vmatmul.mubr.bf16.gmra.mrb[0].mxu0 %v8117
    %v8957 = vpop.f32.mrb[0].mxu0
    %v8958 = vadd.f32 %v8797, %v8957
    %v8959 = vpop.f32.mrb[0].mxu0
    %v8960 = vpop.f32.mrb[0].mxu0
    %v8961 = vadd.f32 %v8800, %v8960
    %v8962 = vpop.f32.mrb[0].mxu0
    %8963 = vmatprep.mubr.bf16.mxu0 %v8126
    %8964 = vmatmul.mubr.bf16.gmra.mrb[0].mxu0 %v8125
    %v8965 = vpop.f32.mrb[0].mxu0
    %v8966 = vadd.f32 %v8805, %v8965
    %v8967 = vpop.f32.mrb[0].mxu0
    %v8968 = vpop.f32.mrb[0].mxu0
    %v8969 = vadd.f32 %v8808, %v8968
    %v8970 = vpop.f32.mrb[0].mxu0
    %8971 = vmatprep.mubr.bf16.mxu0 %v8134
    %8972 = vmatmul.mubr.bf16.gmra.mrb[0].mxu0 %v8133
    %v8973 = vpop.f32.mrb[0].mxu0
    %v8974 = vadd.f32 %v8813, %v8973
    %v8975 = vpop.f32.mrb[0].mxu0
    %v8976 = vpop.f32.mrb[0].mxu0
    %v8977 = vadd.f32 %v8816, %v8976
    %v8978 = vpop.f32.mrb[0].mxu0
    %8979 = vmatprep.mubr.bf16.mxu0 %v8142
    %8980 = vmatmul.mubr.bf16.gmra.mrb[0].mxu0 %v8141
    %v8981 = vpop.f32.mrb[0].mxu0
    %v8982 = vadd.f32 %v8821, %v8981
    %v8983 = vpop.f32.mrb[0].mxu0
    %v8984 = vpop.f32.mrb[0].mxu0
    %v8985 = vadd.f32 %v8824, %v8984
    %v8986 = vpop.f32.mrb[0].mxu0
    %8987 = vmatprep.mubr.bf16.mxu0 %v8150
    %8988 = vmatmul.mubr.bf16.gmra.mrb[0].mxu0 %v8149
    %v8989 = vpop.f32.mrb[0].mxu0
    %v8990 = vadd.f32 %v8829, %v8989
    %v8991 = vpop.f32.mrb[0].mxu0
    %v8992 = vpop.f32.mrb[0].mxu0
    %v8993 = vadd.f32 %v8832, %v8992
    %v8994 = vpop.f32.mrb[0].mxu0
    %8995 = vmatprep.mubr.bf16.mxu0 %v8158
    %8996 = vmatmul.mubr.bf16.gmra.mrb[0].mxu0 %v8157
    %v8997 = vpop.f32.mrb[0].mxu0
    %v8998 = vadd.f32 %v8837, %v8997
    %v8999 = vpop.f32.mrb[0].mxu0
    %v9000 = vpop.f32.mrb[0].mxu0
    %v9001 = vadd.f32 %v8840, %v9000
    %v9002 = vpop.f32.mrb[0].mxu0
    %9003 = vmatprep.mubr.bf16.mxu0 %v8166
    %9004 = vmatmul.mubr.bf16.gmra.mrb[0].mxu0 %v8165
    %v9005 = vpop.f32.mrb[0].mxu0
    %v9006 = vadd.f32 %v8845, %v9005
    %v9007 = vpop.f32.mrb[0].mxu0
    %v9008 = vpop.f32.mrb[0].mxu0
    %v9009 = vadd.f32 %v8848, %v9008
    %v9010 = vpop.f32.mrb[0].mxu0
    %9011 = vmatprep.mubr.bf16.mxu0 %v8174
    %9012 = vmatmul.mubr.bf16.gmra.mrb[0].mxu0 %v8173
    %v9013 = vpop.f32.mrb[0].mxu0
    %v9014 = vadd.f32 %v8853, %v9013
    %v9015 = vpop.f32.mrb[0].mxu0
    %v9016 = vpop.f32.mrb[0].mxu0
    %v9017 = vadd.f32 %v8856, %v9016
    %v9018 = vpop.f32.mrb[0].mxu0
    %9019 = vmatprep.mubr.bf16.mxu0 %v8182
    %9020 = vmatmul.mubr.bf16.gmra.mrb[0].mxu0 %v8181
    %v9021 = vpop.f32.mrb[0].mxu0
    %v9022 = vadd.f32 %v8861, %v9021
    %v9023 = vpop.f32.mrb[0].mxu0
    %v9024 = vpop.f32.mrb[0].mxu0
    %v9025 = vadd.f32 %v8864, %v9024
    %v9026 = vpop.f32.mrb[0].mxu0
    %9027 = vmatprep.mubr.bf16.mxu0 %v8190
    %9028 = vmatmul.mubr.bf16.gmra.mrb[0].mxu0 %v8189
    %v9029 = vpop.f32.mrb[0].mxu0
    %v9030 = vadd.f32 %v8869, %v9029
    %v9031 = vpop.f32.mrb[0].mxu0
    %v9032 = vpop.f32.mrb[0].mxu0
    %v9033 = vadd.f32 %v8872, %v9032
    %v9034 = vpop.f32.mrb[0].mxu0
    %9035 = vmatprep.mubr.bf16.mxu0 %v8198
    %9036 = vmatmul.mubr.bf16.gmra.mrb[0].mxu0 %v8197
    %v9037 = vpop.f32.mrb[0].mxu0
    %v9038 = vadd.f32 %v8877, %v9037
    %v9039 = vpop.f32.mrb[0].mxu0
    %v9040 = vpop.f32.mrb[0].mxu0
    %v9041 = vadd.f32 %v8880, %v9040
    %v9042 = vpop.f32.mrb[0].mxu0
    %9043 = vdwg.mxu0
    %9044 = vmatprep.subr.bf16.mxu0 0
    %9045 = vmatpush1.bf16.msra.mxu0 %v8626
    %9046 = vmatprep.subr.bf16.mxu0 0
    %9047 = vmatpush1.bf16.msra.mxu0 %v8627
    %9048 = vmatprep.subr.bf16.mxu0 0
    %9049 = vmatpush1.bf16.msra.mxu0 %v8628
    %9050 = vmatprep.subr.bf16.mxu0 0
    %9051 = vmatpush1.bf16.msra.mxu0 %v8629
    %9052 = vmatprep.subr.bf16.mxu0 0
    %9053 = vmatpush1.bf16.msra.mxu0 %v8630
    %9054 = vmatprep.subr.bf16.mxu0 0
    %9055 = vmatpush1.bf16.msra.mxu0 %v8631
    %9056 = vmatprep.subr.bf16.mxu0 0
    %9057 = vmatpush1.bf16.msra.mxu0 %v8632
    %9058 = vmatprep.subr.bf16.mxu0 0
    %9059 = vmatpush1.bf16.msra.mxu0 %v8633
    %9060 = vmatprep.subr.bf16.mxu0 0
    %9061 = vmatpush1.bf16.msra.mxu0 %v8634
    %9062 = vmatprep.subr.bf16.mxu0 0
    %9063 = vmatpush1.bf16.msra.mxu0 %v8635
    %9064 = vmatprep.subr.bf16.mxu0 0
    %9065 = vmatpush1.bf16.msra.mxu0 %v8636
    %9066 = vmatprep.subr.bf16.mxu0 0
    %9067 = vmatpush1.bf16.msra.mxu0 %v8637
    %9068 = vmatprep.subr.bf16.mxu0 0
    %9069 = vmatpush1.bf16.msra.mxu0 %v8638
    %9070 = vmatprep.subr.bf16.mxu0 0
    %9071 = vmatpush1.bf16.msra.mxu0 %v8639
    %9072 = vmatprep.subr.bf16.mxu0 0
    %9073 = vmatpush1.bf16.msra.mxu0 %v8640
    %9074 = vmatprep.subr.bf16.mxu0 0
    %9075 = vmatpush1.bf16.msra.mxu0 %v8641
    %9076 = vmatprep.mubr.bf16.mxu0 %v8080
    %9077 = vmatmul.mubr.bf16.gmra.mrb[0].mxu0 %v8079
    %v9078 = vpop.f32.mrb[0].mxu0
    %v9079 = vadd.f32 %v8918, %v9078
    %v9080 = vpop.f32.mrb[0].mxu0
    %v9081 = vpop.f32.mrb[0].mxu0
    %v9082 = vadd.f32 %v8921, %v9081
    %v9083 = vpop.f32.mrb[0].mxu0
    %9084 = vmatprep.mubr.bf16.mxu0 %v8088
    %9085 = vmatmul.mubr.bf16.gmra.mrb[0].mxu0 %v8087
    %v9086 = vpop.f32.mrb[0].mxu0
    %v9087 = vadd.f32 %v8926, %v9086
    %v9088 = vpop.f32.mrb[0].mxu0
    %v9089 = vpop.f32.mrb[0].mxu0
    %v9090 = vadd.f32 %v8929, %v9089
    %v9091 = vpop.f32.mrb[0].mxu0
    %9092 = vmatprep.mubr.bf16.mxu0 %v8096
    %9093 = vmatmul.mubr.bf16.gmra.mrb[0].mxu0 %v8095
    %v9094 = vpop.f32.mrb[0].mxu0
    %v9095 = vadd.f32 %v8934, %v9094
    %v9096 = vpop.f32.mrb[0].mxu0
    %v9097 = vpop.f32.mrb[0].mxu0
    %v9098 = vadd.f32 %v8937, %v9097
    %v9099 = vpop.f32.mrb[0].mxu0
    %9100 = vmatprep.mubr.bf16.mxu0 %v8104
    %9101 = vmatmul.mubr.bf16.gmra.mrb[0].mxu0 %v8103
    %v9102 = vpop.f32.mrb[0].mxu0
    %v9103 = vadd.f32 %v8942, %v9102
    %v9104 = vpop.f32.mrb[0].mxu0
    %v9105 = vpop.f32.mrb[0].mxu0
    %v9106 = vadd.f32 %v8945, %v9105
    %v9107 = vpop.f32.mrb[0].mxu0
    %9108 = vmatprep.mubr.bf16.mxu0 %v8112
    %9109 = vmatmul.mubr.bf16.gmra.mrb[0].mxu0 %v8111
    %v9110 = vpop.f32.mrb[0].mxu0
    %v9111 = vadd.f32 %v8950, %v9110
    %v9112 = vpop.f32.mrb[0].mxu0
    %v9113 = vpop.f32.mrb[0].mxu0
    %v9114 = vadd.f32 %v8953, %v9113
    %v9115 = vpop.f32.mrb[0].mxu0
    %9116 = vmatprep.mubr.bf16.mxu0 %v8120
    %9117 = vmatmul.mubr.bf16.gmra.mrb[0].mxu0 %v8119
    %v9118 = vpop.f32.mrb[0].mxu0
    %v9119 = vadd.f32 %v8958, %v9118
    %v9120 = vpop.f32.mrb[0].mxu0
    %v9121 = vpop.f32.mrb[0].mxu0
    %v9122 = vadd.f32 %v8961, %v9121
    %v9123 = vpop.f32.mrb[0].mxu0
    %9124 = vmatprep.mubr.bf16.mxu0 %v8128
    %9125 = vmatmul.mubr.bf16.gmra.mrb[0].mxu0 %v8127
    %v9126 = vpop.f32.mrb[0].mxu0
    %v9127 = vadd.f32 %v8966, %v9126
    %v9128 = vpop.f32.mrb[0].mxu0
    %v9129 = vpop.f32.mrb[0].mxu0
    %v9130 = vadd.f32 %v8969, %v9129
    %v9131 = vpop.f32.mrb[0].mxu0
    %9132 = vmatprep.mubr.bf16.mxu0 %v8136
    %9133 = vmatmul.mubr.bf16.gmra.mrb[0].mxu0 %v8135
    %v9134 = vpop.f32.mrb[0].mxu0
    %v9135 = vadd.f32 %v8974, %v9134
    %v9136 = vpop.f32.mrb[0].mxu0
    %v9137 = vpop.f32.mrb[0].mxu0
    %v9138 = vadd.f32 %v8977, %v9137
    %v9139 = vpop.f32.mrb[0].mxu0
    %9140 = vmatprep.mubr.bf16.mxu0 %v8144
    %9141 = vmatmul.mubr.bf16.gmra.mrb[0].mxu0 %v8143
    %v9142 = vpop.f32.mrb[0].mxu0
    %v9143 = vadd.f32 %v8982, %v9142
    %v9144 = vpop.f32.mrb[0].mxu0
    %v9145 = vpop.f32.mrb[0].mxu0
    %v9146 = vadd.f32 %v8985, %v9145
    %v9147 = vpop.f32.mrb[0].mxu0
    %9148 = vmatprep.mubr.bf16.mxu0 %v8152
    %9149 = vmatmul.mubr.bf16.gmra.mrb[0].mxu0 %v8151
    %v9150 = vpop.f32.mrb[0].mxu0
    %v9151 = vadd.f32 %v8990, %v9150
    %v9152 = vpop.f32.mrb[0].mxu0
    %v9153 = vpop.f32.mrb[0].mxu0
    %v9154 = vadd.f32 %v8993, %v9153
    %v9155 = vpop.f32.mrb[0].mxu0
    %9156 = vmatprep.mubr.bf16.mxu0 %v8160
    %9157 = vmatmul.mubr.bf16.gmra.mrb[0].mxu0 %v8159
    %v9158 = vpop.f32.mrb[0].mxu0
    %v9159 = vadd.f32 %v8998, %v9158
    %v9160 = vpop.f32.mrb[0].mxu0
    %v9161 = vpop.f32.mrb[0].mxu0
    %v9162 = vadd.f32 %v9001, %v9161
    %v9163 = vpop.f32.mrb[0].mxu0
    %9164 = vmatprep.mubr.bf16.mxu0 %v8168
    %9165 = vmatmul.mubr.bf16.gmra.mrb[0].mxu0 %v8167
    %v9166 = vpop.f32.mrb[0].mxu0
    %v9167 = vadd.f32 %v9006, %v9166
    %v9168 = vpop.f32.mrb[0].mxu0
    %v9169 = vpop.f32.mrb[0].mxu0
    %v9170 = vadd.f32 %v9009, %v9169
    %v9171 = vpop.f32.mrb[0].mxu0
    %9172 = vmatprep.mubr.bf16.mxu0 %v8176
    %9173 = vmatmul.mubr.bf16.gmra.mrb[0].mxu0 %v8175
    %v9174 = vpop.f32.mrb[0].mxu0
    %v9175 = vadd.f32 %v9014, %v9174
    %v9176 = vpop.f32.mrb[0].mxu0
    %v9177 = vpop.f32.mrb[0].mxu0
    %v9178 = vadd.f32 %v9017, %v9177
    %v9179 = vpop.f32.mrb[0].mxu0
    %9180 = vmatprep.mubr.bf16.mxu0 %v8184
    %9181 = vmatmul.mubr.bf16.gmra.mrb[0].mxu0 %v8183
    %v9182 = vpop.f32.mrb[0].mxu0
    %v9183 = vadd.f32 %v9022, %v9182
    %v9184 = vpop.f32.mrb[0].mxu0
    %v9185 = vpop.f32.mrb[0].mxu0
    %v9186 = vadd.f32 %v9025, %v9185
    %v9187 = vpop.f32.mrb[0].mxu0
    %9188 = vmatprep.mubr.bf16.mxu0 %v8192
    %9189 = vmatmul.mubr.bf16.gmra.mrb[0].mxu0 %v8191
    %v9190 = vpop.f32.mrb[0].mxu0
    %v9191 = vadd.f32 %v9030, %v9190
    %v9192 = vpop.f32.mrb[0].mxu0
    %v9193 = vpop.f32.mrb[0].mxu0
    %v9194 = vadd.f32 %v9033, %v9193
    %v9195 = vpop.f32.mrb[0].mxu0
    %9196 = vmatprep.mubr.bf16.mxu0 %v8200
    %9197 = vmatmul.mubr.bf16.gmra.mrb[0].mxu0 %v8199
    %v9198 = vpop.f32.mrb[0].mxu0
    %v9199 = vadd.f32 %v9038, %v9198
    %v9200 = vpop.f32.mrb[0].mxu0
    %v9201 = vpop.f32.mrb[0].mxu0
    %v9202 = vadd.f32 %v9041, %v9201
    %v9203 = vpop.f32.mrb[0].mxu0
    %9204 = vdwg.mxu0
    %9205 = vmatprep.subr.bf16.mxu0 0
    %9206 = vmatpush1.bf16.msra.mxu0 %v8642
    %9207 = vmatprep.subr.bf16.mxu0 0
    %9208 = vmatpush1.bf16.msra.mxu0 %v8643
    %9209 = vmatprep.subr.bf16.mxu0 0
    %9210 = vmatpush1.bf16.msra.mxu0 %v8644
    %9211 = vmatprep.subr.bf16.mxu0 0
    %9212 = vmatpush1.bf16.msra.mxu0 %v8645
    %9213 = vmatprep.subr.bf16.mxu0 0
    %9214 = vmatpush1.bf16.msra.mxu0 %v8646
    %9215 = vmatprep.subr.bf16.mxu0 0
    %9216 = vmatpush1.bf16.msra.mxu0 %v8647
    %9217 = vmatprep.subr.bf16.mxu0 0
    %9218 = vmatpush1.bf16.msra.mxu0 %v8648
    %9219 = vmatprep.subr.bf16.mxu0 0
    %9220 = vmatpush1.bf16.msra.mxu0 %v8649
    %9221 = vmatprep.subr.bf16.mxu0 0
    %9222 = vmatpush1.bf16.msra.mxu0 %v8650
    %9223 = vmatprep.subr.bf16.mxu0 0
    %9224 = vmatpush1.bf16.msra.mxu0 %v8651
    %9225 = vmatprep.subr.bf16.mxu0 0
    %9226 = vmatpush1.bf16.msra.mxu0 %v8652
    %9227 = vmatprep.subr.bf16.mxu0 0
    %9228 = vmatpush1.bf16.msra.mxu0 %v8653
    %9229 = vmatprep.subr.bf16.mxu0 0
    %9230 = vmatpush1.bf16.msra.mxu0 %v8654
    %9231 = vmatprep.subr.bf16.mxu0 0
    %9232 = vmatpush1.bf16.msra.mxu0 %v8655
    %9233 = vmatprep.subr.bf16.mxu0 0
    %9234 = vmatpush1.bf16.msra.mxu0 %v8656
    %9235 = vmatprep.subr.bf16.mxu0 0
    %9236 = vmatpush1.bf16.msra.mxu0 %v8657
    %9237 = vmatprep.mubr.bf16.mxu0 %v8082
    %9238 = vmatmul.mubr.bf16.gmra.mrb[0].mxu0 %v8081
    %v9239 = vpop.f32.mrb[0].mxu0
    %v9240 = vadd.f32 %v9079, %v9239
    %v9241 = vpop.f32.mrb[0].mxu0
    %v9242 = vpop.f32.mrb[0].mxu0
    %v9243 = vadd.f32 %v9082, %v9242
    %v9244 = vpop.f32.mrb[0].mxu0
    %9245 = vmatprep.mubr.bf16.mxu0 %v8090
    %9246 = vmatmul.mubr.bf16.gmra.mrb[0].mxu0 %v8089
    %v9247 = vpop.f32.mrb[0].mxu0
    %v9248 = vadd.f32 %v9087, %v9247
    %v9249 = vpop.f32.mrb[0].mxu0
    %v9250 = vpop.f32.mrb[0].mxu0
    %v9251 = vadd.f32 %v9090, %v9250
    %v9252 = vpop.f32.mrb[0].mxu0
    %9253 = vmatprep.mubr.bf16.mxu0 %v8098
    %9254 = vmatmul.mubr.bf16.gmra.mrb[0].mxu0 %v8097
    %v9255 = vpop.f32.mrb[0].mxu0
    %v9256 = vadd.f32 %v9095, %v9255
    %v9257 = vpop.f32.mrb[0].mxu0
    %v9258 = vpop.f32.mrb[0].mxu0
    %v9259 = vadd.f32 %v9098, %v9258
    %v9260 = vpop.f32.mrb[0].mxu0
    %9261 = vmatprep.mubr.bf16.mxu0 %v8106
    %9262 = vmatmul.mubr.bf16.gmra.mrb[0].mxu0 %v8105
    %v9263 = vpop.f32.mrb[0].mxu0
    %v9264 = vadd.f32 %v9103, %v9263
    %v9265 = vpop.f32.mrb[0].mxu0
    %v9266 = vpop.f32.mrb[0].mxu0
    %v9267 = vadd.f32 %v9106, %v9266
    %v9268 = vpop.f32.mrb[0].mxu0
    %9269 = vmatprep.mubr.bf16.mxu0 %v8114
    %9270 = vmatmul.mubr.bf16.gmra.mrb[0].mxu0 %v8113
    %v9271 = vpop.f32.mrb[0].mxu0
    %v9272 = vadd.f32 %v9111, %v9271
    %v9273 = vpop.f32.mrb[0].mxu0
    %v9274 = vpop.f32.mrb[0].mxu0
    %v9275 = vadd.f32 %v9114, %v9274
    %v9276 = vpop.f32.mrb[0].mxu0
    %9277 = vmatprep.mubr.bf16.mxu0 %v8122
    %9278 = vmatmul.mubr.bf16.gmra.mrb[0].mxu0 %v8121
    %v9279 = vpop.f32.mrb[0].mxu0
    %v9280 = vadd.f32 %v9119, %v9279
    %v9281 = vpop.f32.mrb[0].mxu0
    %v9282 = vpop.f32.mrb[0].mxu0
    %v9283 = vadd.f32 %v9122, %v9282
    %v9284 = vpop.f32.mrb[0].mxu0
    %9285 = vmatprep.mubr.bf16.mxu0 %v8130
    %9286 = vmatmul.mubr.bf16.gmra.mrb[0].mxu0 %v8129
    %v9287 = vpop.f32.mrb[0].mxu0
    %v9288 = vadd.f32 %v9127, %v9287
    %v9289 = vpop.f32.mrb[0].mxu0
    %v9290 = vpop.f32.mrb[0].mxu0
    %v9291 = vadd.f32 %v9130, %v9290
    %v9292 = vpop.f32.mrb[0].mxu0
    %9293 = vmatprep.mubr.bf16.mxu0 %v8138
    %9294 = vmatmul.mubr.bf16.gmra.mrb[0].mxu0 %v8137
    %v9295 = vpop.f32.mrb[0].mxu0
    %v9296 = vadd.f32 %v9135, %v9295
    %v9297 = vpop.f32.mrb[0].mxu0
    %v9298 = vpop.f32.mrb[0].mxu0
    %v9299 = vadd.f32 %v9138, %v9298
    %v9300 = vpop.f32.mrb[0].mxu0
    %9301 = vmatprep.mubr.bf16.mxu0 %v8146
    %9302 = vmatmul.mubr.bf16.gmra.mrb[0].mxu0 %v8145
    %v9303 = vpop.f32.mrb[0].mxu0
    %v9304 = vadd.f32 %v9143, %v9303
    %v9305 = vpop.f32.mrb[0].mxu0
    %v9306 = vpop.f32.mrb[0].mxu0
    %v9307 = vadd.f32 %v9146, %v9306
    %v9308 = vpop.f32.mrb[0].mxu0
    %9309 = vmatprep.mubr.bf16.mxu0 %v8154
    %9310 = vmatmul.mubr.bf16.gmra.mrb[0].mxu0 %v8153
    %v9311 = vpop.f32.mrb[0].mxu0
    %v9312 = vadd.f32 %v9151, %v9311
    %v9313 = vpop.f32.mrb[0].mxu0
    %v9314 = vpop.f32.mrb[0].mxu0
    %v9315 = vadd.f32 %v9154, %v9314
    %v9316 = vpop.f32.mrb[0].mxu0
    %9317 = vmatprep.mubr.bf16.mxu0 %v8162
    %9318 = vmatmul.mubr.bf16.gmra.mrb[0].mxu0 %v8161
    %v9319 = vpop.f32.mrb[0].mxu0
    %v9320 = vadd.f32 %v9159, %v9319
    %v9321 = vpop.f32.mrb[0].mxu0
    %v9322 = vpop.f32.mrb[0].mxu0
    %v9323 = vadd.f32 %v9162, %v9322
    %v9324 = vpop.f32.mrb[0].mxu0
    %9325 = vmatprep.mubr.bf16.mxu0 %v8170
    %9326 = vmatmul.mubr.bf16.gmra.mrb[0].mxu0 %v8169
    %v9327 = vpop.f32.mrb[0].mxu0
    %v9328 = vadd.f32 %v9167, %v9327
    %v9329 = vpop.f32.mrb[0].mxu0
    %v9330 = vpop.f32.mrb[0].mxu0
    %v9331 = vadd.f32 %v9170, %v9330
    %v9332 = vpop.f32.mrb[0].mxu0
    %9333 = vmatprep.mubr.bf16.mxu0 %v8178
    %9334 = vmatmul.mubr.bf16.gmra.mrb[0].mxu0 %v8177
    %v9335 = vpop.f32.mrb[0].mxu0
    %v9336 = vadd.f32 %v9175, %v9335
    %v9337 = vpop.f32.mrb[0].mxu0
    %v9338 = vpop.f32.mrb[0].mxu0
    %v9339 = vadd.f32 %v9178, %v9338
    %v9340 = vpop.f32.mrb[0].mxu0
    %9341 = vmatprep.mubr.bf16.mxu0 %v8186
    %9342 = vmatmul.mubr.bf16.gmra.mrb[0].mxu0 %v8185
    %v9343 = vpop.f32.mrb[0].mxu0
    %v9344 = vadd.f32 %v9183, %v9343
    %v9345 = vpop.f32.mrb[0].mxu0
    %v9346 = vpop.f32.mrb[0].mxu0
    %v9347 = vadd.f32 %v9186, %v9346
    %v9348 = vpop.f32.mrb[0].mxu0
    %9349 = vmatprep.mubr.bf16.mxu0 %v8194
    %9350 = vmatmul.mubr.bf16.gmra.mrb[0].mxu0 %v8193
    %v9351 = vpop.f32.mrb[0].mxu0
    %v9352 = vadd.f32 %v9191, %v9351
    %v9353 = vpop.f32.mrb[0].mxu0
    %v9354 = vpop.f32.mrb[0].mxu0
    %v9355 = vadd.f32 %v9194, %v9354
    %v9356 = vpop.f32.mrb[0].mxu0
    %9357 = vmatprep.mubr.bf16.mxu0 %v8202
    %9358 = vmatmul.mubr.bf16.gmra.mrb[0].mxu0 %v8201
    %v9359 = vpop.f32.mrb[0].mxu0
    %v9360 = vadd.f32 %v9199, %v9359
    %v9361 = vpop.f32.mrb[0].mxu0
    %v9362 = vpop.f32.mrb[0].mxu0
    %v9363 = vadd.f32 %v9202, %v9362
    %v9364 = vpop.f32.mrb[0].mxu0
    %9365 = vdwg.mxu0
    %v9366 = vadd.f32 %v200, %v9240
    %v9367 = vadd.f32 %v201, %v9243
    %v9368 = vadd.f32 %v202, %v9248
    %v9369 = vadd.f32 %v203, %v9251
    %v9370 = vadd.f32 %v204, %v9256
    %v9371 = vadd.f32 %v205, %v9259
    %v9372 = vadd.f32 %v206, %v9264
    %v9373 = vadd.f32 %v207, %v9267
    %v9374 = vadd.f32 %v208, %v9272
    %v9375 = vadd.f32 %v209, %v9275
    %v9376 = vadd.f32 %v210, %v9280
    %v9377 = vadd.f32 %v211, %v9283
    %v9378 = vadd.f32 %v212, %v9288
    %v9379 = vadd.f32 %v213, %v9291
    %v9380 = vadd.f32 %v214, %v9296
    %v9381 = vadd.f32 %v215, %v9299
    %v9382 = vadd.f32 %v216, %v9304
    %v9383 = vadd.f32 %v217, %v9307
    %v9384 = vadd.f32 %v218, %v9312
    %v9385 = vadd.f32 %v219, %v9315
    %v9386 = vadd.f32 %v220, %v9320
    %v9387 = vadd.f32 %v221, %v9323
    %v9388 = vadd.f32 %v222, %v9328
    %v9389 = vadd.f32 %v223, %v9331
    %v9390 = vadd.f32 %v224, %v9336
    %v9391 = vadd.f32 %v225, %v9339
    %v9392 = vadd.f32 %v226, %v9344
    %v9393 = vadd.f32 %v227, %v9347
    %v9394 = vadd.f32 %v228, %v9352
    %v9395 = vadd.f32 %v229, %v9355
    %v9396 = vadd.f32 %v230, %v9360
    %v9397 = vadd.f32 %v231, %v9363
    %v9398 = vld [vmem:[%s13] sm:$0x1]
    %v9399 = vld [vmem:[%s14] sm:$0x1]
    %9400 = vmatprep.subr.mxu0 0.0
    %9401 = vmatpush1.msra.mxu0 %v232
    %9402 = vmatprep.subr.mxu0 0.0
    %9403 = vmatpush1.msra.mxu0 %v233
    %9404 = vmatprep.subr.mxu0 0.0
    %9405 = vmatpush1.msra.mxu0 %v234
    %9406 = vmatprep.subr.mxu0 0.0
    %9407 = vmatpush1.msra.mxu0 %v235
    %9408 = vmatprep.subr.mxu0 0.0
    %9409 = vmatpush1.msra.mxu0 %v236
    %9410 = vmatprep.subr.mxu0 0.0
    %9411 = vmatpush1.msra.mxu0 %v237
    %9412 = vmatprep.subr.mxu0 0.0
    %9413 = vmatpush1.msra.mxu0 %v238
    %9414 = vmatprep.subr.mxu0 0.0
    %9415 = vmatpush1.msra.mxu0 %v239
    %9416 = vmatprep.subr.mxu0 0.0
    %9417 = vmatpush1.msra.mxu0 %v240
    %9418 = vmatprep.subr.mxu0 0.0
    %9419 = vmatpush1.msra.mxu0 %v241
    %9420 = vmatprep.subr.mxu0 0.0
    %9421 = vmatpush1.msra.mxu0 %v242
    %9422 = vmatprep.subr.mxu0 0.0
    %9423 = vmatpush1.msra.mxu0 %v243
    %9424 = vmatprep.subr.mxu0 0.0
    %9425 = vmatpush1.msra.mxu0 %v244
    %9426 = vmatprep.subr.mxu0 0.0
    %9427 = vmatpush1.msra.mxu0 %v245
    %9428 = vmatprep.subr.mxu0 0.0
    %9429 = vmatpush1.msra.mxu0 %v246
    %9430 = vmatprep.subr.mxu0 0.0
    %9431 = vmatpush1.msra.mxu0 %v247
    %9432 = vmatprep.subr.mxu0 0.0
    %9433 = vmatpush1.msra.mxu0 0.0
    %9434 = vmatprep.subr.mxu0 0.0
    %9435 = vmatpush1.msra.mxu0 0.0
    %9436 = vmatprep.subr.mxu0 0.0
    %9437 = vmatpush1.msra.mxu0 0.0
    %9438 = vmatprep.subr.mxu0 0.0
    %9439 = vmatpush1.msra.mxu0 0.0
    %9440 = vmatprep.subr.mxu0 0.0
    %9441 = vmatpush1.msra.mxu0 0.0
    %9442 = vmatprep.subr.mxu0 0.0
    %9443 = vmatpush1.msra.mxu0 0.0
    %9444 = vmatprep.subr.mxu0 0.0
    %9445 = vmatpush1.msra.mxu0 0.0
    %9446 = vmatprep.subr.mxu0 0.0
    %9447 = vmatpush1.msra.mxu0 0.0
    %9448 = vmatprep.subr.mxu0 0.0
    %9449 = vmatpush1.msra.mxu0 0.0
    %9450 = vmatprep.subr.mxu0 0.0
    %9451 = vmatpush1.msra.mxu0 0.0
    %9452 = vmatprep.subr.mxu0 0.0
    %9453 = vmatpush1.msra.mxu0 0.0
    %9454 = vmatprep.subr.mxu0 0.0
    %9455 = vmatpush1.msra.mxu0 0.0
    %9456 = vmatprep.subr.mxu0 0.0
    %9457 = vmatpush1.msra.mxu0 0.0
    %9458 = vmatprep.subr.mxu0 0.0
    %9459 = vmatpush1.msra.mxu0 0.0
    %9460 = vmatprep.subr.mxu0 0.0
    %9461 = vmatpush1.msra.mxu0 0.0
    %9462 = vmatprep.subr.mxu0 0.0
    %9463 = vmatpush1.msra.mxu0 0.0
    %9464 = vmatprep.mubr.f32.mxu0 0.0
    %9465 = vmatmul.mubr.f32.gmra.mrb[0].mxu0 %v9366
    %v9466 = vpop.f32.mrb[0].mxu0
    %v9467 = vadd.f32 0.0, %v9466
    %v9468 = vpop.f32.mrb[0].mxu0
    %9469 = vmatprep.mubr.f32.mxu0 0.0
    %9470 = vmatmul.mubr.f32.gmra.mrb[0].mxu0 %v9367
    %v9471 = vpop.f32.mrb[0].mxu0
    %v9472 = vadd.f32 0.0, %v9471
    %v9473 = vpop.f32.mrb[0].mxu0
    %9474 = vmatprep.mubr.f32.mxu0 0.0
    %9475 = vmatmul.mubr.f32.gmra.mrb[0].mxu0 %v9368
    %v9476 = vpop.f32.mrb[0].mxu0
    %v9477 = vadd.f32 0.0, %v9476
    %v9478 = vpop.f32.mrb[0].mxu0
    %9479 = vmatprep.mubr.f32.mxu0 0.0
    %9480 = vmatmul.mubr.f32.gmra.mrb[0].mxu0 %v9369
    %v9481 = vpop.f32.mrb[0].mxu0
    %v9482 = vadd.f32 0.0, %v9481
    %v9483 = vpop.f32.mrb[0].mxu0
    %9484 = vmatprep.mubr.f32.mxu0 0.0
    %9485 = vmatmul.mubr.f32.gmra.mrb[0].mxu0 %v9370
    %v9486 = vpop.f32.mrb[0].mxu0
    %v9487 = vadd.f32 0.0, %v9486
    %v9488 = vpop.f32.mrb[0].mxu0
    %9489 = vmatprep.mubr.f32.mxu0 0.0
    %9490 = vmatmul.mubr.f32.gmra.mrb[0].mxu0 %v9371
    %v9491 = vpop.f32.mrb[0].mxu0
    %v9492 = vadd.f32 0.0, %v9491
    %v9493 = vpop.f32.mrb[0].mxu0
    %9494 = vmatprep.mubr.f32.mxu0 0.0
    %9495 = vmatmul.mubr.f32.gmra.mrb[0].mxu0 %v9372
    %v9496 = vpop.f32.mrb[0].mxu0
    %v9497 = vadd.f32 0.0, %v9496
    %v9498 = vpop.f32.mrb[0].mxu0
    %9499 = vmatprep.mubr.f32.mxu0 0.0
    %9500 = vmatmul.mubr.f32.gmra.mrb[0].mxu0 %v9373
    %v9501 = vpop.f32.mrb[0].mxu0
    %v9502 = vadd.f32 0.0, %v9501
    %v9503 = vpop.f32.mrb[0].mxu0
    %9504 = vmatprep.mubr.f32.mxu0 0.0
    %9505 = vmatmul.mubr.f32.gmra.mrb[0].mxu0 %v9374
    %v9506 = vpop.f32.mrb[0].mxu0
    %v9507 = vadd.f32 0.0, %v9506
    %v9508 = vpop.f32.mrb[0].mxu0
    %9509 = vmatprep.mubr.f32.mxu0 0.0
    %9510 = vmatmul.mubr.f32.gmra.mrb[0].mxu0 %v9375
    %v9511 = vpop.f32.mrb[0].mxu0
    %v9512 = vadd.f32 0.0, %v9511
    %v9513 = vpop.f32.mrb[0].mxu0
    %9514 = vmatprep.mubr.f32.mxu0 0.0
    %9515 = vmatmul.mubr.f32.gmra.mrb[0].mxu0 %v9376
    %v9516 = vpop.f32.mrb[0].mxu0
    %v9517 = vadd.f32 0.0, %v9516
    %v9518 = vpop.f32.mrb[0].mxu0
    %9519 = vmatprep.mubr.f32.mxu0 0.0
    %9520 = vmatmul.mubr.f32.gmra.mrb[0].mxu0 %v9377
    %v9521 = vpop.f32.mrb[0].mxu0
    %v9522 = vadd.f32 0.0, %v9521
    %v9523 = vpop.f32.mrb[0].mxu0
    %9524 = vmatprep.mubr.f32.mxu0 0.0
    %9525 = vmatmul.mubr.f32.gmra.mrb[0].mxu0 %v9378
    %v9526 = vpop.f32.mrb[0].mxu0
    %v9527 = vadd.f32 0.0, %v9526
    %v9528 = vpop.f32.mrb[0].mxu0
    %9529 = vmatprep.mubr.f32.mxu0 0.0
    %9530 = vmatmul.mubr.f32.gmra.mrb[0].mxu0 %v9379
    %v9531 = vpop.f32.mrb[0].mxu0
    %v9532 = vadd.f32 0.0, %v9531
    %v9533 = vpop.f32.mrb[0].mxu0
    %9534 = vmatprep.mubr.f32.mxu0 0.0
    %9535 = vmatmul.mubr.f32.gmra.mrb[0].mxu0 %v9380
    %v9536 = vpop.f32.mrb[0].mxu0
    %v9537 = vadd.f32 0.0, %v9536
    %v9538 = vpop.f32.mrb[0].mxu0
    %9539 = vmatprep.mubr.f32.mxu0 0.0
    %9540 = vmatmul.mubr.f32.gmra.mrb[0].mxu0 %v9381
    %v9541 = vpop.f32.mrb[0].mxu0
    %v9542 = vadd.f32 0.0, %v9541
    %v9543 = vpop.f32.mrb[0].mxu0
    %9544 = vmatprep.mubr.f32.mxu0 0.0
    %9545 = vmatmul.mubr.f32.gmra.mrb[0].mxu0 %v9382
    %v9546 = vpop.f32.mrb[0].mxu0
    %v9547 = vadd.f32 0.0, %v9546
    %v9548 = vpop.f32.mrb[0].mxu0
    %9549 = vmatprep.mubr.f32.mxu0 0.0
    %9550 = vmatmul.mubr.f32.gmra.mrb[0].mxu0 %v9383
    %v9551 = vpop.f32.mrb[0].mxu0
    %v9552 = vadd.f32 0.0, %v9551
    %v9553 = vpop.f32.mrb[0].mxu0
    %9554 = vmatprep.mubr.f32.mxu0 0.0
    %9555 = vmatmul.mubr.f32.gmra.mrb[0].mxu0 %v9384
    %v9556 = vpop.f32.mrb[0].mxu0
    %v9557 = vadd.f32 0.0, %v9556
    %v9558 = vpop.f32.mrb[0].mxu0
    %9559 = vmatprep.mubr.f32.mxu0 0.0
    %9560 = vmatmul.mubr.f32.gmra.mrb[0].mxu0 %v9385
    %v9561 = vpop.f32.mrb[0].mxu0
    %v9562 = vadd.f32 0.0, %v9561
    %v9563 = vpop.f32.mrb[0].mxu0
    %9564 = vmatprep.mubr.f32.mxu0 0.0
    %9565 = vmatmul.mubr.f32.gmra.mrb[0].mxu0 %v9386
    %v9566 = vpop.f32.mrb[0].mxu0
    %v9567 = vadd.f32 0.0, %v9566
    %v9568 = vpop.f32.mrb[0].mxu0
    %9569 = vmatprep.mubr.f32.mxu0 0.0
    %9570 = vmatmul.mubr.f32.gmra.mrb[0].mxu0 %v9387
    %v9571 = vpop.f32.mrb[0].mxu0
    %v9572 = vadd.f32 0.0, %v9571
    %v9573 = vpop.f32.mrb[0].mxu0
    %9574 = vmatprep.mubr.f32.mxu0 0.0
    %9575 = vmatmul.mubr.f32.gmra.mrb[0].mxu0 %v9388
    %v9576 = vpop.f32.mrb[0].mxu0
    %v9577 = vadd.f32 0.0, %v9576
    %v9578 = vpop.f32.mrb[0].mxu0
    %9579 = vmatprep.mubr.f32.mxu0 0.0
    %9580 = vmatmul.mubr.f32.gmra.mrb[0].mxu0 %v9389
    %v9581 = vpop.f32.mrb[0].mxu0
    %v9582 = vadd.f32 0.0, %v9581
    %v9583 = vpop.f32.mrb[0].mxu0
    %9584 = vmatprep.mubr.f32.mxu0 0.0
    %9585 = vmatmul.mubr.f32.gmra.mrb[0].mxu0 %v9390
    %v9586 = vpop.f32.mrb[0].mxu0
    %v9587 = vadd.f32 0.0, %v9586
    %v9588 = vpop.f32.mrb[0].mxu0
    %9589 = vmatprep.mubr.f32.mxu0 0.0
    %9590 = vmatmul.mubr.f32.gmra.mrb[0].mxu0 %v9391
    %v9591 = vpop.f32.mrb[0].mxu0
    %v9592 = vadd.f32 0.0, %v9591
    %v9593 = vpop.f32.mrb[0].mxu0
    %9594 = vmatprep.mubr.f32.mxu0 0.0
    %9595 = vmatmul.mubr.f32.gmra.mrb[0].mxu0 %v9392
    %v9596 = vpop.f32.mrb[0].mxu0
    %v9597 = vadd.f32 0.0, %v9596
    %v9598 = vpop.f32.mrb[0].mxu0
    %9599 = vmatprep.mubr.f32.mxu0 0.0
    %9600 = vmatmul.mubr.f32.gmra.mrb[0].mxu0 %v9393
    %v9601 = vpop.f32.mrb[0].mxu0
    %v9602 = vadd.f32 0.0, %v9601
    %v9603 = vpop.f32.mrb[0].mxu0
    %9604 = vmatprep.mubr.f32.mxu0 0.0
    %9605 = vmatmul.mubr.f32.gmra.mrb[0].mxu0 %v9394
    %v9606 = vpop.f32.mrb[0].mxu0
    %v9607 = vadd.f32 0.0, %v9606
    %v9608 = vpop.f32.mrb[0].mxu0
    %9609 = vmatprep.mubr.f32.mxu0 0.0
    %9610 = vmatmul.mubr.f32.gmra.mrb[0].mxu0 %v9395
    %v9611 = vpop.f32.mrb[0].mxu0
    %v9612 = vadd.f32 0.0, %v9611
    %v9613 = vpop.f32.mrb[0].mxu0
    %9614 = vmatprep.mubr.f32.mxu0 0.0
    %9615 = vmatmul.mubr.f32.gmra.mrb[0].mxu0 %v9396
    %v9616 = vpop.f32.mrb[0].mxu0
    %v9617 = vadd.f32 0.0, %v9616
    %v9618 = vpop.f32.mrb[0].mxu0
    %9619 = vmatprep.mubr.f32.mxu0 0.0
    %9620 = vmatmul.mubr.f32.gmra.mrb[0].mxu0 %v9397
    %v9621 = vpop.f32.mrb[0].mxu0
    %v9622 = vadd.f32 0.0, %v9621
    %v9623 = vpop.f32.mrb[0].mxu0
    %9624 = vdwg.mxu0
    %v9625 = vmul.f32 %v9467, 0.015625
    %v9626 = vmul.f32 %v9472, 0.015625
    %v9627 = vmul.f32 %v9477, 0.015625
    %v9628 = vmul.f32 %v9482, 0.015625
    %v9629 = vmul.f32 %v9487, 0.015625
    %v9630 = vmul.f32 %v9492, 0.015625
    %v9631 = vmul.f32 %v9497, 0.015625
    %v9632 = vmul.f32 %v9502, 0.015625
    %v9633 = vmul.f32 %v9507, 0.015625
    %v9634 = vmul.f32 %v9512, 0.015625
    %v9635 = vmul.f32 %v9517, 0.015625
    %v9636 = vmul.f32 %v9522, 0.015625
    %v9637 = vmul.f32 %v9527, 0.015625
    %v9638 = vmul.f32 %v9532, 0.015625
    %v9639 = vmul.f32 %v9537, 0.015625
    %v9640 = vmul.f32 %v9542, 0.015625
    %v9641 = vmul.f32 %v9547, 0.015625
    %v9642 = vmul.f32 %v9552, 0.015625
    %v9643 = vmul.f32 %v9557, 0.015625
    %v9644 = vmul.f32 %v9562, 0.015625
    %v9645 = vmul.f32 %v9567, 0.015625
    %v9646 = vmul.f32 %v9572, 0.015625
    %v9647 = vmul.f32 %v9577, 0.015625
    %v9648 = vmul.f32 %v9582, 0.015625
    %v9649 = vmul.f32 %v9587, 0.015625
    %v9650 = vmul.f32 %v9592, 0.015625
    %v9651 = vmul.f32 %v9597, 0.015625
    %v9652 = vmul.f32 %v9602, 0.015625
    %v9653 = vmul.f32 %v9607, 0.015625
    %v9654 = vmul.f32 %v9612, 0.015625
    %v9655 = vmul.f32 %v9617, 0.015625
    %v9656 = vmul.f32 %v9622, 0.015625
    %v9657 = vsub.f32 %v9366, %v9625
    %v9658 = vsub.f32 %v9367, %v9626
    %v9659 = vsub.f32 %v9368, %v9627
    %v9660 = vsub.f32 %v9369, %v9628
    %v9661 = vsub.f32 %v9370, %v9629
    %v9662 = vsub.f32 %v9371, %v9630
    %v9663 = vsub.f32 %v9372, %v9631
    %v9664 = vsub.f32 %v9373, %v9632
    %v9665 = vsub.f32 %v9374, %v9633
    %v9666 = vsub.f32 %v9375, %v9634
    %v9667 = vsub.f32 %v9376, %v9635
    %v9668 = vsub.f32 %v9377, %v9636
    %v9669 = vsub.f32 %v9378, %v9637
    %v9670 = vsub.f32 %v9379, %v9638
    %v9671 = vsub.f32 %v9380, %v9639
    %v9672 = vsub.f32 %v9381, %v9640
    %v9673 = vsub.f32 %v9382, %v9641
    %v9674 = vsub.f32 %v9383, %v9642
    %v9675 = vsub.f32 %v9384, %v9643
    %v9676 = vsub.f32 %v9385, %v9644
    %v9677 = vsub.f32 %v9386, %v9645
    %v9678 = vsub.f32 %v9387, %v9646
    %v9679 = vsub.f32 %v9388, %v9647
    %v9680 = vsub.f32 %v9389, %v9648
    %v9681 = vsub.f32 %v9390, %v9649
    %v9682 = vsub.f32 %v9391, %v9650
    %v9683 = vsub.f32 %v9392, %v9651
    %v9684 = vsub.f32 %v9393, %v9652
    %v9685 = vsub.f32 %v9394, %v9653
    %v9686 = vsub.f32 %v9395, %v9654
    %v9687 = vsub.f32 %v9396, %v9655
    %v9688 = vsub.f32 %v9397, %v9656
    %v9689 = vmul.f32 %v9657, %v9657
    %v9690 = vmul.f32 %v9658, %v9658
    %v9691 = vmul.f32 %v9659, %v9659
    %v9692 = vmul.f32 %v9660, %v9660
    %v9693 = vmul.f32 %v9661, %v9661
    %v9694 = vmul.f32 %v9662, %v9662
    %v9695 = vmul.f32 %v9663, %v9663
    %v9696 = vmul.f32 %v9664, %v9664
    %v9697 = vmul.f32 %v9665, %v9665
    %v9698 = vmul.f32 %v9666, %v9666
    %v9699 = vmul.f32 %v9667, %v9667
    %v9700 = vmul.f32 %v9668, %v9668
    %v9701 = vmul.f32 %v9669, %v9669
    %v9702 = vmul.f32 %v9670, %v9670
    %v9703 = vmul.f32 %v9671, %v9671
    %v9704 = vmul.f32 %v9672, %v9672
    %v9705 = vmul.f32 %v9673, %v9673
    %v9706 = vmul.f32 %v9674, %v9674
    %v9707 = vmul.f32 %v9675, %v9675
    %v9708 = vmul.f32 %v9676, %v9676
    %v9709 = vmul.f32 %v9677, %v9677
    %v9710 = vmul.f32 %v9678, %v9678
    %v9711 = vmul.f32 %v9679, %v9679
    %v9712 = vmul.f32 %v9680, %v9680
    %v9713 = vmul.f32 %v9681, %v9681
    %v9714 = vmul.f32 %v9682, %v9682
    %v9715 = vmul.f32 %v9683, %v9683
    %v9716 = vmul.f32 %v9684, %v9684
    %v9717 = vmul.f32 %v9685, %v9685
    %v9718 = vmul.f32 %v9686, %v9686
    %v9719 = vmul.f32 %v9687, %v9687
    %v9720 = vmul.f32 %v9688, %v9688
    %9721 = vmatprep.subr.mxu0 0.0
    %9722 = vmatpush1.msra.mxu0 %v232
    %9723 = vmatprep.subr.mxu0 0.0
    %9724 = vmatpush1.msra.mxu0 %v233
    %9725 = vmatprep.subr.mxu0 0.0
    %9726 = vmatpush1.msra.mxu0 %v234
    %9727 = vmatprep.subr.mxu0 0.0
    %9728 = vmatpush1.msra.mxu0 %v235
    %9729 = vmatprep.subr.mxu0 0.0
    %9730 = vmatpush1.msra.mxu0 %v236
    %9731 = vmatprep.subr.mxu0 0.0
    %9732 = vmatpush1.msra.mxu0 %v237
    %9733 = vmatprep.subr.mxu0 0.0
    %9734 = vmatpush1.msra.mxu0 %v238
    %9735 = vmatprep.subr.mxu0 0.0
    %9736 = vmatpush1.msra.mxu0 %v239
    %9737 = vmatprep.subr.mxu0 0.0
    %9738 = vmatpush1.msra.mxu0 %v240
    %9739 = vmatprep.subr.mxu0 0.0
    %9740 = vmatpush1.msra.mxu0 %v241
    %9741 = vmatprep.subr.mxu0 0.0
    %9742 = vmatpush1.msra.mxu0 %v242
    %9743 = vmatprep.subr.mxu0 0.0
    %9744 = vmatpush1.msra.mxu0 %v243
    %9745 = vmatprep.subr.mxu0 0.0
    %9746 = vmatpush1.msra.mxu0 %v244
    %9747 = vmatprep.subr.mxu0 0.0
    %9748 = vmatpush1.msra.mxu0 %v245
    %9749 = vmatprep.subr.mxu0 0.0
    %9750 = vmatpush1.msra.mxu0 %v246
    %9751 = vmatprep.subr.mxu0 0.0
    %9752 = vmatpush1.msra.mxu0 %v247
    %9753 = vmatprep.subr.mxu0 0.0
    %9754 = vmatpush1.msra.mxu0 0.0
    %9755 = vmatprep.subr.mxu0 0.0
    %9756 = vmatpush1.msra.mxu0 0.0
    %9757 = vmatprep.subr.mxu0 0.0
    %9758 = vmatpush1.msra.mxu0 0.0
    %9759 = vmatprep.subr.mxu0 0.0
    %9760 = vmatpush1.msra.mxu0 0.0
    %9761 = vmatprep.subr.mxu0 0.0
    %9762 = vmatpush1.msra.mxu0 0.0
    %9763 = vmatprep.subr.mxu0 0.0
    %9764 = vmatpush1.msra.mxu0 0.0
    %9765 = vmatprep.subr.mxu0 0.0
    %9766 = vmatpush1.msra.mxu0 0.0
    %9767 = vmatprep.subr.mxu0 0.0
    %9768 = vmatpush1.msra.mxu0 0.0
    %9769 = vmatprep.subr.mxu0 0.0
    %9770 = vmatpush1.msra.mxu0 0.0
    %9771 = vmatprep.subr.mxu0 0.0
    %9772 = vmatpush1.msra.mxu0 0.0
    %9773 = vmatprep.subr.mxu0 0.0
    %9774 = vmatpush1.msra.mxu0 0.0
    %9775 = vmatprep.subr.mxu0 0.0
    %9776 = vmatpush1.msra.mxu0 0.0
    %9777 = vmatprep.subr.mxu0 0.0
    %9778 = vmatpush1.msra.mxu0 0.0
    %9779 = vmatprep.subr.mxu0 0.0
    %9780 = vmatpush1.msra.mxu0 0.0
    %9781 = vmatprep.subr.mxu0 0.0
    %9782 = vmatpush1.msra.mxu0 0.0
    %9783 = vmatprep.subr.mxu0 0.0
    %9784 = vmatpush1.msra.mxu0 0.0
    %9785 = vmatprep.mubr.f32.mxu0 0.0
    %9786 = vmatmul.mubr.f32.gmra.mrb[0].mxu0 %v9689
    %v9787 = vpop.f32.mrb[0].mxu0
    %v9788 = vadd.f32 0.0, %v9787
    %v9789 = vpop.f32.mrb[0].mxu0
    %9790 = vmatprep.mubr.f32.mxu0 0.0
    %9791 = vmatmul.mubr.f32.gmra.mrb[0].mxu0 %v9690
    %v9792 = vpop.f32.mrb[0].mxu0
    %v9793 = vadd.f32 0.0, %v9792
    %v9794 = vpop.f32.mrb[0].mxu0
    %9795 = vmatprep.mubr.f32.mxu0 0.0
    %9796 = vmatmul.mubr.f32.gmra.mrb[0].mxu0 %v9691
    %v9797 = vpop.f32.mrb[0].mxu0
    %v9798 = vadd.f32 0.0, %v9797
    %v9799 = vpop.f32.mrb[0].mxu0
    %9800 = vmatprep.mubr.f32.mxu0 0.0
    %9801 = vmatmul.mubr.f32.gmra.mrb[0].mxu0 %v9692
    %v9802 = vpop.f32.mrb[0].mxu0
    %v9803 = vadd.f32 0.0, %v9802
    %v9804 = vpop.f32.mrb[0].mxu0
    %9805 = vmatprep.mubr.f32.mxu0 0.0
    %9806 = vmatmul.mubr.f32.gmra.mrb[0].mxu0 %v9693
    %v9807 = vpop.f32.mrb[0].mxu0
    %v9808 = vadd.f32 0.0, %v9807
    %v9809 = vpop.f32.mrb[0].mxu0
    %9810 = vmatprep.mubr.f32.mxu0 0.0
    %9811 = vmatmul.mubr.f32.gmra.mrb[0].mxu0 %v9694
    %v9812 = vpop.f32.mrb[0].mxu0
    %v9813 = vadd.f32 0.0, %v9812
    %v9814 = vpop.f32.mrb[0].mxu0
    %9815 = vmatprep.mubr.f32.mxu0 0.0
    %9816 = vmatmul.mubr.f32.gmra.mrb[0].mxu0 %v9695
    %v9817 = vpop.f32.mrb[0].mxu0
    %v9818 = vadd.f32 0.0, %v9817
    %v9819 = vpop.f32.mrb[0].mxu0
    %9820 = vmatprep.mubr.f32.mxu0 0.0
    %9821 = vmatmul.mubr.f32.gmra.mrb[0].mxu0 %v9696
    %v9822 = vpop.f32.mrb[0].mxu0
    %v9823 = vadd.f32 0.0, %v9822
    %v9824 = vpop.f32.mrb[0].mxu0
    %9825 = vmatprep.mubr.f32.mxu0 0.0
    %9826 = vmatmul.mubr.f32.gmra.mrb[0].mxu0 %v9697
    %v9827 = vpop.f32.mrb[0].mxu0
    %v9828 = vadd.f32 0.0, %v9827
    %v9829 = vpop.f32.mrb[0].mxu0
    %9830 = vmatprep.mubr.f32.mxu0 0.0
    %9831 = vmatmul.mubr.f32.gmra.mrb[0].mxu0 %v9698
    %v9832 = vpop.f32.mrb[0].mxu0
    %v9833 = vadd.f32 0.0, %v9832
    %v9834 = vpop.f32.mrb[0].mxu0
    %9835 = vmatprep.mubr.f32.mxu0 0.0
    %9836 = vmatmul.mubr.f32.gmra.mrb[0].mxu0 %v9699
    %v9837 = vpop.f32.mrb[0].mxu0
    %v9838 = vadd.f32 0.0, %v9837
    %v9839 = vpop.f32.mrb[0].mxu0
    %9840 = vmatprep.mubr.f32.mxu0 0.0
    %9841 = vmatmul.mubr.f32.gmra.mrb[0].mxu0 %v9700
    %v9842 = vpop.f32.mrb[0].mxu0
    %v9843 = vadd.f32 0.0, %v9842
    %v9844 = vpop.f32.mrb[0].mxu0
    %9845 = vmatprep.mubr.f32.mxu0 0.0
    %9846 = vmatmul.mubr.f32.gmra.mrb[0].mxu0 %v9701
    %v9847 = vpop.f32.mrb[0].mxu0
    %v9848 = vadd.f32 0.0, %v9847
    %v9849 = vpop.f32.mrb[0].mxu0
    %9850 = vmatprep.mubr.f32.mxu0 0.0
    %9851 = vmatmul.mubr.f32.gmra.mrb[0].mxu0 %v9702
    %v9852 = vpop.f32.mrb[0].mxu0
    %v9853 = vadd.f32 0.0, %v9852
    %v9854 = vpop.f32.mrb[0].mxu0
    %9855 = vmatprep.mubr.f32.mxu0 0.0
    %9856 = vmatmul.mubr.f32.gmra.mrb[0].mxu0 %v9703
    %v9857 = vpop.f32.mrb[0].mxu0
    %v9858 = vadd.f32 0.0, %v9857
    %v9859 = vpop.f32.mrb[0].mxu0
    %9860 = vmatprep.mubr.f32.mxu0 0.0
    %9861 = vmatmul.mubr.f32.gmra.mrb[0].mxu0 %v9704
    %v9862 = vpop.f32.mrb[0].mxu0
    %v9863 = vadd.f32 0.0, %v9862
    %v9864 = vpop.f32.mrb[0].mxu0
    %9865 = vmatprep.mubr.f32.mxu0 0.0
    %9866 = vmatmul.mubr.f32.gmra.mrb[0].mxu0 %v9705
    %v9867 = vpop.f32.mrb[0].mxu0
    %v9868 = vadd.f32 0.0, %v9867
    %v9869 = vpop.f32.mrb[0].mxu0
    %9870 = vmatprep.mubr.f32.mxu0 0.0
    %9871 = vmatmul.mubr.f32.gmra.mrb[0].mxu0 %v9706
    %v9872 = vpop.f32.mrb[0].mxu0
    %v9873 = vadd.f32 0.0, %v9872
    %v9874 = vpop.f32.mrb[0].mxu0
    %9875 = vmatprep.mubr.f32.mxu0 0.0
    %9876 = vmatmul.mubr.f32.gmra.mrb[0].mxu0 %v9707
    %v9877 = vpop.f32.mrb[0].mxu0
    %v9878 = vadd.f32 0.0, %v9877
    %v9879 = vpop.f32.mrb[0].mxu0
    %9880 = vmatprep.mubr.f32.mxu0 0.0
    %9881 = vmatmul.mubr.f32.gmra.mrb[0].mxu0 %v9708
    %v9882 = vpop.f32.mrb[0].mxu0
    %v9883 = vadd.f32 0.0, %v9882
    %v9884 = vpop.f32.mrb[0].mxu0
    %9885 = vmatprep.mubr.f32.mxu0 0.0
    %9886 = vmatmul.mubr.f32.gmra.mrb[0].mxu0 %v9709
    %v9887 = vpop.f32.mrb[0].mxu0
    %v9888 = vadd.f32 0.0, %v9887
    %v9889 = vpop.f32.mrb[0].mxu0
    %9890 = vmatprep.mubr.f32.mxu0 0.0
    %9891 = vmatmul.mubr.f32.gmra.mrb[0].mxu0 %v9710
    %v9892 = vpop.f32.mrb[0].mxu0
    %v9893 = vadd.f32 0.0, %v9892
    %v9894 = vpop.f32.mrb[0].mxu0
    %9895 = vmatprep.mubr.f32.mxu0 0.0
    %9896 = vmatmul.mubr.f32.gmra.mrb[0].mxu0 %v9711
    %v9897 = vpop.f32.mrb[0].mxu0
    %v9898 = vadd.f32 0.0, %v9897
    %v9899 = vpop.f32.mrb[0].mxu0
    %9900 = vmatprep.mubr.f32.mxu0 0.0
    %9901 = vmatmul.mubr.f32.gmra.mrb[0].mxu0 %v9712
    %v9902 = vpop.f32.mrb[0].mxu0
    %v9903 = vadd.f32 0.0, %v9902
    %v9904 = vpop.f32.mrb[0].mxu0
    %9905 = vmatprep.mubr.f32.mxu0 0.0
    %9906 = vmatmul.mubr.f32.gmra.mrb[0].mxu0 %v9713
    %v9907 = vpop.f32.mrb[0].mxu0
    %v9908 = vadd.f32 0.0, %v9907
    %v9909 = vpop.f32.mrb[0].mxu0
    %9910 = vmatprep.mubr.f32.mxu0 0.0
    %9911 = vmatmul.mubr.f32.gmra.mrb[0].mxu0 %v9714
    %v9912 = vpop.f32.mrb[0].mxu0
    %v9913 = vadd.f32 0.0, %v9912
    %v9914 = vpop.f32.mrb[0].mxu0
    %9915 = vmatprep.mubr.f32.mxu0 0.0
    %9916 = vmatmul.mubr.f32.gmra.mrb[0].mxu0 %v9715
    %v9917 = vpop.f32.mrb[0].mxu0
    %v9918 = vadd.f32 0.0, %v9917
    %v9919 = vpop.f32.mrb[0].mxu0
    %9920 = vmatprep.mubr.f32.mxu0 0.0
    %9921 = vmatmul.mubr.f32.gmra.mrb[0].mxu0 %v9716
    %v9922 = vpop.f32.mrb[0].mxu0
    %v9923 = vadd.f32 0.0, %v9922
    %v9924 = vpop.f32.mrb[0].mxu0
    %9925 = vmatprep.mubr.f32.mxu0 0.0
    %9926 = vmatmul.mubr.f32.gmra.mrb[0].mxu0 %v9717
    %v9927 = vpop.f32.mrb[0].mxu0
    %v9928 = vadd.f32 0.0, %v9927
    %v9929 = vpop.f32.mrb[0].mxu0
    %9930 = vmatprep.mubr.f32.mxu0 0.0
    %9931 = vmatmul.mubr.f32.gmra.mrb[0].mxu0 %v9718
    %v9932 = vpop.f32.mrb[0].mxu0
    %v9933 = vadd.f32 0.0, %v9932
    %v9934 = vpop.f32.mrb[0].mxu0
    %9935 = vmatprep.mubr.f32.mxu0 0.0
    %9936 = vmatmul.mubr.f32.gmra.mrb[0].mxu0 %v9719
    %v9937 = vpop.f32.mrb[0].mxu0
    %v9938 = vadd.f32 0.0, %v9937
    %v9939 = vpop.f32.mrb[0].mxu0
    %9940 = vmatprep.mubr.f32.mxu0 0.0
    %9941 = vmatmul.mubr.f32.gmra.mrb[0].mxu0 %v9720
    %v9942 = vpop.f32.mrb[0].mxu0
    %v9943 = vadd.f32 0.0, %v9942
    %v9944 = vpop.f32.mrb[0].mxu0
    %9945 = vdwg.mxu0
    %v9946 = vmul.f32 %v9788, 0.015625
    %v9947 = vmul.f32 %v9793, 0.015625
    %v9948 = vmul.f32 %v9798, 0.015625
    %v9949 = vmul.f32 %v9803, 0.015625
    %v9950 = vmul.f32 %v9808, 0.015625
    %v9951 = vmul.f32 %v9813, 0.015625
    %v9952 = vmul.f32 %v9818, 0.015625
    %v9953 = vmul.f32 %v9823, 0.015625
    %v9954 = vmul.f32 %v9828, 0.015625
    %v9955 = vmul.f32 %v9833, 0.015625
    %v9956 = vmul.f32 %v9838, 0.015625
    %v9957 = vmul.f32 %v9843, 0.015625
    %v9958 = vmul.f32 %v9848, 0.015625
    %v9959 = vmul.f32 %v9853, 0.015625
    %v9960 = vmul.f32 %v9858, 0.015625
    %v9961 = vmul.f32 %v9863, 0.015625
    %v9962 = vmul.f32 %v9868, 0.015625
    %v9963 = vmul.f32 %v9873, 0.015625
    %v9964 = vmul.f32 %v9878, 0.015625
    %v9965 = vmul.f32 %v9883, 0.015625
    %v9966 = vmul.f32 %v9888, 0.015625
    %v9967 = vmul.f32 %v9893, 0.015625
    %v9968 = vmul.f32 %v9898, 0.015625
    %v9969 = vmul.f32 %v9903, 0.015625
    %v9970 = vmul.f32 %v9908, 0.015625
    %v9971 = vmul.f32 %v9913, 0.015625
    %v9972 = vmul.f32 %v9918, 0.015625
    %v9973 = vmul.f32 %v9923, 0.015625
    %v9974 = vmul.f32 %v9928, 0.015625
    %v9975 = vmul.f32 %v9933, 0.015625
    %v9976 = vmul.f32 %v9938, 0.015625
    %v9977 = vmul.f32 %v9943, 0.015625
    %v9978 = vadd.f32 %v9946, 1e-05
    %v9979 = vadd.f32 %v9947, 1e-05
    %v9980 = vadd.f32 %v9948, 1e-05
    %v9981 = vadd.f32 %v9949, 1e-05
    %v9982 = vadd.f32 %v9950, 1e-05
    %v9983 = vadd.f32 %v9951, 1e-05
    %v9984 = vadd.f32 %v9952, 1e-05
    %v9985 = vadd.f32 %v9953, 1e-05
    %v9986 = vadd.f32 %v9954, 1e-05
    %v9987 = vadd.f32 %v9955, 1e-05
    %v9988 = vadd.f32 %v9956, 1e-05
    %v9989 = vadd.f32 %v9957, 1e-05
    %v9990 = vadd.f32 %v9958, 1e-05
    %v9991 = vadd.f32 %v9959, 1e-05
    %v9992 = vadd.f32 %v9960, 1e-05
    %v9993 = vadd.f32 %v9961, 1e-05
    %v9994 = vadd.f32 %v9962, 1e-05
    %v9995 = vadd.f32 %v9963, 1e-05
    %v9996 = vadd.f32 %v9964, 1e-05
    %v9997 = vadd.f32 %v9965, 1e-05
    %v9998 = vadd.f32 %v9966, 1e-05
    %v9999 = vadd.f32 %v9967, 1e-05
    %v10000 = vadd.f32 %v9968, 1e-05
    %v10001 = vadd.f32 %v9969, 1e-05
    %v10002 = vadd.f32 %v9970, 1e-05
    %v10003 = vadd.f32 %v9971, 1e-05
    %v10004 = vadd.f32 %v9972, 1e-05
    %v10005 = vadd.f32 %v9973, 1e-05
    %v10006 = vadd.f32 %v9974, 1e-05
    %v10007 = vadd.f32 %v9975, 1e-05
    %v10008 = vadd.f32 %v9976, 1e-05
    %v10009 = vadd.f32 %v9977, 1e-05
    %v10010 = vrsqrt.pop %v9978
    %v10011 = vrsqrt.pop %v9979
    %v10012 = vrsqrt.pop %v9980
    %v10013 = vrsqrt.pop %v9981
    %v10014 = vrsqrt.pop %v9982
    %v10015 = vrsqrt.pop %v9983
    %v10016 = vrsqrt.pop %v9984
    %v10017 = vrsqrt.pop %v9985
    %v10018 = vrsqrt.pop %v9986
    %v10019 = vrsqrt.pop %v9987
    %v10020 = vrsqrt.pop %v9988
    %v10021 = vrsqrt.pop %v9989
    %v10022 = vrsqrt.pop %v9990
    %v10023 = vrsqrt.pop %v9991
    %v10024 = vrsqrt.pop %v9992
    %v10025 = vrsqrt.pop %v9993
    %v10026 = vrsqrt.pop %v9994
    %v10027 = vrsqrt.pop %v9995
    %v10028 = vrsqrt.pop %v9996
    %v10029 = vrsqrt.pop %v9997
    %v10030 = vrsqrt.pop %v9998
    %v10031 = vrsqrt.pop %v9999
    %v10032 = vrsqrt.pop %v10000
    %v10033 = vrsqrt.pop %v10001
    %v10034 = vrsqrt.pop %v10002
    %v10035 = vrsqrt.pop %v10003
    %v10036 = vrsqrt.pop %v10004
    %v10037 = vrsqrt.pop %v10005
    %v10038 = vrsqrt.pop %v10006
    %v10039 = vrsqrt.pop %v10007
    %v10040 = vrsqrt.pop %v10008
    %v10041 = vrsqrt.pop %v10009
    %v10042 = vmul.f32 %v9657, %v10010
    %v10043 = vmul.f32 %v9658, %v10011
    %v10044 = vmul.f32 %v9659, %v10012
    %v10045 = vmul.f32 %v9660, %v10013
    %v10046 = vmul.f32 %v9661, %v10014
    %v10047 = vmul.f32 %v9662, %v10015
    %v10048 = vmul.f32 %v9663, %v10016
    %v10049 = vmul.f32 %v9664, %v10017
    %v10050 = vmul.f32 %v9665, %v10018
    %v10051 = vmul.f32 %v9666, %v10019
    %v10052 = vmul.f32 %v9667, %v10020
    %v10053 = vmul.f32 %v9668, %v10021
    %v10054 = vmul.f32 %v9669, %v10022
    %v10055 = vmul.f32 %v9670, %v10023
    %v10056 = vmul.f32 %v9671, %v10024
    %v10057 = vmul.f32 %v9672, %v10025
    %v10058 = vmul.f32 %v9673, %v10026
    %v10059 = vmul.f32 %v9674, %v10027
    %v10060 = vmul.f32 %v9675, %v10028
    %v10061 = vmul.f32 %v9676, %v10029
    %v10062 = vmul.f32 %v9677, %v10030
    %v10063 = vmul.f32 %v9678, %v10031
    %v10064 = vmul.f32 %v9679, %v10032
    %v10065 = vmul.f32 %v9680, %v10033
    %v10066 = vmul.f32 %v9681, %v10034
    %v10067 = vmul.f32 %v9682, %v10035
    %v10068 = vmul.f32 %v9683, %v10036
    %v10069 = vmul.f32 %v9684, %v10037
    %v10070 = vmul.f32 %v9685, %v10038
    %v10071 = vmul.f32 %v9686, %v10039
    %v10072 = vmul.f32 %v9687, %v10040
    %v10073 = vmul.f32 %v9688, %v10041
    %v10075 = vlaneseq
    %v10076 = vshrl.u32 %v10075, 7
    %v10077 = vsub.s32 0, %v10076
    %v10078 = vrot.slane %v9398, %v10077
    %v10080 = vmul.f32 %v10042, %v10078
    %v10081 = vmul.f32 %v10043, %v10078
    %v10082 = vmul.f32 %v10044, %v10078
    %v10083 = vmul.f32 %v10045, %v10078
    %v10084 = vmul.f32 %v10046, %v10078
    %v10085 = vmul.f32 %v10047, %v10078
    %v10086 = vmul.f32 %v10048, %v10078
    %v10087 = vmul.f32 %v10049, %v10078
    %v10088 = vmul.f32 %v10050, %v10078
    %v10089 = vmul.f32 %v10051, %v10078
    %v10090 = vmul.f32 %v10052, %v10078
    %v10091 = vmul.f32 %v10053, %v10078
    %v10092 = vmul.f32 %v10054, %v10078
    %v10093 = vmul.f32 %v10055, %v10078
    %v10094 = vmul.f32 %v10056, %v10078
    %v10095 = vmul.f32 %v10057, %v10078
    %v10096 = vmul.f32 %v10058, %v10078
    %v10097 = vmul.f32 %v10059, %v10078
    %v10098 = vmul.f32 %v10060, %v10078
    %v10099 = vmul.f32 %v10061, %v10078
    %v10100 = vmul.f32 %v10062, %v10078
    %v10101 = vmul.f32 %v10063, %v10078
    %v10102 = vmul.f32 %v10064, %v10078
    %v10103 = vmul.f32 %v10065, %v10078
    %v10104 = vmul.f32 %v10066, %v10078
    %v10105 = vmul.f32 %v10067, %v10078
    %v10106 = vmul.f32 %v10068, %v10078
    %v10107 = vmul.f32 %v10069, %v10078
    %v10108 = vmul.f32 %v10070, %v10078
    %v10109 = vmul.f32 %v10071, %v10078
    %v10110 = vmul.f32 %v10072, %v10078
    %v10111 = vmul.f32 %v10073, %v10078
    %v10113 = vlaneseq
    %v10114 = vshrl.u32 %v10113, 7
    %v10115 = vsub.s32 0, %v10114
    %v10116 = vrot.slane %v9399, %v10115
    %v10118 = vadd.f32 %v10080, %v10116
    %v10119 = vadd.f32 %v10081, %v10116
    %v10120 = vadd.f32 %v10082, %v10116
    %v10121 = vadd.f32 %v10083, %v10116
    %v10122 = vadd.f32 %v10084, %v10116
    %v10123 = vadd.f32 %v10085, %v10116
    %v10124 = vadd.f32 %v10086, %v10116
    %v10125 = vadd.f32 %v10087, %v10116
    %v10126 = vadd.f32 %v10088, %v10116
    %v10127 = vadd.f32 %v10089, %v10116
    %v10128 = vadd.f32 %v10090, %v10116
    %v10129 = vadd.f32 %v10091, %v10116
    %v10130 = vadd.f32 %v10092, %v10116
    %v10131 = vadd.f32 %v10093, %v10116
    %v10132 = vadd.f32 %v10094, %v10116
    %v10133 = vadd.f32 %v10095, %v10116
    %v10134 = vadd.f32 %v10096, %v10116
    %v10135 = vadd.f32 %v10097, %v10116
    %v10136 = vadd.f32 %v10098, %v10116
    %v10137 = vadd.f32 %v10099, %v10116
    %v10138 = vadd.f32 %v10100, %v10116
    %v10139 = vadd.f32 %v10101, %v10116
    %v10140 = vadd.f32 %v10102, %v10116
    %v10141 = vadd.f32 %v10103, %v10116
    %v10142 = vadd.f32 %v10104, %v10116
    %v10143 = vadd.f32 %v10105, %v10116
    %v10144 = vadd.f32 %v10106, %v10116
    %v10145 = vadd.f32 %v10107, %v10116
    %v10146 = vadd.f32 %v10108, %v10116
    %v10147 = vadd.f32 %v10109, %v10116
    %v10148 = vadd.f32 %v10110, %v10116
    %v10149 = vadd.f32 %v10111, %v10116
    %v10150 = vpack.c.bf16 %v10119, %v10118
    %v10151 = vpack.c.bf16 %v10121, %v10120
    %v10152 = vpack.c.bf16 %v10123, %v10122
    %v10153 = vpack.c.bf16 %v10125, %v10124
    %v10154 = vpack.c.bf16 %v10127, %v10126
    %v10155 = vpack.c.bf16 %v10129, %v10128
    %v10156 = vpack.c.bf16 %v10131, %v10130
    %v10157 = vpack.c.bf16 %v10133, %v10132
    %v10158 = vpack.c.bf16 %v10135, %v10134
    %v10159 = vpack.c.bf16 %v10137, %v10136
    %v10160 = vpack.c.bf16 %v10139, %v10138
    %v10161 = vpack.c.bf16 %v10141, %v10140
    %v10162 = vpack.c.bf16 %v10143, %v10142
    %v10163 = vpack.c.bf16 %v10145, %v10144
    %v10164 = vpack.c.bf16 %v10147, %v10146
    %v10165 = vpack.c.bf16 %v10149, %v10148
    %v10166 = vld [vmem:[#allocation16] sm:$0xff]
    %v10167 = vld [vmem:[#allocation16 + $0x8] sm:$0xff]
    %v10168 = vld [vmem:[#allocation16 + $0x10] sm:$0xff]
    %v10169 = vld [vmem:[#allocation16 + $0x18] sm:$0xff]
    %v10170 = vld [vmem:[#allocation16 + $0x20] sm:$0xff]
    %v10171 = vld [vmem:[#allocation16 + $0x28] sm:$0xff]
    %v10172 = vld [vmem:[#allocation16 + $0x30] sm:$0xff]
    %v10173 = vld [vmem:[#allocation16 + $0x38] sm:$0xff]
    %v10174 = vld [vmem:[#allocation16 + $0x40] sm:$0xff]
    %v10175 = vld [vmem:[#allocation16 + $0x48] sm:$0xff]
    %v10176 = vld [vmem:[#allocation16 + $0x50] sm:$0xff]
    %v10177 = vld [vmem:[#allocation16 + $0x58] sm:$0xff]
    %v10178 = vld [vmem:[#allocation16 + $0x60] sm:$0xff]
    %v10179 = vld [vmem:[#allocation16 + $0x68] sm:$0xff]
    %v10180 = vld [vmem:[#allocation16 + $0x70] sm:$0xff]
    %v10181 = vld [vmem:[#allocation16 + $0x78] sm:$0xff]
    %v10182 = vld [vmem:[#allocation16 + $0x80] sm:$0xff]
    %v10183 = vld [vmem:[#allocation16 + $0x88] sm:$0xff]
    %v10184 = vld [vmem:[#allocation16 + $0x90] sm:$0xff]
    %v10185 = vld [vmem:[#allocation16 + $0x98] sm:$0xff]
    %v10186 = vld [vmem:[#allocation16 + $0xa0] sm:$0xff]
    %v10187 = vld [vmem:[#allocation16 + $0xa8] sm:$0xff]
    %v10188 = vld [vmem:[#allocation16 + $0xb0] sm:$0xff]
    %v10189 = vld [vmem:[#allocation16 + $0xb8] sm:$0xff]
    %v10190 = vld [vmem:[#allocation16 + $0xc0] sm:$0xff]
    %v10191 = vld [vmem:[#allocation16 + $0xc8] sm:$0xff]
    %v10192 = vld [vmem:[#allocation16 + $0xd0] sm:$0xff]
    %v10193 = vld [vmem:[#allocation16 + $0xd8] sm:$0xff]
    %v10194 = vld [vmem:[#allocation16 + $0xe0] sm:$0xff]
    %v10195 = vld [vmem:[#allocation16 + $0xe8] sm:$0xff]
    %v10196 = vld [vmem:[#allocation16 + $0xf0] sm:$0xff]
    %v10197 = vld [vmem:[#allocation16 + $0xf8] sm:$0xff]
    %v10198 = vld [vmem:[%s16] sm:$0xf]
    %v10200 = vlaneseq
    %v10201 = vshrl.u32 %v10200, 7
    %v10202 = vsub.s32 0, %v10201
    %v10203 = vrot.slane %v10198, %v10202
    %v10204 = vlaneseq
    %v10205 = vshrl.u32 %v10204, 7
    %v10206 = vsub.s32 1, %v10205
    %v10207 = vrot.slane %v10198, %v10206
    %v10208 = vlaneseq
    %v10209 = vshrl.u32 %v10208, 7
    %v10210 = vsub.s32 2, %v10209
    %v10211 = vrot.slane %v10198, %v10210
    %v10212 = vlaneseq
    %v10213 = vshrl.u32 %v10212, 7
    %v10214 = vsub.s32 3, %v10213
    %v10215 = vrot.slane %v10198, %v10214
    %v10252 = vunpack.c.l.b16 %v10166
    %v10253 = vunpack.c.h.b16 %v10166
    %v10254 = vunpack.c.l.b16 %v10167
    %v10255 = vunpack.c.h.b16 %v10167
    %v10256 = vunpack.c.l.b16 %v10168
    %v10257 = vunpack.c.h.b16 %v10168
    %v10258 = vunpack.c.l.b16 %v10169
    %v10259 = vunpack.c.h.b16 %v10169
    %v10260 = vunpack.c.l.b16 %v10170
    %v10261 = vunpack.c.h.b16 %v10170
    %v10262 = vunpack.c.l.b16 %v10171
    %v10263 = vunpack.c.h.b16 %v10171
    %v10264 = vunpack.c.l.b16 %v10172
    %v10265 = vunpack.c.h.b16 %v10172
    %v10266 = vunpack.c.l.b16 %v10173
    %v10267 = vunpack.c.h.b16 %v10173
    %v10268 = vunpack.c.l.b16 %v10174
    %v10269 = vunpack.c.h.b16 %v10174
    %v10270 = vunpack.c.l.b16 %v10175
    %v10271 = vunpack.c.h.b16 %v10175
    %v10272 = vunpack.c.l.b16 %v10176
    %v10273 = vunpack.c.h.b16 %v10176
    %v10274 = vunpack.c.l.b16 %v10177
    %v10275 = vunpack.c.h.b16 %v10177
    %v10276 = vunpack.c.l.b16 %v10178
    %v10277 = vunpack.c.h.b16 %v10178
    %v10278 = vunpack.c.l.b16 %v10179
    %v10279 = vunpack.c.h.b16 %v10179
    %v10280 = vunpack.c.l.b16 %v10180
    %v10281 = vunpack.c.h.b16 %v10180
    %v10282 = vunpack.c.l.b16 %v10181
    %v10283 = vunpack.c.h.b16 %v10181
    %v10284 = vunpack.c.l.b16 %v10182
    %v10285 = vunpack.c.h.b16 %v10182
    %v10286 = vunpack.c.l.b16 %v10183
    %v10287 = vunpack.c.h.b16 %v10183
    %v10288 = vunpack.c.l.b16 %v10184
    %v10289 = vunpack.c.h.b16 %v10184
    %v10290 = vunpack.c.l.b16 %v10185
    %v10291 = vunpack.c.h.b16 %v10185
    %v10292 = vunpack.c.l.b16 %v10186
    %v10293 = vunpack.c.h.b16 %v10186
    %v10294 = vunpack.c.l.b16 %v10187
    %v10295 = vunpack.c.h.b16 %v10187
    %v10296 = vunpack.c.l.b16 %v10188
    %v10297 = vunpack.c.h.b16 %v10188
    %v10298 = vunpack.c.l.b16 %v10189
    %v10299 = vunpack.c.h.b16 %v10189
    %v10300 = vunpack.c.l.b16 %v10190
    %v10301 = vunpack.c.h.b16 %v10190
    %v10302 = vunpack.c.l.b16 %v10191
    %v10303 = vunpack.c.h.b16 %v10191
    %v10304 = vunpack.c.l.b16 %v10192
    %v10305 = vunpack.c.h.b16 %v10192
    %v10306 = vunpack.c.l.b16 %v10193
    %v10307 = vunpack.c.h.b16 %v10193
    %v10308 = vunpack.c.l.b16 %v10194
    %v10309 = vunpack.c.h.b16 %v10194
    %v10310 = vunpack.c.l.b16 %v10195
    %v10311 = vunpack.c.h.b16 %v10195
    %v10312 = vunpack.c.l.b16 %v10196
    %v10313 = vunpack.c.h.b16 %v10196
    %v10314 = vunpack.c.l.b16 %v10197
    %v10315 = vunpack.c.h.b16 %v10197
    %v10316 = vpack.c.b16 %v10256, %v10252
    %v10317 = vpack.c.b16 %v10257, %v10253
    %v10318 = vpack.c.b16 %v10258, %v10254
    %v10319 = vpack.c.b16 %v10259, %v10255
    %v10320 = vpack.c.b16 %v10264, %v10260
    %v10321 = vpack.c.b16 %v10265, %v10261
    %v10322 = vpack.c.b16 %v10266, %v10262
    %v10323 = vpack.c.b16 %v10267, %v10263
    %v10324 = vpack.c.b16 %v10272, %v10268
    %v10325 = vpack.c.b16 %v10273, %v10269
    %v10326 = vpack.c.b16 %v10274, %v10270
    %v10327 = vpack.c.b16 %v10275, %v10271
    %v10328 = vpack.c.b16 %v10280, %v10276
    %v10329 = vpack.c.b16 %v10281, %v10277
    %v10330 = vpack.c.b16 %v10282, %v10278
    %v10331 = vpack.c.b16 %v10283, %v10279
    %v10332 = vpack.c.b16 %v10288, %v10284
    %v10333 = vpack.c.b16 %v10289, %v10285
    %v10334 = vpack.c.b16 %v10290, %v10286
    %v10335 = vpack.c.b16 %v10291, %v10287
    %v10336 = vpack.c.b16 %v10296, %v10292
    %v10337 = vpack.c.b16 %v10297, %v10293
    %v10338 = vpack.c.b16 %v10298, %v10294
    %v10339 = vpack.c.b16 %v10299, %v10295
    %v10340 = vpack.c.b16 %v10304, %v10300
    %v10341 = vpack.c.b16 %v10305, %v10301
    %v10342 = vpack.c.b16 %v10306, %v10302
    %v10343 = vpack.c.b16 %v10307, %v10303
    %v10344 = vpack.c.b16 %v10312, %v10308
    %v10345 = vpack.c.b16 %v10313, %v10309
    %v10346 = vpack.c.b16 %v10314, %v10310
    %v10347 = vpack.c.b16 %v10315, %v10311
    %10380 = vmatprep.subr.bf16.mxu0 %v10317
    %10381 = vmatpush1.bf16.msra.mxu0 %v10316
    %10382 = vmatprep.subr.bf16.mxu0 %v10321
    %10383 = vmatpush1.bf16.msra.mxu0 %v10320
    %10384 = vmatprep.subr.bf16.mxu0 %v10325
    %10385 = vmatpush1.bf16.msra.mxu0 %v10324
    %10386 = vmatprep.subr.bf16.mxu0 %v10329
    %10387 = vmatpush1.bf16.msra.mxu0 %v10328
    %10388 = vmatprep.subr.bf16.mxu0 %v10333
    %10389 = vmatpush1.bf16.msra.mxu0 %v10332
    %10390 = vmatprep.subr.bf16.mxu0 %v10337
    %10391 = vmatpush1.bf16.msra.mxu0 %v10336
    %10392 = vmatprep.subr.bf16.mxu0 %v10341
    %10393 = vmatpush1.bf16.msra.mxu0 %v10340
    %10394 = vmatprep.subr.bf16.mxu0 %v10345
    %10395 = vmatpush1.bf16.msra.mxu0 %v10344
    %10396 = vmatprep.subr.bf16.mxu0 0
    %10397 = vmatpush1.bf16.msra.mxu0 0
    %10398 = vmatprep.subr.bf16.mxu0 0
    %10399 = vmatpush1.bf16.msra.mxu0 0
    %10400 = vmatprep.subr.bf16.mxu0 0
    %10401 = vmatpush1.bf16.msra.mxu0 0
    %10402 = vmatprep.subr.bf16.mxu0 0
    %10403 = vmatpush1.bf16.msra.mxu0 0
    %10404 = vmatprep.subr.bf16.mxu0 0
    %10405 = vmatpush1.bf16.msra.mxu0 0
    %10406 = vmatprep.subr.bf16.mxu0 0
    %10407 = vmatpush1.bf16.msra.mxu0 0
    %10408 = vmatprep.subr.bf16.mxu0 0
    %10409 = vmatpush1.bf16.msra.mxu0 0
    %10410 = vmatprep.subr.bf16.mxu0 0
    %10411 = vmatpush1.bf16.msra.mxu0 0
    %10412 = vmatprep.mubr.bf16.mxu0 0
    %10413 = vmatmul.mubr.bf16.gmra.mrb[0].mxu0 %v10150
    %v10414 = vpop.f32.mrb[0].mxu0
    %v10415 = vadd.f32 %v10203, %v10414
    %v10416 = vpop.f32.mrb[0].mxu0
    %v10417 = vadd.f32 %v10207, %v10416
    %v10418 = vpop.f32.mrb[0].mxu0
    %v10419 = vadd.f32 %v10203, %v10418
    %v10420 = vpop.f32.mrb[0].mxu0
    %v10421 = vadd.f32 %v10207, %v10420
    %10422 = vmatprep.mubr.bf16.mxu0 0
    %10423 = vmatmul.mubr.bf16.gmra.mrb[0].mxu0 %v10151
    %v10424 = vpop.f32.mrb[0].mxu0
    %v10425 = vadd.f32 %v10203, %v10424
    %v10426 = vpop.f32.mrb[0].mxu0
    %v10427 = vadd.f32 %v10207, %v10426
    %v10428 = vpop.f32.mrb[0].mxu0
    %v10429 = vadd.f32 %v10203, %v10428
    %v10430 = vpop.f32.mrb[0].mxu0
    %v10431 = vadd.f32 %v10207, %v10430
    %10432 = vmatprep.mubr.bf16.mxu0 0
    %10433 = vmatmul.mubr.bf16.gmra.mrb[0].mxu0 %v10152
    %v10434 = vpop.f32.mrb[0].mxu0
    %v10435 = vadd.f32 %v10203, %v10434
    %v10436 = vpop.f32.mrb[0].mxu0
    %v10437 = vadd.f32 %v10207, %v10436
    %v10438 = vpop.f32.mrb[0].mxu0
    %v10439 = vadd.f32 %v10203, %v10438
    %v10440 = vpop.f32.mrb[0].mxu0
    %v10441 = vadd.f32 %v10207, %v10440
    %10442 = vmatprep.mubr.bf16.mxu0 0
    %10443 = vmatmul.mubr.bf16.gmra.mrb[0].mxu0 %v10153
    %v10444 = vpop.f32.mrb[0].mxu0
    %v10445 = vadd.f32 %v10203, %v10444
    %v10446 = vpop.f32.mrb[0].mxu0
    %v10447 = vadd.f32 %v10207, %v10446
    %v10448 = vpop.f32.mrb[0].mxu0
    %v10449 = vadd.f32 %v10203, %v10448
    %v10450 = vpop.f32.mrb[0].mxu0
    %v10451 = vadd.f32 %v10207, %v10450
    %10452 = vmatprep.mubr.bf16.mxu0 0
    %10453 = vmatmul.mubr.bf16.gmra.mrb[0].mxu0 %v10154
    %v10454 = vpop.f32.mrb[0].mxu0
    %v10455 = vadd.f32 %v10203, %v10454
    %v10456 = vpop.f32.mrb[0].mxu0
    %v10457 = vadd.f32 %v10207, %v10456
    %v10458 = vpop.f32.mrb[0].mxu0
    %v10459 = vadd.f32 %v10203, %v10458
    %v10460 = vpop.f32.mrb[0].mxu0
    %v10461 = vadd.f32 %v10207, %v10460
    %10462 = vmatprep.mubr.bf16.mxu0 0
    %10463 = vmatmul.mubr.bf16.gmra.mrb[0].mxu0 %v10155
    %v10464 = vpop.f32.mrb[0].mxu0
    %v10465 = vadd.f32 %v10203, %v10464
    %v10466 = vpop.f32.mrb[0].mxu0
    %v10467 = vadd.f32 %v10207, %v10466
    %v10468 = vpop.f32.mrb[0].mxu0
    %v10469 = vadd.f32 %v10203, %v10468
    %v10470 = vpop.f32.mrb[0].mxu0
    %v10471 = vadd.f32 %v10207, %v10470
    %10472 = vmatprep.mubr.bf16.mxu0 0
    %10473 = vmatmul.mubr.bf16.gmra.mrb[0].mxu0 %v10156
    %v10474 = vpop.f32.mrb[0].mxu0
    %v10475 = vadd.f32 %v10203, %v10474
    %v10476 = vpop.f32.mrb[0].mxu0
    %v10477 = vadd.f32 %v10207, %v10476
    %v10478 = vpop.f32.mrb[0].mxu0
    %v10479 = vadd.f32 %v10203, %v10478
    %v10480 = vpop.f32.mrb[0].mxu0
    %v10481 = vadd.f32 %v10207, %v10480
    %10482 = vmatprep.mubr.bf16.mxu0 0
    %10483 = vmatmul.mubr.bf16.gmra.mrb[0].mxu0 %v10157
    %v10484 = vpop.f32.mrb[0].mxu0
    %v10485 = vadd.f32 %v10203, %v10484
    %v10486 = vpop.f32.mrb[0].mxu0
    %v10487 = vadd.f32 %v10207, %v10486
    %v10488 = vpop.f32.mrb[0].mxu0
    %v10489 = vadd.f32 %v10203, %v10488
    %v10490 = vpop.f32.mrb[0].mxu0
    %v10491 = vadd.f32 %v10207, %v10490
    %10492 = vmatprep.mubr.bf16.mxu0 0
    %10493 = vmatmul.mubr.bf16.gmra.mrb[0].mxu0 %v10158
    %v10494 = vpop.f32.mrb[0].mxu0
    %v10495 = vadd.f32 %v10203, %v10494
    %v10496 = vpop.f32.mrb[0].mxu0
    %v10497 = vadd.f32 %v10207, %v10496
    %v10498 = vpop.f32.mrb[0].mxu0
    %v10499 = vadd.f32 %v10203, %v10498
    %v10500 = vpop.f32.mrb[0].mxu0
    %v10501 = vadd.f32 %v10207, %v10500
    %10502 = vmatprep.mubr.bf16.mxu0 0
    %10503 = vmatmul.mubr.bf16.gmra.mrb[0].mxu0 %v10159
    %v10504 = vpop.f32.mrb[0].mxu0
    %v10505 = vadd.f32 %v10203, %v10504
    %v10506 = vpop.f32.mrb[0].mxu0
    %v10507 = vadd.f32 %v10207, %v10506
    %v10508 = vpop.f32.mrb[0].mxu0
    %v10509 = vadd.f32 %v10203, %v10508
    %v10510 = vpop.f32.mrb[0].mxu0
    %v10511 = vadd.f32 %v10207, %v10510
    %10512 = vmatprep.mubr.bf16.mxu0 0
    %10513 = vmatmul.mubr.bf16.gmra.mrb[0].mxu0 %v10160
    %v10514 = vpop.f32.mrb[0].mxu0
    %v10515 = vadd.f32 %v10203, %v10514
    %v10516 = vpop.f32.mrb[0].mxu0
    %v10517 = vadd.f32 %v10207, %v10516
    %v10518 = vpop.f32.mrb[0].mxu0
    %v10519 = vadd.f32 %v10203, %v10518
    %v10520 = vpop.f32.mrb[0].mxu0
    %v10521 = vadd.f32 %v10207, %v10520
    %10522 = vmatprep.mubr.bf16.mxu0 0
    %10523 = vmatmul.mubr.bf16.gmra.mrb[0].mxu0 %v10161
    %v10524 = vpop.f32.mrb[0].mxu0
    %v10525 = vadd.f32 %v10203, %v10524
    %v10526 = vpop.f32.mrb[0].mxu0
    %v10527 = vadd.f32 %v10207, %v10526
    %v10528 = vpop.f32.mrb[0].mxu0
    %v10529 = vadd.f32 %v10203, %v10528
    %v10530 = vpop.f32.mrb[0].mxu0
    %v10531 = vadd.f32 %v10207, %v10530
    %10532 = vmatprep.mubr.bf16.mxu0 0
    %10533 = vmatmul.mubr.bf16.gmra.mrb[0].mxu0 %v10162
    %v10534 = vpop.f32.mrb[0].mxu0
    %v10535 = vadd.f32 %v10203, %v10534
    %v10536 = vpop.f32.mrb[0].mxu0
    %v10537 = vadd.f32 %v10207, %v10536
    %v10538 = vpop.f32.mrb[0].mxu0
    %v10539 = vadd.f32 %v10203, %v10538
    %v10540 = vpop.f32.mrb[0].mxu0
    %v10541 = vadd.f32 %v10207, %v10540
    %10542 = vmatprep.mubr.bf16.mxu0 0
    %10543 = vmatmul.mubr.bf16.gmra.mrb[0].mxu0 %v10163
    %v10544 = vpop.f32.mrb[0].mxu0
    %v10545 = vadd.f32 %v10203, %v10544
    %v10546 = vpop.f32.mrb[0].mxu0
    %v10547 = vadd.f32 %v10207, %v10546
    %v10548 = vpop.f32.mrb[0].mxu0
    %v10549 = vadd.f32 %v10203, %v10548
    %v10550 = vpop.f32.mrb[0].mxu0
    %v10551 = vadd.f32 %v10207, %v10550
    %10552 = vmatprep.mubr.bf16.mxu0 0
    %10553 = vmatmul.mubr.bf16.gmra.mrb[0].mxu0 %v10164
    %v10554 = vpop.f32.mrb[0].mxu0
    %v10555 = vadd.f32 %v10203, %v10554
    %v10556 = vpop.f32.mrb[0].mxu0
    %v10557 = vadd.f32 %v10207, %v10556
    %v10558 = vpop.f32.mrb[0].mxu0
    %v10559 = vadd.f32 %v10203, %v10558
    %v10560 = vpop.f32.mrb[0].mxu0
    %v10561 = vadd.f32 %v10207, %v10560
    %10562 = vmatprep.mubr.bf16.mxu0 0
    %10563 = vmatmul.mubr.bf16.gmra.mrb[0].mxu0 %v10165
    %v10564 = vpop.f32.mrb[0].mxu0
    %v10565 = vadd.f32 %v10203, %v10564
    %v10566 = vpop.f32.mrb[0].mxu0
    %v10567 = vadd.f32 %v10207, %v10566
    %v10568 = vpop.f32.mrb[0].mxu0
    %v10569 = vadd.f32 %v10203, %v10568
    %v10570 = vpop.f32.mrb[0].mxu0
    %v10571 = vadd.f32 %v10207, %v10570
    %10572 = vdwg.mxu0
    %10573 = vmatprep.subr.bf16.mxu0 %v10319
    %10574 = vmatpush1.bf16.msra.mxu0 %v10318
    %10575 = vmatprep.subr.bf16.mxu0 %v10323
    %10576 = vmatpush1.bf16.msra.mxu0 %v10322
    %10577 = vmatprep.subr.bf16.mxu0 %v10327
    %10578 = vmatpush1.bf16.msra.mxu0 %v10326
    %10579 = vmatprep.subr.bf16.mxu0 %v10331
    %10580 = vmatpush1.bf16.msra.mxu0 %v10330
    %10581 = vmatprep.subr.bf16.mxu0 %v10335
    %10582 = vmatpush1.bf16.msra.mxu0 %v10334
    %10583 = vmatprep.subr.bf16.mxu0 %v10339
    %10584 = vmatpush1.bf16.msra.mxu0 %v10338
    %10585 = vmatprep.subr.bf16.mxu0 %v10343
    %10586 = vmatpush1.bf16.msra.mxu0 %v10342
    %10587 = vmatprep.subr.bf16.mxu0 %v10347
    %10588 = vmatpush1.bf16.msra.mxu0 %v10346
    %10589 = vmatprep.subr.bf16.mxu0 0
    %10590 = vmatpush1.bf16.msra.mxu0 0
    %10591 = vmatprep.subr.bf16.mxu0 0
    %10592 = vmatpush1.bf16.msra.mxu0 0
    %10593 = vmatprep.subr.bf16.mxu0 0
    %10594 = vmatpush1.bf16.msra.mxu0 0
    %10595 = vmatprep.subr.bf16.mxu0 0
    %10596 = vmatpush1.bf16.msra.mxu0 0
    %10597 = vmatprep.subr.bf16.mxu0 0
    %10598 = vmatpush1.bf16.msra.mxu0 0
    %10599 = vmatprep.subr.bf16.mxu0 0
    %10600 = vmatpush1.bf16.msra.mxu0 0
    %10601 = vmatprep.subr.bf16.mxu0 0
    %10602 = vmatpush1.bf16.msra.mxu0 0
    %10603 = vmatprep.subr.bf16.mxu0 0
    %10604 = vmatpush1.bf16.msra.mxu0 0
    %10605 = vmatprep.mubr.bf16.mxu0 0
    %10606 = vmatmul.mubr.bf16.gmra.mrb[0].mxu0 %v10150
    %v10607 = vpop.f32.mrb[0].mxu0
    %v10608 = vadd.f32 %v10211, %v10607
    %v10609 = vpop.f32.mrb[0].mxu0
    %v10610 = vadd.f32 %v10215, %v10609
    %v10611 = vpop.f32.mrb[0].mxu0
    %v10612 = vadd.f32 %v10211, %v10611
    %v10613 = vpop.f32.mrb[0].mxu0
    %v10614 = vadd.f32 %v10215, %v10613
    %10615 = vmatprep.mubr.bf16.mxu0 0
    %10616 = vmatmul.mubr.bf16.gmra.mrb[0].mxu0 %v10151
    %v10617 = vpop.f32.mrb[0].mxu0
    %v10618 = vadd.f32 %v10211, %v10617
    %v10619 = vpop.f32.mrb[0].mxu0
    %v10620 = vadd.f32 %v10215, %v10619
    %v10621 = vpop.f32.mrb[0].mxu0
    %v10622 = vadd.f32 %v10211, %v10621
    %v10623 = vpop.f32.mrb[0].mxu0
    %v10624 = vadd.f32 %v10215, %v10623
    %10625 = vmatprep.mubr.bf16.mxu0 0
    %10626 = vmatmul.mubr.bf16.gmra.mrb[0].mxu0 %v10152
    %v10627 = vpop.f32.mrb[0].mxu0
    %v10628 = vadd.f32 %v10211, %v10627
    %v10629 = vpop.f32.mrb[0].mxu0
    %v10630 = vadd.f32 %v10215, %v10629
    %v10631 = vpop.f32.mrb[0].mxu0
    %v10632 = vadd.f32 %v10211, %v10631
    %v10633 = vpop.f32.mrb[0].mxu0
    %v10634 = vadd.f32 %v10215, %v10633
    %10635 = vmatprep.mubr.bf16.mxu0 0
    %10636 = vmatmul.mubr.bf16.gmra.mrb[0].mxu0 %v10153
    %v10637 = vpop.f32.mrb[0].mxu0
    %v10638 = vadd.f32 %v10211, %v10637
    %v10639 = vpop.f32.mrb[0].mxu0
    %v10640 = vadd.f32 %v10215, %v10639
    %v10641 = vpop.f32.mrb[0].mxu0
    %v10642 = vadd.f32 %v10211, %v10641
    %v10643 = vpop.f32.mrb[0].mxu0
    %v10644 = vadd.f32 %v10215, %v10643
    %10645 = vmatprep.mubr.bf16.mxu0 0
    %10646 = vmatmul.mubr.bf16.gmra.mrb[0].mxu0 %v10154
    %v10647 = vpop.f32.mrb[0].mxu0
    %v10648 = vadd.f32 %v10211, %v10647
    %v10649 = vpop.f32.mrb[0].mxu0
    %v10650 = vadd.f32 %v10215, %v10649
    %v10651 = vpop.f32.mrb[0].mxu0
    %v10652 = vadd.f32 %v10211, %v10651
    %v10653 = vpop.f32.mrb[0].mxu0
    %v10654 = vadd.f32 %v10215, %v10653
    %10655 = vmatprep.mubr.bf16.mxu0 0
    %10656 = vmatmul.mubr.bf16.gmra.mrb[0].mxu0 %v10155
    %v10657 = vpop.f32.mrb[0].mxu0
    %v10658 = vadd.f32 %v10211, %v10657
    %v10659 = vpop.f32.mrb[0].mxu0
    %v10660 = vadd.f32 %v10215, %v10659
    %v10661 = vpop.f32.mrb[0].mxu0
    %v10662 = vadd.f32 %v10211, %v10661
    %v10663 = vpop.f32.mrb[0].mxu0
    %v10664 = vadd.f32 %v10215, %v10663
    %10665 = vmatprep.mubr.bf16.mxu0 0
    %10666 = vmatmul.mubr.bf16.gmra.mrb[0].mxu0 %v10156
    %v10667 = vpop.f32.mrb[0].mxu0
    %v10668 = vadd.f32 %v10211, %v10667
    %v10669 = vpop.f32.mrb[0].mxu0
    %v10670 = vadd.f32 %v10215, %v10669
    %v10671 = vpop.f32.mrb[0].mxu0
    %v10672 = vadd.f32 %v10211, %v10671
    %v10673 = vpop.f32.mrb[0].mxu0
    %v10674 = vadd.f32 %v10215, %v10673
    %10675 = vmatprep.mubr.bf16.mxu0 0
    %10676 = vmatmul.mubr.bf16.gmra.mrb[0].mxu0 %v10157
    %v10677 = vpop.f32.mrb[0].mxu0
    %v10678 = vadd.f32 %v10211, %v10677
    %v10679 = vpop.f32.mrb[0].mxu0
    %v10680 = vadd.f32 %v10215, %v10679
    %v10681 = vpop.f32.mrb[0].mxu0
    %v10682 = vadd.f32 %v10211, %v10681
    %v10683 = vpop.f32.mrb[0].mxu0
    %v10684 = vadd.f32 %v10215, %v10683
    %10685 = vmatprep.mubr.bf16.mxu0 0
    %10686 = vmatmul.mubr.bf16.gmra.mrb[0].mxu0 %v10158
    %v10687 = vpop.f32.mrb[0].mxu0
    %v10688 = vadd.f32 %v10211, %v10687
    %v10689 = vpop.f32.mrb[0].mxu0
    %v10690 = vadd.f32 %v10215, %v10689
    %v10691 = vpop.f32.mrb[0].mxu0
    %v10692 = vadd.f32 %v10211, %v10691
    %v10693 = vpop.f32.mrb[0].mxu0
    %v10694 = vadd.f32 %v10215, %v10693
    %10695 = vmatprep.mubr.bf16.mxu0 0
    %10696 = vmatmul.mubr.bf16.gmra.mrb[0].mxu0 %v10159
    %v10697 = vpop.f32.mrb[0].mxu0
    %v10698 = vadd.f32 %v10211, %v10697
    %v10699 = vpop.f32.mrb[0].mxu0
    %v10700 = vadd.f32 %v10215, %v10699
    %v10701 = vpop.f32.mrb[0].mxu0
    %v10702 = vadd.f32 %v10211, %v10701
    %v10703 = vpop.f32.mrb[0].mxu0
    %v10704 = vadd.f32 %v10215, %v10703
    %10705 = vmatprep.mubr.bf16.mxu0 0
    %10706 = vmatmul.mubr.bf16.gmra.mrb[0].mxu0 %v10160
    %v10707 = vpop.f32.mrb[0].mxu0
    %v10708 = vadd.f32 %v10211, %v10707
    %v10709 = vpop.f32.mrb[0].mxu0
    %v10710 = vadd.f32 %v10215, %v10709
    %v10711 = vpop.f32.mrb[0].mxu0
    %v10712 = vadd.f32 %v10211, %v10711
    %v10713 = vpop.f32.mrb[0].mxu0
    %v10714 = vadd.f32 %v10215, %v10713
    %10715 = vmatprep.mubr.bf16.mxu0 0
    %10716 = vmatmul.mubr.bf16.gmra.mrb[0].mxu0 %v10161
    %v10717 = vpop.f32.mrb[0].mxu0
    %v10718 = vadd.f32 %v10211, %v10717
    %v10719 = vpop.f32.mrb[0].mxu0
    %v10720 = vadd.f32 %v10215, %v10719
    %v10721 = vpop.f32.mrb[0].mxu0
    %v10722 = vadd.f32 %v10211, %v10721
    %v10723 = vpop.f32.mrb[0].mxu0
    %v10724 = vadd.f32 %v10215, %v10723
    %10725 = vmatprep.mubr.bf16.mxu0 0
    %10726 = vmatmul.mubr.bf16.gmra.mrb[0].mxu0 %v10162
    %v10727 = vpop.f32.mrb[0].mxu0
    %v10728 = vadd.f32 %v10211, %v10727
    %v10729 = vpop.f32.mrb[0].mxu0
    %v10730 = vadd.f32 %v10215, %v10729
    %v10731 = vpop.f32.mrb[0].mxu0
    %v10732 = vadd.f32 %v10211, %v10731
    %v10733 = vpop.f32.mrb[0].mxu0
    %v10734 = vadd.f32 %v10215, %v10733
    %10735 = vmatprep.mubr.bf16.mxu0 0
    %10736 = vmatmul.mubr.bf16.gmra.mrb[0].mxu0 %v10163
    %v10737 = vpop.f32.mrb[0].mxu0
    %v10738 = vadd.f32 %v10211, %v10737
    %v10739 = vpop.f32.mrb[0].mxu0
    %v10740 = vadd.f32 %v10215, %v10739
    %v10741 = vpop.f32.mrb[0].mxu0
    %v10742 = vadd.f32 %v10211, %v10741
    %v10743 = vpop.f32.mrb[0].mxu0
    %v10744 = vadd.f32 %v10215, %v10743
    %10745 = vmatprep.mubr.bf16.mxu0 0
    %10746 = vmatmul.mubr.bf16.gmra.mrb[0].mxu0 %v10164
    %v10747 = vpop.f32.mrb[0].mxu0
    %v10748 = vadd.f32 %v10211, %v10747
    %v10749 = vpop.f32.mrb[0].mxu0
    %v10750 = vadd.f32 %v10215, %v10749
    %v10751 = vpop.f32.mrb[0].mxu0
    %v10752 = vadd.f32 %v10211, %v10751
    %v10753 = vpop.f32.mrb[0].mxu0
    %v10754 = vadd.f32 %v10215, %v10753
    %10755 = vmatprep.mubr.bf16.mxu0 0
    %10756 = vmatmul.mubr.bf16.gmra.mrb[0].mxu0 %v10165
    %v10757 = vpop.f32.mrb[0].mxu0
    %v10758 = vadd.f32 %v10211, %v10757
    %v10759 = vpop.f32.mrb[0].mxu0
    %v10760 = vadd.f32 %v10215, %v10759
    %v10761 = vpop.f32.mrb[0].mxu0
    %v10762 = vadd.f32 %v10211, %v10761
    %v10763 = vpop.f32.mrb[0].mxu0
    %v10764 = vadd.f32 %v10215, %v10763
    %10765 = vdwg.mxu0
    %v10766 = vmax.f32 %v10415, 0.0
    %v10767 = vmax.f32 %v10417, 0.0
    %v10768 = vmax.f32 %v10608, 0.0
    %v10769 = vmax.f32 %v10610, 0.0
    %v10770 = vmax.f32 %v10419, 0.0
    %v10771 = vmax.f32 %v10421, 0.0
    %v10772 = vmax.f32 %v10612, 0.0
    %v10773 = vmax.f32 %v10614, 0.0
    %v10774 = vmax.f32 %v10425, 0.0
    %v10775 = vmax.f32 %v10427, 0.0
    %v10776 = vmax.f32 %v10618, 0.0
    %v10777 = vmax.f32 %v10620, 0.0
    %v10778 = vmax.f32 %v10429, 0.0
    %v10779 = vmax.f32 %v10431, 0.0
    %v10780 = vmax.f32 %v10622, 0.0
    %v10781 = vmax.f32 %v10624, 0.0
    %v10782 = vmax.f32 %v10435, 0.0
    %v10783 = vmax.f32 %v10437, 0.0
    %v10784 = vmax.f32 %v10628, 0.0
    %v10785 = vmax.f32 %v10630, 0.0
    %v10786 = vmax.f32 %v10439, 0.0
    %v10787 = vmax.f32 %v10441, 0.0
    %v10788 = vmax.f32 %v10632, 0.0
    %v10789 = vmax.f32 %v10634, 0.0
    %v10790 = vmax.f32 %v10445, 0.0
    %v10791 = vmax.f32 %v10447, 0.0
    %v10792 = vmax.f32 %v10638, 0.0
    %v10793 = vmax.f32 %v10640, 0.0
    %v10794 = vmax.f32 %v10449, 0.0
    %v10795 = vmax.f32 %v10451, 0.0
    %v10796 = vmax.f32 %v10642, 0.0
    %v10797 = vmax.f32 %v10644, 0.0
    %v10798 = vmax.f32 %v10455, 0.0
    %v10799 = vmax.f32 %v10457, 0.0
    %v10800 = vmax.f32 %v10648, 0.0
    %v10801 = vmax.f32 %v10650, 0.0
    %v10802 = vmax.f32 %v10459, 0.0
    %v10803 = vmax.f32 %v10461, 0.0
    %v10804 = vmax.f32 %v10652, 0.0
    %v10805 = vmax.f32 %v10654, 0.0
    %v10806 = vmax.f32 %v10465, 0.0
    %v10807 = vmax.f32 %v10467, 0.0
    %v10808 = vmax.f32 %v10658, 0.0
    %v10809 = vmax.f32 %v10660, 0.0
    %v10810 = vmax.f32 %v10469, 0.0
    %v10811 = vmax.f32 %v10471, 0.0
    %v10812 = vmax.f32 %v10662, 0.0
    %v10813 = vmax.f32 %v10664, 0.0
    %v10814 = vmax.f32 %v10475, 0.0
    %v10815 = vmax.f32 %v10477, 0.0
    %v10816 = vmax.f32 %v10668, 0.0
    %v10817 = vmax.f32 %v10670, 0.0
    %v10818 = vmax.f32 %v10479, 0.0
    %v10819 = vmax.f32 %v10481, 0.0
    %v10820 = vmax.f32 %v10672, 0.0
    %v10821 = vmax.f32 %v10674, 0.0
    %v10822 = vmax.f32 %v10485, 0.0
    %v10823 = vmax.f32 %v10487, 0.0
    %v10824 = vmax.f32 %v10678, 0.0
    %v10825 = vmax.f32 %v10680, 0.0
    %v10826 = vmax.f32 %v10489, 0.0
    %v10827 = vmax.f32 %v10491, 0.0
    %v10828 = vmax.f32 %v10682, 0.0
    %v10829 = vmax.f32 %v10684, 0.0
    %v10830 = vmax.f32 %v10495, 0.0
    %v10831 = vmax.f32 %v10497, 0.0
    %v10832 = vmax.f32 %v10688, 0.0
    %v10833 = vmax.f32 %v10690, 0.0
    %v10834 = vmax.f32 %v10499, 0.0
    %v10835 = vmax.f32 %v10501, 0.0
    %v10836 = vmax.f32 %v10692, 0.0
    %v10837 = vmax.f32 %v10694, 0.0
    %v10838 = vmax.f32 %v10505, 0.0
    %v10839 = vmax.f32 %v10507, 0.0
    %v10840 = vmax.f32 %v10698, 0.0
    %v10841 = vmax.f32 %v10700, 0.0
    %v10842 = vmax.f32 %v10509, 0.0
    %v10843 = vmax.f32 %v10511, 0.0
    %v10844 = vmax.f32 %v10702, 0.0
    %v10845 = vmax.f32 %v10704, 0.0
    %v10846 = vmax.f32 %v10515, 0.0
    %v10847 = vmax.f32 %v10517, 0.0
    %v10848 = vmax.f32 %v10708, 0.0
    %v10849 = vmax.f32 %v10710, 0.0
    %v10850 = vmax.f32 %v10519, 0.0
    %v10851 = vmax.f32 %v10521, 0.0
    %v10852 = vmax.f32 %v10712, 0.0
    %v10853 = vmax.f32 %v10714, 0.0
    %v10854 = vmax.f32 %v10525, 0.0
    %v10855 = vmax.f32 %v10527, 0.0
    %v10856 = vmax.f32 %v10718, 0.0
    %v10857 = vmax.f32 %v10720, 0.0
    %v10858 = vmax.f32 %v10529, 0.0
    %v10859 = vmax.f32 %v10531, 0.0
    %v10860 = vmax.f32 %v10722, 0.0
    %v10861 = vmax.f32 %v10724, 0.0
    %v10862 = vmax.f32 %v10535, 0.0
    %v10863 = vmax.f32 %v10537, 0.0
    %v10864 = vmax.f32 %v10728, 0.0
    %v10865 = vmax.f32 %v10730, 0.0
    %v10866 = vmax.f32 %v10539, 0.0
    %v10867 = vmax.f32 %v10541, 0.0
    %v10868 = vmax.f32 %v10732, 0.0
    %v10869 = vmax.f32 %v10734, 0.0
    %v10870 = vmax.f32 %v10545, 0.0
    %v10871 = vmax.f32 %v10547, 0.0
    %v10872 = vmax.f32 %v10738, 0.0
    %v10873 = vmax.f32 %v10740, 0.0
    %v10874 = vmax.f32 %v10549, 0.0
    %v10875 = vmax.f32 %v10551, 0.0
    %v10876 = vmax.f32 %v10742, 0.0
    %v10877 = vmax.f32 %v10744, 0.0
    %v10878 = vmax.f32 %v10555, 0.0
    %v10879 = vmax.f32 %v10557, 0.0
    %v10880 = vmax.f32 %v10748, 0.0
    %v10881 = vmax.f32 %v10750, 0.0
    %v10882 = vmax.f32 %v10559, 0.0
    %v10883 = vmax.f32 %v10561, 0.0
    %v10884 = vmax.f32 %v10752, 0.0
    %v10885 = vmax.f32 %v10754, 0.0
    %v10886 = vmax.f32 %v10565, 0.0
    %v10887 = vmax.f32 %v10567, 0.0
    %v10888 = vmax.f32 %v10758, 0.0
    %v10889 = vmax.f32 %v10760, 0.0
    %v10890 = vmax.f32 %v10569, 0.0
    %v10891 = vmax.f32 %v10571, 0.0
    %v10892 = vmax.f32 %v10762, 0.0
    %v10893 = vmax.f32 %v10764, 0.0
    %v10894 = vpack.c.bf16 %v10770, %v10766
    %v10895 = vpack.c.bf16 %v10771, %v10767
    %v10896 = vpack.c.bf16 %v10772, %v10768
    %v10897 = vpack.c.bf16 %v10773, %v10769
    %v10898 = vpack.c.bf16 %v10778, %v10774
    %v10899 = vpack.c.bf16 %v10779, %v10775
    %v10900 = vpack.c.bf16 %v10780, %v10776
    %v10901 = vpack.c.bf16 %v10781, %v10777
    %v10902 = vpack.c.bf16 %v10786, %v10782
    %v10903 = vpack.c.bf16 %v10787, %v10783
    %v10904 = vpack.c.bf16 %v10788, %v10784
    %v10905 = vpack.c.bf16 %v10789, %v10785
    %v10906 = vpack.c.bf16 %v10794, %v10790
    %v10907 = vpack.c.bf16 %v10795, %v10791
    %v10908 = vpack.c.bf16 %v10796, %v10792
    %v10909 = vpack.c.bf16 %v10797, %v10793
    %v10910 = vpack.c.bf16 %v10802, %v10798
    %v10911 = vpack.c.bf16 %v10803, %v10799
    %v10912 = vpack.c.bf16 %v10804, %v10800
    %v10913 = vpack.c.bf16 %v10805, %v10801
    %v10914 = vpack.c.bf16 %v10810, %v10806
    %v10915 = vpack.c.bf16 %v10811, %v10807
    %v10916 = vpack.c.bf16 %v10812, %v10808
    %v10917 = vpack.c.bf16 %v10813, %v10809
    %v10918 = vpack.c.bf16 %v10818, %v10814
    %v10919 = vpack.c.bf16 %v10819, %v10815
    %v10920 = vpack.c.bf16 %v10820, %v10816
    %v10921 = vpack.c.bf16 %v10821, %v10817
    %v10922 = vpack.c.bf16 %v10826, %v10822
    %v10923 = vpack.c.bf16 %v10827, %v10823
    %v10924 = vpack.c.bf16 %v10828, %v10824
    %v10925 = vpack.c.bf16 %v10829, %v10825
    %v10926 = vpack.c.bf16 %v10834, %v10830
    %v10927 = vpack.c.bf16 %v10835, %v10831
    %v10928 = vpack.c.bf16 %v10836, %v10832
    %v10929 = vpack.c.bf16 %v10837, %v10833
    %v10930 = vpack.c.bf16 %v10842, %v10838
    %v10931 = vpack.c.bf16 %v10843, %v10839
    %v10932 = vpack.c.bf16 %v10844, %v10840
    %v10933 = vpack.c.bf16 %v10845, %v10841
    %v10934 = vpack.c.bf16 %v10850, %v10846
    %v10935 = vpack.c.bf16 %v10851, %v10847
    %v10936 = vpack.c.bf16 %v10852, %v10848
    %v10937 = vpack.c.bf16 %v10853, %v10849
    %v10938 = vpack.c.bf16 %v10858, %v10854
    %v10939 = vpack.c.bf16 %v10859, %v10855
    %v10940 = vpack.c.bf16 %v10860, %v10856
    %v10941 = vpack.c.bf16 %v10861, %v10857
    %v10942 = vpack.c.bf16 %v10866, %v10862
    %v10943 = vpack.c.bf16 %v10867, %v10863
    %v10944 = vpack.c.bf16 %v10868, %v10864
    %v10945 = vpack.c.bf16 %v10869, %v10865
    %v10946 = vpack.c.bf16 %v10874, %v10870
    %v10947 = vpack.c.bf16 %v10875, %v10871
    %v10948 = vpack.c.bf16 %v10876, %v10872
    %v10949 = vpack.c.bf16 %v10877, %v10873
    %v10950 = vpack.c.bf16 %v10882, %v10878
    %v10951 = vpack.c.bf16 %v10883, %v10879
    %v10952 = vpack.c.bf16 %v10884, %v10880
    %v10953 = vpack.c.bf16 %v10885, %v10881
    %v10954 = vpack.c.bf16 %v10890, %v10886
    %v10955 = vpack.c.bf16 %v10891, %v10887
    %v10956 = vpack.c.bf16 %v10892, %v10888
    %v10957 = vpack.c.bf16 %v10893, %v10889
    %v10958 = vld [vmem:[#allocation17] sm:$0xf]
    %v10959 = vld [vmem:[#allocation17 + $0x4] sm:$0xf]
    %v10960 = vld [vmem:[#allocation17 + $0x8] sm:$0xf]
    %v10961 = vld [vmem:[#allocation17 + $0xc] sm:$0xf]
    %v10962 = vld [vmem:[#allocation17 + $0x10] sm:$0xf]
    %v10963 = vld [vmem:[#allocation17 + $0x14] sm:$0xf]
    %v10964 = vld [vmem:[#allocation17 + $0x18] sm:$0xf]
    %v10965 = vld [vmem:[#allocation17 + $0x1c] sm:$0xf]
    %v10966 = vld [vmem:[#allocation17 + $0x20] sm:$0xf]
    %v10967 = vld [vmem:[#allocation17 + $0x24] sm:$0xf]
    %v10968 = vld [vmem:[#allocation17 + $0x28] sm:$0xf]
    %v10969 = vld [vmem:[#allocation17 + $0x2c] sm:$0xf]
    %v10970 = vld [vmem:[#allocation17 + $0x30] sm:$0xf]
    %v10971 = vld [vmem:[#allocation17 + $0x34] sm:$0xf]
    %v10972 = vld [vmem:[#allocation17 + $0x38] sm:$0xf]
    %v10973 = vld [vmem:[#allocation17 + $0x3c] sm:$0xf]
    %v10974 = vld [vmem:[#allocation17 + $0x40] sm:$0xf]
    %v10975 = vld [vmem:[#allocation17 + $0x44] sm:$0xf]
    %v10976 = vld [vmem:[#allocation17 + $0x48] sm:$0xf]
    %v10977 = vld [vmem:[#allocation17 + $0x4c] sm:$0xf]
    %v10978 = vld [vmem:[#allocation17 + $0x50] sm:$0xf]
    %v10979 = vld [vmem:[#allocation17 + $0x54] sm:$0xf]
    %v10980 = vld [vmem:[#allocation17 + $0x58] sm:$0xf]
    %v10981 = vld [vmem:[#allocation17 + $0x5c] sm:$0xf]
    %v10982 = vld [vmem:[#allocation17 + $0x60] sm:$0xf]
    %v10983 = vld [vmem:[#allocation17 + $0x64] sm:$0xf]
    %v10984 = vld [vmem:[#allocation17 + $0x68] sm:$0xf]
    %v10985 = vld [vmem:[#allocation17 + $0x6c] sm:$0xf]
    %v10986 = vld [vmem:[#allocation17 + $0x70] sm:$0xf]
    %v10987 = vld [vmem:[#allocation17 + $0x74] sm:$0xf]
    %v10988 = vld [vmem:[#allocation17 + $0x78] sm:$0xf]
    %v10989 = vld [vmem:[#allocation17 + $0x7c] sm:$0xf]
    %v10990 = vld [vmem:[#allocation17 + $0x80] sm:$0xf]
    %v10991 = vld [vmem:[#allocation17 + $0x84] sm:$0xf]
    %v10992 = vld [vmem:[#allocation17 + $0x88] sm:$0xf]
    %v10993 = vld [vmem:[#allocation17 + $0x8c] sm:$0xf]
    %v10994 = vld [vmem:[#allocation17 + $0x90] sm:$0xf]
    %v10995 = vld [vmem:[#allocation17 + $0x94] sm:$0xf]
    %v10996 = vld [vmem:[#allocation17 + $0x98] sm:$0xf]
    %v10997 = vld [vmem:[#allocation17 + $0x9c] sm:$0xf]
    %v10998 = vld [vmem:[#allocation17 + $0xa0] sm:$0xf]
    %v10999 = vld [vmem:[#allocation17 + $0xa4] sm:$0xf]
    %v11000 = vld [vmem:[#allocation17 + $0xa8] sm:$0xf]
    %v11001 = vld [vmem:[#allocation17 + $0xac] sm:$0xf]
    %v11002 = vld [vmem:[#allocation17 + $0xb0] sm:$0xf]
    %v11003 = vld [vmem:[#allocation17 + $0xb4] sm:$0xf]
    %v11004 = vld [vmem:[#allocation17 + $0xb8] sm:$0xf]
    %v11005 = vld [vmem:[#allocation17 + $0xbc] sm:$0xf]
    %v11006 = vld [vmem:[#allocation17 + $0xc0] sm:$0xf]
    %v11007 = vld [vmem:[#allocation17 + $0xc4] sm:$0xf]
    %v11008 = vld [vmem:[#allocation17 + $0xc8] sm:$0xf]
    %v11009 = vld [vmem:[#allocation17 + $0xcc] sm:$0xf]
    %v11010 = vld [vmem:[#allocation17 + $0xd0] sm:$0xf]
    %v11011 = vld [vmem:[#allocation17 + $0xd4] sm:$0xf]
    %v11012 = vld [vmem:[#allocation17 + $0xd8] sm:$0xf]
    %v11013 = vld [vmem:[#allocation17 + $0xdc] sm:$0xf]
    %v11014 = vld [vmem:[#allocation17 + $0xe0] sm:$0xf]
    %v11015 = vld [vmem:[#allocation17 + $0xe4] sm:$0xf]
    %v11016 = vld [vmem:[#allocation17 + $0xe8] sm:$0xf]
    %v11017 = vld [vmem:[#allocation17 + $0xec] sm:$0xf]
    %v11018 = vld [vmem:[#allocation17 + $0xf0] sm:$0xf]
    %v11019 = vld [vmem:[#allocation17 + $0xf4] sm:$0xf]
    %v11020 = vld [vmem:[#allocation17 + $0xf8] sm:$0xf]
    %v11021 = vld [vmem:[#allocation17 + $0xfc] sm:$0xf]
    %v11022 = vld [vmem:[%s18] sm:$0x1]
    %v11024 = vlaneseq
    %v11025 = vshrl.u32 %v11024, 7
    %v11026 = vsub.s32 0, %v11025
    %v11027 = vrot.slane %v11022, %v11026
    %v11093 = vunpack.c.l.b16 %v10958
    %v11094 = vunpack.c.l.b16 %v10959
    %v11095 = vunpack.c.l.b16 %v10960
    %v11096 = vunpack.c.l.b16 %v10961
    %v11097 = vunpack.c.l.b16 %v10962
    %v11098 = vunpack.c.l.b16 %v10963
    %v11099 = vunpack.c.l.b16 %v10964
    %v11100 = vunpack.c.l.b16 %v10965
    %v11101 = vunpack.c.l.b16 %v10966
    %v11102 = vunpack.c.l.b16 %v10967
    %v11103 = vunpack.c.l.b16 %v10968
    %v11104 = vunpack.c.l.b16 %v10969
    %v11105 = vunpack.c.l.b16 %v10970
    %v11106 = vunpack.c.l.b16 %v10971
    %v11107 = vunpack.c.l.b16 %v10972
    %v11108 = vunpack.c.l.b16 %v10973
    %v11109 = vunpack.c.l.b16 %v10974
    %v11110 = vunpack.c.l.b16 %v10975
    %v11111 = vunpack.c.l.b16 %v10976
    %v11112 = vunpack.c.l.b16 %v10977
    %v11113 = vunpack.c.l.b16 %v10978
    %v11114 = vunpack.c.l.b16 %v10979
    %v11115 = vunpack.c.l.b16 %v10980
    %v11116 = vunpack.c.l.b16 %v10981
    %v11117 = vunpack.c.l.b16 %v10982
    %v11118 = vunpack.c.l.b16 %v10983
    %v11119 = vunpack.c.l.b16 %v10984
    %v11120 = vunpack.c.l.b16 %v10985
    %v11121 = vunpack.c.l.b16 %v10986
    %v11122 = vunpack.c.l.b16 %v10987
    %v11123 = vunpack.c.l.b16 %v10988
    %v11124 = vunpack.c.l.b16 %v10989
    %v11125 = vunpack.c.l.b16 %v10990
    %v11126 = vunpack.c.l.b16 %v10991
    %v11127 = vunpack.c.l.b16 %v10992
    %v11128 = vunpack.c.l.b16 %v10993
    %v11129 = vunpack.c.l.b16 %v10994
    %v11130 = vunpack.c.l.b16 %v10995
    %v11131 = vunpack.c.l.b16 %v10996
    %v11132 = vunpack.c.l.b16 %v10997
    %v11133 = vunpack.c.l.b16 %v10998
    %v11134 = vunpack.c.l.b16 %v10999
    %v11135 = vunpack.c.l.b16 %v11000
    %v11136 = vunpack.c.l.b16 %v11001
    %v11137 = vunpack.c.l.b16 %v11002
    %v11138 = vunpack.c.l.b16 %v11003
    %v11139 = vunpack.c.l.b16 %v11004
    %v11140 = vunpack.c.l.b16 %v11005
    %v11141 = vunpack.c.l.b16 %v11006
    %v11142 = vunpack.c.l.b16 %v11007
    %v11143 = vunpack.c.l.b16 %v11008
    %v11144 = vunpack.c.l.b16 %v11009
    %v11145 = vunpack.c.l.b16 %v11010
    %v11146 = vunpack.c.l.b16 %v11011
    %v11147 = vunpack.c.l.b16 %v11012
    %v11148 = vunpack.c.l.b16 %v11013
    %v11149 = vunpack.c.l.b16 %v11014
    %v11150 = vunpack.c.l.b16 %v11015
    %v11151 = vunpack.c.l.b16 %v11016
    %v11152 = vunpack.c.l.b16 %v11017
    %v11153 = vunpack.c.l.b16 %v11018
    %v11154 = vunpack.c.l.b16 %v11019
    %v11155 = vunpack.c.l.b16 %v11020
    %v11156 = vunpack.c.l.b16 %v11021
    %v11157 = vpack.c.b16 %v11094, %v11093
    %v11158 = vpack.c.b16 %v11096, %v11095
    %v11159 = vpack.c.b16 %v11098, %v11097
    %v11160 = vpack.c.b16 %v11100, %v11099
    %v11161 = vpack.c.b16 %v11102, %v11101
    %v11162 = vpack.c.b16 %v11104, %v11103
    %v11163 = vpack.c.b16 %v11106, %v11105
    %v11164 = vpack.c.b16 %v11108, %v11107
    %v11165 = vpack.c.b16 %v11110, %v11109
    %v11166 = vpack.c.b16 %v11112, %v11111
    %v11167 = vpack.c.b16 %v11114, %v11113
    %v11168 = vpack.c.b16 %v11116, %v11115
    %v11169 = vpack.c.b16 %v11118, %v11117
    %v11170 = vpack.c.b16 %v11120, %v11119
    %v11171 = vpack.c.b16 %v11122, %v11121
    %v11172 = vpack.c.b16 %v11124, %v11123
    %v11173 = vpack.c.b16 %v11126, %v11125
    %v11174 = vpack.c.b16 %v11128, %v11127
    %v11175 = vpack.c.b16 %v11130, %v11129
    %v11176 = vpack.c.b16 %v11132, %v11131
    %v11177 = vpack.c.b16 %v11134, %v11133
    %v11178 = vpack.c.b16 %v11136, %v11135
    %v11179 = vpack.c.b16 %v11138, %v11137
    %v11180 = vpack.c.b16 %v11140, %v11139
    %v11181 = vpack.c.b16 %v11142, %v11141
    %v11182 = vpack.c.b16 %v11144, %v11143
    %v11183 = vpack.c.b16 %v11146, %v11145
    %v11184 = vpack.c.b16 %v11148, %v11147
    %v11185 = vpack.c.b16 %v11150, %v11149
    %v11186 = vpack.c.b16 %v11152, %v11151
    %v11187 = vpack.c.b16 %v11154, %v11153
    %v11188 = vpack.c.b16 %v11156, %v11155
    %11221 = vmatprep.subr.bf16.mxu0 0
    %11222 = vmatpush1.bf16.msra.mxu0 %v11157
    %11223 = vmatprep.subr.bf16.mxu0 0
    %11224 = vmatpush1.bf16.msra.mxu0 %v11158
    %11225 = vmatprep.subr.bf16.mxu0 0
    %11226 = vmatpush1.bf16.msra.mxu0 %v11159
    %11227 = vmatprep.subr.bf16.mxu0 0
    %11228 = vmatpush1.bf16.msra.mxu0 %v11160
    %11229 = vmatprep.subr.bf16.mxu0 0
    %11230 = vmatpush1.bf16.msra.mxu0 %v11161
    %11231 = vmatprep.subr.bf16.mxu0 0
    %11232 = vmatpush1.bf16.msra.mxu0 %v11162
    %11233 = vmatprep.subr.bf16.mxu0 0
    %11234 = vmatpush1.bf16.msra.mxu0 %v11163
    %11235 = vmatprep.subr.bf16.mxu0 0
    %11236 = vmatpush1.bf16.msra.mxu0 %v11164
    %11237 = vmatprep.subr.bf16.mxu0 0
    %11238 = vmatpush1.bf16.msra.mxu0 %v11165
    %11239 = vmatprep.subr.bf16.mxu0 0
    %11240 = vmatpush1.bf16.msra.mxu0 %v11166
    %11241 = vmatprep.subr.bf16.mxu0 0
    %11242 = vmatpush1.bf16.msra.mxu0 %v11167
    %11243 = vmatprep.subr.bf16.mxu0 0
    %11244 = vmatpush1.bf16.msra.mxu0 %v11168
    %11245 = vmatprep.subr.bf16.mxu0 0
    %11246 = vmatpush1.bf16.msra.mxu0 %v11169
    %11247 = vmatprep.subr.bf16.mxu0 0
    %11248 = vmatpush1.bf16.msra.mxu0 %v11170
    %11249 = vmatprep.subr.bf16.mxu0 0
    %11250 = vmatpush1.bf16.msra.mxu0 %v11171
    %11251 = vmatprep.subr.bf16.mxu0 0
    %11252 = vmatpush1.bf16.msra.mxu0 %v11172
    %11253 = vmatprep.mubr.bf16.mxu0 %v10895
    %11254 = vmatmul.mubr.bf16.gmra.mrb[0].mxu0 %v10894
    %v11255 = vpop.f32.mrb[0].mxu0
    %v11256 = vadd.f32 %v11027, %v11255
    %v11257 = vpop.f32.mrb[0].mxu0
    %v11258 = vpop.f32.mrb[0].mxu0
    %v11259 = vadd.f32 %v11027, %v11258
    %v11260 = vpop.f32.mrb[0].mxu0
    %11261 = vmatprep.mubr.bf16.mxu0 %v10899
    %11262 = vmatmul.mubr.bf16.gmra.mrb[0].mxu0 %v10898
    %v11263 = vpop.f32.mrb[0].mxu0
    %v11264 = vadd.f32 %v11027, %v11263
    %v11265 = vpop.f32.mrb[0].mxu0
    %v11266 = vpop.f32.mrb[0].mxu0
    %v11267 = vadd.f32 %v11027, %v11266
    %v11268 = vpop.f32.mrb[0].mxu0
    %11269 = vmatprep.mubr.bf16.mxu0 %v10903
    %11270 = vmatmul.mubr.bf16.gmra.mrb[0].mxu0 %v10902
    %v11271 = vpop.f32.mrb[0].mxu0
    %v11272 = vadd.f32 %v11027, %v11271
    %v11273 = vpop.f32.mrb[0].mxu0
    %v11274 = vpop.f32.mrb[0].mxu0
    %v11275 = vadd.f32 %v11027, %v11274
    %v11276 = vpop.f32.mrb[0].mxu0
    %11277 = vmatprep.mubr.bf16.mxu0 %v10907
    %11278 = vmatmul.mubr.bf16.gmra.mrb[0].mxu0 %v10906
    %v11279 = vpop.f32.mrb[0].mxu0
    %v11280 = vadd.f32 %v11027, %v11279
    %v11281 = vpop.f32.mrb[0].mxu0
    %v11282 = vpop.f32.mrb[0].mxu0
    %v11283 = vadd.f32 %v11027, %v11282
    %v11284 = vpop.f32.mrb[0].mxu0
    %11285 = vmatprep.mubr.bf16.mxu0 %v10911
    %11286 = vmatmul.mubr.bf16.gmra.mrb[0].mxu0 %v10910
    %v11287 = vpop.f32.mrb[0].mxu0
    %v11288 = vadd.f32 %v11027, %v11287
    %v11289 = vpop.f32.mrb[0].mxu0
    %v11290 = vpop.f32.mrb[0].mxu0
    %v11291 = vadd.f32 %v11027, %v11290
    %v11292 = vpop.f32.mrb[0].mxu0
    %11293 = vmatprep.mubr.bf16.mxu0 %v10915
    %11294 = vmatmul.mubr.bf16.gmra.mrb[0].mxu0 %v10914
    %v11295 = vpop.f32.mrb[0].mxu0
    %v11296 = vadd.f32 %v11027, %v11295
    %v11297 = vpop.f32.mrb[0].mxu0
    %v11298 = vpop.f32.mrb[0].mxu0
    %v11299 = vadd.f32 %v11027, %v11298
    %v11300 = vpop.f32.mrb[0].mxu0
    %11301 = vmatprep.mubr.bf16.mxu0 %v10919
    %11302 = vmatmul.mubr.bf16.gmra.mrb[0].mxu0 %v10918
    %v11303 = vpop.f32.mrb[0].mxu0
    %v11304 = vadd.f32 %v11027, %v11303
    %v11305 = vpop.f32.mrb[0].mxu0
    %v11306 = vpop.f32.mrb[0].mxu0
    %v11307 = vadd.f32 %v11027, %v11306
    %v11308 = vpop.f32.mrb[0].mxu0
    %11309 = vmatprep.mubr.bf16.mxu0 %v10923
    %11310 = vmatmul.mubr.bf16.gmra.mrb[0].mxu0 %v10922
    %v11311 = vpop.f32.mrb[0].mxu0
    %v11312 = vadd.f32 %v11027, %v11311
    %v11313 = vpop.f32.mrb[0].mxu0
    %v11314 = vpop.f32.mrb[0].mxu0
    %v11315 = vadd.f32 %v11027, %v11314
    %v11316 = vpop.f32.mrb[0].mxu0
    %11317 = vmatprep.mubr.bf16.mxu0 %v10927
    %11318 = vmatmul.mubr.bf16.gmra.mrb[0].mxu0 %v10926
    %v11319 = vpop.f32.mrb[0].mxu0
    %v11320 = vadd.f32 %v11027, %v11319
    %v11321 = vpop.f32.mrb[0].mxu0
    %v11322 = vpop.f32.mrb[0].mxu0
    %v11323 = vadd.f32 %v11027, %v11322
    %v11324 = vpop.f32.mrb[0].mxu0
    %11325 = vmatprep.mubr.bf16.mxu0 %v10931
    %11326 = vmatmul.mubr.bf16.gmra.mrb[0].mxu0 %v10930
    %v11327 = vpop.f32.mrb[0].mxu0
    %v11328 = vadd.f32 %v11027, %v11327
    %v11329 = vpop.f32.mrb[0].mxu0
    %v11330 = vpop.f32.mrb[0].mxu0
    %v11331 = vadd.f32 %v11027, %v11330
    %v11332 = vpop.f32.mrb[0].mxu0
    %11333 = vmatprep.mubr.bf16.mxu0 %v10935
    %11334 = vmatmul.mubr.bf16.gmra.mrb[0].mxu0 %v10934
    %v11335 = vpop.f32.mrb[0].mxu0
    %v11336 = vadd.f32 %v11027, %v11335
    %v11337 = vpop.f32.mrb[0].mxu0
    %v11338 = vpop.f32.mrb[0].mxu0
    %v11339 = vadd.f32 %v11027, %v11338
    %v11340 = vpop.f32.mrb[0].mxu0
    %11341 = vmatprep.mubr.bf16.mxu0 %v10939
    %11342 = vmatmul.mubr.bf16.gmra.mrb[0].mxu0 %v10938
    %v11343 = vpop.f32.mrb[0].mxu0
    %v11344 = vadd.f32 %v11027, %v11343
    %v11345 = vpop.f32.mrb[0].mxu0
    %v11346 = vpop.f32.mrb[0].mxu0
    %v11347 = vadd.f32 %v11027, %v11346
    %v11348 = vpop.f32.mrb[0].mxu0
    %11349 = vmatprep.mubr.bf16.mxu0 %v10943
    %11350 = vmatmul.mubr.bf16.gmra.mrb[0].mxu0 %v10942
    %v11351 = vpop.f32.mrb[0].mxu0
    %v11352 = vadd.f32 %v11027, %v11351
    %v11353 = vpop.f32.mrb[0].mxu0
    %v11354 = vpop.f32.mrb[0].mxu0
    %v11355 = vadd.f32 %v11027, %v11354
    %v11356 = vpop.f32.mrb[0].mxu0
    %11357 = vmatprep.mubr.bf16.mxu0 %v10947
    %11358 = vmatmul.mubr.bf16.gmra.mrb[0].mxu0 %v10946
    %v11359 = vpop.f32.mrb[0].mxu0
    %v11360 = vadd.f32 %v11027, %v11359
    %v11361 = vpop.f32.mrb[0].mxu0
    %v11362 = vpop.f32.mrb[0].mxu0
    %v11363 = vadd.f32 %v11027, %v11362
    %v11364 = vpop.f32.mrb[0].mxu0
    %11365 = vmatprep.mubr.bf16.mxu0 %v10951
    %11366 = vmatmul.mubr.bf16.gmra.mrb[0].mxu0 %v10950
    %v11367 = vpop.f32.mrb[0].mxu0
    %v11368 = vadd.f32 %v11027, %v11367
    %v11369 = vpop.f32.mrb[0].mxu0
    %v11370 = vpop.f32.mrb[0].mxu0
    %v11371 = vadd.f32 %v11027, %v11370
    %v11372 = vpop.f32.mrb[0].mxu0
    %11373 = vmatprep.mubr.bf16.mxu0 %v10955
    %11374 = vmatmul.mubr.bf16.gmra.mrb[0].mxu0 %v10954
    %v11375 = vpop.f32.mrb[0].mxu0
    %v11376 = vadd.f32 %v11027, %v11375
    %v11377 = vpop.f32.mrb[0].mxu0
    %v11378 = vpop.f32.mrb[0].mxu0
    %v11379 = vadd.f32 %v11027, %v11378
    %v11380 = vpop.f32.mrb[0].mxu0
    %11381 = vdwg.mxu0
    %11382 = vmatprep.subr.bf16.mxu0 0
    %11383 = vmatpush1.bf16.msra.mxu0 %v11173
    %11384 = vmatprep.subr.bf16.mxu0 0
    %11385 = vmatpush1.bf16.msra.mxu0 %v11174
    %11386 = vmatprep.subr.bf16.mxu0 0
    %11387 = vmatpush1.bf16.msra.mxu0 %v11175
    %11388 = vmatprep.subr.bf16.mxu0 0
    %11389 = vmatpush1.bf16.msra.mxu0 %v11176
    %11390 = vmatprep.subr.bf16.mxu0 0
    %11391 = vmatpush1.bf16.msra.mxu0 %v11177
    %11392 = vmatprep.subr.bf16.mxu0 0
    %11393 = vmatpush1.bf16.msra.mxu0 %v11178
    %11394 = vmatprep.subr.bf16.mxu0 0
    %11395 = vmatpush1.bf16.msra.mxu0 %v11179
    %11396 = vmatprep.subr.bf16.mxu0 0
    %11397 = vmatpush1.bf16.msra.mxu0 %v11180
    %11398 = vmatprep.subr.bf16.mxu0 0
    %11399 = vmatpush1.bf16.msra.mxu0 %v11181
    %11400 = vmatprep.subr.bf16.mxu0 0
    %11401 = vmatpush1.bf16.msra.mxu0 %v11182
    %11402 = vmatprep.subr.bf16.mxu0 0
    %11403 = vmatpush1.bf16.msra.mxu0 %v11183
    %11404 = vmatprep.subr.bf16.mxu0 0
    %11405 = vmatpush1.bf16.msra.mxu0 %v11184
    %11406 = vmatprep.subr.bf16.mxu0 0
    %11407 = vmatpush1.bf16.msra.mxu0 %v11185
    %11408 = vmatprep.subr.bf16.mxu0 0
    %11409 = vmatpush1.bf16.msra.mxu0 %v11186
    %11410 = vmatprep.subr.bf16.mxu0 0
    %11411 = vmatpush1.bf16.msra.mxu0 %v11187
    %11412 = vmatprep.subr.bf16.mxu0 0
    %11413 = vmatpush1.bf16.msra.mxu0 %v11188
    %11414 = vmatprep.mubr.bf16.mxu0 %v10897
    %11415 = vmatmul.mubr.bf16.gmra.mrb[0].mxu0 %v10896
    %v11416 = vpop.f32.mrb[0].mxu0
    %v11417 = vadd.f32 %v11256, %v11416
    %v11418 = vpop.f32.mrb[0].mxu0
    %v11419 = vpop.f32.mrb[0].mxu0
    %v11420 = vadd.f32 %v11259, %v11419
    %v11421 = vpop.f32.mrb[0].mxu0
    %11422 = vmatprep.mubr.bf16.mxu0 %v10901
    %11423 = vmatmul.mubr.bf16.gmra.mrb[0].mxu0 %v10900
    %v11424 = vpop.f32.mrb[0].mxu0
    %v11425 = vadd.f32 %v11264, %v11424
    %v11426 = vpop.f32.mrb[0].mxu0
    %v11427 = vpop.f32.mrb[0].mxu0
    %v11428 = vadd.f32 %v11267, %v11427
    %v11429 = vpop.f32.mrb[0].mxu0
    %11430 = vmatprep.mubr.bf16.mxu0 %v10905
    %11431 = vmatmul.mubr.bf16.gmra.mrb[0].mxu0 %v10904
    %v11432 = vpop.f32.mrb[0].mxu0
    %v11433 = vadd.f32 %v11272, %v11432
    %v11434 = vpop.f32.mrb[0].mxu0
    %v11435 = vpop.f32.mrb[0].mxu0
    %v11436 = vadd.f32 %v11275, %v11435
    %v11437 = vpop.f32.mrb[0].mxu0
    %11438 = vmatprep.mubr.bf16.mxu0 %v10909
    %11439 = vmatmul.mubr.bf16.gmra.mrb[0].mxu0 %v10908
    %v11440 = vpop.f32.mrb[0].mxu0
    %v11441 = vadd.f32 %v11280, %v11440
    %v11442 = vpop.f32.mrb[0].mxu0
    %v11443 = vpop.f32.mrb[0].mxu0
    %v11444 = vadd.f32 %v11283, %v11443
    %v11445 = vpop.f32.mrb[0].mxu0
    %11446 = vmatprep.mubr.bf16.mxu0 %v10913
    %11447 = vmatmul.mubr.bf16.gmra.mrb[0].mxu0 %v10912
    %v11448 = vpop.f32.mrb[0].mxu0
    %v11449 = vadd.f32 %v11288, %v11448
    %v11450 = vpop.f32.mrb[0].mxu0
    %v11451 = vpop.f32.mrb[0].mxu0
    %v11452 = vadd.f32 %v11291, %v11451
    %v11453 = vpop.f32.mrb[0].mxu0
    %11454 = vmatprep.mubr.bf16.mxu0 %v10917
    %11455 = vmatmul.mubr.bf16.gmra.mrb[0].mxu0 %v10916
    %v11456 = vpop.f32.mrb[0].mxu0
    %v11457 = vadd.f32 %v11296, %v11456
    %v11458 = vpop.f32.mrb[0].mxu0
    %v11459 = vpop.f32.mrb[0].mxu0
    %v11460 = vadd.f32 %v11299, %v11459
    %v11461 = vpop.f32.mrb[0].mxu0
    %11462 = vmatprep.mubr.bf16.mxu0 %v10921
    %11463 = vmatmul.mubr.bf16.gmra.mrb[0].mxu0 %v10920
    %v11464 = vpop.f32.mrb[0].mxu0
    %v11465 = vadd.f32 %v11304, %v11464
    %v11466 = vpop.f32.mrb[0].mxu0
    %v11467 = vpop.f32.mrb[0].mxu0
    %v11468 = vadd.f32 %v11307, %v11467
    %v11469 = vpop.f32.mrb[0].mxu0
    %11470 = vmatprep.mubr.bf16.mxu0 %v10925
    %11471 = vmatmul.mubr.bf16.gmra.mrb[0].mxu0 %v10924
    %v11472 = vpop.f32.mrb[0].mxu0
    %v11473 = vadd.f32 %v11312, %v11472
    %v11474 = vpop.f32.mrb[0].mxu0
    %v11475 = vpop.f32.mrb[0].mxu0
    %v11476 = vadd.f32 %v11315, %v11475
    %v11477 = vpop.f32.mrb[0].mxu0
    %11478 = vmatprep.mubr.bf16.mxu0 %v10929
    %11479 = vmatmul.mubr.bf16.gmra.mrb[0].mxu0 %v10928
    %v11480 = vpop.f32.mrb[0].mxu0
    %v11481 = vadd.f32 %v11320, %v11480
    %v11482 = vpop.f32.mrb[0].mxu0
    %v11483 = vpop.f32.mrb[0].mxu0
    %v11484 = vadd.f32 %v11323, %v11483
    %v11485 = vpop.f32.mrb[0].mxu0
    %11486 = vmatprep.mubr.bf16.mxu0 %v10933
    %11487 = vmatmul.mubr.bf16.gmra.mrb[0].mxu0 %v10932
    %v11488 = vpop.f32.mrb[0].mxu0
    %v11489 = vadd.f32 %v11328, %v11488
    %v11490 = vpop.f32.mrb[0].mxu0
    %v11491 = vpop.f32.mrb[0].mxu0
    %v11492 = vadd.f32 %v11331, %v11491
    %v11493 = vpop.f32.mrb[0].mxu0
    %11494 = vmatprep.mubr.bf16.mxu0 %v10937
    %11495 = vmatmul.mubr.bf16.gmra.mrb[0].mxu0 %v10936
    %v11496 = vpop.f32.mrb[0].mxu0
    %v11497 = vadd.f32 %v11336, %v11496
    %v11498 = vpop.f32.mrb[0].mxu0
    %v11499 = vpop.f32.mrb[0].mxu0
    %v11500 = vadd.f32 %v11339, %v11499
    %v11501 = vpop.f32.mrb[0].mxu0
    %11502 = vmatprep.mubr.bf16.mxu0 %v10941
    %11503 = vmatmul.mubr.bf16.gmra.mrb[0].mxu0 %v10940
    %v11504 = vpop.f32.mrb[0].mxu0
    %v11505 = vadd.f32 %v11344, %v11504
    %v11506 = vpop.f32.mrb[0].mxu0
    %v11507 = vpop.f32.mrb[0].mxu0
    %v11508 = vadd.f32 %v11347, %v11507
    %v11509 = vpop.f32.mrb[0].mxu0
    %11510 = vmatprep.mubr.bf16.mxu0 %v10945
    %11511 = vmatmul.mubr.bf16.gmra.mrb[0].mxu0 %v10944
    %v11512 = vpop.f32.mrb[0].mxu0
    %v11513 = vadd.f32 %v11352, %v11512
    %v11514 = vpop.f32.mrb[0].mxu0
    %v11515 = vpop.f32.mrb[0].mxu0
    %v11516 = vadd.f32 %v11355, %v11515
    %v11517 = vpop.f32.mrb[0].mxu0
    %11518 = vmatprep.mubr.bf16.mxu0 %v10949
    %11519 = vmatmul.mubr.bf16.gmra.mrb[0].mxu0 %v10948
    %v11520 = vpop.f32.mrb[0].mxu0
    %v11521 = vadd.f32 %v11360, %v11520
    %v11522 = vpop.f32.mrb[0].mxu0
    %v11523 = vpop.f32.mrb[0].mxu0
    %v11524 = vadd.f32 %v11363, %v11523
    %v11525 = vpop.f32.mrb[0].mxu0
    %11526 = vmatprep.mubr.bf16.mxu0 %v10953
    %11527 = vmatmul.mubr.bf16.gmra.mrb[0].mxu0 %v10952
    %v11528 = vpop.f32.mrb[0].mxu0
    %v11529 = vadd.f32 %v11368, %v11528
    %v11530 = vpop.f32.mrb[0].mxu0
    %v11531 = vpop.f32.mrb[0].mxu0
    %v11532 = vadd.f32 %v11371, %v11531
    %v11533 = vpop.f32.mrb[0].mxu0
    %11534 = vmatprep.mubr.bf16.mxu0 %v10957
    %11535 = vmatmul.mubr.bf16.gmra.mrb[0].mxu0 %v10956
    %v11536 = vpop.f32.mrb[0].mxu0
    %v11537 = vadd.f32 %v11376, %v11536
    %v11538 = vpop.f32.mrb[0].mxu0
    %v11539 = vpop.f32.mrb[0].mxu0
    %v11540 = vadd.f32 %v11379, %v11539
    %v11541 = vpop.f32.mrb[0].mxu0
    %11542 = vdwg.mxu0
    %v11543 = vadd.f32 %v9366, %v11417
    %v11544 = vadd.f32 %v9367, %v11420
    %v11545 = vadd.f32 %v9368, %v11425
    %v11546 = vadd.f32 %v9369, %v11428
    %v11547 = vadd.f32 %v9370, %v11433
    %v11548 = vadd.f32 %v9371, %v11436
    %v11549 = vadd.f32 %v9372, %v11441
    %v11550 = vadd.f32 %v9373, %v11444
    %v11551 = vadd.f32 %v9374, %v11449
    %v11552 = vadd.f32 %v9375, %v11452
    %v11553 = vadd.f32 %v9376, %v11457
    %v11554 = vadd.f32 %v9377, %v11460
    %v11555 = vadd.f32 %v9378, %v11465
    %v11556 = vadd.f32 %v9379, %v11468
    %v11557 = vadd.f32 %v9380, %v11473
    %v11558 = vadd.f32 %v9381, %v11476
    %v11559 = vadd.f32 %v9382, %v11481
    %v11560 = vadd.f32 %v9383, %v11484
    %v11561 = vadd.f32 %v9384, %v11489
    %v11562 = vadd.f32 %v9385, %v11492
    %v11563 = vadd.f32 %v9386, %v11497
    %v11564 = vadd.f32 %v9387, %v11500
    %v11565 = vadd.f32 %v9388, %v11505
    %v11566 = vadd.f32 %v9389, %v11508
    %v11567 = vadd.f32 %v9390, %v11513
    %v11568 = vadd.f32 %v9391, %v11516
    %v11569 = vadd.f32 %v9392, %v11521
    %v11570 = vadd.f32 %v9393, %v11524
    %v11571 = vadd.f32 %v9394, %v11529
    %v11572 = vadd.f32 %v9395, %v11532
    %v11573 = vadd.f32 %v9396, %v11537
    %v11574 = vadd.f32 %v9397, %v11540
    %11575 = vst [vmem:[#allocation19] sm:$0xff] %v11543
    %11576 = vst [vmem:[#allocation19 + $0x8] sm:$0xff] %v11544
    %11577 = vst [vmem:[#allocation19 + $0x10] sm:$0xff] %v11545
    %11578 = vst [vmem:[#allocation19 + $0x18] sm:$0xff] %v11546
    %11579 = vst [vmem:[#allocation19 + $0x20] sm:$0xff] %v11547
    %11580 = vst [vmem:[#allocation19 + $0x28] sm:$0xff] %v11548
    %11581 = vst [vmem:[#allocation19 + $0x30] sm:$0xff] %v11549
    %11582 = vst [vmem:[#allocation19 + $0x38] sm:$0xff] %v11550
    %11583 = vst [vmem:[#allocation19 + $0x40] sm:$0xff] %v11551
    %11584 = vst [vmem:[#allocation19 + $0x48] sm:$0xff] %v11552
    %11585 = vst [vmem:[#allocation19 + $0x50] sm:$0xff] %v11553
    %11586 = vst [vmem:[#allocation19 + $0x58] sm:$0xff] %v11554
    %11587 = vst [vmem:[#allocation19 + $0x60] sm:$0xff] %v11555
    %11588 = vst [vmem:[#allocation19 + $0x68] sm:$0xff] %v11556
    %11589 = vst [vmem:[#allocation19 + $0x70] sm:$0xff] %v11557
    %11590 = vst [vmem:[#allocation19 + $0x78] sm:$0xff] %v11558
    %11591 = vst [vmem:[#allocation19 + $0x80] sm:$0xff] %v11559
    %11592 = vst [vmem:[#allocation19 + $0x88] sm:$0xff] %v11560
    %11593 = vst [vmem:[#allocation19 + $0x90] sm:$0xff] %v11561
    %11594 = vst [vmem:[#allocation19 + $0x98] sm:$0xff] %v11562
    %11595 = vst [vmem:[#allocation19 + $0xa0] sm:$0xff] %v11563
    %11596 = vst [vmem:[#allocation19 + $0xa8] sm:$0xff] %v11564
    %11597 = vst [vmem:[#allocation19 + $0xb0] sm:$0xff] %v11565
    %11598 = vst [vmem:[#allocation19 + $0xb8] sm:$0xff] %v11566
    %11599 = vst [vmem:[#allocation19 + $0xc0] sm:$0xff] %v11567
    %11600 = vst [vmem:[#allocation19 + $0xc8] sm:$0xff] %v11568
    %11601 = vst [vmem:[#allocation19 + $0xd0] sm:$0xff] %v11569
    %11602 = vst [vmem:[#allocation19 + $0xd8] sm:$0xff] %v11570
    %11603 = vst [vmem:[#allocation19 + $0xe0] sm:$0xff] %v11571
    %11604 = vst [vmem:[#allocation19 + $0xe8] sm:$0xff] %v11572
    %11605 = vst [vmem:[#allocation19 + $0xf0] sm:$0xff] %v11573
    %11606 = vst [vmem:[#allocation19 + $0xf8] sm:$0xff] %v11574
    // Predicated region
    $region118: #{tpu_custom_call.1} parent=1 // pred_check
      _
    $region119: #{tpu_custom_call.1} parent=1 // pred_check_branch
      %11608 = sbr.rel (0) target = $region121
    $region120: #{tpu_custom_call.1} parent=1 // pred_region
      %s11610 = ssub.s32 4096, 4096
      %11611 = vsyncadd [#allocation4], %s11610
      %s11612 = sshll.u32 [#allocation19], 4
      %s11613 = int_to_ptr.vmem [resolvable:$true] %s11612
      %11618 = dma.vmem_to_hbm [thread:$0]  %s11613, 4096, %s19, [#allocation4], 128, 128, 8
    $region121: #{tpu_custom_call.1} parent=1 // pred_fallthru
      _
    // Predicated region
    $region122: #{tpu_custom_call.1} parent=1 // pred_check
      _
    $region123: #{tpu_custom_call.1} parent=1 // pred_check_branch
      %11620 = sbr.rel (0) target = $region125
    $region124: #{tpu_custom_call.1} parent=1 // pred_region
      %11621 = dma.done [#allocation4], 4096
    $region125: #{tpu_custom_call.1} parent=1 // pred_fallthru
      _
    %11622 = vsyncpa [#allocation3], 1
    %11623 = vsyncpa [#allocation6], 1
    %11624 = vsyncpa [#allocation9], 1
    %11625 = vsyncpa [#allocation12], 1
    %11626 = vsyncpa [#allocation15], 1
    %11627 = vsyncpa [#allocation18], 1
    %11628 = vsyncpa [#allocation4], 1

</llo_original>
